<compile_context>
chip_gen: v5e
topology: v5e:2x2
jax: 0.10.0
libtpu: 0.0.40
codegen_flags: <defaults>
</compile_context>

<pallas_src>
import functools

import numpy as np

import jax
import jax.numpy as jnp
from jax.experimental import pallas as pl
from jax.experimental.pallas import tpu as pltpu

NEG_SLOPE = 0.01   # nn.LeakyReLU default
BN_EPS = 1e-5      # nn.BatchNorm2d default


# ------------------------------ geometry ------------------------------

def _round_up(x, m):
    return ((x + m - 1) // m) * m


def _geometry(n_batch, size_in):
    """Flat padded-grid bookkeeping.

    Grid 1 (input/conv1/conv2) is size_in x size_in per image; grid 2
    (pooled2/conv3) is P2 x P2; grid 3 (pooled3) is P3 x P3.  Row counts are
    padded so every shifted read stays inside its scratch buffer; garbage only
    ever lands in (and is only ever read from) invalid border rows.
    """
    S1 = size_in
    O2 = S1 - 4
    assert S1 >= 8 and O2 > 0 and O2 % 2 == 0, "needs (size_in - 4) even/positive"
    P2 = O2 // 2
    S2 = P2
    O3 = P2 - 2
    assert O3 > 0 and O3 % 2 == 0, "needs ((size_in-4)//2 - 2) even/positive"
    P3 = O3 // 2
    R1 = n_batch * S1 * S1                    # grid-1 rows (valid region inside)
    R2 = n_batch * P2 * P2                    # grid-2 rows
    A2R = _round_up(R1 + S1 + 2, 8)           # conv2 output rows (pool reads +S1+1)
    A1R = _round_up(A2R + 2 * S1 + 2, 8)      # conv1 output rows (conv2 reads +2*S1+2)
    C3R = _round_up(R2 + S2 + 2, 8)           # conv3 output rows
    R2p = _round_up(C3R + 2 * S2 + 2, 8)      # pooled2 rows (conv3 reads +2*S2+2)
    return dict(S1=S1, S2=S2, P2=P2, P3=P3, R1=R1, R2=R2,
                A1R=A1R, A2R=A2R, C3R=C3R, R2p=R2p)


def _selectors(n_batch, g):
    """Constant 0/1 matrices that do the stride-2 pool subsampling / FC gather."""
    S1, S2, P2, P3 = g["S1"], g["S2"], g["P2"], g["P3"]
    R1, R2, R2p = g["R1"], g["R2"], g["R2p"]
    sel2 = np.zeros((R2p, R1), np.float32)
    for n in range(n_batch):
        for ii in range(P2):
            for jj in range(P2):
                q = n * P2 * P2 + ii * S2 + jj
                r = n * S1 * S1 + (2 * ii) * S1 + (2 * jj)
                sel2[q, r] = 1.0
    sel3 = np.zeros((P3 * P3, n_batch, R2), np.float32)
    for p in range(P3 * P3):
        pi, pj = divmod(p, P3)
        for n in range(n_batch):
            q = n * P2 * P2 + (2 * pi) * S2 + (2 * pj)
            sel3[p, n, q] = 1.0
    return jnp.asarray(sel2, jnp.bfloat16), jnp.asarray(sel3, jnp.bfloat16)


# ------------------------------ the kernel ------------------------------

def _make_kernel(g, n_batch, c2, c3, f1):
    S1, S2 = g["S1"], g["S2"]
    R1, R2 = g["R1"], g["R2"]
    A2R, C3R = g["A2R"], g["C3R"]
    P3 = g["P3"]
    bf16, f32 = jnp.bfloat16, jnp.float32

    def leaky(v):
        return jnp.where(v >= 0, v, NEG_SLOPE * v)

    def kernel(p1_ref, w1_ref, b1_ref, w2_ref, b2_ref, w3_ref, b3_ref,
               sel2_ref, sel3_ref, wf1_ref, bf1_ref, wf2_ref, bf2_ref,
               wf3_ref, bf3_ref, out_ref, act1, act2, pool2, act3):
        # ---- conv1 + LeakyReLU (single K = 9*Cin matmul on tiny patch block) ----
        y1 = jnp.dot(p1_ref[...], w1_ref[...], preferred_element_type=f32)
        act1[...] = leaky(y1 + b1_ref[...])

        # ---- conv2 (BN scale folded into weights) as 9 shifted matmuls ----
        acc = jnp.zeros((A2R, c2), f32)
        for s in range(9):
            di, dj = divmod(s, 3)
            a = act1[pl.ds(di * S1 + dj, A2R), :].astype(bf16)
            acc = acc + jnp.dot(a, w2_ref[s], preferred_element_type=f32)
        act2[...] = leaky(acc + b2_ref[...])

        # ---- maxpool 2x2/2: max of 4 shifted views + 0/1 subsample matmul ----
        hv = jnp.maximum(
            jnp.maximum(act2[pl.ds(0, R1), :], act2[pl.ds(1, R1), :]),
            jnp.maximum(act2[pl.ds(S1, R1), :], act2[pl.ds(S1 + 1, R1), :]))
        pool2[...] = jnp.dot(sel2_ref[...], hv.astype(bf16),
                             preferred_element_type=f32)

        # ---- conv3 (BN scale folded) as 9 shifted matmuls ----
        acc = jnp.zeros((C3R, c3), f32)
        for s in range(9):
            di, dj = divmod(s, 3)
            a = pool2[pl.ds(di * S2 + dj, C3R), :].astype(bf16)
            acc = acc + jnp.dot(a, w3_ref[s], preferred_element_type=f32)
        act3[...] = leaky(acc + b3_ref[...])

        # ---- second maxpool + NCHW-flatten gather + fc1, all fused ----
        hv3 = jnp.maximum(
            jnp.maximum(act3[pl.ds(0, R2), :], act3[pl.ds(1, R2), :]),
            jnp.maximum(act3[pl.ds(S2, R2), :], act3[pl.ds(S2 + 1, R2), :]))
        hv3 = hv3.astype(bf16)
        # TODO(synk): nn.Dropout(0.5) is implemented as eval-mode identity (no RNG mask).
        acc = jnp.zeros((n_batch, f1), f32)
        for p in range(P3 * P3):
            z = jnp.dot(sel3_ref[p], hv3, preferred_element_type=f32)      # (N, c3)
            acc = acc + jnp.dot(z.astype(bf16), wf1_ref[p],
                                preferred_element_type=f32)
        h = leaky(acc + bf1_ref[...])

        # ---- fc2 + LeakyReLU, fc3 (lane-padded output) ----
        h = leaky(jnp.dot(h.astype(bf16), wf2_ref[...],
                          preferred_element_type=f32) + bf2_ref[...])
        out_ref[...] = jnp.dot(h.astype(bf16), wf3_ref[...],
                               preferred_element_type=f32) + bf3_ref[...]

    return kernel


# --------------------------- params & wrapper ---------------------------

def init_params(key, size_in=16, channels_in=1, classes_out=62):
    i = ((size_in - 4) // 2 - 2) // 2
    fc_in = 128 * i * i
    keys = jax.random.split(key, 12)

    def w(k, shape, fan_in):
        return jax.random.normal(k, shape, jnp.float32) / jnp.sqrt(float(fan_in))

    return {
        "conv1_w": w(keys[0], (64, channels_in, 3, 3), channels_in * 9),
        "conv1_b": w(keys[1], (64,), channels_in * 9),
        "conv2_w": w(keys[2], (64, 64, 3, 3), 64 * 9),
        "conv2_b": w(keys[3], (64,), 64 * 9),
        "conv3_w": w(keys[4], (128, 64, 3, 3), 64 * 9),
        "conv3_b": w(keys[5], (128,), 64 * 9),
        "fc1_w": w(keys[6], (256, fc_in), fc_in),
        "fc1_b": w(keys[7], (256,), fc_in),
        "fc2_w": w(keys[8], (128, 256), 256),
        "fc2_b": w(keys[9], (128,), 256),
        "fc3_w": w(keys[10], (classes_out, 128), 128),
        "fc3_b": w(keys[11], (classes_out,), 128),
        # BatchNorm parameters / running stats (eval mode)
        "bn2_gamma": jnp.ones((64,), jnp.float32),
        "bn2_beta": jnp.zeros((64,), jnp.float32),
        "bn2_mean": jnp.zeros((64,), jnp.float32),
        "bn2_var": jnp.ones((64,), jnp.float32),
        "bn3_gamma": jnp.ones((128,), jnp.float32),
        "bn3_beta": jnp.zeros((128,), jnp.float32),
        "bn3_mean": jnp.zeros((128,), jnp.float32),
        "bn3_var": jnp.ones((128,), jnp.float32),
    }


def prepare_params(params, classes_out):
    """One-time weight prep: BN fold, bf16 cast, transposes, flatten permutation."""
    bf16, f32 = jnp.bfloat16, jnp.float32

    def conv_mat(w_pt, scale):               # (O,C,3,3) -> (9, C, O), scale folded
        o, c, _, _ = w_pt.shape
        w = jnp.transpose(w_pt, (2, 3, 1, 0)).reshape(9, c, o)
        return (w * scale.reshape(1, 1, o)).astype(bf16)

    s2 = params["bn2_gamma"] / jnp.sqrt(params["bn2_var"] + BN_EPS)
    s3 = params["bn3_gamma"] / jnp.sqrt(params["bn3_var"] + BN_EPS)

    cin = params["conv1_w"].shape[1]
    w1 = jnp.transpose(params["conv1_w"], (2, 3, 1, 0)).reshape(9 * cin, 64)
    fc_in = params["fc1_w"].shape[1]
    p3 = int(round((fc_in // 128) ** 0.5))
    npad = _round_up(classes_out, 128)

    return {
        "w1": w1.astype(bf16),
        "b1": params["conv1_b"].reshape(1, -1).astype(f32),
        "w2": conv_mat(params["conv2_w"], s2),
        "b2": (params["bn2_beta"] + (params["conv2_b"] - params["bn2_mean"]) * s2
               ).reshape(1, -1).astype(f32),
        "w3": conv_mat(params["conv3_w"], s3),
        "b3": (params["bn3_beta"] + (params["conv3_b"] - params["bn3_mean"]) * s3
               ).reshape(1, -1).astype(f32),
        # fc1: fold NCHW flatten order (index = c*P3^2 + p) into the weight layout
        "wf1": jnp.transpose(params["fc1_w"].reshape(256, 128, p3 * p3),
                             (2, 1, 0)).astype(bf16),
        "bf1": params["fc1_b"].reshape(1, -1).astype(f32),
        "wf2": params["fc2_w"].T.astype(bf16),
        "bf2": params["fc2_b"].reshape(1, -1).astype(f32),
        "wf3": jnp.pad(params["fc3_w"].T,
                       ((0, 0), (0, npad - classes_out))).astype(bf16),
        "bf3": jnp.pad(params["fc3_b"],
                       (0, npad - classes_out)).reshape(1, -1).astype(f32),
    }


def _build_patches(x_nhwc, a1r):
    """conv1 im2col on the padded flat grid (tiny: rows x 9*Cin)."""
    nb, h, w, cin = x_nhwc.shape
    o1 = h - 2
    cols = []
    for di in range(3):
        for dj in range(3):
            v = x_nhwc[:, di:di + o1, dj:dj + o1, :]
            cols.append(jnp.pad(v, ((0, 0), (0, h - o1), (0, w - o1), (0, 0))))
    p = jnp.concatenate(cols, axis=-1).reshape(nb * h * w, 9 * cin)
    p = jnp.pad(p, ((0, a1r - nb * h * w), (0, 0)))
    return p.astype(jnp.bfloat16)


def _whole_spec(arr):
    nd = arr.ndim
    return pl.BlockSpec(arr.shape, lambda i, _n=nd: (0,) * _n)


@functools.partial(jax.jit, static_argnames=("classes_out",))
def cnn_forward(prep, x_nchw, *, classes_out):
    x = jnp.transpose(x_nchw, (0, 2, 3, 1)).astype(jnp.float32)   # NCHW -> NHWC
    n_batch, s1, _, _ = x.shape
    g = _geometry(n_batch, s1)
    sel2, sel3 = _selectors(n_batch, g)
    p1 = _build_patches(x, g["A1R"])

    c1 = prep["w1"].shape[1]
    c2 = prep["w2"].shape[2]
    c3 = prep["w3"].shape[2]
    f1 = prep["wf1"].shape[2]
    npad = prep["wf3"].shape[1]

    inputs = (p1, prep["w1"], prep["b1"], prep["w2"], prep["b2"],
              prep["w3"], prep["b3"], sel2, sel3,
              prep["wf1"], prep["bf1"], prep["wf2"], prep["bf2"],
              prep["wf3"], prep["bf3"])

    kernel = _make_kernel(g, n_batch, c2, c3, f1)

    out = pl.pallas_call(
        kernel,
        out_shape=jax.ShapeDtypeStruct((n_batch, npad), jnp.float32),
        grid=(1,),
        in_specs=[_whole_spec(a) for a in inputs],
        out_specs=pl.BlockSpec((n_batch, npad), lambda i: (0, 0)),
        scratch_shapes=[
            pltpu.VMEM((g["A1R"], c1), jnp.float32),   # conv1 activations
            pltpu.VMEM((g["A2R"], c2), jnp.float32),   # conv2 activations
            pltpu.VMEM((g["R2p"], c2), jnp.float32),   # pooled2
            pltpu.VMEM((g["C3R"], c3), jnp.float32),   # conv3 activations
        ],
        compiler_params=pltpu.CompilerParams(
            dimension_semantics=("arbitrary",)),
    )(*inputs)
    return out[:, :classes_out]


if __name__ == "__main__":
    key = jax.random.PRNGKey(0)
    pkey, xkey = jax.random.split(key)

    batch, channels_in, size_in, classes_out = 2, 1, 16, 62
    params = init_params(pkey, size_in=size_in, channels_in=channels_in,
                         classes_out=classes_out)
    prep = prepare_params(params, classes_out)
    x = jax.random.normal(xkey, (batch, channels_in, size_in, size_in), jnp.float32)

    out = cnn_forward(prep, x, classes_out=classes_out)
    out = jax.block_until_ready(out)
    assert out.shape == (batch, classes_out), out.shape
    assert bool(jnp.all(jnp.isfinite(out)))
    print("KERNEL_OK")
</pallas_src>

<mosaic_0001>
module attributes {stable_mosaic.version = 11 : i64} {
  func.func @kernel(%arg0: i32, %arg1: memref<576x9xbf16, #tpu.memory_space<vmem>>, %arg2: memref<9x64xbf16, #tpu.memory_space<vmem>>, %arg3: memref<1x64xf32, #tpu.memory_space<vmem>>, %arg4: memref<9x64x64xbf16, #tpu.memory_space<vmem>>, %arg5: memref<1x64xf32, #tpu.memory_space<vmem>>, %arg6: memref<9x64x128xbf16, #tpu.memory_space<vmem>>, %arg7: memref<1x128xf32, #tpu.memory_space<vmem>>, %arg8: memref<96x512xbf16, #tpu.memory_space<vmem>>, %arg9: memref<4x2x72xbf16, #tpu.memory_space<vmem>>, %arg10: memref<4x128x256xbf16, #tpu.memory_space<vmem>>, %arg11: memref<1x256xf32, #tpu.memory_space<vmem>>, %arg12: memref<256x128xbf16, #tpu.memory_space<vmem>>, %arg13: memref<1x128xf32, #tpu.memory_space<vmem>>, %arg14: memref<128x128xbf16, #tpu.memory_space<vmem>>, %arg15: memref<1x128xf32, #tpu.memory_space<vmem>>, %arg16: memref<2x128xf32, #tpu.memory_space<vmem>>, %arg17: memref<576x64xf32, #tpu.memory_space<vmem>>, %arg18: memref<536x64xf32, #tpu.memory_space<vmem>>, %arg19: memref<96x64xf32, #tpu.memory_space<vmem>>, %arg20: memref<80x128xf32, #tpu.memory_space<vmem>>) attributes {dimension_semantics = [#tpu.dimension_semantics<arbitrary>], iteration_bounds = array<i64: 1>, scalar_prefetch = 0 : i64, scratch_operands = 4 : i64, tpu.core_type = #tpu.core_type<tc>, window_params = [{pipeline_mode = #tpu.pipeline_mode<synchronous>, transform_indices = @transform_0, window_bounds = array<i64: 576, 9>}, {pipeline_mode = #tpu.pipeline_mode<synchronous>, transform_indices = @transform_1, window_bounds = array<i64: 9, 64>}, {pipeline_mode = #tpu.pipeline_mode<synchronous>, transform_indices = @transform_2, window_bounds = array<i64: 1, 64>}, {pipeline_mode = #tpu.pipeline_mode<synchronous>, transform_indices = @transform_3, window_bounds = array<i64: 9, 64, 64>}, {pipeline_mode = #tpu.pipeline_mode<synchronous>, transform_indices = @transform_4, window_bounds = array<i64: 1, 64>}, {pipeline_mode = #tpu.pipeline_mode<synchronous>, transform_indices = @transform_5, window_bounds = array<i64: 9, 64, 128>}, {pipeline_mode = #tpu.pipeline_mode<synchronous>, transform_indices = @transform_6, window_bounds = array<i64: 1, 128>}, {pipeline_mode = #tpu.pipeline_mode<synchronous>, transform_indices = @transform_7, window_bounds = array<i64: 96, 512>}, {pipeline_mode = #tpu.pipeline_mode<synchronous>, transform_indices = @transform_8, window_bounds = array<i64: 4, 2, 72>}, {pipeline_mode = #tpu.pipeline_mode<synchronous>, transform_indices = @transform_9, window_bounds = array<i64: 4, 128, 256>}, {pipeline_mode = #tpu.pipeline_mode<synchronous>, transform_indices = @transform_10, window_bounds = array<i64: 1, 256>}, {pipeline_mode = #tpu.pipeline_mode<synchronous>, transform_indices = @transform_11, window_bounds = array<i64: 256, 128>}, {pipeline_mode = #tpu.pipeline_mode<synchronous>, transform_indices = @transform_12, window_bounds = array<i64: 1, 128>}, {pipeline_mode = #tpu.pipeline_mode<synchronous>, transform_indices = @transform_13, window_bounds = array<i64: 128, 128>}, {pipeline_mode = #tpu.pipeline_mode<synchronous>, transform_indices = @transform_14, window_bounds = array<i64: 1, 128>}, {pipeline_mode = #tpu.pipeline_mode<synchronous>, transform_indices = @transform_15, window_bounds = array<i64: 2, 128>}]} {
    %c0 = arith.constant 0 : index
    %c0_0 = arith.constant 0 : index
    %0 = vector.load %arg1[%c0, %c0_0] : memref<576x9xbf16, #tpu.memory_space<vmem>>, vector<576x9xbf16>
    %c0_1 = arith.constant 0 : index
    %c0_2 = arith.constant 0 : index
    %1 = vector.load %arg2[%c0_1, %c0_2] : memref<9x64xbf16, #tpu.memory_space<vmem>>, vector<9x64xbf16>
    %cst = arith.constant dense<0.000000e+00> : vector<576x64xf32>
    %2 = tpu.matmul %0, %1, %cst {dimension_numbers = #tpu.dot_dimension_numbers<[1], [0], [0], [1], [0, 0, 1, 1], [], []>} : vector<576x9xbf16>, vector<9x64xbf16>, vector<576x64xf32> -> vector<576x64xf32>
    %c0_3 = arith.constant 0 : index
    %c0_4 = arith.constant 0 : index
    %3 = vector.load %arg3[%c0_3, %c0_4] : memref<1x64xf32, #tpu.memory_space<vmem>>, vector<1x64xf32>
    %4 = vector.broadcast %3 : vector<1x64xf32> to vector<576x64xf32>
    %5 = arith.addf %2, %4 : vector<576x64xf32>
    %cst_5 = arith.constant 0.000000e+00 : f32
    %6 = vector.broadcast %cst_5 : f32 to vector<576x64xf32>
    %7 = arith.cmpf oge, %5, %6 : vector<576x64xf32>
    %cst_6 = arith.constant 0.00999999977 : f32
    %8 = vector.broadcast %cst_6 : f32 to vector<576x64xf32>
    %9 = arith.mulf %8, %5 : vector<576x64xf32>
    %10 = arith.select %7, %5, %9 : vector<576x64xi1>, vector<576x64xf32>
    %c0_7 = arith.constant 0 : index
    %c0_8 = arith.constant 0 : index
    %11 = vector.load %arg17[%c0_7, %c0_8] : memref<576x64xf32, #tpu.memory_space<vmem>>, vector<576x64xf32>
    tpu.vector_store %arg17[%c0_7, %c0_8], %10 {strides = array<i32>} : memref<576x64xf32, #tpu.memory_space<vmem>>, vector<576x64xf32>,
    %cst_9 = arith.constant 0.000000e+00 : f32
    %12 = vector.broadcast %cst_9 : f32 to vector<536x64xf32>
    %c0_10 = arith.constant 0 : index
    %c0_11 = arith.constant 0 : index
    %13 = vector.load %arg17[%c0_10, %c0_11] : memref<576x64xf32, #tpu.memory_space<vmem>>, vector<536x64xf32>
    %14 = arith.truncf %13 : vector<536x64xf32> to vector<536x64xbf16>
    %c0_12 = arith.constant 0 : index
    %c0_13 = arith.constant 0 : index
    %c0_14 = arith.constant 0 : index
    %15 = vector.load %arg4[%c0_12, %c0_13, %c0_14] : memref<9x64x64xbf16, #tpu.memory_space<vmem>>, vector<1x64x64xbf16>
    %16 = vector.shape_cast %15 : vector<1x64x64xbf16> to vector<64x64xbf16>
    %cst_15 = arith.constant dense<0.000000e+00> : vector<536x64xf32>
    %17 = tpu.matmul %14, %16, %cst_15 {dimension_numbers = #tpu.dot_dimension_numbers<[1], [0], [0], [1], [0, 0, 1, 1], [], []>} : vector<536x64xbf16>, vector<64x64xbf16>, vector<536x64xf32> -> vector<536x64xf32>
    %18 = arith.addf %12, %17 : vector<536x64xf32>
    %c1 = arith.constant 1 : index
    %c0_16 = arith.constant 0 : index
    %19 = vector.load %arg17[%c1, %c0_16] : memref<576x64xf32, #tpu.memory_space<vmem>>, vector<536x64xf32>
    %20 = arith.truncf %19 : vector<536x64xf32> to vector<536x64xbf16>
    %c1_17 = arith.constant 1 : index
    %c0_18 = arith.constant 0 : index
    %c0_19 = arith.constant 0 : index
    %21 = vector.load %arg4[%c1_17, %c0_18, %c0_19] : memref<9x64x64xbf16, #tpu.memory_space<vmem>>, vector<1x64x64xbf16>
    %22 = vector.shape_cast %21 : vector<1x64x64xbf16> to vector<64x64xbf16>
    %cst_20 = arith.constant dense<0.000000e+00> : vector<536x64xf32>
    %23 = tpu.matmul %20, %22, %cst_20 {dimension_numbers = #tpu.dot_dimension_numbers<[1], [0], [0], [1], [0, 0, 1, 1], [], []>} : vector<536x64xbf16>, vector<64x64xbf16>, vector<536x64xf32> -> vector<536x64xf32>
    %24 = arith.addf %18, %23 : vector<536x64xf32>
    %c2 = arith.constant 2 : index
    %c0_21 = arith.constant 0 : index
    %25 = vector.load %arg17[%c2, %c0_21] : memref<576x64xf32, #tpu.memory_space<vmem>>, vector<536x64xf32>
    %26 = arith.truncf %25 : vector<536x64xf32> to vector<536x64xbf16>
    %c2_22 = arith.constant 2 : index
    %c0_23 = arith.constant 0 : index
    %c0_24 = arith.constant 0 : index
    %27 = vector.load %arg4[%c2_22, %c0_23, %c0_24] : memref<9x64x64xbf16, #tpu.memory_space<vmem>>, vector<1x64x64xbf16>
    %28 = vector.shape_cast %27 : vector<1x64x64xbf16> to vector<64x64xbf16>
    %cst_25 = arith.constant dense<0.000000e+00> : vector<536x64xf32>
    %29 = tpu.matmul %26, %28, %cst_25 {dimension_numbers = #tpu.dot_dimension_numbers<[1], [0], [0], [1], [0, 0, 1, 1], [], []>} : vector<536x64xbf16>, vector<64x64xbf16>, vector<536x64xf32> -> vector<536x64xf32>
    %30 = arith.addf %24, %29 : vector<536x64xf32>
    %c16 = arith.constant 16 : index
    %c0_26 = arith.constant 0 : index
    %31 = vector.load %arg17[%c16, %c0_26] : memref<576x64xf32, #tpu.memory_space<vmem>>, vector<536x64xf32>
    %32 = arith.truncf %31 : vector<536x64xf32> to vector<536x64xbf16>
    %c3 = arith.constant 3 : index
    %c0_27 = arith.constant 0 : index
    %c0_28 = arith.constant 0 : index
    %33 = vector.load %arg4[%c3, %c0_27, %c0_28] : memref<9x64x64xbf16, #tpu.memory_space<vmem>>, vector<1x64x64xbf16>
    %34 = vector.shape_cast %33 : vector<1x64x64xbf16> to vector<64x64xbf16>
    %cst_29 = arith.constant dense<0.000000e+00> : vector<536x64xf32>
    %35 = tpu.matmul %32, %34, %cst_29 {dimension_numbers = #tpu.dot_dimension_numbers<[1], [0], [0], [1], [0, 0, 1, 1], [], []>} : vector<536x64xbf16>, vector<64x64xbf16>, vector<536x64xf32> -> vector<536x64xf32>
    %36 = arith.addf %30, %35 : vector<536x64xf32>
    %c17 = arith.constant 17 : index
    %c0_30 = arith.constant 0 : index
    %37 = vector.load %arg17[%c17, %c0_30] : memref<576x64xf32, #tpu.memory_space<vmem>>, vector<536x64xf32>
    %38 = arith.truncf %37 : vector<536x64xf32> to vector<536x64xbf16>
    %c4 = arith.constant 4 : index
    %c0_31 = arith.constant 0 : index
    %c0_32 = arith.constant 0 : index
    %39 = vector.load %arg4[%c4, %c0_31, %c0_32] : memref<9x64x64xbf16, #tpu.memory_space<vmem>>, vector<1x64x64xbf16>
    %40 = vector.shape_cast %39 : vector<1x64x64xbf16> to vector<64x64xbf16>
    %cst_33 = arith.constant dense<0.000000e+00> : vector<536x64xf32>
    %41 = tpu.matmul %38, %40, %cst_33 {dimension_numbers = #tpu.dot_dimension_numbers<[1], [0], [0], [1], [0, 0, 1, 1], [], []>} : vector<536x64xbf16>, vector<64x64xbf16>, vector<536x64xf32> -> vector<536x64xf32>
    %42 = arith.addf %36, %41 : vector<536x64xf32>
    %c18 = arith.constant 18 : index
    %c0_34 = arith.constant 0 : index
    %43 = vector.load %arg17[%c18, %c0_34] : memref<576x64xf32, #tpu.memory_space<vmem>>, vector<536x64xf32>
    %44 = arith.truncf %43 : vector<536x64xf32> to vector<536x64xbf16>
    %c5 = arith.constant 5 : index
    %c0_35 = arith.constant 0 : index
    %c0_36 = arith.constant 0 : index
    %45 = vector.load %arg4[%c5, %c0_35, %c0_36] : memref<9x64x64xbf16, #tpu.memory_space<vmem>>, vector<1x64x64xbf16>
    %46 = vector.shape_cast %45 : vector<1x64x64xbf16> to vector<64x64xbf16>
    %cst_37 = arith.constant dense<0.000000e+00> : vector<536x64xf32>
    %47 = tpu.matmul %44, %46, %cst_37 {dimension_numbers = #tpu.dot_dimension_numbers<[1], [0], [0], [1], [0, 0, 1, 1], [], []>} : vector<536x64xbf16>, vector<64x64xbf16>, vector<536x64xf32> -> vector<536x64xf32>
    %48 = arith.addf %42, %47 : vector<536x64xf32>
    %c32 = arith.constant 32 : index
    %c0_38 = arith.constant 0 : index
    %49 = vector.load %arg17[%c32, %c0_38] : memref<576x64xf32, #tpu.memory_space<vmem>>, vector<536x64xf32>
    %50 = arith.truncf %49 : vector<536x64xf32> to vector<536x64xbf16>
    %c6 = arith.constant 6 : index
    %c0_39 = arith.constant 0 : index
    %c0_40 = arith.constant 0 : index
    %51 = vector.load %arg4[%c6, %c0_39, %c0_40] : memref<9x64x64xbf16, #tpu.memory_space<vmem>>, vector<1x64x64xbf16>
    %52 = vector.shape_cast %51 : vector<1x64x64xbf16> to vector<64x64xbf16>
    %cst_41 = arith.constant dense<0.000000e+00> : vector<536x64xf32>
    %53 = tpu.matmul %50, %52, %cst_41 {dimension_numbers = #tpu.dot_dimension_numbers<[1], [0], [0], [1], [0, 0, 1, 1], [], []>} : vector<536x64xbf16>, vector<64x64xbf16>, vector<536x64xf32> -> vector<536x64xf32>
    %54 = arith.addf %48, %53 : vector<536x64xf32>
    %c33 = arith.constant 33 : index
    %c0_42 = arith.constant 0 : index
    %55 = vector.load %arg17[%c33, %c0_42] : memref<576x64xf32, #tpu.memory_space<vmem>>, vector<536x64xf32>
    %56 = arith.truncf %55 : vector<536x64xf32> to vector<536x64xbf16>
    %c7 = arith.constant 7 : index
    %c0_43 = arith.constant 0 : index
    %c0_44 = arith.constant 0 : index
    %57 = vector.load %arg4[%c7, %c0_43, %c0_44] : memref<9x64x64xbf16, #tpu.memory_space<vmem>>, vector<1x64x64xbf16>
    %58 = vector.shape_cast %57 : vector<1x64x64xbf16> to vector<64x64xbf16>
    %cst_45 = arith.constant dense<0.000000e+00> : vector<536x64xf32>
    %59 = tpu.matmul %56, %58, %cst_45 {dimension_numbers = #tpu.dot_dimension_numbers<[1], [0], [0], [1], [0, 0, 1, 1], [], []>} : vector<536x64xbf16>, vector<64x64xbf16>, vector<536x64xf32> -> vector<536x64xf32>
    %60 = arith.addf %54, %59 : vector<536x64xf32>
    %c34 = arith.constant 34 : index
    %c0_46 = arith.constant 0 : index
    %61 = vector.load %arg17[%c34, %c0_46] : memref<576x64xf32, #tpu.memory_space<vmem>>, vector<536x64xf32>
    %62 = arith.truncf %61 : vector<536x64xf32> to vector<536x64xbf16>
    %c8 = arith.constant 8 : index
    %c0_47 = arith.constant 0 : index
    %c0_48 = arith.constant 0 : index
    %63 = vector.load %arg4[%c8, %c0_47, %c0_48] : memref<9x64x64xbf16, #tpu.memory_space<vmem>>, vector<1x64x64xbf16>
    %64 = vector.shape_cast %63 : vector<1x64x64xbf16> to vector<64x64xbf16>
    %cst_49 = arith.constant dense<0.000000e+00> : vector<536x64xf32>
    %65 = tpu.matmul %62, %64, %cst_49 {dimension_numbers = #tpu.dot_dimension_numbers<[1], [0], [0], [1], [0, 0, 1, 1], [], []>} : vector<536x64xbf16>, vector<64x64xbf16>, vector<536x64xf32> -> vector<536x64xf32>
    %66 = arith.addf %60, %65 : vector<536x64xf32>
    %c0_50 = arith.constant 0 : index
    %c0_51 = arith.constant 0 : index
    %67 = vector.load %arg5[%c0_50, %c0_51] : memref<1x64xf32, #tpu.memory_space<vmem>>, vector<1x64xf32>
    %68 = vector.broadcast %67 : vector<1x64xf32> to vector<536x64xf32>
    %69 = arith.addf %66, %68 : vector<536x64xf32>
    %cst_52 = arith.constant 0.000000e+00 : f32
    %70 = vector.broadcast %cst_52 : f32 to vector<536x64xf32>
    %71 = arith.cmpf oge, %69, %70 : vector<536x64xf32>
    %cst_53 = arith.constant 0.00999999977 : f32
    %72 = vector.broadcast %cst_53 : f32 to vector<536x64xf32>
    %73 = arith.mulf %72, %69 : vector<536x64xf32>
    %74 = arith.select %71, %69, %73 : vector<536x64xi1>, vector<536x64xf32>
    %c0_54 = arith.constant 0 : index
    %c0_55 = arith.constant 0 : index
    %75 = vector.load %arg18[%c0_54, %c0_55] : memref<536x64xf32, #tpu.memory_space<vmem>>, vector<536x64xf32>
    tpu.vector_store %arg18[%c0_54, %c0_55], %74 {strides = array<i32>} : memref<536x64xf32, #tpu.memory_space<vmem>>, vector<536x64xf32>,
    %c0_56 = arith.constant 0 : index
    %c0_57 = arith.constant 0 : index
    %76 = vector.load %arg18[%c0_56, %c0_57] : memref<536x64xf32, #tpu.memory_space<vmem>>, vector<512x64xf32>
    %c1_58 = arith.constant 1 : index
    %c0_59 = arith.constant 0 : index
    %77 = vector.load %arg18[%c1_58, %c0_59] : memref<536x64xf32, #tpu.memory_space<vmem>>, vector<512x64xf32>
    %78 = arith.maximumf %76, %77 : vector<512x64xf32>
    %c16_60 = arith.constant 16 : index
    %c0_61 = arith.constant 0 : index
    %79 = vector.load %arg18[%c16_60, %c0_61] : memref<536x64xf32, #tpu.memory_space<vmem>>, vector<512x64xf32>
    %c17_62 = arith.constant 17 : index
    %c0_63 = arith.constant 0 : index
    %80 = vector.load %arg18[%c17_62, %c0_63] : memref<536x64xf32, #tpu.memory_space<vmem>>, vector<512x64xf32>
    %81 = arith.maximumf %79, %80 : vector<512x64xf32>
    %82 = arith.maximumf %78, %81 : vector<512x64xf32>
    %c0_64 = arith.constant 0 : index
    %c0_65 = arith.constant 0 : index
    %83 = vector.load %arg8[%c0_64, %c0_65] : memref<96x512xbf16, #tpu.memory_space<vmem>>, vector<96x512xbf16>
    %84 = arith.truncf %82 : vector<512x64xf32> to vector<512x64xbf16>
    %cst_66 = arith.constant dense<0.000000e+00> : vector<96x64xf32>
    %85 = tpu.matmul %83, %84, %cst_66 {dimension_numbers = #tpu.dot_dimension_numbers<[1], [0], [0], [1], [0, 0, 1, 1], [], []>} : vector<96x512xbf16>, vector<512x64xbf16>, vector<96x64xf32> -> vector<96x64xf32>
    %c0_67 = arith.constant 0 : index
    %c0_68 = arith.constant 0 : index
    %86 = vector.load %arg19[%c0_67, %c0_68] : memref<96x64xf32, #tpu.memory_space<vmem>>, vector<96x64xf32>
    tpu.vector_store %arg19[%c0_67, %c0_68], %85 {strides = array<i32>} : memref<96x64xf32, #tpu.memory_space<vmem>>, vector<96x64xf32>,
    %cst_69 = arith.constant 0.000000e+00 : f32
    %87 = vector.broadcast %cst_69 : f32 to vector<80x128xf32>
    %c0_70 = arith.constant 0 : index
    %c0_71 = arith.constant 0 : index
    %88 = vector.load %arg19[%c0_70, %c0_71] : memref<96x64xf32, #tpu.memory_space<vmem>>, vector<80x64xf32>
    %89 = arith.truncf %88 : vector<80x64xf32> to vector<80x64xbf16>
    %c0_72 = arith.constant 0 : index
    %c0_73 = arith.constant 0 : index
    %c0_74 = arith.constant 0 : index
    %90 = vector.load %arg6[%c0_72, %c0_73, %c0_74] : memref<9x64x128xbf16, #tpu.memory_space<vmem>>, vector<1x64x128xbf16>
    %91 = vector.shape_cast %90 : vector<1x64x128xbf16> to vector<64x128xbf16>
    %cst_75 = arith.constant dense<0.000000e+00> : vector<80x128xf32>
    %92 = tpu.matmul %89, %91, %cst_75 {dimension_numbers = #tpu.dot_dimension_numbers<[1], [0], [0], [1], [0, 0, 1, 1], [], []>} : vector<80x64xbf16>, vector<64x128xbf16>, vector<80x128xf32> -> vector<80x128xf32>
    %93 = arith.addf %87, %92 : vector<80x128xf32>
    %c1_76 = arith.constant 1 : index
    %c0_77 = arith.constant 0 : index
    %94 = vector.load %arg19[%c1_76, %c0_77] : memref<96x64xf32, #tpu.memory_space<vmem>>, vector<80x64xf32>
    %95 = arith.truncf %94 : vector<80x64xf32> to vector<80x64xbf16>
    %c1_78 = arith.constant 1 : index
    %c0_79 = arith.constant 0 : index
    %c0_80 = arith.constant 0 : index
    %96 = vector.load %arg6[%c1_78, %c0_79, %c0_80] : memref<9x64x128xbf16, #tpu.memory_space<vmem>>, vector<1x64x128xbf16>
    %97 = vector.shape_cast %96 : vector<1x64x128xbf16> to vector<64x128xbf16>
    %cst_81 = arith.constant dense<0.000000e+00> : vector<80x128xf32>
    %98 = tpu.matmul %95, %97, %cst_81 {dimension_numbers = #tpu.dot_dimension_numbers<[1], [0], [0], [1], [0, 0, 1, 1], [], []>} : vector<80x64xbf16>, vector<64x128xbf16>, vector<80x128xf32> -> vector<80x128xf32>
    %99 = arith.addf %93, %98 : vector<80x128xf32>
    %c2_82 = arith.constant 2 : index
    %c0_83 = arith.constant 0 : index
    %100 = vector.load %arg19[%c2_82, %c0_83] : memref<96x64xf32, #tpu.memory_space<vmem>>, vector<80x64xf32>
    %101 = arith.truncf %100 : vector<80x64xf32> to vector<80x64xbf16>
    %c2_84 = arith.constant 2 : index
    %c0_85 = arith.constant 0 : index
    %c0_86 = arith.constant 0 : index
    %102 = vector.load %arg6[%c2_84, %c0_85, %c0_86] : memref<9x64x128xbf16, #tpu.memory_space<vmem>>, vector<1x64x128xbf16>
    %103 = vector.shape_cast %102 : vector<1x64x128xbf16> to vector<64x128xbf16>
    %cst_87 = arith.constant dense<0.000000e+00> : vector<80x128xf32>
    %104 = tpu.matmul %101, %103, %cst_87 {dimension_numbers = #tpu.dot_dimension_numbers<[1], [0], [0], [1], [0, 0, 1, 1], [], []>} : vector<80x64xbf16>, vector<64x128xbf16>, vector<80x128xf32> -> vector<80x128xf32>
    %105 = arith.addf %99, %104 : vector<80x128xf32>
    %c6_88 = arith.constant 6 : index
    %c0_89 = arith.constant 0 : index
    %106 = vector.load %arg19[%c6_88, %c0_89] : memref<96x64xf32, #tpu.memory_space<vmem>>, vector<80x64xf32>
    %107 = arith.truncf %106 : vector<80x64xf32> to vector<80x64xbf16>
    %c3_90 = arith.constant 3 : index
    %c0_91 = arith.constant 0 : index
    %c0_92 = arith.constant 0 : index
    %108 = vector.load %arg6[%c3_90, %c0_91, %c0_92] : memref<9x64x128xbf16, #tpu.memory_space<vmem>>, vector<1x64x128xbf16>
    %109 = vector.shape_cast %108 : vector<1x64x128xbf16> to vector<64x128xbf16>
    %cst_93 = arith.constant dense<0.000000e+00> : vector<80x128xf32>
    %110 = tpu.matmul %107, %109, %cst_93 {dimension_numbers = #tpu.dot_dimension_numbers<[1], [0], [0], [1], [0, 0, 1, 1], [], []>} : vector<80x64xbf16>, vector<64x128xbf16>, vector<80x128xf32> -> vector<80x128xf32>
    %111 = arith.addf %105, %110 : vector<80x128xf32>
    %c7_94 = arith.constant 7 : index
    %c0_95 = arith.constant 0 : index
    %112 = vector.load %arg19[%c7_94, %c0_95] : memref<96x64xf32, #tpu.memory_space<vmem>>, vector<80x64xf32>
    %113 = arith.truncf %112 : vector<80x64xf32> to vector<80x64xbf16>
    %c4_96 = arith.constant 4 : index
    %c0_97 = arith.constant 0 : index
    %c0_98 = arith.constant 0 : index
    %114 = vector.load %arg6[%c4_96, %c0_97, %c0_98] : memref<9x64x128xbf16, #tpu.memory_space<vmem>>, vector<1x64x128xbf16>
    %115 = vector.shape_cast %114 : vector<1x64x128xbf16> to vector<64x128xbf16>
    %cst_99 = arith.constant dense<0.000000e+00> : vector<80x128xf32>
    %116 = tpu.matmul %113, %115, %cst_99 {dimension_numbers = #tpu.dot_dimension_numbers<[1], [0], [0], [1], [0, 0, 1, 1], [], []>} : vector<80x64xbf16>, vector<64x128xbf16>, vector<80x128xf32> -> vector<80x128xf32>
    %117 = arith.addf %111, %116 : vector<80x128xf32>
    %c8_100 = arith.constant 8 : index
    %c0_101 = arith.constant 0 : index
    %118 = vector.load %arg19[%c8_100, %c0_101] : memref<96x64xf32, #tpu.memory_space<vmem>>, vector<80x64xf32>
    %119 = arith.truncf %118 : vector<80x64xf32> to vector<80x64xbf16>
    %c5_102 = arith.constant 5 : index
    %c0_103 = arith.constant 0 : index
    %c0_104 = arith.constant 0 : index
    %120 = vector.load %arg6[%c5_102, %c0_103, %c0_104] : memref<9x64x128xbf16, #tpu.memory_space<vmem>>, vector<1x64x128xbf16>
    %121 = vector.shape_cast %120 : vector<1x64x128xbf16> to vector<64x128xbf16>
    %cst_105 = arith.constant dense<0.000000e+00> : vector<80x128xf32>
    %122 = tpu.matmul %119, %121, %cst_105 {dimension_numbers = #tpu.dot_dimension_numbers<[1], [0], [0], [1], [0, 0, 1, 1], [], []>} : vector<80x64xbf16>, vector<64x128xbf16>, vector<80x128xf32> -> vector<80x128xf32>
    %123 = arith.addf %117, %122 : vector<80x128xf32>
    %c12 = arith.constant 12 : index
    %c0_106 = arith.constant 0 : index
    %124 = vector.load %arg19[%c12, %c0_106] : memref<96x64xf32, #tpu.memory_space<vmem>>, vector<80x64xf32>
    %125 = arith.truncf %124 : vector<80x64xf32> to vector<80x64xbf16>
    %c6_107 = arith.constant 6 : index
    %c0_108 = arith.constant 0 : index
    %c0_109 = arith.constant 0 : index
    %126 = vector.load %arg6[%c6_107, %c0_108, %c0_109] : memref<9x64x128xbf16, #tpu.memory_space<vmem>>, vector<1x64x128xbf16>
    %127 = vector.shape_cast %126 : vector<1x64x128xbf16> to vector<64x128xbf16>
    %cst_110 = arith.constant dense<0.000000e+00> : vector<80x128xf32>
    %128 = tpu.matmul %125, %127, %cst_110 {dimension_numbers = #tpu.dot_dimension_numbers<[1], [0], [0], [1], [0, 0, 1, 1], [], []>} : vector<80x64xbf16>, vector<64x128xbf16>, vector<80x128xf32> -> vector<80x128xf32>
    %129 = arith.addf %123, %128 : vector<80x128xf32>
    %c13 = arith.constant 13 : index
    %c0_111 = arith.constant 0 : index
    %130 = vector.load %arg19[%c13, %c0_111] : memref<96x64xf32, #tpu.memory_space<vmem>>, vector<80x64xf32>
    %131 = arith.truncf %130 : vector<80x64xf32> to vector<80x64xbf16>
    %c7_112 = arith.constant 7 : index
    %c0_113 = arith.constant 0 : index
    %c0_114 = arith.constant 0 : index
    %132 = vector.load %arg6[%c7_112, %c0_113, %c0_114] : memref<9x64x128xbf16, #tpu.memory_space<vmem>>, vector<1x64x128xbf16>
    %133 = vector.shape_cast %132 : vector<1x64x128xbf16> to vector<64x128xbf16>
    %cst_115 = arith.constant dense<0.000000e+00> : vector<80x128xf32>
    %134 = tpu.matmul %131, %133, %cst_115 {dimension_numbers = #tpu.dot_dimension_numbers<[1], [0], [0], [1], [0, 0, 1, 1], [], []>} : vector<80x64xbf16>, vector<64x128xbf16>, vector<80x128xf32> -> vector<80x128xf32>
    %135 = arith.addf %129, %134 : vector<80x128xf32>
    %c14 = arith.constant 14 : index
    %c0_116 = arith.constant 0 : index
    %136 = vector.load %arg19[%c14, %c0_116] : memref<96x64xf32, #tpu.memory_space<vmem>>, vector<80x64xf32>
    %137 = arith.truncf %136 : vector<80x64xf32> to vector<80x64xbf16>
    %c8_117 = arith.constant 8 : index
    %c0_118 = arith.constant 0 : index
    %c0_119 = arith.constant 0 : index
    %138 = vector.load %arg6[%c8_117, %c0_118, %c0_119] : memref<9x64x128xbf16, #tpu.memory_space<vmem>>, vector<1x64x128xbf16>
    %139 = vector.shape_cast %138 : vector<1x64x128xbf16> to vector<64x128xbf16>
    %cst_120 = arith.constant dense<0.000000e+00> : vector<80x128xf32>
    %140 = tpu.matmul %137, %139, %cst_120 {dimension_numbers = #tpu.dot_dimension_numbers<[1], [0], [0], [1], [0, 0, 1, 1], [], []>} : vector<80x64xbf16>, vector<64x128xbf16>, vector<80x128xf32> -> vector<80x128xf32>
    %141 = arith.addf %135, %140 : vector<80x128xf32>
    %c0_121 = arith.constant 0 : index
    %c0_122 = arith.constant 0 : index
    %142 = vector.load %arg7[%c0_121, %c0_122] : memref<1x128xf32, #tpu.memory_space<vmem>>, vector<1x128xf32>
    %143 = vector.broadcast %142 : vector<1x128xf32> to vector<80x128xf32>
    %144 = arith.addf %141, %143 : vector<80x128xf32>
    %cst_123 = arith.constant 0.000000e+00 : f32
    %145 = vector.broadcast %cst_123 : f32 to vector<80x128xf32>
    %146 = arith.cmpf oge, %144, %145 : vector<80x128xf32>
    %cst_124 = arith.constant 0.00999999977 : f32
    %147 = vector.broadcast %cst_124 : f32 to vector<80x128xf32>
    %148 = arith.mulf %147, %144 : vector<80x128xf32>
    %149 = arith.select %146, %144, %148 : vector<80x128xi1>, vector<80x128xf32>
    %c0_125 = arith.constant 0 : index
    %c0_126 = arith.constant 0 : index
    %150 = vector.load %arg20[%c0_125, %c0_126] : memref<80x128xf32, #tpu.memory_space<vmem>>, vector<80x128xf32>
    tpu.vector_store %arg20[%c0_125, %c0_126], %149 {strides = array<i32>} : memref<80x128xf32, #tpu.memory_space<vmem>>, vector<80x128xf32>,
    %c0_127 = arith.constant 0 : index
    %c0_128 = arith.constant 0 : index
    %151 = vector.load %arg20[%c0_127, %c0_128] : memref<80x128xf32, #tpu.memory_space<vmem>>, vector<72x128xf32>
    %c1_129 = arith.constant 1 : index
    %c0_130 = arith.constant 0 : index
    %152 = vector.load %arg20[%c1_129, %c0_130] : memref<80x128xf32, #tpu.memory_space<vmem>>, vector<72x128xf32>
    %153 = arith.maximumf %151, %152 : vector<72x128xf32>
    %c6_131 = arith.constant 6 : index
    %c0_132 = arith.constant 0 : index
    %154 = vector.load %arg20[%c6_131, %c0_132] : memref<80x128xf32, #tpu.memory_space<vmem>>, vector<72x128xf32>
    %c7_133 = arith.constant 7 : index
    %c0_134 = arith.constant 0 : index
    %155 = vector.load %arg20[%c7_133, %c0_134] : memref<80x128xf32, #tpu.memory_space<vmem>>, vector<72x128xf32>
    %156 = arith.maximumf %154, %155 : vector<72x128xf32>
    %157 = arith.maximumf %153, %156 : vector<72x128xf32>
    %158 = arith.truncf %157 : vector<72x128xf32> to vector<72x128xbf16>
    %cst_135 = arith.constant 0.000000e+00 : f32
    %159 = vector.broadcast %cst_135 : f32 to vector<2x256xf32>
    %c0_136 = arith.constant 0 : index
    %c0_137 = arith.constant 0 : index
    %c0_138 = arith.constant 0 : index
    %160 = vector.load %arg9[%c0_136, %c0_137, %c0_138] : memref<4x2x72xbf16, #tpu.memory_space<vmem>>, vector<1x2x72xbf16>
    %161 = vector.shape_cast %160 : vector<1x2x72xbf16> to vector<2x72xbf16>
    %cst_139 = arith.constant dense<0.000000e+00> : vector<2x128xf32>
    %162 = tpu.matmul %161, %158, %cst_139 {dimension_numbers = #tpu.dot_dimension_numbers<[1], [0], [0], [1], [0, 0, 1, 1], [], []>} : vector<2x72xbf16>, vector<72x128xbf16>, vector<2x128xf32> -> vector<2x128xf32>
    %163 = arith.truncf %162 : vector<2x128xf32> to vector<2x128xbf16>
    %c0_140 = arith.constant 0 : index
    %c0_141 = arith.constant 0 : index
    %c0_142 = arith.constant 0 : index
    %164 = vector.load %arg10[%c0_140, %c0_141, %c0_142] : memref<4x128x256xbf16, #tpu.memory_space<vmem>>, vector<1x128x256xbf16>
    %165 = vector.shape_cast %164 : vector<1x128x256xbf16> to vector<128x256xbf16>
    %cst_143 = arith.constant dense<0.000000e+00> : vector<2x256xf32>
    %166 = tpu.matmul %163, %165, %cst_143 {dimension_numbers = #tpu.dot_dimension_numbers<[1], [0], [0], [1], [0, 0, 1, 1], [], []>} : vector<2x128xbf16>, vector<128x256xbf16>, vector<2x256xf32> -> vector<2x256xf32>
    %167 = arith.addf %159, %166 : vector<2x256xf32>
    %c1_144 = arith.constant 1 : index
    %c0_145 = arith.constant 0 : index
    %c0_146 = arith.constant 0 : index
    %168 = vector.load %arg9[%c1_144, %c0_145, %c0_146] : memref<4x2x72xbf16, #tpu.memory_space<vmem>>, vector<1x2x72xbf16>
    %169 = vector.shape_cast %168 : vector<1x2x72xbf16> to vector<2x72xbf16>
    %cst_147 = arith.constant dense<0.000000e+00> : vector<2x128xf32>
    %170 = tpu.matmul %169, %158, %cst_147 {dimension_numbers = #tpu.dot_dimension_numbers<[1], [0], [0], [1], [0, 0, 1, 1], [], []>} : vector<2x72xbf16>, vector<72x128xbf16>, vector<2x128xf32> -> vector<2x128xf32>
    %171 = arith.truncf %170 : vector<2x128xf32> to vector<2x128xbf16>
    %c1_148 = arith.constant 1 : index
    %c0_149 = arith.constant 0 : index
    %c0_150 = arith.constant 0 : index
    %172 = vector.load %arg10[%c1_148, %c0_149, %c0_150] : memref<4x128x256xbf16, #tpu.memory_space<vmem>>, vector<1x128x256xbf16>
    %173 = vector.shape_cast %172 : vector<1x128x256xbf16> to vector<128x256xbf16>
    %cst_151 = arith.constant dense<0.000000e+00> : vector<2x256xf32>
    %174 = tpu.matmul %171, %173, %cst_151 {dimension_numbers = #tpu.dot_dimension_numbers<[1], [0], [0], [1], [0, 0, 1, 1], [], []>} : vector<2x128xbf16>, vector<128x256xbf16>, vector<2x256xf32> -> vector<2x256xf32>
    %175 = arith.addf %167, %174 : vector<2x256xf32>
    %c2_152 = arith.constant 2 : index
    %c0_153 = arith.constant 0 : index
    %c0_154 = arith.constant 0 : index
    %176 = vector.load %arg9[%c2_152, %c0_153, %c0_154] : memref<4x2x72xbf16, #tpu.memory_space<vmem>>, vector<1x2x72xbf16>
    %177 = vector.shape_cast %176 : vector<1x2x72xbf16> to vector<2x72xbf16>
    %cst_155 = arith.constant dense<0.000000e+00> : vector<2x128xf32>
    %178 = tpu.matmul %177, %158, %cst_155 {dimension_numbers = #tpu.dot_dimension_numbers<[1], [0], [0], [1], [0, 0, 1, 1], [], []>} : vector<2x72xbf16>, vector<72x128xbf16>, vector<2x128xf32> -> vector<2x128xf32>
    %179 = arith.truncf %178 : vector<2x128xf32> to vector<2x128xbf16>
    %c2_156 = arith.constant 2 : index
    %c0_157 = arith.constant 0 : index
    %c0_158 = arith.constant 0 : index
    %180 = vector.load %arg10[%c2_156, %c0_157, %c0_158] : memref<4x128x256xbf16, #tpu.memory_space<vmem>>, vector<1x128x256xbf16>
    %181 = vector.shape_cast %180 : vector<1x128x256xbf16> to vector<128x256xbf16>
    %cst_159 = arith.constant dense<0.000000e+00> : vector<2x256xf32>
    %182 = tpu.matmul %179, %181, %cst_159 {dimension_numbers = #tpu.dot_dimension_numbers<[1], [0], [0], [1], [0, 0, 1, 1], [], []>} : vector<2x128xbf16>, vector<128x256xbf16>, vector<2x256xf32> -> vector<2x256xf32>
    %183 = arith.addf %175, %182 : vector<2x256xf32>
    %c3_160 = arith.constant 3 : index
    %c0_161 = arith.constant 0 : index
    %c0_162 = arith.constant 0 : index
    %184 = vector.load %arg9[%c3_160, %c0_161, %c0_162] : memref<4x2x72xbf16, #tpu.memory_space<vmem>>, vector<1x2x72xbf16>
    %185 = vector.shape_cast %184 : vector<1x2x72xbf16> to vector<2x72xbf16>
    %cst_163 = arith.constant dense<0.000000e+00> : vector<2x128xf32>
    %186 = tpu.matmul %185, %158, %cst_163 {dimension_numbers = #tpu.dot_dimension_numbers<[1], [0], [0], [1], [0, 0, 1, 1], [], []>} : vector<2x72xbf16>, vector<72x128xbf16>, vector<2x128xf32> -> vector<2x128xf32>
    %187 = arith.truncf %186 : vector<2x128xf32> to vector<2x128xbf16>
    %c3_164 = arith.constant 3 : index
    %c0_165 = arith.constant 0 : index
    %c0_166 = arith.constant 0 : index
    %188 = vector.load %arg10[%c3_164, %c0_165, %c0_166] : memref<4x128x256xbf16, #tpu.memory_space<vmem>>, vector<1x128x256xbf16>
    %189 = vector.shape_cast %188 : vector<1x128x256xbf16> to vector<128x256xbf16>
    %cst_167 = arith.constant dense<0.000000e+00> : vector<2x256xf32>
    %190 = tpu.matmul %187, %189, %cst_167 {dimension_numbers = #tpu.dot_dimension_numbers<[1], [0], [0], [1], [0, 0, 1, 1], [], []>} : vector<2x128xbf16>, vector<128x256xbf16>, vector<2x256xf32> -> vector<2x256xf32>
    %191 = arith.addf %183, %190 : vector<2x256xf32>
    %c0_168 = arith.constant 0 : index
    %c0_169 = arith.constant 0 : index
    %192 = vector.load %arg11[%c0_168, %c0_169] : memref<1x256xf32, #tpu.memory_space<vmem>>, vector<1x256xf32>
    %193 = vector.broadcast %192 : vector<1x256xf32> to vector<2x256xf32>
    %194 = arith.addf %191, %193 : vector<2x256xf32>
    %cst_170 = arith.constant 0.000000e+00 : f32
    %195 = vector.broadcast %cst_170 : f32 to vector<2x256xf32>
    %196 = arith.cmpf oge, %194, %195 : vector<2x256xf32>
    %cst_171 = arith.constant 0.00999999977 : f32
    %197 = vector.broadcast %cst_171 : f32 to vector<2x256xf32>
    %198 = arith.mulf %197, %194 : vector<2x256xf32>
    %199 = arith.select %196, %194, %198 : vector<2x256xi1>, vector<2x256xf32>
    %200 = arith.truncf %199 : vector<2x256xf32> to vector<2x256xbf16>
    %c0_172 = arith.constant 0 : index
    %c0_173 = arith.constant 0 : index
    %201 = vector.load %arg12[%c0_172, %c0_173] : memref<256x128xbf16, #tpu.memory_space<vmem>>, vector<256x128xbf16>
    %cst_174 = arith.constant dense<0.000000e+00> : vector<2x128xf32>
    %202 = tpu.matmul %200, %201, %cst_174 {dimension_numbers = #tpu.dot_dimension_numbers<[1], [0], [0], [1], [0, 0, 1, 1], [], []>} : vector<2x256xbf16>, vector<256x128xbf16>, vector<2x128xf32> -> vector<2x128xf32>
    %c0_175 = arith.constant 0 : index
    %c0_176 = arith.constant 0 : index
    %203 = vector.load %arg13[%c0_175, %c0_176] : memref<1x128xf32, #tpu.memory_space<vmem>>, vector<1x128xf32>
    %204 = vector.broadcast %203 : vector<1x128xf32> to vector<2x128xf32>
    %205 = arith.addf %202, %204 : vector<2x128xf32>
    %cst_177 = arith.constant 0.000000e+00 : f32
    %206 = vector.broadcast %cst_177 : f32 to vector<2x128xf32>
    %207 = arith.cmpf oge, %205, %206 : vector<2x128xf32>
    %cst_178 = arith.constant 0.00999999977 : f32
    %208 = vector.broadcast %cst_178 : f32 to vector<2x128xf32>
    %209 = arith.mulf %208, %205 : vector<2x128xf32>
    %210 = arith.select %207, %205, %209 : vector<2x128xi1>, vector<2x128xf32>
    %211 = arith.truncf %210 : vector<2x128xf32> to vector<2x128xbf16>
    %c0_179 = arith.constant 0 : index
    %c0_180 = arith.constant 0 : index
    %212 = vector.load %arg14[%c0_179, %c0_180] : memref<128x128xbf16, #tpu.memory_space<vmem>>, vector<128x128xbf16>
    %cst_181 = arith.constant dense<0.000000e+00> : vector<2x128xf32>
    %213 = tpu.matmul %211, %212, %cst_181 {dimension_numbers = #tpu.dot_dimension_numbers<[1], [0], [0], [1], [0, 0, 1, 1], [], []>} : vector<2x128xbf16>, vector<128x128xbf16>, vector<2x128xf32> -> vector<2x128xf32>
    %c0_182 = arith.constant 0 : index
    %c0_183 = arith.constant 0 : index
    %214 = vector.load %arg15[%c0_182, %c0_183] : memref<1x128xf32, #tpu.memory_space<vmem>>, vector<1x128xf32>
    %215 = vector.broadcast %214 : vector<1x128xf32> to vector<2x128xf32>
    %216 = arith.addf %213, %215 : vector<2x128xf32>
    %c0_184 = arith.constant 0 : index
    %c0_185 = arith.constant 0 : index
    %217 = vector.load %arg16[%c0_184, %c0_185] : memref<2x128xf32, #tpu.memory_space<vmem>>, vector<2x128xf32>
    tpu.vector_store %arg16[%c0_184, %c0_185], %216 {strides = array<i32>} : memref<2x128xf32, #tpu.memory_space<vmem>>, vector<2x128xf32>,
    return
  }
  func.func @transform_0(%arg0: i32) -> (i32, i32) {
    %c0_i32 = arith.constant 0 : i32
    %c0_i32_0 = arith.constant 0 : i32
    %c0_i32_1 = arith.constant 0 : i32
    return %c0_i32, %c0_i32_0 : i32, i32
  }
  func.func @transform_1(%arg0: i32) -> (i32, i32) {
    %c0_i32 = arith.constant 0 : i32
    %c0_i32_0 = arith.constant 0 : i32
    %c0_i32_1 = arith.constant 0 : i32
    return %c0_i32, %c0_i32_0 : i32, i32
  }
  func.func @transform_2(%arg0: i32) -> (i32, i32) {
    %c0_i32 = arith.constant 0 : i32
    %c0_i32_0 = arith.constant 0 : i32
    %c0_i32_1 = arith.constant 0 : i32
    return %c0_i32, %c0_i32_0 : i32, i32
  }
  func.func @transform_3(%arg0: i32) -> (i32, i32, i32) {
    %c0_i32 = arith.constant 0 : i32
    %c0_i32_0 = arith.constant 0 : i32
    %c0_i32_1 = arith.constant 0 : i32
    %c0_i32_2 = arith.constant 0 : i32
    return %c0_i32, %c0_i32_0, %c0_i32_1 : i32, i32, i32
  }
  func.func @transform_4(%arg0: i32) -> (i32, i32) {
    %c0_i32 = arith.constant 0 : i32
    %c0_i32_0 = arith.constant 0 : i32
    %c0_i32_1 = arith.constant 0 : i32
    return %c0_i32, %c0_i32_0 : i32, i32
  }
  func.func @transform_5(%arg0: i32) -> (i32, i32, i32) {
    %c0_i32 = arith.constant 0 : i32
    %c0_i32_0 = arith.constant 0 : i32
    %c0_i32_1 = arith.constant 0 : i32
    %c0_i32_2 = arith.constant 0 : i32
    return %c0_i32, %c0_i32_0, %c0_i32_1 : i32, i32, i32
  }
  func.func @transform_6(%arg0: i32) -> (i32, i32) {
    %c0_i32 = arith.constant 0 : i32
    %c0_i32_0 = arith.constant 0 : i32
    %c0_i32_1 = arith.constant 0 : i32
    return %c0_i32, %c0_i32_0 : i32, i32
  }
  func.func @transform_7(%arg0: i32) -> (i32, i32) {
    %c0_i32 = arith.constant 0 : i32
    %c0_i32_0 = arith.constant 0 : i32
    %c0_i32_1 = arith.constant 0 : i32
    return %c0_i32, %c0_i32_0 : i32, i32
  }
  func.func @transform_8(%arg0: i32) -> (i32, i32, i32) {
    %c0_i32 = arith.constant 0 : i32
    %c0_i32_0 = arith.constant 0 : i32
    %c0_i32_1 = arith.constant 0 : i32
    %c0_i32_2 = arith.constant 0 : i32
    return %c0_i32, %c0_i32_0, %c0_i32_1 : i32, i32, i32
  }
  func.func @transform_9(%arg0: i32) -> (i32, i32, i32) {
    %c0_i32 = arith.constant 0 : i32
    %c0_i32_0 = arith.constant 0 : i32
    %c0_i32_1 = arith.constant 0 : i32
    %c0_i32_2 = arith.constant 0 : i32
    return %c0_i32, %c0_i32_0, %c0_i32_1 : i32, i32, i32
  }
  func.func @transform_10(%arg0: i32) -> (i32, i32) {
    %c0_i32 = arith.constant 0 : i32
    %c0_i32_0 = arith.constant 0 : i32
    %c0_i32_1 = arith.constant 0 : i32
    return %c0_i32, %c0_i32_0 : i32, i32
  }
  func.func @transform_11(%arg0: i32) -> (i32, i32) {
    %c0_i32 = arith.constant 0 : i32
    %c0_i32_0 = arith.constant 0 : i32
    %c0_i32_1 = arith.constant 0 : i32
    return %c0_i32, %c0_i32_0 : i32, i32
  }
  func.func @transform_12(%arg0: i32) -> (i32, i32) {
    %c0_i32 = arith.constant 0 : i32
    %c0_i32_0 = arith.constant 0 : i32
    %c0_i32_1 = arith.constant 0 : i32
    return %c0_i32, %c0_i32_0 : i32, i32
  }
  func.func @transform_13(%arg0: i32) -> (i32, i32) {
    %c0_i32 = arith.constant 0 : i32
    %c0_i32_0 = arith.constant 0 : i32
    %c0_i32_1 = arith.constant 0 : i32
    return %c0_i32, %c0_i32_0 : i32, i32
  }
  func.func @transform_14(%arg0: i32) -> (i32, i32) {
    %c0_i32 = arith.constant 0 : i32
    %c0_i32_0 = arith.constant 0 : i32
    %c0_i32_1 = arith.constant 0 : i32
    return %c0_i32, %c0_i32_0 : i32, i32
  }
  func.func @transform_15(%arg0: i32) -> (i32, i32) {
    %c0_i32 = arith.constant 0 : i32
    %c0_i32_0 = arith.constant 0 : i32
    %c0_i32_1 = arith.constant 0 : i32
    return %c0_i32, %c0_i32_0 : i32, i32
  }
}

</mosaic_0001>

<llo_original>
// kernel: cnn_forward.1
$region0: #{cnn_forward.1}
  #allocation0 [shape = 'u32[]', space=smem, size = 0x4, offset = 0x4, fixed_abs, tag = 'smem constant byte address 0x4 - core index']
  #allocation1 [shape = 'u32[72,128]{1,0:T(1,128)}', space=vmem, size = 0x9000, scoped, tag = 'internal scratch']
  #allocation2 [shape = 'f32[576,64]{1,0:T(8,128)}', space=vmem, size = 0x48000, scoped, tag = 'scratch operand']
  #allocation3 [shape = 'f32[536,64]{1,0:T(8,128)}', space=vmem, size = 0x43000, scoped, tag = 'scratch operand']
  #allocation4 [shape = 'f32[96,64]{1,0:T(8,128)}', space=vmem, size = 0xc000, scoped, tag = 'scratch operand']
  #allocation5 [shape = 'f32[80,128]{1,0:T(8,128)}', space=vmem, size = 0xa000, scoped, tag = 'scratch operand']
  %s0 = inlined_call_operand.vmem [shape: bf16[576,9], index: 0, kind: input, shape index: {}]
  %s1 = inlined_call_operand.vmem [shape: bf16[9,64], index: 1, kind: input, shape index: {}]
  %s2 = inlined_call_operand.vmem [shape: f32[1,64], index: 2, kind: input, shape index: {}]
  %s3 = inlined_call_operand.vmem [shape: bf16[9,64,64], index: 3, kind: input, shape index: {}]
  %s4 = inlined_call_operand.vmem [shape: f32[1,64], index: 4, kind: input, shape index: {}]
  %s5 = inlined_call_operand.vmem [shape: bf16[9,64,128], index: 5, kind: input, shape index: {}]
  %s6 = inlined_call_operand.vmem [shape: f32[1,128], index: 6, kind: input, shape index: {}]
  %s7 = inlined_call_operand.vmem [shape: bf16[96,512], index: 7, kind: input, shape index: {}]
  %s8 = inlined_call_operand.vmem [shape: bf16[4,2,72], index: 8, kind: input, shape index: {}]
  %s9 = inlined_call_operand.vmem [shape: bf16[4,128,256], index: 9, kind: input, shape index: {}]
  %s10 = inlined_call_operand.vmem [shape: f32[1,256], index: 10, kind: input, shape index: {}]
  %s11 = inlined_call_operand.vmem [shape: bf16[256,128], index: 11, kind: input, shape index: {}]
  %s12 = inlined_call_operand.vmem [shape: f32[1,128], index: 12, kind: input, shape index: {}]
  %s13 = inlined_call_operand.vmem [shape: bf16[128,128], index: 13, kind: input, shape index: {}]
  %s14 = inlined_call_operand.vmem [shape: f32[1,128], index: 14, kind: input, shape index: {}]
  %s15 = inlined_call_operand.hbm [shape: f32[2,128], index: 15, kind: output, shape index: {}]
  %s16 = sld [smem:[#allocation0]]
  $region70: #{cnn_forward.1} parent=0
    _
  %s18 = ssub.s32 1, %s16
  %s19 = scalar_select 0, %s18, %s16
  $region1: #{cnn_forward.1} parent=0
    #allocation6 [shape = 'u8[1024]{0}', space=vmem, size = 0x400, scoped, tag = 'output window, operand 0, single buffered']
    #allocation7 [shape = 's32[1]{0}', space=sflag, size = 0x4, scoped, tag = 'scoped memory for cnn_forward.1']
    %20 = vsyncpa [#allocation7], 0
    // Predicated region
    $region2: #{cnn_forward.1} parent=1 // pred_check
      _
    $region3: #{cnn_forward.1} parent=1 // pred_check_branch
      %22 = sbr.rel (0) target = $region5
    $region4: #{cnn_forward.1} parent=1 // pred_region
      _
    $region5: #{cnn_forward.1} parent=1 // pred_fallthru
      _
    // Predicated region
    $region6: #{cnn_forward.1} parent=1 // pred_check
      _
    $region7: #{cnn_forward.1} parent=1 // pred_check_branch
      %24 = sbr.rel (0) target = $region9
    $region8: #{cnn_forward.1} parent=1 // pred_region
      _
    $region9: #{cnn_forward.1} parent=1 // pred_fallthru
      _
    // Predicated region
    $region10: #{cnn_forward.1} parent=1 // pred_check
      _
    $region11: #{cnn_forward.1} parent=1 // pred_check_branch
      %26 = sbr.rel (0) target = $region13
    $region12: #{cnn_forward.1} parent=1 // pred_region
      _
    $region13: #{cnn_forward.1} parent=1 // pred_fallthru
      _
    // Predicated region
    $region14: #{cnn_forward.1} parent=1 // pred_check
      _
    $region15: #{cnn_forward.1} parent=1 // pred_check_branch
      %28 = sbr.rel (0) target = $region17
    $region16: #{cnn_forward.1} parent=1 // pred_region
      _
    $region17: #{cnn_forward.1} parent=1 // pred_fallthru
      _
    // Predicated region
    $region18: #{cnn_forward.1} parent=1 // pred_check
      _
    $region19: #{cnn_forward.1} parent=1 // pred_check_branch
      %30 = sbr.rel (0) target = $region21
    $region20: #{cnn_forward.1} parent=1 // pred_region
      _
    $region21: #{cnn_forward.1} parent=1 // pred_fallthru
      _
    // Predicated region
    $region22: #{cnn_forward.1} parent=1 // pred_check
      _
    $region23: #{cnn_forward.1} parent=1 // pred_check_branch
      %32 = sbr.rel (0) target = $region25
    $region24: #{cnn_forward.1} parent=1 // pred_region
      _
    $region25: #{cnn_forward.1} parent=1 // pred_fallthru
      _
    // Predicated region
    $region26: #{cnn_forward.1} parent=1 // pred_check
      _
    $region27: #{cnn_forward.1} parent=1 // pred_check_branch
      %34 = sbr.rel (0) target = $region29
    $region28: #{cnn_forward.1} parent=1 // pred_region
      _
    $region29: #{cnn_forward.1} parent=1 // pred_fallthru
      _
    // Predicated region
    $region30: #{cnn_forward.1} parent=1 // pred_check
      _
    $region31: #{cnn_forward.1} parent=1 // pred_check_branch
      %36 = sbr.rel (0) target = $region33
    $region32: #{cnn_forward.1} parent=1 // pred_region
      _
    $region33: #{cnn_forward.1} parent=1 // pred_fallthru
      _
    // Predicated region
    $region34: #{cnn_forward.1} parent=1 // pred_check
      _
    $region35: #{cnn_forward.1} parent=1 // pred_check_branch
      %38 = sbr.rel (0) target = $region37
    $region36: #{cnn_forward.1} parent=1 // pred_region
      _
    $region37: #{cnn_forward.1} parent=1 // pred_fallthru
      _
    // Predicated region
    $region38: #{cnn_forward.1} parent=1 // pred_check
      _
    $region39: #{cnn_forward.1} parent=1 // pred_check_branch
      %40 = sbr.rel (0) target = $region41
    $region40: #{cnn_forward.1} parent=1 // pred_region
      _
    $region41: #{cnn_forward.1} parent=1 // pred_fallthru
      _
    // Predicated region
    $region42: #{cnn_forward.1} parent=1 // pred_check
      _
    $region43: #{cnn_forward.1} parent=1 // pred_check_branch
      %42 = sbr.rel (0) target = $region45
    $region44: #{cnn_forward.1} parent=1 // pred_region
      _
    $region45: #{cnn_forward.1} parent=1 // pred_fallthru
      _
    // Predicated region
    $region46: #{cnn_forward.1} parent=1 // pred_check
      _
    $region47: #{cnn_forward.1} parent=1 // pred_check_branch
      %44 = sbr.rel (0) target = $region49
    $region48: #{cnn_forward.1} parent=1 // pred_region
      _
    $region49: #{cnn_forward.1} parent=1 // pred_fallthru
      _
    // Predicated region
    $region50: #{cnn_forward.1} parent=1 // pred_check
      _
    $region51: #{cnn_forward.1} parent=1 // pred_check_branch
      %46 = sbr.rel (0) target = $region53
    $region52: #{cnn_forward.1} parent=1 // pred_region
      _
    $region53: #{cnn_forward.1} parent=1 // pred_fallthru
      _
    // Predicated region
    $region54: #{cnn_forward.1} parent=1 // pred_check
      _
    $region55: #{cnn_forward.1} parent=1 // pred_check_branch
      %48 = sbr.rel (0) target = $region57
    $region56: #{cnn_forward.1} parent=1 // pred_region
      _
    $region57: #{cnn_forward.1} parent=1 // pred_fallthru
      _
    // Predicated region
    $region58: #{cnn_forward.1} parent=1 // pred_check
      _
    $region59: #{cnn_forward.1} parent=1 // pred_check_branch
      %50 = sbr.rel (0) target = $region61
    $region60: #{cnn_forward.1} parent=1 // pred_region
      _
    $region61: #{cnn_forward.1} parent=1 // pred_fallthru
      _
    %v52 = vld [vmem:[%s0] sm:$0xf]
    %v53 = vld [vmem:[%s0 + $0x4] sm:$0xf]
    %v54 = vld [vmem:[%s0 + $0x8] sm:$0xf]
    %v55 = vld [vmem:[%s0 + $0xc] sm:$0xf]
    %v56 = vld [vmem:[%s0 + $0x10] sm:$0xf]
    %v57 = vld [vmem:[%s0 + $0x14] sm:$0xf]
    %v58 = vld [vmem:[%s0 + $0x18] sm:$0xf]
    %v59 = vld [vmem:[%s0 + $0x1c] sm:$0xf]
    %v60 = vld [vmem:[%s0 + $0x20] sm:$0xf]
    %v61 = vld [vmem:[%s0 + $0x24] sm:$0xf]
    %v62 = vld [vmem:[%s0 + $0x28] sm:$0xf]
    %v63 = vld [vmem:[%s0 + $0x2c] sm:$0xf]
    %v64 = vld [vmem:[%s0 + $0x30] sm:$0xf]
    %v65 = vld [vmem:[%s0 + $0x34] sm:$0xf]
    %v66 = vld [vmem:[%s0 + $0x38] sm:$0xf]
    %v67 = vld [vmem:[%s0 + $0x3c] sm:$0xf]
    %v68 = vld [vmem:[%s0 + $0x40] sm:$0xf]
    %v69 = vld [vmem:[%s0 + $0x44] sm:$0xf]
    %v70 = vld [vmem:[%s0 + $0x48] sm:$0xf]
    %v71 = vld [vmem:[%s0 + $0x4c] sm:$0xf]
    %v72 = vld [vmem:[%s0 + $0x50] sm:$0xf]
    %v73 = vld [vmem:[%s0 + $0x54] sm:$0xf]
    %v74 = vld [vmem:[%s0 + $0x58] sm:$0xf]
    %v75 = vld [vmem:[%s0 + $0x5c] sm:$0xf]
    %v76 = vld [vmem:[%s0 + $0x60] sm:$0xf]
    %v77 = vld [vmem:[%s0 + $0x64] sm:$0xf]
    %v78 = vld [vmem:[%s0 + $0x68] sm:$0xf]
    %v79 = vld [vmem:[%s0 + $0x6c] sm:$0xf]
    %v80 = vld [vmem:[%s0 + $0x70] sm:$0xf]
    %v81 = vld [vmem:[%s0 + $0x74] sm:$0xf]
    %v82 = vld [vmem:[%s0 + $0x78] sm:$0xf]
    %v83 = vld [vmem:[%s0 + $0x7c] sm:$0xf]
    %v84 = vld [vmem:[%s0 + $0x80] sm:$0xf]
    %v85 = vld [vmem:[%s0 + $0x84] sm:$0xf]
    %v86 = vld [vmem:[%s0 + $0x88] sm:$0xf]
    %v87 = vld [vmem:[%s0 + $0x8c] sm:$0xf]
    %v88 = vld [vmem:[%s0 + $0x90] sm:$0xf]
    %v89 = vld [vmem:[%s0 + $0x94] sm:$0xf]
    %v90 = vld [vmem:[%s0 + $0x98] sm:$0xf]
    %v91 = vld [vmem:[%s0 + $0x9c] sm:$0xf]
    %v92 = vld [vmem:[%s0 + $0xa0] sm:$0xf]
    %v93 = vld [vmem:[%s0 + $0xa4] sm:$0xf]
    %v94 = vld [vmem:[%s0 + $0xa8] sm:$0xf]
    %v95 = vld [vmem:[%s0 + $0xac] sm:$0xf]
    %v96 = vld [vmem:[%s0 + $0xb0] sm:$0xf]
    %v97 = vld [vmem:[%s0 + $0xb4] sm:$0xf]
    %v98 = vld [vmem:[%s0 + $0xb8] sm:$0xf]
    %v99 = vld [vmem:[%s0 + $0xbc] sm:$0xf]
    %v100 = vld [vmem:[%s0 + $0xc0] sm:$0xf]
    %v101 = vld [vmem:[%s0 + $0xc4] sm:$0xf]
    %v102 = vld [vmem:[%s0 + $0xc8] sm:$0xf]
    %v103 = vld [vmem:[%s0 + $0xcc] sm:$0xf]
    %v104 = vld [vmem:[%s0 + $0xd0] sm:$0xf]
    %v105 = vld [vmem:[%s0 + $0xd4] sm:$0xf]
    %v106 = vld [vmem:[%s0 + $0xd8] sm:$0xf]
    %v107 = vld [vmem:[%s0 + $0xdc] sm:$0xf]
    %v108 = vld [vmem:[%s0 + $0xe0] sm:$0xf]
    %v109 = vld [vmem:[%s0 + $0xe4] sm:$0xf]
    %v110 = vld [vmem:[%s0 + $0xe8] sm:$0xf]
    %v111 = vld [vmem:[%s0 + $0xec] sm:$0xf]
    %v112 = vld [vmem:[%s0 + $0xf0] sm:$0xf]
    %v113 = vld [vmem:[%s0 + $0xf4] sm:$0xf]
    %v114 = vld [vmem:[%s0 + $0xf8] sm:$0xf]
    %v115 = vld [vmem:[%s0 + $0xfc] sm:$0xf]
    %v116 = vld [vmem:[%s0 + $0x100] sm:$0xf]
    %v117 = vld [vmem:[%s0 + $0x104] sm:$0xf]
    %v118 = vld [vmem:[%s0 + $0x108] sm:$0xf]
    %v119 = vld [vmem:[%s0 + $0x10c] sm:$0xf]
    %v120 = vld [vmem:[%s0 + $0x110] sm:$0xf]
    %v121 = vld [vmem:[%s0 + $0x114] sm:$0xf]
    %v122 = vld [vmem:[%s0 + $0x118] sm:$0xf]
    %v123 = vld [vmem:[%s0 + $0x11c] sm:$0xf]
    %v124 = vld [vmem:[%s1] sm:$0xf]
    %v125 = vld [vmem:[%s1 + $0x4] sm:$0x1]
    %v126 = vld [vmem:[%s2] sm:$0x1]
    %v128 = vperm.slane %v126, 0
    %v202 = vunpack.c.l.b16 %v52
    %v203 = vunpack.c.l.b16 %v53
    %v204 = vunpack.c.l.b16 %v54
    %v205 = vunpack.c.l.b16 %v55
    %v206 = vunpack.c.l.b16 %v56
    %v207 = vunpack.c.l.b16 %v57
    %v208 = vunpack.c.l.b16 %v58
    %v209 = vunpack.c.l.b16 %v59
    %v210 = vunpack.c.l.b16 %v60
    %v211 = vunpack.c.l.b16 %v61
    %v212 = vunpack.c.l.b16 %v62
    %v213 = vunpack.c.l.b16 %v63
    %v214 = vunpack.c.l.b16 %v64
    %v215 = vunpack.c.l.b16 %v65
    %v216 = vunpack.c.l.b16 %v66
    %v217 = vunpack.c.l.b16 %v67
    %v218 = vunpack.c.l.b16 %v68
    %v219 = vunpack.c.l.b16 %v69
    %v220 = vunpack.c.l.b16 %v70
    %v221 = vunpack.c.l.b16 %v71
    %v222 = vunpack.c.l.b16 %v72
    %v223 = vunpack.c.l.b16 %v73
    %v224 = vunpack.c.l.b16 %v74
    %v225 = vunpack.c.l.b16 %v75
    %v226 = vunpack.c.l.b16 %v76
    %v227 = vunpack.c.l.b16 %v77
    %v228 = vunpack.c.l.b16 %v78
    %v229 = vunpack.c.l.b16 %v79
    %v230 = vunpack.c.l.b16 %v80
    %v231 = vunpack.c.l.b16 %v81
    %v232 = vunpack.c.l.b16 %v82
    %v233 = vunpack.c.l.b16 %v83
    %v234 = vunpack.c.l.b16 %v84
    %v235 = vunpack.c.l.b16 %v85
    %v236 = vunpack.c.l.b16 %v86
    %v237 = vunpack.c.l.b16 %v87
    %v238 = vunpack.c.l.b16 %v88
    %v239 = vunpack.c.l.b16 %v89
    %v240 = vunpack.c.l.b16 %v90
    %v241 = vunpack.c.l.b16 %v91
    %v242 = vunpack.c.l.b16 %v92
    %v243 = vunpack.c.l.b16 %v93
    %v244 = vunpack.c.l.b16 %v94
    %v245 = vunpack.c.l.b16 %v95
    %v246 = vunpack.c.l.b16 %v96
    %v247 = vunpack.c.l.b16 %v97
    %v248 = vunpack.c.l.b16 %v98
    %v249 = vunpack.c.l.b16 %v99
    %v250 = vunpack.c.l.b16 %v100
    %v251 = vunpack.c.l.b16 %v101
    %v252 = vunpack.c.l.b16 %v102
    %v253 = vunpack.c.l.b16 %v103
    %v254 = vunpack.c.l.b16 %v104
    %v255 = vunpack.c.l.b16 %v105
    %v256 = vunpack.c.l.b16 %v106
    %v257 = vunpack.c.l.b16 %v107
    %v258 = vunpack.c.l.b16 %v108
    %v259 = vunpack.c.l.b16 %v109
    %v260 = vunpack.c.l.b16 %v110
    %v261 = vunpack.c.l.b16 %v111
    %v262 = vunpack.c.l.b16 %v112
    %v263 = vunpack.c.l.b16 %v113
    %v264 = vunpack.c.l.b16 %v114
    %v265 = vunpack.c.l.b16 %v115
    %v266 = vunpack.c.l.b16 %v116
    %v267 = vunpack.c.l.b16 %v117
    %v268 = vunpack.c.l.b16 %v118
    %v269 = vunpack.c.l.b16 %v119
    %v270 = vunpack.c.l.b16 %v120
    %v271 = vunpack.c.l.b16 %v121
    %v272 = vunpack.c.l.b16 %v122
    %v273 = vunpack.c.l.b16 %v123
    %v274 = vpack.c.b16 %v203, %v202
    %v275 = vpack.c.b16 %v205, %v204
    %v276 = vpack.c.b16 %v207, %v206
    %v277 = vpack.c.b16 %v209, %v208
    %v278 = vpack.c.b16 %v211, %v210
    %v279 = vpack.c.b16 %v213, %v212
    %v280 = vpack.c.b16 %v215, %v214
    %v281 = vpack.c.b16 %v217, %v216
    %v282 = vpack.c.b16 %v219, %v218
    %v283 = vpack.c.b16 %v221, %v220
    %v284 = vpack.c.b16 %v223, %v222
    %v285 = vpack.c.b16 %v225, %v224
    %v286 = vpack.c.b16 %v227, %v226
    %v287 = vpack.c.b16 %v229, %v228
    %v288 = vpack.c.b16 %v231, %v230
    %v289 = vpack.c.b16 %v233, %v232
    %v290 = vpack.c.b16 %v235, %v234
    %v291 = vpack.c.b16 %v237, %v236
    %v292 = vpack.c.b16 %v239, %v238
    %v293 = vpack.c.b16 %v241, %v240
    %v294 = vpack.c.b16 %v243, %v242
    %v295 = vpack.c.b16 %v245, %v244
    %v296 = vpack.c.b16 %v247, %v246
    %v297 = vpack.c.b16 %v249, %v248
    %v298 = vpack.c.b16 %v251, %v250
    %v299 = vpack.c.b16 %v253, %v252
    %v300 = vpack.c.b16 %v255, %v254
    %v301 = vpack.c.b16 %v257, %v256
    %v302 = vpack.c.b16 %v259, %v258
    %v303 = vpack.c.b16 %v261, %v260
    %v304 = vpack.c.b16 %v263, %v262
    %v305 = vpack.c.b16 %v265, %v264
    %v306 = vpack.c.b16 %v267, %v266
    %v307 = vpack.c.b16 %v269, %v268
    %v308 = vpack.c.b16 %v271, %v270
    %v309 = vpack.c.b16 %v273, %v272
    %v312 = vunpack.c.l.b16 %v124
    %v313 = vunpack.c.l.b16 %v125
    %v314 = vpack.c.b16 %v313, %v312
    %vm315 = vcmask 72704
    %v317 = vsel %vm315, %v274, 0
    %v320 = vsel %vm315, %v275, 0
    %v323 = vsel %vm315, %v276, 0
    %v326 = vsel %vm315, %v277, 0
    %v329 = vsel %vm315, %v278, 0
    %v332 = vsel %vm315, %v279, 0
    %v335 = vsel %vm315, %v280, 0
    %v338 = vsel %vm315, %v281, 0
    %v341 = vsel %vm315, %v282, 0
    %v344 = vsel %vm315, %v283, 0
    %v347 = vsel %vm315, %v284, 0
    %v350 = vsel %vm315, %v285, 0
    %v353 = vsel %vm315, %v286, 0
    %v356 = vsel %vm315, %v287, 0
    %v359 = vsel %vm315, %v288, 0
    %v362 = vsel %vm315, %v289, 0
    %v365 = vsel %vm315, %v290, 0
    %v368 = vsel %vm315, %v291, 0
    %v371 = vsel %vm315, %v292, 0
    %v374 = vsel %vm315, %v293, 0
    %v377 = vsel %vm315, %v294, 0
    %v380 = vsel %vm315, %v295, 0
    %v383 = vsel %vm315, %v296, 0
    %v386 = vsel %vm315, %v297, 0
    %v389 = vsel %vm315, %v298, 0
    %v392 = vsel %vm315, %v299, 0
    %v395 = vsel %vm315, %v300, 0
    %v398 = vsel %vm315, %v301, 0
    %v401 = vsel %vm315, %v302, 0
    %v404 = vsel %vm315, %v303, 0
    %v407 = vsel %vm315, %v304, 0
    %v410 = vsel %vm315, %v305, 0
    %v413 = vsel %vm315, %v306, 0
    %v416 = vsel %vm315, %v307, 0
    %v419 = vsel %vm315, %v308, 0
    %v422 = vsel %vm315, %v309, 0
    %vm424 = vcmask 1043456
    %vm425 = vcmask 1044480
    %v426 = vsel %vm424, 4294967295, 65535
    %v427 = vsel %vm425, %v426, 0
    %v429 = vand.u32 %v314, %v427
    %431 = vmatpush.bf16.msra.mxu0 0
    %432 = vmatpush.bf16.msra.mxu0 0
    %433 = vmatpush.bf16.msra.mxu0 0
    %434 = vmatpush.bf16.msra.mxu0 0
    %435 = vmatpush.bf16.msra.mxu0 0
    %436 = vmatpush.bf16.msra.mxu0 0
    %437 = vmatpush.bf16.msra.mxu0 0
    %438 = vmatpush.bf16.msra.mxu0 %v429
    %439 = vmatmul.bf16.gmra.mxu0 %v317
    %v440 = vpop.f32.mrf.mxu0
    %v441 = vadd.f32 %v128, %v440
    %v442 = vpop.f32.mrf.mxu0
    %v443 = vadd.f32 %v128, %v442
    %444 = vmatmul.bf16.gmra.mxu0 %v320
    %v445 = vpop.f32.mrf.mxu0
    %v446 = vadd.f32 %v128, %v445
    %v447 = vpop.f32.mrf.mxu0
    %v448 = vadd.f32 %v128, %v447
    %449 = vmatmul.bf16.gmra.mxu0 %v323
    %v450 = vpop.f32.mrf.mxu0
    %v451 = vadd.f32 %v128, %v450
    %v452 = vpop.f32.mrf.mxu0
    %v453 = vadd.f32 %v128, %v452
    %454 = vmatmul.bf16.gmra.mxu0 %v326
    %v455 = vpop.f32.mrf.mxu0
    %v456 = vadd.f32 %v128, %v455
    %v457 = vpop.f32.mrf.mxu0
    %v458 = vadd.f32 %v128, %v457
    %459 = vmatmul.bf16.gmra.mxu0 %v329
    %v460 = vpop.f32.mrf.mxu0
    %v461 = vadd.f32 %v128, %v460
    %v462 = vpop.f32.mrf.mxu0
    %v463 = vadd.f32 %v128, %v462
    %464 = vmatmul.bf16.gmra.mxu0 %v332
    %v465 = vpop.f32.mrf.mxu0
    %v466 = vadd.f32 %v128, %v465
    %v467 = vpop.f32.mrf.mxu0
    %v468 = vadd.f32 %v128, %v467
    %469 = vmatmul.bf16.gmra.mxu0 %v335
    %v470 = vpop.f32.mrf.mxu0
    %v471 = vadd.f32 %v128, %v470
    %v472 = vpop.f32.mrf.mxu0
    %v473 = vadd.f32 %v128, %v472
    %474 = vmatmul.bf16.gmra.mxu0 %v338
    %v475 = vpop.f32.mrf.mxu0
    %v476 = vadd.f32 %v128, %v475
    %v477 = vpop.f32.mrf.mxu0
    %v478 = vadd.f32 %v128, %v477
    %479 = vmatmul.bf16.gmra.mxu0 %v341
    %v480 = vpop.f32.mrf.mxu0
    %v481 = vadd.f32 %v128, %v480
    %v482 = vpop.f32.mrf.mxu0
    %v483 = vadd.f32 %v128, %v482
    %484 = vmatmul.bf16.gmra.mxu0 %v344
    %v485 = vpop.f32.mrf.mxu0
    %v486 = vadd.f32 %v128, %v485
    %v487 = vpop.f32.mrf.mxu0
    %v488 = vadd.f32 %v128, %v487
    %489 = vmatmul.bf16.gmra.mxu0 %v347
    %v490 = vpop.f32.mrf.mxu0
    %v491 = vadd.f32 %v128, %v490
    %v492 = vpop.f32.mrf.mxu0
    %v493 = vadd.f32 %v128, %v492
    %494 = vmatmul.bf16.gmra.mxu0 %v350
    %v495 = vpop.f32.mrf.mxu0
    %v496 = vadd.f32 %v128, %v495
    %v497 = vpop.f32.mrf.mxu0
    %v498 = vadd.f32 %v128, %v497
    %499 = vmatmul.bf16.gmra.mxu0 %v353
    %v500 = vpop.f32.mrf.mxu0
    %v501 = vadd.f32 %v128, %v500
    %v502 = vpop.f32.mrf.mxu0
    %v503 = vadd.f32 %v128, %v502
    %504 = vmatmul.bf16.gmra.mxu0 %v356
    %v505 = vpop.f32.mrf.mxu0
    %v506 = vadd.f32 %v128, %v505
    %v507 = vpop.f32.mrf.mxu0
    %v508 = vadd.f32 %v128, %v507
    %509 = vmatmul.bf16.gmra.mxu0 %v359
    %v510 = vpop.f32.mrf.mxu0
    %v511 = vadd.f32 %v128, %v510
    %v512 = vpop.f32.mrf.mxu0
    %v513 = vadd.f32 %v128, %v512
    %514 = vmatmul.bf16.gmra.mxu0 %v362
    %v515 = vpop.f32.mrf.mxu0
    %v516 = vadd.f32 %v128, %v515
    %v517 = vpop.f32.mrf.mxu0
    %v518 = vadd.f32 %v128, %v517
    %519 = vmatmul.bf16.gmra.mxu0 %v365
    %v520 = vpop.f32.mrf.mxu0
    %v521 = vadd.f32 %v128, %v520
    %v522 = vpop.f32.mrf.mxu0
    %v523 = vadd.f32 %v128, %v522
    %524 = vmatmul.bf16.gmra.mxu0 %v368
    %v525 = vpop.f32.mrf.mxu0
    %v526 = vadd.f32 %v128, %v525
    %v527 = vpop.f32.mrf.mxu0
    %v528 = vadd.f32 %v128, %v527
    %529 = vmatmul.bf16.gmra.mxu0 %v371
    %v530 = vpop.f32.mrf.mxu0
    %v531 = vadd.f32 %v128, %v530
    %v532 = vpop.f32.mrf.mxu0
    %v533 = vadd.f32 %v128, %v532
    %534 = vmatmul.bf16.gmra.mxu0 %v374
    %v535 = vpop.f32.mrf.mxu0
    %v536 = vadd.f32 %v128, %v535
    %v537 = vpop.f32.mrf.mxu0
    %v538 = vadd.f32 %v128, %v537
    %539 = vmatmul.bf16.gmra.mxu0 %v377
    %v540 = vpop.f32.mrf.mxu0
    %v541 = vadd.f32 %v128, %v540
    %v542 = vpop.f32.mrf.mxu0
    %v543 = vadd.f32 %v128, %v542
    %544 = vmatmul.bf16.gmra.mxu0 %v380
    %v545 = vpop.f32.mrf.mxu0
    %v546 = vadd.f32 %v128, %v545
    %v547 = vpop.f32.mrf.mxu0
    %v548 = vadd.f32 %v128, %v547
    %549 = vmatmul.bf16.gmra.mxu0 %v383
    %v550 = vpop.f32.mrf.mxu0
    %v551 = vadd.f32 %v128, %v550
    %v552 = vpop.f32.mrf.mxu0
    %v553 = vadd.f32 %v128, %v552
    %554 = vmatmul.bf16.gmra.mxu0 %v386
    %v555 = vpop.f32.mrf.mxu0
    %v556 = vadd.f32 %v128, %v555
    %v557 = vpop.f32.mrf.mxu0
    %v558 = vadd.f32 %v128, %v557
    %559 = vmatmul.bf16.gmra.mxu0 %v389
    %v560 = vpop.f32.mrf.mxu0
    %v561 = vadd.f32 %v128, %v560
    %v562 = vpop.f32.mrf.mxu0
    %v563 = vadd.f32 %v128, %v562
    %564 = vmatmul.bf16.gmra.mxu0 %v392
    %v565 = vpop.f32.mrf.mxu0
    %v566 = vadd.f32 %v128, %v565
    %v567 = vpop.f32.mrf.mxu0
    %v568 = vadd.f32 %v128, %v567
    %569 = vmatmul.bf16.gmra.mxu0 %v395
    %v570 = vpop.f32.mrf.mxu0
    %v571 = vadd.f32 %v128, %v570
    %v572 = vpop.f32.mrf.mxu0
    %v573 = vadd.f32 %v128, %v572
    %574 = vmatmul.bf16.gmra.mxu0 %v398
    %v575 = vpop.f32.mrf.mxu0
    %v576 = vadd.f32 %v128, %v575
    %v577 = vpop.f32.mrf.mxu0
    %v578 = vadd.f32 %v128, %v577
    %579 = vmatmul.bf16.gmra.mxu0 %v401
    %v580 = vpop.f32.mrf.mxu0
    %v581 = vadd.f32 %v128, %v580
    %v582 = vpop.f32.mrf.mxu0
    %v583 = vadd.f32 %v128, %v582
    %584 = vmatmul.bf16.gmra.mxu0 %v404
    %v585 = vpop.f32.mrf.mxu0
    %v586 = vadd.f32 %v128, %v585
    %v587 = vpop.f32.mrf.mxu0
    %v588 = vadd.f32 %v128, %v587
    %589 = vmatmul.bf16.gmra.mxu0 %v407
    %v590 = vpop.f32.mrf.mxu0
    %v591 = vadd.f32 %v128, %v590
    %v592 = vpop.f32.mrf.mxu0
    %v593 = vadd.f32 %v128, %v592
    %594 = vmatmul.bf16.gmra.mxu0 %v410
    %v595 = vpop.f32.mrf.mxu0
    %v596 = vadd.f32 %v128, %v595
    %v597 = vpop.f32.mrf.mxu0
    %v598 = vadd.f32 %v128, %v597
    %599 = vmatmul.bf16.gmra.mxu0 %v413
    %v600 = vpop.f32.mrf.mxu0
    %v601 = vadd.f32 %v128, %v600
    %v602 = vpop.f32.mrf.mxu0
    %v603 = vadd.f32 %v128, %v602
    %604 = vmatmul.bf16.gmra.mxu0 %v416
    %v605 = vpop.f32.mrf.mxu0
    %v606 = vadd.f32 %v128, %v605
    %v607 = vpop.f32.mrf.mxu0
    %v608 = vadd.f32 %v128, %v607
    %609 = vmatmul.bf16.gmra.mxu0 %v419
    %v610 = vpop.f32.mrf.mxu0
    %v611 = vadd.f32 %v128, %v610
    %v612 = vpop.f32.mrf.mxu0
    %v613 = vadd.f32 %v128, %v612
    %614 = vmatmul.bf16.gmra.mxu0 %v422
    %v615 = vpop.f32.mrf.mxu0
    %v616 = vadd.f32 %v128, %v615
    %v617 = vpop.f32.mrf.mxu0
    %v618 = vadd.f32 %v128, %v617
    %619 = vdwg.mxu0
    %vm620 = vcmp.ge.f32.partialorder %v441, 0.0
    %vm621 = vcmp.ge.f32.partialorder %v443, 0.0
    %vm622 = vcmp.ge.f32.partialorder %v446, 0.0
    %vm623 = vcmp.ge.f32.partialorder %v448, 0.0
    %vm624 = vcmp.ge.f32.partialorder %v451, 0.0
    %vm625 = vcmp.ge.f32.partialorder %v453, 0.0
    %vm626 = vcmp.ge.f32.partialorder %v456, 0.0
    %vm627 = vcmp.ge.f32.partialorder %v458, 0.0
    %vm628 = vcmp.ge.f32.partialorder %v461, 0.0
    %vm629 = vcmp.ge.f32.partialorder %v463, 0.0
    %vm630 = vcmp.ge.f32.partialorder %v466, 0.0
    %vm631 = vcmp.ge.f32.partialorder %v468, 0.0
    %vm632 = vcmp.ge.f32.partialorder %v471, 0.0
    %vm633 = vcmp.ge.f32.partialorder %v473, 0.0
    %vm634 = vcmp.ge.f32.partialorder %v476, 0.0
    %vm635 = vcmp.ge.f32.partialorder %v478, 0.0
    %vm636 = vcmp.ge.f32.partialorder %v481, 0.0
    %vm637 = vcmp.ge.f32.partialorder %v483, 0.0
    %vm638 = vcmp.ge.f32.partialorder %v486, 0.0
    %vm639 = vcmp.ge.f32.partialorder %v488, 0.0
    %vm640 = vcmp.ge.f32.partialorder %v491, 0.0
    %vm641 = vcmp.ge.f32.partialorder %v493, 0.0
    %vm642 = vcmp.ge.f32.partialorder %v496, 0.0
    %vm643 = vcmp.ge.f32.partialorder %v498, 0.0
    %vm644 = vcmp.ge.f32.partialorder %v501, 0.0
    %vm645 = vcmp.ge.f32.partialorder %v503, 0.0
    %vm646 = vcmp.ge.f32.partialorder %v506, 0.0
    %vm647 = vcmp.ge.f32.partialorder %v508, 0.0
    %vm648 = vcmp.ge.f32.partialorder %v511, 0.0
    %vm649 = vcmp.ge.f32.partialorder %v513, 0.0
    %vm650 = vcmp.ge.f32.partialorder %v516, 0.0
    %vm651 = vcmp.ge.f32.partialorder %v518, 0.0
    %vm652 = vcmp.ge.f32.partialorder %v521, 0.0
    %vm653 = vcmp.ge.f32.partialorder %v523, 0.0
    %vm654 = vcmp.ge.f32.partialorder %v526, 0.0
    %vm655 = vcmp.ge.f32.partialorder %v528, 0.0
    %vm656 = vcmp.ge.f32.partialorder %v531, 0.0
    %vm657 = vcmp.ge.f32.partialorder %v533, 0.0
    %vm658 = vcmp.ge.f32.partialorder %v536, 0.0
    %vm659 = vcmp.ge.f32.partialorder %v538, 0.0
    %vm660 = vcmp.ge.f32.partialorder %v541, 0.0
    %vm661 = vcmp.ge.f32.partialorder %v543, 0.0
    %vm662 = vcmp.ge.f32.partialorder %v546, 0.0
    %vm663 = vcmp.ge.f32.partialorder %v548, 0.0
    %vm664 = vcmp.ge.f32.partialorder %v551, 0.0
    %vm665 = vcmp.ge.f32.partialorder %v553, 0.0
    %vm666 = vcmp.ge.f32.partialorder %v556, 0.0
    %vm667 = vcmp.ge.f32.partialorder %v558, 0.0
    %vm668 = vcmp.ge.f32.partialorder %v561, 0.0
    %vm669 = vcmp.ge.f32.partialorder %v563, 0.0
    %vm670 = vcmp.ge.f32.partialorder %v566, 0.0
    %vm671 = vcmp.ge.f32.partialorder %v568, 0.0
    %vm672 = vcmp.ge.f32.partialorder %v571, 0.0
    %vm673 = vcmp.ge.f32.partialorder %v573, 0.0
    %vm674 = vcmp.ge.f32.partialorder %v576, 0.0
    %vm675 = vcmp.ge.f32.partialorder %v578, 0.0
    %vm676 = vcmp.ge.f32.partialorder %v581, 0.0
    %vm677 = vcmp.ge.f32.partialorder %v583, 0.0
    %vm678 = vcmp.ge.f32.partialorder %v586, 0.0
    %vm679 = vcmp.ge.f32.partialorder %v588, 0.0
    %vm680 = vcmp.ge.f32.partialorder %v591, 0.0
    %vm681 = vcmp.ge.f32.partialorder %v593, 0.0
    %vm682 = vcmp.ge.f32.partialorder %v596, 0.0
    %vm683 = vcmp.ge.f32.partialorder %v598, 0.0
    %vm684 = vcmp.ge.f32.partialorder %v601, 0.0
    %vm685 = vcmp.ge.f32.partialorder %v603, 0.0
    %vm686 = vcmp.ge.f32.partialorder %v606, 0.0
    %vm687 = vcmp.ge.f32.partialorder %v608, 0.0
    %vm688 = vcmp.ge.f32.partialorder %v611, 0.0
    %vm689 = vcmp.ge.f32.partialorder %v613, 0.0
    %vm690 = vcmp.ge.f32.partialorder %v616, 0.0
    %vm691 = vcmp.ge.f32.partialorder %v618, 0.0
    %v692 = vmul.f32 %v441, 0.01
    %v693 = vmul.f32 %v443, 0.01
    %v694 = vmul.f32 %v446, 0.01
    %v695 = vmul.f32 %v448, 0.01
    %v696 = vmul.f32 %v451, 0.01
    %v697 = vmul.f32 %v453, 0.01
    %v698 = vmul.f32 %v456, 0.01
    %v699 = vmul.f32 %v458, 0.01
    %v700 = vmul.f32 %v461, 0.01
    %v701 = vmul.f32 %v463, 0.01
    %v702 = vmul.f32 %v466, 0.01
    %v703 = vmul.f32 %v468, 0.01
    %v704 = vmul.f32 %v471, 0.01
    %v705 = vmul.f32 %v473, 0.01
    %v706 = vmul.f32 %v476, 0.01
    %v707 = vmul.f32 %v478, 0.01
    %v708 = vmul.f32 %v481, 0.01
    %v709 = vmul.f32 %v483, 0.01
    %v710 = vmul.f32 %v486, 0.01
    %v711 = vmul.f32 %v488, 0.01
    %v712 = vmul.f32 %v491, 0.01
    %v713 = vmul.f32 %v493, 0.01
    %v714 = vmul.f32 %v496, 0.01
    %v715 = vmul.f32 %v498, 0.01
    %v716 = vmul.f32 %v501, 0.01
    %v717 = vmul.f32 %v503, 0.01
    %v718 = vmul.f32 %v506, 0.01
    %v719 = vmul.f32 %v508, 0.01
    %v720 = vmul.f32 %v511, 0.01
    %v721 = vmul.f32 %v513, 0.01
    %v722 = vmul.f32 %v516, 0.01
    %v723 = vmul.f32 %v518, 0.01
    %v724 = vmul.f32 %v521, 0.01
    %v725 = vmul.f32 %v523, 0.01
    %v726 = vmul.f32 %v526, 0.01
    %v727 = vmul.f32 %v528, 0.01
    %v728 = vmul.f32 %v531, 0.01
    %v729 = vmul.f32 %v533, 0.01
    %v730 = vmul.f32 %v536, 0.01
    %v731 = vmul.f32 %v538, 0.01
    %v732 = vmul.f32 %v541, 0.01
    %v733 = vmul.f32 %v543, 0.01
    %v734 = vmul.f32 %v546, 0.01
    %v735 = vmul.f32 %v548, 0.01
    %v736 = vmul.f32 %v551, 0.01
    %v737 = vmul.f32 %v553, 0.01
    %v738 = vmul.f32 %v556, 0.01
    %v739 = vmul.f32 %v558, 0.01
    %v740 = vmul.f32 %v561, 0.01
    %v741 = vmul.f32 %v563, 0.01
    %v742 = vmul.f32 %v566, 0.01
    %v743 = vmul.f32 %v568, 0.01
    %v744 = vmul.f32 %v571, 0.01
    %v745 = vmul.f32 %v573, 0.01
    %v746 = vmul.f32 %v576, 0.01
    %v747 = vmul.f32 %v578, 0.01
    %v748 = vmul.f32 %v581, 0.01
    %v749 = vmul.f32 %v583, 0.01
    %v750 = vmul.f32 %v586, 0.01
    %v751 = vmul.f32 %v588, 0.01
    %v752 = vmul.f32 %v591, 0.01
    %v753 = vmul.f32 %v593, 0.01
    %v754 = vmul.f32 %v596, 0.01
    %v755 = vmul.f32 %v598, 0.01
    %v756 = vmul.f32 %v601, 0.01
    %v757 = vmul.f32 %v603, 0.01
    %v758 = vmul.f32 %v606, 0.01
    %v759 = vmul.f32 %v608, 0.01
    %v760 = vmul.f32 %v611, 0.01
    %v761 = vmul.f32 %v613, 0.01
    %v762 = vmul.f32 %v616, 0.01
    %v763 = vmul.f32 %v618, 0.01
    %v764 = vsel %vm620, %v441, %v692
    %v765 = vsel %vm621, %v443, %v693
    %v766 = vsel %vm622, %v446, %v694
    %v767 = vsel %vm623, %v448, %v695
    %v768 = vsel %vm624, %v451, %v696
    %v769 = vsel %vm625, %v453, %v697
    %v770 = vsel %vm626, %v456, %v698
    %v771 = vsel %vm627, %v458, %v699
    %v772 = vsel %vm628, %v461, %v700
    %v773 = vsel %vm629, %v463, %v701
    %v774 = vsel %vm630, %v466, %v702
    %v775 = vsel %vm631, %v468, %v703
    %v776 = vsel %vm632, %v471, %v704
    %v777 = vsel %vm633, %v473, %v705
    %v778 = vsel %vm634, %v476, %v706
    %v779 = vsel %vm635, %v478, %v707
    %v780 = vsel %vm636, %v481, %v708
    %v781 = vsel %vm637, %v483, %v709
    %v782 = vsel %vm638, %v486, %v710
    %v783 = vsel %vm639, %v488, %v711
    %v784 = vsel %vm640, %v491, %v712
    %v785 = vsel %vm641, %v493, %v713
    %v786 = vsel %vm642, %v496, %v714
    %v787 = vsel %vm643, %v498, %v715
    %v788 = vsel %vm644, %v501, %v716
    %v789 = vsel %vm645, %v503, %v717
    %v790 = vsel %vm646, %v506, %v718
    %v791 = vsel %vm647, %v508, %v719
    %v792 = vsel %vm648, %v511, %v720
    %v793 = vsel %vm649, %v513, %v721
    %v794 = vsel %vm650, %v516, %v722
    %v795 = vsel %vm651, %v518, %v723
    %v796 = vsel %vm652, %v521, %v724
    %v797 = vsel %vm653, %v523, %v725
    %v798 = vsel %vm654, %v526, %v726
    %v799 = vsel %vm655, %v528, %v727
    %v800 = vsel %vm656, %v531, %v728
    %v801 = vsel %vm657, %v533, %v729
    %v802 = vsel %vm658, %v536, %v730
    %v803 = vsel %vm659, %v538, %v731
    %v804 = vsel %vm660, %v541, %v732
    %v805 = vsel %vm661, %v543, %v733
    %v806 = vsel %vm662, %v546, %v734
    %v807 = vsel %vm663, %v548, %v735
    %v808 = vsel %vm664, %v551, %v736
    %v809 = vsel %vm665, %v553, %v737
    %v810 = vsel %vm666, %v556, %v738
    %v811 = vsel %vm667, %v558, %v739
    %v812 = vsel %vm668, %v561, %v740
    %v813 = vsel %vm669, %v563, %v741
    %v814 = vsel %vm670, %v566, %v742
    %v815 = vsel %vm671, %v568, %v743
    %v816 = vsel %vm672, %v571, %v744
    %v817 = vsel %vm673, %v573, %v745
    %v818 = vsel %vm674, %v576, %v746
    %v819 = vsel %vm675, %v578, %v747
    %v820 = vsel %vm676, %v581, %v748
    %v821 = vsel %vm677, %v583, %v749
    %v822 = vsel %vm678, %v586, %v750
    %v823 = vsel %vm679, %v588, %v751
    %v824 = vsel %vm680, %v591, %v752
    %v825 = vsel %vm681, %v593, %v753
    %v826 = vsel %vm682, %v596, %v754
    %v827 = vsel %vm683, %v598, %v755
    %v828 = vsel %vm684, %v601, %v756
    %v829 = vsel %vm685, %v603, %v757
    %v830 = vsel %vm686, %v606, %v758
    %v831 = vsel %vm687, %v608, %v759
    %v832 = vsel %vm688, %v611, %v760
    %v833 = vsel %vm689, %v613, %v761
    %v834 = vsel %vm690, %v616, %v762
    %v835 = vsel %vm691, %v618, %v763
    %vm836 = vcmask 523264
    %837 = vst.msk [vmem:[#allocation2] sm:$0xff] %vm836, %v764
    %838 = vst.msk [vmem:[#allocation2 + $0x8] sm:$0xff] %vm836, %v765
    %839 = vst.msk [vmem:[#allocation2 + $0x10] sm:$0xff] %vm836, %v766
    %840 = vst.msk [vmem:[#allocation2 + $0x18] sm:$0xff] %vm836, %v767
    %841 = vst.msk [vmem:[#allocation2 + $0x20] sm:$0xff] %vm836, %v768
    %842 = vst.msk [vmem:[#allocation2 + $0x28] sm:$0xff] %vm836, %v769
    %843 = vst.msk [vmem:[#allocation2 + $0x30] sm:$0xff] %vm836, %v770
    %844 = vst.msk [vmem:[#allocation2 + $0x38] sm:$0xff] %vm836, %v771
    %845 = vst.msk [vmem:[#allocation2 + $0x40] sm:$0xff] %vm836, %v772
    %846 = vst.msk [vmem:[#allocation2 + $0x48] sm:$0xff] %vm836, %v773
    %847 = vst.msk [vmem:[#allocation2 + $0x50] sm:$0xff] %vm836, %v774
    %848 = vst.msk [vmem:[#allocation2 + $0x58] sm:$0xff] %vm836, %v775
    %849 = vst.msk [vmem:[#allocation2 + $0x60] sm:$0xff] %vm836, %v776
    %850 = vst.msk [vmem:[#allocation2 + $0x68] sm:$0xff] %vm836, %v777
    %851 = vst.msk [vmem:[#allocation2 + $0x70] sm:$0xff] %vm836, %v778
    %852 = vst.msk [vmem:[#allocation2 + $0x78] sm:$0xff] %vm836, %v779
    %853 = vst.msk [vmem:[#allocation2 + $0x80] sm:$0xff] %vm836, %v780
    %854 = vst.msk [vmem:[#allocation2 + $0x88] sm:$0xff] %vm836, %v781
    %855 = vst.msk [vmem:[#allocation2 + $0x90] sm:$0xff] %vm836, %v782
    %856 = vst.msk [vmem:[#allocation2 + $0x98] sm:$0xff] %vm836, %v783
    %857 = vst.msk [vmem:[#allocation2 + $0xa0] sm:$0xff] %vm836, %v784
    %858 = vst.msk [vmem:[#allocation2 + $0xa8] sm:$0xff] %vm836, %v785
    %859 = vst.msk [vmem:[#allocation2 + $0xb0] sm:$0xff] %vm836, %v786
    %860 = vst.msk [vmem:[#allocation2 + $0xb8] sm:$0xff] %vm836, %v787
    %861 = vst.msk [vmem:[#allocation2 + $0xc0] sm:$0xff] %vm836, %v788
    %862 = vst.msk [vmem:[#allocation2 + $0xc8] sm:$0xff] %vm836, %v789
    %863 = vst.msk [vmem:[#allocation2 + $0xd0] sm:$0xff] %vm836, %v790
    %864 = vst.msk [vmem:[#allocation2 + $0xd8] sm:$0xff] %vm836, %v791
    %865 = vst.msk [vmem:[#allocation2 + $0xe0] sm:$0xff] %vm836, %v792
    %866 = vst.msk [vmem:[#allocation2 + $0xe8] sm:$0xff] %vm836, %v793
    %867 = vst.msk [vmem:[#allocation2 + $0xf0] sm:$0xff] %vm836, %v794
    %868 = vst.msk [vmem:[#allocation2 + $0xf8] sm:$0xff] %vm836, %v795
    %869 = vst.msk [vmem:[#allocation2 + $0x100] sm:$0xff] %vm836, %v796
    %870 = vst.msk [vmem:[#allocation2 + $0x108] sm:$0xff] %vm836, %v797
    %871 = vst.msk [vmem:[#allocation2 + $0x110] sm:$0xff] %vm836, %v798
    %872 = vst.msk [vmem:[#allocation2 + $0x118] sm:$0xff] %vm836, %v799
    %873 = vst.msk [vmem:[#allocation2 + $0x120] sm:$0xff] %vm836, %v800
    %874 = vst.msk [vmem:[#allocation2 + $0x128] sm:$0xff] %vm836, %v801
    %875 = vst.msk [vmem:[#allocation2 + $0x130] sm:$0xff] %vm836, %v802
    %876 = vst.msk [vmem:[#allocation2 + $0x138] sm:$0xff] %vm836, %v803
    %877 = vst.msk [vmem:[#allocation2 + $0x140] sm:$0xff] %vm836, %v804
    %878 = vst.msk [vmem:[#allocation2 + $0x148] sm:$0xff] %vm836, %v805
    %879 = vst.msk [vmem:[#allocation2 + $0x150] sm:$0xff] %vm836, %v806
    %880 = vst.msk [vmem:[#allocation2 + $0x158] sm:$0xff] %vm836, %v807
    %881 = vst.msk [vmem:[#allocation2 + $0x160] sm:$0xff] %vm836, %v808
    %882 = vst.msk [vmem:[#allocation2 + $0x168] sm:$0xff] %vm836, %v809
    %883 = vst.msk [vmem:[#allocation2 + $0x170] sm:$0xff] %vm836, %v810
    %884 = vst.msk [vmem:[#allocation2 + $0x178] sm:$0xff] %vm836, %v811
    %885 = vst.msk [vmem:[#allocation2 + $0x180] sm:$0xff] %vm836, %v812
    %886 = vst.msk [vmem:[#allocation2 + $0x188] sm:$0xff] %vm836, %v813
    %887 = vst.msk [vmem:[#allocation2 + $0x190] sm:$0xff] %vm836, %v814
    %888 = vst.msk [vmem:[#allocation2 + $0x198] sm:$0xff] %vm836, %v815
    %889 = vst.msk [vmem:[#allocation2 + $0x1a0] sm:$0xff] %vm836, %v816
    %890 = vst.msk [vmem:[#allocation2 + $0x1a8] sm:$0xff] %vm836, %v817
    %891 = vst.msk [vmem:[#allocation2 + $0x1b0] sm:$0xff] %vm836, %v818
    %892 = vst.msk [vmem:[#allocation2 + $0x1b8] sm:$0xff] %vm836, %v819
    %893 = vst.msk [vmem:[#allocation2 + $0x1c0] sm:$0xff] %vm836, %v820
    %894 = vst.msk [vmem:[#allocation2 + $0x1c8] sm:$0xff] %vm836, %v821
    %895 = vst.msk [vmem:[#allocation2 + $0x1d0] sm:$0xff] %vm836, %v822
    %896 = vst.msk [vmem:[#allocation2 + $0x1d8] sm:$0xff] %vm836, %v823
    %897 = vst.msk [vmem:[#allocation2 + $0x1e0] sm:$0xff] %vm836, %v824
    %898 = vst.msk [vmem:[#allocation2 + $0x1e8] sm:$0xff] %vm836, %v825
    %899 = vst.msk [vmem:[#allocation2 + $0x1f0] sm:$0xff] %vm836, %v826
    %900 = vst.msk [vmem:[#allocation2 + $0x1f8] sm:$0xff] %vm836, %v827
    %901 = vst.msk [vmem:[#allocation2 + $0x200] sm:$0xff] %vm836, %v828
    %902 = vst.msk [vmem:[#allocation2 + $0x208] sm:$0xff] %vm836, %v829
    %903 = vst.msk [vmem:[#allocation2 + $0x210] sm:$0xff] %vm836, %v830
    %904 = vst.msk [vmem:[#allocation2 + $0x218] sm:$0xff] %vm836, %v831
    %905 = vst.msk [vmem:[#allocation2 + $0x220] sm:$0xff] %vm836, %v832
    %906 = vst.msk [vmem:[#allocation2 + $0x228] sm:$0xff] %vm836, %v833
    %907 = vst.msk [vmem:[#allocation2 + $0x230] sm:$0xff] %vm836, %v834
    %908 = vst.msk [vmem:[#allocation2 + $0x238] sm:$0xff] %vm836, %v835
    %v909 = vld [vmem:[#allocation2] sm:$0xff]
    %v910 = vld [vmem:[#allocation2 + $0x8] sm:$0xff]
    %v911 = vld [vmem:[#allocation2 + $0x10] sm:$0xff]
    %v912 = vld [vmem:[#allocation2 + $0x18] sm:$0xff]
    %v913 = vld [vmem:[#allocation2 + $0x20] sm:$0xff]
    %v914 = vld [vmem:[#allocation2 + $0x28] sm:$0xff]
    %v915 = vld [vmem:[#allocation2 + $0x30] sm:$0xff]
    %v916 = vld [vmem:[#allocation2 + $0x38] sm:$0xff]
    %v917 = vld [vmem:[#allocation2 + $0x40] sm:$0xff]
    %v918 = vld [vmem:[#allocation2 + $0x48] sm:$0xff]
    %v919 = vld [vmem:[#allocation2 + $0x50] sm:$0xff]
    %v920 = vld [vmem:[#allocation2 + $0x58] sm:$0xff]
    %v921 = vld [vmem:[#allocation2 + $0x60] sm:$0xff]
    %v922 = vld [vmem:[#allocation2 + $0x68] sm:$0xff]
    %v923 = vld [vmem:[#allocation2 + $0x70] sm:$0xff]
    %v924 = vld [vmem:[#allocation2 + $0x78] sm:$0xff]
    %v925 = vld [vmem:[#allocation2 + $0x80] sm:$0xff]
    %v926 = vld [vmem:[#allocation2 + $0x88] sm:$0xff]
    %v927 = vld [vmem:[#allocation2 + $0x90] sm:$0xff]
    %v928 = vld [vmem:[#allocation2 + $0x98] sm:$0xff]
    %v929 = vld [vmem:[#allocation2 + $0xa0] sm:$0xff]
    %v930 = vld [vmem:[#allocation2 + $0xa8] sm:$0xff]
    %v931 = vld [vmem:[#allocation2 + $0xb0] sm:$0xff]
    %v932 = vld [vmem:[#allocation2 + $0xb8] sm:$0xff]
    %v933 = vld [vmem:[#allocation2 + $0xc0] sm:$0xff]
    %v934 = vld [vmem:[#allocation2 + $0xc8] sm:$0xff]
    %v935 = vld [vmem:[#allocation2 + $0xd0] sm:$0xff]
    %v936 = vld [vmem:[#allocation2 + $0xd8] sm:$0xff]
    %v937 = vld [vmem:[#allocation2 + $0xe0] sm:$0xff]
    %v938 = vld [vmem:[#allocation2 + $0xe8] sm:$0xff]
    %v939 = vld [vmem:[#allocation2 + $0xf0] sm:$0xff]
    %v940 = vld [vmem:[#allocation2 + $0xf8] sm:$0xff]
    %v941 = vld [vmem:[#allocation2 + $0x100] sm:$0xff]
    %v942 = vld [vmem:[#allocation2 + $0x108] sm:$0xff]
    %v943 = vld [vmem:[#allocation2 + $0x110] sm:$0xff]
    %v944 = vld [vmem:[#allocation2 + $0x118] sm:$0xff]
    %v945 = vld [vmem:[#allocation2 + $0x120] sm:$0xff]
    %v946 = vld [vmem:[#allocation2 + $0x128] sm:$0xff]
    %v947 = vld [vmem:[#allocation2 + $0x130] sm:$0xff]
    %v948 = vld [vmem:[#allocation2 + $0x138] sm:$0xff]
    %v949 = vld [vmem:[#allocation2 + $0x140] sm:$0xff]
    %v950 = vld [vmem:[#allocation2 + $0x148] sm:$0xff]
    %v951 = vld [vmem:[#allocation2 + $0x150] sm:$0xff]
    %v952 = vld [vmem:[#allocation2 + $0x158] sm:$0xff]
    %v953 = vld [vmem:[#allocation2 + $0x160] sm:$0xff]
    %v954 = vld [vmem:[#allocation2 + $0x168] sm:$0xff]
    %v955 = vld [vmem:[#allocation2 + $0x170] sm:$0xff]
    %v956 = vld [vmem:[#allocation2 + $0x178] sm:$0xff]
    %v957 = vld [vmem:[#allocation2 + $0x180] sm:$0xff]
    %v958 = vld [vmem:[#allocation2 + $0x188] sm:$0xff]
    %v959 = vld [vmem:[#allocation2 + $0x190] sm:$0xff]
    %v960 = vld [vmem:[#allocation2 + $0x198] sm:$0xff]
    %v961 = vld [vmem:[#allocation2 + $0x1a0] sm:$0xff]
    %v962 = vld [vmem:[#allocation2 + $0x1a8] sm:$0xff]
    %v963 = vld [vmem:[#allocation2 + $0x1b0] sm:$0xff]
    %v964 = vld [vmem:[#allocation2 + $0x1b8] sm:$0xff]
    %v965 = vld [vmem:[#allocation2 + $0x1c0] sm:$0xff]
    %v966 = vld [vmem:[#allocation2 + $0x1c8] sm:$0xff]
    %v967 = vld [vmem:[#allocation2 + $0x1d0] sm:$0xff]
    %v968 = vld [vmem:[#allocation2 + $0x1d8] sm:$0xff]
    %v969 = vld [vmem:[#allocation2 + $0x1e0] sm:$0xff]
    %v970 = vld [vmem:[#allocation2 + $0x1e8] sm:$0xff]
    %v971 = vld [vmem:[#allocation2 + $0x1f0] sm:$0xff]
    %v972 = vld [vmem:[#allocation2 + $0x1f8] sm:$0xff]
    %v973 = vld [vmem:[#allocation2 + $0x200] sm:$0xff]
    %v974 = vld [vmem:[#allocation2 + $0x208] sm:$0xff]
    %v975 = vld [vmem:[#allocation2 + $0x210] sm:$0xff]
    %v976 = vpack.c.bf16 %v910, %v909
    %v977 = vpack.c.bf16 %v912, %v911
    %v978 = vpack.c.bf16 %v914, %v913
    %v979 = vpack.c.bf16 %v916, %v915
    %v980 = vpack.c.bf16 %v918, %v917
    %v981 = vpack.c.bf16 %v920, %v919
    %v982 = vpack.c.bf16 %v922, %v921
    %v983 = vpack.c.bf16 %v924, %v923
    %v984 = vpack.c.bf16 %v926, %v925
    %v985 = vpack.c.bf16 %v928, %v927
    %v986 = vpack.c.bf16 %v930, %v929
    %v987 = vpack.c.bf16 %v932, %v931
    %v988 = vpack.c.bf16 %v934, %v933
    %v989 = vpack.c.bf16 %v936, %v935
    %v990 = vpack.c.bf16 %v938, %v937
    %v991 = vpack.c.bf16 %v940, %v939
    %v992 = vpack.c.bf16 %v942, %v941
    %v993 = vpack.c.bf16 %v944, %v943
    %v994 = vpack.c.bf16 %v946, %v945
    %v995 = vpack.c.bf16 %v948, %v947
    %v996 = vpack.c.bf16 %v950, %v949
    %v997 = vpack.c.bf16 %v952, %v951
    %v998 = vpack.c.bf16 %v954, %v953
    %v999 = vpack.c.bf16 %v956, %v955
    %v1000 = vpack.c.bf16 %v958, %v957
    %v1001 = vpack.c.bf16 %v960, %v959
    %v1002 = vpack.c.bf16 %v962, %v961
    %v1003 = vpack.c.bf16 %v964, %v963
    %v1004 = vpack.c.bf16 %v966, %v965
    %v1005 = vpack.c.bf16 %v968, %v967
    %v1006 = vpack.c.bf16 %v970, %v969
    %v1007 = vpack.c.bf16 %v972, %v971
    %v1008 = vpack.c.bf16 %v974, %v973
    %v1009 = vpack.c.bf16 %v975, %v975
    %v1010 = vld [vmem:[%s3] sm:$0xf]
    %v1011 = vld [vmem:[%s3 + $0x4] sm:$0xf]
    %v1012 = vld [vmem:[%s3 + $0x8] sm:$0xf]
    %v1013 = vld [vmem:[%s3 + $0xc] sm:$0xf]
    %v1014 = vld [vmem:[%s3 + $0x10] sm:$0xf]
    %v1015 = vld [vmem:[%s3 + $0x14] sm:$0xf]
    %v1016 = vld [vmem:[%s3 + $0x18] sm:$0xf]
    %v1017 = vld [vmem:[%s3 + $0x1c] sm:$0xf]
    %v1018 = vld [vmem:[#allocation2 + $0x1] sm:$0xff]
    %v1019 = vld [vmem:[#allocation2 + $0x9] sm:$0xff]
    %v1020 = vld [vmem:[#allocation2 + $0x11] sm:$0xff]
    %v1021 = vld [vmem:[#allocation2 + $0x19] sm:$0xff]
    %v1022 = vld [vmem:[#allocation2 + $0x21] sm:$0xff]
    %v1023 = vld [vmem:[#allocation2 + $0x29] sm:$0xff]
    %v1024 = vld [vmem:[#allocation2 + $0x31] sm:$0xff]
    %v1025 = vld [vmem:[#allocation2 + $0x39] sm:$0xff]
    %v1026 = vld [vmem:[#allocation2 + $0x41] sm:$0xff]
    %v1027 = vld [vmem:[#allocation2 + $0x49] sm:$0xff]
    %v1028 = vld [vmem:[#allocation2 + $0x51] sm:$0xff]
    %v1029 = vld [vmem:[#allocation2 + $0x59] sm:$0xff]
    %v1030 = vld [vmem:[#allocation2 + $0x61] sm:$0xff]
    %v1031 = vld [vmem:[#allocation2 + $0x69] sm:$0xff]
    %v1032 = vld [vmem:[#allocation2 + $0x71] sm:$0xff]
    %v1033 = vld [vmem:[#allocation2 + $0x79] sm:$0xff]
    %v1034 = vld [vmem:[#allocation2 + $0x81] sm:$0xff]
    %v1035 = vld [vmem:[#allocation2 + $0x89] sm:$0xff]
    %v1036 = vld [vmem:[#allocation2 + $0x91] sm:$0xff]
    %v1037 = vld [vmem:[#allocation2 + $0x99] sm:$0xff]
    %v1038 = vld [vmem:[#allocation2 + $0xa1] sm:$0xff]
    %v1039 = vld [vmem:[#allocation2 + $0xa9] sm:$0xff]
    %v1040 = vld [vmem:[#allocation2 + $0xb1] sm:$0xff]
    %v1041 = vld [vmem:[#allocation2 + $0xb9] sm:$0xff]
    %v1042 = vld [vmem:[#allocation2 + $0xc1] sm:$0xff]
    %v1043 = vld [vmem:[#allocation2 + $0xc9] sm:$0xff]
    %v1044 = vld [vmem:[#allocation2 + $0xd1] sm:$0xff]
    %v1045 = vld [vmem:[#allocation2 + $0xd9] sm:$0xff]
    %v1046 = vld [vmem:[#allocation2 + $0xe1] sm:$0xff]
    %v1047 = vld [vmem:[#allocation2 + $0xe9] sm:$0xff]
    %v1048 = vld [vmem:[#allocation2 + $0xf1] sm:$0xff]
    %v1049 = vld [vmem:[#allocation2 + $0xf9] sm:$0xff]
    %v1050 = vld [vmem:[#allocation2 + $0x101] sm:$0xff]
    %v1051 = vld [vmem:[#allocation2 + $0x109] sm:$0xff]
    %v1052 = vld [vmem:[#allocation2 + $0x111] sm:$0xff]
    %v1053 = vld [vmem:[#allocation2 + $0x119] sm:$0xff]
    %v1054 = vld [vmem:[#allocation2 + $0x121] sm:$0xff]
    %v1055 = vld [vmem:[#allocation2 + $0x129] sm:$0xff]
    %v1056 = vld [vmem:[#allocation2 + $0x131] sm:$0xff]
    %v1057 = vld [vmem:[#allocation2 + $0x139] sm:$0xff]
    %v1058 = vld [vmem:[#allocation2 + $0x141] sm:$0xff]
    %v1059 = vld [vmem:[#allocation2 + $0x149] sm:$0xff]
    %v1060 = vld [vmem:[#allocation2 + $0x151] sm:$0xff]
    %v1061 = vld [vmem:[#allocation2 + $0x159] sm:$0xff]
    %v1062 = vld [vmem:[#allocation2 + $0x161] sm:$0xff]
    %v1063 = vld [vmem:[#allocation2 + $0x169] sm:$0xff]
    %v1064 = vld [vmem:[#allocation2 + $0x171] sm:$0xff]
    %v1065 = vld [vmem:[#allocation2 + $0x179] sm:$0xff]
    %v1066 = vld [vmem:[#allocation2 + $0x181] sm:$0xff]
    %v1067 = vld [vmem:[#allocation2 + $0x189] sm:$0xff]
    %v1068 = vld [vmem:[#allocation2 + $0x191] sm:$0xff]
    %v1069 = vld [vmem:[#allocation2 + $0x199] sm:$0xff]
    %v1070 = vld [vmem:[#allocation2 + $0x1a1] sm:$0xff]
    %v1071 = vld [vmem:[#allocation2 + $0x1a9] sm:$0xff]
    %v1072 = vld [vmem:[#allocation2 + $0x1b1] sm:$0xff]
    %v1073 = vld [vmem:[#allocation2 + $0x1b9] sm:$0xff]
    %v1074 = vld [vmem:[#allocation2 + $0x1c1] sm:$0xff]
    %v1075 = vld [vmem:[#allocation2 + $0x1c9] sm:$0xff]
    %v1076 = vld [vmem:[#allocation2 + $0x1d1] sm:$0xff]
    %v1077 = vld [vmem:[#allocation2 + $0x1d9] sm:$0xff]
    %v1078 = vld [vmem:[#allocation2 + $0x1e1] sm:$0xff]
    %v1079 = vld [vmem:[#allocation2 + $0x1e9] sm:$0xff]
    %v1080 = vld [vmem:[#allocation2 + $0x1f1] sm:$0xff]
    %v1081 = vld [vmem:[#allocation2 + $0x1f9] sm:$0xff]
    %v1082 = vld [vmem:[#allocation2 + $0x201] sm:$0xff]
    %v1083 = vld [vmem:[#allocation2 + $0x209] sm:$0xff]
    %v1084 = vld [vmem:[#allocation2 + $0x211] sm:$0xff]
    %v1085 = vpack.c.bf16 %v1019, %v1018
    %v1086 = vpack.c.bf16 %v1021, %v1020
    %v1087 = vpack.c.bf16 %v1023, %v1022
    %v1088 = vpack.c.bf16 %v1025, %v1024
    %v1089 = vpack.c.bf16 %v1027, %v1026
    %v1090 = vpack.c.bf16 %v1029, %v1028
    %v1091 = vpack.c.bf16 %v1031, %v1030
    %v1092 = vpack.c.bf16 %v1033, %v1032
    %v1093 = vpack.c.bf16 %v1035, %v1034
    %v1094 = vpack.c.bf16 %v1037, %v1036
    %v1095 = vpack.c.bf16 %v1039, %v1038
    %v1096 = vpack.c.bf16 %v1041, %v1040
    %v1097 = vpack.c.bf16 %v1043, %v1042
    %v1098 = vpack.c.bf16 %v1045, %v1044
    %v1099 = vpack.c.bf16 %v1047, %v1046
    %v1100 = vpack.c.bf16 %v1049, %v1048
    %v1101 = vpack.c.bf16 %v1051, %v1050
    %v1102 = vpack.c.bf16 %v1053, %v1052
    %v1103 = vpack.c.bf16 %v1055, %v1054
    %v1104 = vpack.c.bf16 %v1057, %v1056
    %v1105 = vpack.c.bf16 %v1059, %v1058
    %v1106 = vpack.c.bf16 %v1061, %v1060
    %v1107 = vpack.c.bf16 %v1063, %v1062
    %v1108 = vpack.c.bf16 %v1065, %v1064
    %v1109 = vpack.c.bf16 %v1067, %v1066
    %v1110 = vpack.c.bf16 %v1069, %v1068
    %v1111 = vpack.c.bf16 %v1071, %v1070
    %v1112 = vpack.c.bf16 %v1073, %v1072
    %v1113 = vpack.c.bf16 %v1075, %v1074
    %v1114 = vpack.c.bf16 %v1077, %v1076
    %v1115 = vpack.c.bf16 %v1079, %v1078
    %v1116 = vpack.c.bf16 %v1081, %v1080
    %v1117 = vpack.c.bf16 %v1083, %v1082
    %v1118 = vpack.c.bf16 %v1084, %v1084
    %s1119 = scalar_lea.vmem %s3, 32
    %v1120 = vld [vmem:[%s1119] sm:$0xf]
    %v1121 = vld [vmem:[%s1119 + $0x4] sm:$0xf]
    %v1122 = vld [vmem:[%s1119 + $0x8] sm:$0xf]
    %v1123 = vld [vmem:[%s1119 + $0xc] sm:$0xf]
    %v1124 = vld [vmem:[%s1119 + $0x10] sm:$0xf]
    %v1125 = vld [vmem:[%s1119 + $0x14] sm:$0xf]
    %v1126 = vld [vmem:[%s1119 + $0x18] sm:$0xf]
    %v1127 = vld [vmem:[%s1119 + $0x1c] sm:$0xf]
    %v1136 = vunpack.c.l.b16 %v1120
    %v1137 = vunpack.c.l.b16 %v1121
    %v1138 = vunpack.c.l.b16 %v1122
    %v1139 = vunpack.c.l.b16 %v1123
    %v1140 = vunpack.c.l.b16 %v1124
    %v1141 = vunpack.c.l.b16 %v1125
    %v1142 = vunpack.c.l.b16 %v1126
    %v1143 = vunpack.c.l.b16 %v1127
    %v1144 = vpack.c.b16 %v1137, %v1136
    %v1145 = vpack.c.b16 %v1139, %v1138
    %v1146 = vpack.c.b16 %v1141, %v1140
    %v1147 = vpack.c.b16 %v1143, %v1142
    %v1153 = vsel %vm836, %v1085, 0
    %v1156 = vsel %vm836, %v1086, 0
    %v1159 = vsel %vm836, %v1087, 0
    %v1162 = vsel %vm836, %v1088, 0
    %v1165 = vsel %vm836, %v1089, 0
    %v1168 = vsel %vm836, %v1090, 0
    %v1171 = vsel %vm836, %v1091, 0
    %v1174 = vsel %vm836, %v1092, 0
    %v1177 = vsel %vm836, %v1093, 0
    %v1180 = vsel %vm836, %v1094, 0
    %v1183 = vsel %vm836, %v1095, 0
    %v1186 = vsel %vm836, %v1096, 0
    %v1189 = vsel %vm836, %v1097, 0
    %v1192 = vsel %vm836, %v1098, 0
    %v1195 = vsel %vm836, %v1099, 0
    %v1198 = vsel %vm836, %v1100, 0
    %v1201 = vsel %vm836, %v1101, 0
    %v1204 = vsel %vm836, %v1102, 0
    %v1207 = vsel %vm836, %v1103, 0
    %v1210 = vsel %vm836, %v1104, 0
    %v1213 = vsel %vm836, %v1105, 0
    %v1216 = vsel %vm836, %v1106, 0
    %v1219 = vsel %vm836, %v1107, 0
    %v1222 = vsel %vm836, %v1108, 0
    %v1225 = vsel %vm836, %v1109, 0
    %v1228 = vsel %vm836, %v1110, 0
    %v1231 = vsel %vm836, %v1111, 0
    %v1234 = vsel %vm836, %v1112, 0
    %v1237 = vsel %vm836, %v1113, 0
    %v1240 = vsel %vm836, %v1114, 0
    %v1243 = vsel %vm836, %v1115, 0
    %v1246 = vsel %vm836, %v1116, 0
    %v1249 = vsel %vm836, %v1117, 0
    %v1252 = vsel %vm836, %v1118, 0
    %1254 = vmatpush.bf16.msra.mxu0 0
    %1255 = vmatpush.bf16.msra.mxu0 0
    %1256 = vmatpush.bf16.msra.mxu0 0
    %1257 = vmatpush.bf16.msra.mxu0 0
    %1258 = vmatpush.bf16.msra.mxu0 %v1147
    %1259 = vmatpush.bf16.msra.mxu0 %v1146
    %1260 = vmatpush.bf16.msra.mxu0 %v1145
    %1261 = vmatpush.bf16.msra.mxu0 %v1144
    %1262 = vmatmul.bf16.gmra.mxu0 %v1153
    %v1263 = vpop.f32.mrf.mxu0
    %v1264 = vadd.f32 0.0, %v1263
    %v1265 = vpop.f32.mrf.mxu0
    %v1266 = vadd.f32 0.0, %v1265
    %1267 = vmatmul.bf16.gmra.mxu0 %v1156
    %v1268 = vpop.f32.mrf.mxu0
    %v1269 = vadd.f32 0.0, %v1268
    %v1270 = vpop.f32.mrf.mxu0
    %v1271 = vadd.f32 0.0, %v1270
    %1272 = vmatmul.bf16.gmra.mxu0 %v1159
    %v1273 = vpop.f32.mrf.mxu0
    %v1274 = vadd.f32 0.0, %v1273
    %v1275 = vpop.f32.mrf.mxu0
    %v1276 = vadd.f32 0.0, %v1275
    %1277 = vmatmul.bf16.gmra.mxu0 %v1162
    %v1278 = vpop.f32.mrf.mxu0
    %v1279 = vadd.f32 0.0, %v1278
    %v1280 = vpop.f32.mrf.mxu0
    %v1281 = vadd.f32 0.0, %v1280
    %1282 = vmatmul.bf16.gmra.mxu0 %v1165
    %v1283 = vpop.f32.mrf.mxu0
    %v1284 = vadd.f32 0.0, %v1283
    %v1285 = vpop.f32.mrf.mxu0
    %v1286 = vadd.f32 0.0, %v1285
    %1287 = vmatmul.bf16.gmra.mxu0 %v1168
    %v1288 = vpop.f32.mrf.mxu0
    %v1289 = vadd.f32 0.0, %v1288
    %v1290 = vpop.f32.mrf.mxu0
    %v1291 = vadd.f32 0.0, %v1290
    %1292 = vmatmul.bf16.gmra.mxu0 %v1171
    %v1293 = vpop.f32.mrf.mxu0
    %v1294 = vadd.f32 0.0, %v1293
    %v1295 = vpop.f32.mrf.mxu0
    %v1296 = vadd.f32 0.0, %v1295
    %1297 = vmatmul.bf16.gmra.mxu0 %v1174
    %v1298 = vpop.f32.mrf.mxu0
    %v1299 = vadd.f32 0.0, %v1298
    %v1300 = vpop.f32.mrf.mxu0
    %v1301 = vadd.f32 0.0, %v1300
    %1302 = vmatmul.bf16.gmra.mxu0 %v1177
    %v1303 = vpop.f32.mrf.mxu0
    %v1304 = vadd.f32 0.0, %v1303
    %v1305 = vpop.f32.mrf.mxu0
    %v1306 = vadd.f32 0.0, %v1305
    %1307 = vmatmul.bf16.gmra.mxu0 %v1180
    %v1308 = vpop.f32.mrf.mxu0
    %v1309 = vadd.f32 0.0, %v1308
    %v1310 = vpop.f32.mrf.mxu0
    %v1311 = vadd.f32 0.0, %v1310
    %1312 = vmatmul.bf16.gmra.mxu0 %v1183
    %v1313 = vpop.f32.mrf.mxu0
    %v1314 = vadd.f32 0.0, %v1313
    %v1315 = vpop.f32.mrf.mxu0
    %v1316 = vadd.f32 0.0, %v1315
    %1317 = vmatmul.bf16.gmra.mxu0 %v1186
    %v1318 = vpop.f32.mrf.mxu0
    %v1319 = vadd.f32 0.0, %v1318
    %v1320 = vpop.f32.mrf.mxu0
    %v1321 = vadd.f32 0.0, %v1320
    %1322 = vmatmul.bf16.gmra.mxu0 %v1189
    %v1323 = vpop.f32.mrf.mxu0
    %v1324 = vadd.f32 0.0, %v1323
    %v1325 = vpop.f32.mrf.mxu0
    %v1326 = vadd.f32 0.0, %v1325
    %1327 = vmatmul.bf16.gmra.mxu0 %v1192
    %v1328 = vpop.f32.mrf.mxu0
    %v1329 = vadd.f32 0.0, %v1328
    %v1330 = vpop.f32.mrf.mxu0
    %v1331 = vadd.f32 0.0, %v1330
    %1332 = vmatmul.bf16.gmra.mxu0 %v1195
    %v1333 = vpop.f32.mrf.mxu0
    %v1334 = vadd.f32 0.0, %v1333
    %v1335 = vpop.f32.mrf.mxu0
    %v1336 = vadd.f32 0.0, %v1335
    %1337 = vmatmul.bf16.gmra.mxu0 %v1198
    %v1338 = vpop.f32.mrf.mxu0
    %v1339 = vadd.f32 0.0, %v1338
    %v1340 = vpop.f32.mrf.mxu0
    %v1341 = vadd.f32 0.0, %v1340
    %1342 = vmatmul.bf16.gmra.mxu0 %v1201
    %v1343 = vpop.f32.mrf.mxu0
    %v1344 = vadd.f32 0.0, %v1343
    %v1345 = vpop.f32.mrf.mxu0
    %v1346 = vadd.f32 0.0, %v1345
    %1347 = vmatmul.bf16.gmra.mxu0 %v1204
    %v1348 = vpop.f32.mrf.mxu0
    %v1349 = vadd.f32 0.0, %v1348
    %v1350 = vpop.f32.mrf.mxu0
    %v1351 = vadd.f32 0.0, %v1350
    %1352 = vmatmul.bf16.gmra.mxu0 %v1207
    %v1353 = vpop.f32.mrf.mxu0
    %v1354 = vadd.f32 0.0, %v1353
    %v1355 = vpop.f32.mrf.mxu0
    %v1356 = vadd.f32 0.0, %v1355
    %1357 = vmatmul.bf16.gmra.mxu0 %v1210
    %v1358 = vpop.f32.mrf.mxu0
    %v1359 = vadd.f32 0.0, %v1358
    %v1360 = vpop.f32.mrf.mxu0
    %v1361 = vadd.f32 0.0, %v1360
    %1362 = vmatmul.bf16.gmra.mxu0 %v1213
    %v1363 = vpop.f32.mrf.mxu0
    %v1364 = vadd.f32 0.0, %v1363
    %v1365 = vpop.f32.mrf.mxu0
    %v1366 = vadd.f32 0.0, %v1365
    %1367 = vmatmul.bf16.gmra.mxu0 %v1216
    %v1368 = vpop.f32.mrf.mxu0
    %v1369 = vadd.f32 0.0, %v1368
    %v1370 = vpop.f32.mrf.mxu0
    %v1371 = vadd.f32 0.0, %v1370
    %1372 = vmatmul.bf16.gmra.mxu0 %v1219
    %v1373 = vpop.f32.mrf.mxu0
    %v1374 = vadd.f32 0.0, %v1373
    %v1375 = vpop.f32.mrf.mxu0
    %v1376 = vadd.f32 0.0, %v1375
    %1377 = vmatmul.bf16.gmra.mxu0 %v1222
    %v1378 = vpop.f32.mrf.mxu0
    %v1379 = vadd.f32 0.0, %v1378
    %v1380 = vpop.f32.mrf.mxu0
    %v1381 = vadd.f32 0.0, %v1380
    %1382 = vmatmul.bf16.gmra.mxu0 %v1225
    %v1383 = vpop.f32.mrf.mxu0
    %v1384 = vadd.f32 0.0, %v1383
    %v1385 = vpop.f32.mrf.mxu0
    %v1386 = vadd.f32 0.0, %v1385
    %1387 = vmatmul.bf16.gmra.mxu0 %v1228
    %v1388 = vpop.f32.mrf.mxu0
    %v1389 = vadd.f32 0.0, %v1388
    %v1390 = vpop.f32.mrf.mxu0
    %v1391 = vadd.f32 0.0, %v1390
    %1392 = vmatmul.bf16.gmra.mxu0 %v1231
    %v1393 = vpop.f32.mrf.mxu0
    %v1394 = vadd.f32 0.0, %v1393
    %v1395 = vpop.f32.mrf.mxu0
    %v1396 = vadd.f32 0.0, %v1395
    %1397 = vmatmul.bf16.gmra.mxu0 %v1234
    %v1398 = vpop.f32.mrf.mxu0
    %v1399 = vadd.f32 0.0, %v1398
    %v1400 = vpop.f32.mrf.mxu0
    %v1401 = vadd.f32 0.0, %v1400
    %1402 = vmatmul.bf16.gmra.mxu0 %v1237
    %v1403 = vpop.f32.mrf.mxu0
    %v1404 = vadd.f32 0.0, %v1403
    %v1405 = vpop.f32.mrf.mxu0
    %v1406 = vadd.f32 0.0, %v1405
    %1407 = vmatmul.bf16.gmra.mxu0 %v1240
    %v1408 = vpop.f32.mrf.mxu0
    %v1409 = vadd.f32 0.0, %v1408
    %v1410 = vpop.f32.mrf.mxu0
    %v1411 = vadd.f32 0.0, %v1410
    %1412 = vmatmul.bf16.gmra.mxu0 %v1243
    %v1413 = vpop.f32.mrf.mxu0
    %v1414 = vadd.f32 0.0, %v1413
    %v1415 = vpop.f32.mrf.mxu0
    %v1416 = vadd.f32 0.0, %v1415
    %1417 = vmatmul.bf16.gmra.mxu0 %v1246
    %v1418 = vpop.f32.mrf.mxu0
    %v1419 = vadd.f32 0.0, %v1418
    %v1420 = vpop.f32.mrf.mxu0
    %v1421 = vadd.f32 0.0, %v1420
    %1422 = vmatmul.bf16.gmra.mxu0 %v1249
    %v1423 = vpop.f32.mrf.mxu0
    %v1424 = vadd.f32 0.0, %v1423
    %v1425 = vpop.f32.mrf.mxu0
    %v1426 = vadd.f32 0.0, %v1425
    %1427 = vmatmul.bf16.gmra.mxu0 %v1252
    %v1428 = vpop.f32.mrf.mxu0
    %v1429 = vadd.f32 0.0, %v1428
    %v1430 = vpop.f32.mrf.mxu0
    %1431 = vdwg.mxu0
    %v1440 = vunpack.c.l.b16 %v1010
    %v1441 = vunpack.c.l.b16 %v1011
    %v1442 = vunpack.c.l.b16 %v1012
    %v1443 = vunpack.c.l.b16 %v1013
    %v1444 = vunpack.c.l.b16 %v1014
    %v1445 = vunpack.c.l.b16 %v1015
    %v1446 = vunpack.c.l.b16 %v1016
    %v1447 = vunpack.c.l.b16 %v1017
    %v1448 = vpack.c.b16 %v1441, %v1440
    %v1449 = vpack.c.b16 %v1443, %v1442
    %v1450 = vpack.c.b16 %v1445, %v1444
    %v1451 = vpack.c.b16 %v1447, %v1446
    %v1457 = vsel %vm836, %v976, 0
    %v1460 = vsel %vm836, %v977, 0
    %v1463 = vsel %vm836, %v978, 0
    %v1466 = vsel %vm836, %v979, 0
    %v1469 = vsel %vm836, %v980, 0
    %v1472 = vsel %vm836, %v981, 0
    %v1475 = vsel %vm836, %v982, 0
    %v1478 = vsel %vm836, %v983, 0
    %v1481 = vsel %vm836, %v984, 0
    %v1484 = vsel %vm836, %v985, 0
    %v1487 = vsel %vm836, %v986, 0
    %v1490 = vsel %vm836, %v987, 0
    %v1493 = vsel %vm836, %v988, 0
    %v1496 = vsel %vm836, %v989, 0
    %v1499 = vsel %vm836, %v990, 0
    %v1502 = vsel %vm836, %v991, 0
    %v1505 = vsel %vm836, %v992, 0
    %v1508 = vsel %vm836, %v993, 0
    %v1511 = vsel %vm836, %v994, 0
    %v1514 = vsel %vm836, %v995, 0
    %v1517 = vsel %vm836, %v996, 0
    %v1520 = vsel %vm836, %v997, 0
    %v1523 = vsel %vm836, %v998, 0
    %v1526 = vsel %vm836, %v999, 0
    %v1529 = vsel %vm836, %v1000, 0
    %v1532 = vsel %vm836, %v1001, 0
    %v1535 = vsel %vm836, %v1002, 0
    %v1538 = vsel %vm836, %v1003, 0
    %v1541 = vsel %vm836, %v1004, 0
    %v1544 = vsel %vm836, %v1005, 0
    %v1547 = vsel %vm836, %v1006, 0
    %v1550 = vsel %vm836, %v1007, 0
    %v1553 = vsel %vm836, %v1008, 0
    %v1556 = vsel %vm836, %v1009, 0
    %1558 = vmatpush.bf16.msra.mxu0 0
    %1559 = vmatpush.bf16.msra.mxu0 0
    %1560 = vmatpush.bf16.msra.mxu0 0
    %1561 = vmatpush.bf16.msra.mxu0 0
    %1562 = vmatpush.bf16.msra.mxu0 %v1451
    %1563 = vmatpush.bf16.msra.mxu0 %v1450
    %1564 = vmatpush.bf16.msra.mxu0 %v1449
    %1565 = vmatpush.bf16.msra.mxu0 %v1448
    %1566 = vmatmul.bf16.gmra.mxu0 %v1457
    %v1567 = vpop.f32.mrf.mxu0
    %v1568 = vadd.f32 %v1264, %v1567
    %v1569 = vpop.f32.mrf.mxu0
    %v1570 = vadd.f32 %v1266, %v1569
    %1571 = vmatmul.bf16.gmra.mxu0 %v1460
    %v1572 = vpop.f32.mrf.mxu0
    %v1573 = vadd.f32 %v1269, %v1572
    %v1574 = vpop.f32.mrf.mxu0
    %v1575 = vadd.f32 %v1271, %v1574
    %1576 = vmatmul.bf16.gmra.mxu0 %v1463
    %v1577 = vpop.f32.mrf.mxu0
    %v1578 = vadd.f32 %v1274, %v1577
    %v1579 = vpop.f32.mrf.mxu0
    %v1580 = vadd.f32 %v1276, %v1579
    %1581 = vmatmul.bf16.gmra.mxu0 %v1466
    %v1582 = vpop.f32.mrf.mxu0
    %v1583 = vadd.f32 %v1279, %v1582
    %v1584 = vpop.f32.mrf.mxu0
    %v1585 = vadd.f32 %v1281, %v1584
    %1586 = vmatmul.bf16.gmra.mxu0 %v1469
    %v1587 = vpop.f32.mrf.mxu0
    %v1588 = vadd.f32 %v1284, %v1587
    %v1589 = vpop.f32.mrf.mxu0
    %v1590 = vadd.f32 %v1286, %v1589
    %1591 = vmatmul.bf16.gmra.mxu0 %v1472
    %v1592 = vpop.f32.mrf.mxu0
    %v1593 = vadd.f32 %v1289, %v1592
    %v1594 = vpop.f32.mrf.mxu0
    %v1595 = vadd.f32 %v1291, %v1594
    %1596 = vmatmul.bf16.gmra.mxu0 %v1475
    %v1597 = vpop.f32.mrf.mxu0
    %v1598 = vadd.f32 %v1294, %v1597
    %v1599 = vpop.f32.mrf.mxu0
    %v1600 = vadd.f32 %v1296, %v1599
    %1601 = vmatmul.bf16.gmra.mxu0 %v1478
    %v1602 = vpop.f32.mrf.mxu0
    %v1603 = vadd.f32 %v1299, %v1602
    %v1604 = vpop.f32.mrf.mxu0
    %v1605 = vadd.f32 %v1301, %v1604
    %1606 = vmatmul.bf16.gmra.mxu0 %v1481
    %v1607 = vpop.f32.mrf.mxu0
    %v1608 = vadd.f32 %v1304, %v1607
    %v1609 = vpop.f32.mrf.mxu0
    %v1610 = vadd.f32 %v1306, %v1609
    %1611 = vmatmul.bf16.gmra.mxu0 %v1484
    %v1612 = vpop.f32.mrf.mxu0
    %v1613 = vadd.f32 %v1309, %v1612
    %v1614 = vpop.f32.mrf.mxu0
    %v1615 = vadd.f32 %v1311, %v1614
    %1616 = vmatmul.bf16.gmra.mxu0 %v1487
    %v1617 = vpop.f32.mrf.mxu0
    %v1618 = vadd.f32 %v1314, %v1617
    %v1619 = vpop.f32.mrf.mxu0
    %v1620 = vadd.f32 %v1316, %v1619
    %1621 = vmatmul.bf16.gmra.mxu0 %v1490
    %v1622 = vpop.f32.mrf.mxu0
    %v1623 = vadd.f32 %v1319, %v1622
    %v1624 = vpop.f32.mrf.mxu0
    %v1625 = vadd.f32 %v1321, %v1624
    %1626 = vmatmul.bf16.gmra.mxu0 %v1493
    %v1627 = vpop.f32.mrf.mxu0
    %v1628 = vadd.f32 %v1324, %v1627
    %v1629 = vpop.f32.mrf.mxu0
    %v1630 = vadd.f32 %v1326, %v1629
    %1631 = vmatmul.bf16.gmra.mxu0 %v1496
    %v1632 = vpop.f32.mrf.mxu0
    %v1633 = vadd.f32 %v1329, %v1632
    %v1634 = vpop.f32.mrf.mxu0
    %v1635 = vadd.f32 %v1331, %v1634
    %1636 = vmatmul.bf16.gmra.mxu0 %v1499
    %v1637 = vpop.f32.mrf.mxu0
    %v1638 = vadd.f32 %v1334, %v1637
    %v1639 = vpop.f32.mrf.mxu0
    %v1640 = vadd.f32 %v1336, %v1639
    %1641 = vmatmul.bf16.gmra.mxu0 %v1502
    %v1642 = vpop.f32.mrf.mxu0
    %v1643 = vadd.f32 %v1339, %v1642
    %v1644 = vpop.f32.mrf.mxu0
    %v1645 = vadd.f32 %v1341, %v1644
    %1646 = vmatmul.bf16.gmra.mxu0 %v1505
    %v1647 = vpop.f32.mrf.mxu0
    %v1648 = vadd.f32 %v1344, %v1647
    %v1649 = vpop.f32.mrf.mxu0
    %v1650 = vadd.f32 %v1346, %v1649
    %1651 = vmatmul.bf16.gmra.mxu0 %v1508
    %v1652 = vpop.f32.mrf.mxu0
    %v1653 = vadd.f32 %v1349, %v1652
    %v1654 = vpop.f32.mrf.mxu0
    %v1655 = vadd.f32 %v1351, %v1654
    %1656 = vmatmul.bf16.gmra.mxu0 %v1511
    %v1657 = vpop.f32.mrf.mxu0
    %v1658 = vadd.f32 %v1354, %v1657
    %v1659 = vpop.f32.mrf.mxu0
    %v1660 = vadd.f32 %v1356, %v1659
    %1661 = vmatmul.bf16.gmra.mxu0 %v1514
    %v1662 = vpop.f32.mrf.mxu0
    %v1663 = vadd.f32 %v1359, %v1662
    %v1664 = vpop.f32.mrf.mxu0
    %v1665 = vadd.f32 %v1361, %v1664
    %1666 = vmatmul.bf16.gmra.mxu0 %v1517
    %v1667 = vpop.f32.mrf.mxu0
    %v1668 = vadd.f32 %v1364, %v1667
    %v1669 = vpop.f32.mrf.mxu0
    %v1670 = vadd.f32 %v1366, %v1669
    %1671 = vmatmul.bf16.gmra.mxu0 %v1520
    %v1672 = vpop.f32.mrf.mxu0
    %v1673 = vadd.f32 %v1369, %v1672
    %v1674 = vpop.f32.mrf.mxu0
    %v1675 = vadd.f32 %v1371, %v1674
    %1676 = vmatmul.bf16.gmra.mxu0 %v1523
    %v1677 = vpop.f32.mrf.mxu0
    %v1678 = vadd.f32 %v1374, %v1677
    %v1679 = vpop.f32.mrf.mxu0
    %v1680 = vadd.f32 %v1376, %v1679
    %1681 = vmatmul.bf16.gmra.mxu0 %v1526
    %v1682 = vpop.f32.mrf.mxu0
    %v1683 = vadd.f32 %v1379, %v1682
    %v1684 = vpop.f32.mrf.mxu0
    %v1685 = vadd.f32 %v1381, %v1684
    %1686 = vmatmul.bf16.gmra.mxu0 %v1529
    %v1687 = vpop.f32.mrf.mxu0
    %v1688 = vadd.f32 %v1384, %v1687
    %v1689 = vpop.f32.mrf.mxu0
    %v1690 = vadd.f32 %v1386, %v1689
    %1691 = vmatmul.bf16.gmra.mxu0 %v1532
    %v1692 = vpop.f32.mrf.mxu0
    %v1693 = vadd.f32 %v1389, %v1692
    %v1694 = vpop.f32.mrf.mxu0
    %v1695 = vadd.f32 %v1391, %v1694
    %1696 = vmatmul.bf16.gmra.mxu0 %v1535
    %v1697 = vpop.f32.mrf.mxu0
    %v1698 = vadd.f32 %v1394, %v1697
    %v1699 = vpop.f32.mrf.mxu0
    %v1700 = vadd.f32 %v1396, %v1699
    %1701 = vmatmul.bf16.gmra.mxu0 %v1538
    %v1702 = vpop.f32.mrf.mxu0
    %v1703 = vadd.f32 %v1399, %v1702
    %v1704 = vpop.f32.mrf.mxu0
    %v1705 = vadd.f32 %v1401, %v1704
    %1706 = vmatmul.bf16.gmra.mxu0 %v1541
    %v1707 = vpop.f32.mrf.mxu0
    %v1708 = vadd.f32 %v1404, %v1707
    %v1709 = vpop.f32.mrf.mxu0
    %v1710 = vadd.f32 %v1406, %v1709
    %1711 = vmatmul.bf16.gmra.mxu0 %v1544
    %v1712 = vpop.f32.mrf.mxu0
    %v1713 = vadd.f32 %v1409, %v1712
    %v1714 = vpop.f32.mrf.mxu0
    %v1715 = vadd.f32 %v1411, %v1714
    %1716 = vmatmul.bf16.gmra.mxu0 %v1547
    %v1717 = vpop.f32.mrf.mxu0
    %v1718 = vadd.f32 %v1414, %v1717
    %v1719 = vpop.f32.mrf.mxu0
    %v1720 = vadd.f32 %v1416, %v1719
    %1721 = vmatmul.bf16.gmra.mxu0 %v1550
    %v1722 = vpop.f32.mrf.mxu0
    %v1723 = vadd.f32 %v1419, %v1722
    %v1724 = vpop.f32.mrf.mxu0
    %v1725 = vadd.f32 %v1421, %v1724
    %1726 = vmatmul.bf16.gmra.mxu0 %v1553
    %v1727 = vpop.f32.mrf.mxu0
    %v1728 = vadd.f32 %v1424, %v1727
    %v1729 = vpop.f32.mrf.mxu0
    %v1730 = vadd.f32 %v1426, %v1729
    %1731 = vmatmul.bf16.gmra.mxu0 %v1556
    %v1732 = vpop.f32.mrf.mxu0
    %v1733 = vadd.f32 %v1429, %v1732
    %v1734 = vpop.f32.mrf.mxu0
    %1735 = vdwg.mxu0
    %v1736 = vld [vmem:[#allocation2 + $0x2] sm:$0xff]
    %v1737 = vld [vmem:[#allocation2 + $0xa] sm:$0xff]
    %v1738 = vld [vmem:[#allocation2 + $0x12] sm:$0xff]
    %v1739 = vld [vmem:[#allocation2 + $0x1a] sm:$0xff]
    %v1740 = vld [vmem:[#allocation2 + $0x22] sm:$0xff]
    %v1741 = vld [vmem:[#allocation2 + $0x2a] sm:$0xff]
    %v1742 = vld [vmem:[#allocation2 + $0x32] sm:$0xff]
    %v1743 = vld [vmem:[#allocation2 + $0x3a] sm:$0xff]
    %v1744 = vld [vmem:[#allocation2 + $0x42] sm:$0xff]
    %v1745 = vld [vmem:[#allocation2 + $0x4a] sm:$0xff]
    %v1746 = vld [vmem:[#allocation2 + $0x52] sm:$0xff]
    %v1747 = vld [vmem:[#allocation2 + $0x5a] sm:$0xff]
    %v1748 = vld [vmem:[#allocation2 + $0x62] sm:$0xff]
    %v1749 = vld [vmem:[#allocation2 + $0x6a] sm:$0xff]
    %v1750 = vld [vmem:[#allocation2 + $0x72] sm:$0xff]
    %v1751 = vld [vmem:[#allocation2 + $0x7a] sm:$0xff]
    %v1752 = vld [vmem:[#allocation2 + $0x82] sm:$0xff]
    %v1753 = vld [vmem:[#allocation2 + $0x8a] sm:$0xff]
    %v1754 = vld [vmem:[#allocation2 + $0x92] sm:$0xff]
    %v1755 = vld [vmem:[#allocation2 + $0x9a] sm:$0xff]
    %v1756 = vld [vmem:[#allocation2 + $0xa2] sm:$0xff]
    %v1757 = vld [vmem:[#allocation2 + $0xaa] sm:$0xff]
    %v1758 = vld [vmem:[#allocation2 + $0xb2] sm:$0xff]
    %v1759 = vld [vmem:[#allocation2 + $0xba] sm:$0xff]
    %v1760 = vld [vmem:[#allocation2 + $0xc2] sm:$0xff]
    %v1761 = vld [vmem:[#allocation2 + $0xca] sm:$0xff]
    %v1762 = vld [vmem:[#allocation2 + $0xd2] sm:$0xff]
    %v1763 = vld [vmem:[#allocation2 + $0xda] sm:$0xff]
    %v1764 = vld [vmem:[#allocation2 + $0xe2] sm:$0xff]
    %v1765 = vld [vmem:[#allocation2 + $0xea] sm:$0xff]
    %v1766 = vld [vmem:[#allocation2 + $0xf2] sm:$0xff]
    %v1767 = vld [vmem:[#allocation2 + $0xfa] sm:$0xff]
    %v1768 = vld [vmem:[#allocation2 + $0x102] sm:$0xff]
    %v1769 = vld [vmem:[#allocation2 + $0x10a] sm:$0xff]
    %v1770 = vld [vmem:[#allocation2 + $0x112] sm:$0xff]
    %v1771 = vld [vmem:[#allocation2 + $0x11a] sm:$0xff]
    %v1772 = vld [vmem:[#allocation2 + $0x122] sm:$0xff]
    %v1773 = vld [vmem:[#allocation2 + $0x12a] sm:$0xff]
    %v1774 = vld [vmem:[#allocation2 + $0x132] sm:$0xff]
    %v1775 = vld [vmem:[#allocation2 + $0x13a] sm:$0xff]
    %v1776 = vld [vmem:[#allocation2 + $0x142] sm:$0xff]
    %v1777 = vld [vmem:[#allocation2 + $0x14a] sm:$0xff]
    %v1778 = vld [vmem:[#allocation2 + $0x152] sm:$0xff]
    %v1779 = vld [vmem:[#allocation2 + $0x15a] sm:$0xff]
    %v1780 = vld [vmem:[#allocation2 + $0x162] sm:$0xff]
    %v1781 = vld [vmem:[#allocation2 + $0x16a] sm:$0xff]
    %v1782 = vld [vmem:[#allocation2 + $0x172] sm:$0xff]
    %v1783 = vld [vmem:[#allocation2 + $0x17a] sm:$0xff]
    %v1784 = vld [vmem:[#allocation2 + $0x182] sm:$0xff]
    %v1785 = vld [vmem:[#allocation2 + $0x18a] sm:$0xff]
    %v1786 = vld [vmem:[#allocation2 + $0x192] sm:$0xff]
    %v1787 = vld [vmem:[#allocation2 + $0x19a] sm:$0xff]
    %v1788 = vld [vmem:[#allocation2 + $0x1a2] sm:$0xff]
    %v1789 = vld [vmem:[#allocation2 + $0x1aa] sm:$0xff]
    %v1790 = vld [vmem:[#allocation2 + $0x1b2] sm:$0xff]
    %v1791 = vld [vmem:[#allocation2 + $0x1ba] sm:$0xff]
    %v1792 = vld [vmem:[#allocation2 + $0x1c2] sm:$0xff]
    %v1793 = vld [vmem:[#allocation2 + $0x1ca] sm:$0xff]
    %v1794 = vld [vmem:[#allocation2 + $0x1d2] sm:$0xff]
    %v1795 = vld [vmem:[#allocation2 + $0x1da] sm:$0xff]
    %v1796 = vld [vmem:[#allocation2 + $0x1e2] sm:$0xff]
    %v1797 = vld [vmem:[#allocation2 + $0x1ea] sm:$0xff]
    %v1798 = vld [vmem:[#allocation2 + $0x1f2] sm:$0xff]
    %v1799 = vld [vmem:[#allocation2 + $0x1fa] sm:$0xff]
    %v1800 = vld [vmem:[#allocation2 + $0x202] sm:$0xff]
    %v1801 = vld [vmem:[#allocation2 + $0x20a] sm:$0xff]
    %v1802 = vld [vmem:[#allocation2 + $0x212] sm:$0xff]
    %v1803 = vpack.c.bf16 %v1737, %v1736
    %v1804 = vpack.c.bf16 %v1739, %v1738
    %v1805 = vpack.c.bf16 %v1741, %v1740
    %v1806 = vpack.c.bf16 %v1743, %v1742
    %v1807 = vpack.c.bf16 %v1745, %v1744
    %v1808 = vpack.c.bf16 %v1747, %v1746
    %v1809 = vpack.c.bf16 %v1749, %v1748
    %v1810 = vpack.c.bf16 %v1751, %v1750
    %v1811 = vpack.c.bf16 %v1753, %v1752
    %v1812 = vpack.c.bf16 %v1755, %v1754
    %v1813 = vpack.c.bf16 %v1757, %v1756
    %v1814 = vpack.c.bf16 %v1759, %v1758
    %v1815 = vpack.c.bf16 %v1761, %v1760
    %v1816 = vpack.c.bf16 %v1763, %v1762
    %v1817 = vpack.c.bf16 %v1765, %v1764
    %v1818 = vpack.c.bf16 %v1767, %v1766
    %v1819 = vpack.c.bf16 %v1769, %v1768
    %v1820 = vpack.c.bf16 %v1771, %v1770
    %v1821 = vpack.c.bf16 %v1773, %v1772
    %v1822 = vpack.c.bf16 %v1775, %v1774
    %v1823 = vpack.c.bf16 %v1777, %v1776
    %v1824 = vpack.c.bf16 %v1779, %v1778
    %v1825 = vpack.c.bf16 %v1781, %v1780
    %v1826 = vpack.c.bf16 %v1783, %v1782
    %v1827 = vpack.c.bf16 %v1785, %v1784
    %v1828 = vpack.c.bf16 %v1787, %v1786
    %v1829 = vpack.c.bf16 %v1789, %v1788
    %v1830 = vpack.c.bf16 %v1791, %v1790
    %v1831 = vpack.c.bf16 %v1793, %v1792
    %v1832 = vpack.c.bf16 %v1795, %v1794
    %v1833 = vpack.c.bf16 %v1797, %v1796
    %v1834 = vpack.c.bf16 %v1799, %v1798
    %v1835 = vpack.c.bf16 %v1801, %v1800
    %v1836 = vpack.c.bf16 %v1802, %v1802
    %s1837 = scalar_lea.vmem %s3, 64
    %v1838 = vld [vmem:[%s1837] sm:$0xf]
    %v1839 = vld [vmem:[%s1837 + $0x4] sm:$0xf]
    %v1840 = vld [vmem:[%s1837 + $0x8] sm:$0xf]
    %v1841 = vld [vmem:[%s1837 + $0xc] sm:$0xf]
    %v1842 = vld [vmem:[%s1837 + $0x10] sm:$0xf]
    %v1843 = vld [vmem:[%s1837 + $0x14] sm:$0xf]
    %v1844 = vld [vmem:[%s1837 + $0x18] sm:$0xf]
    %v1845 = vld [vmem:[%s1837 + $0x1c] sm:$0xf]
    %v1854 = vunpack.c.l.b16 %v1838
    %v1855 = vunpack.c.l.b16 %v1839
    %v1856 = vunpack.c.l.b16 %v1840
    %v1857 = vunpack.c.l.b16 %v1841
    %v1858 = vunpack.c.l.b16 %v1842
    %v1859 = vunpack.c.l.b16 %v1843
    %v1860 = vunpack.c.l.b16 %v1844
    %v1861 = vunpack.c.l.b16 %v1845
    %v1862 = vpack.c.b16 %v1855, %v1854
    %v1863 = vpack.c.b16 %v1857, %v1856
    %v1864 = vpack.c.b16 %v1859, %v1858
    %v1865 = vpack.c.b16 %v1861, %v1860
    %v1871 = vsel %vm836, %v1803, 0
    %v1874 = vsel %vm836, %v1804, 0
    %v1877 = vsel %vm836, %v1805, 0
    %v1880 = vsel %vm836, %v1806, 0
    %v1883 = vsel %vm836, %v1807, 0
    %v1886 = vsel %vm836, %v1808, 0
    %v1889 = vsel %vm836, %v1809, 0
    %v1892 = vsel %vm836, %v1810, 0
    %v1895 = vsel %vm836, %v1811, 0
    %v1898 = vsel %vm836, %v1812, 0
    %v1901 = vsel %vm836, %v1813, 0
    %v1904 = vsel %vm836, %v1814, 0
    %v1907 = vsel %vm836, %v1815, 0
    %v1910 = vsel %vm836, %v1816, 0
    %v1913 = vsel %vm836, %v1817, 0
    %v1916 = vsel %vm836, %v1818, 0
    %v1919 = vsel %vm836, %v1819, 0
    %v1922 = vsel %vm836, %v1820, 0
    %v1925 = vsel %vm836, %v1821, 0
    %v1928 = vsel %vm836, %v1822, 0
    %v1931 = vsel %vm836, %v1823, 0
    %v1934 = vsel %vm836, %v1824, 0
    %v1937 = vsel %vm836, %v1825, 0
    %v1940 = vsel %vm836, %v1826, 0
    %v1943 = vsel %vm836, %v1827, 0
    %v1946 = vsel %vm836, %v1828, 0
    %v1949 = vsel %vm836, %v1829, 0
    %v1952 = vsel %vm836, %v1830, 0
    %v1955 = vsel %vm836, %v1831, 0
    %v1958 = vsel %vm836, %v1832, 0
    %v1961 = vsel %vm836, %v1833, 0
    %v1964 = vsel %vm836, %v1834, 0
    %v1967 = vsel %vm836, %v1835, 0
    %v1970 = vsel %vm836, %v1836, 0
    %1972 = vmatpush.bf16.msra.mxu0 0
    %1973 = vmatpush.bf16.msra.mxu0 0
    %1974 = vmatpush.bf16.msra.mxu0 0
    %1975 = vmatpush.bf16.msra.mxu0 0
    %1976 = vmatpush.bf16.msra.mxu0 %v1865
    %1977 = vmatpush.bf16.msra.mxu0 %v1864
    %1978 = vmatpush.bf16.msra.mxu0 %v1863
    %1979 = vmatpush.bf16.msra.mxu0 %v1862
    %1980 = vmatmul.bf16.gmra.mxu0 %v1871
    %v1981 = vpop.f32.mrf.mxu0
    %v1982 = vadd.f32 0.0, %v1981
    %v1983 = vpop.f32.mrf.mxu0
    %v1984 = vadd.f32 0.0, %v1983
    %1985 = vmatmul.bf16.gmra.mxu0 %v1874
    %v1986 = vpop.f32.mrf.mxu0
    %v1987 = vadd.f32 0.0, %v1986
    %v1988 = vpop.f32.mrf.mxu0
    %v1989 = vadd.f32 0.0, %v1988
    %1990 = vmatmul.bf16.gmra.mxu0 %v1877
    %v1991 = vpop.f32.mrf.mxu0
    %v1992 = vadd.f32 0.0, %v1991
    %v1993 = vpop.f32.mrf.mxu0
    %v1994 = vadd.f32 0.0, %v1993
    %1995 = vmatmul.bf16.gmra.mxu0 %v1880
    %v1996 = vpop.f32.mrf.mxu0
    %v1997 = vadd.f32 0.0, %v1996
    %v1998 = vpop.f32.mrf.mxu0
    %v1999 = vadd.f32 0.0, %v1998
    %2000 = vmatmul.bf16.gmra.mxu0 %v1883
    %v2001 = vpop.f32.mrf.mxu0
    %v2002 = vadd.f32 0.0, %v2001
    %v2003 = vpop.f32.mrf.mxu0
    %v2004 = vadd.f32 0.0, %v2003
    %2005 = vmatmul.bf16.gmra.mxu0 %v1886
    %v2006 = vpop.f32.mrf.mxu0
    %v2007 = vadd.f32 0.0, %v2006
    %v2008 = vpop.f32.mrf.mxu0
    %v2009 = vadd.f32 0.0, %v2008
    %2010 = vmatmul.bf16.gmra.mxu0 %v1889
    %v2011 = vpop.f32.mrf.mxu0
    %v2012 = vadd.f32 0.0, %v2011
    %v2013 = vpop.f32.mrf.mxu0
    %v2014 = vadd.f32 0.0, %v2013
    %2015 = vmatmul.bf16.gmra.mxu0 %v1892
    %v2016 = vpop.f32.mrf.mxu0
    %v2017 = vadd.f32 0.0, %v2016
    %v2018 = vpop.f32.mrf.mxu0
    %v2019 = vadd.f32 0.0, %v2018
    %2020 = vmatmul.bf16.gmra.mxu0 %v1895
    %v2021 = vpop.f32.mrf.mxu0
    %v2022 = vadd.f32 0.0, %v2021
    %v2023 = vpop.f32.mrf.mxu0
    %v2024 = vadd.f32 0.0, %v2023
    %2025 = vmatmul.bf16.gmra.mxu0 %v1898
    %v2026 = vpop.f32.mrf.mxu0
    %v2027 = vadd.f32 0.0, %v2026
    %v2028 = vpop.f32.mrf.mxu0
    %v2029 = vadd.f32 0.0, %v2028
    %2030 = vmatmul.bf16.gmra.mxu0 %v1901
    %v2031 = vpop.f32.mrf.mxu0
    %v2032 = vadd.f32 0.0, %v2031
    %v2033 = vpop.f32.mrf.mxu0
    %v2034 = vadd.f32 0.0, %v2033
    %2035 = vmatmul.bf16.gmra.mxu0 %v1904
    %v2036 = vpop.f32.mrf.mxu0
    %v2037 = vadd.f32 0.0, %v2036
    %v2038 = vpop.f32.mrf.mxu0
    %v2039 = vadd.f32 0.0, %v2038
    %2040 = vmatmul.bf16.gmra.mxu0 %v1907
    %v2041 = vpop.f32.mrf.mxu0
    %v2042 = vadd.f32 0.0, %v2041
    %v2043 = vpop.f32.mrf.mxu0
    %v2044 = vadd.f32 0.0, %v2043
    %2045 = vmatmul.bf16.gmra.mxu0 %v1910
    %v2046 = vpop.f32.mrf.mxu0
    %v2047 = vadd.f32 0.0, %v2046
    %v2048 = vpop.f32.mrf.mxu0
    %v2049 = vadd.f32 0.0, %v2048
    %2050 = vmatmul.bf16.gmra.mxu0 %v1913
    %v2051 = vpop.f32.mrf.mxu0
    %v2052 = vadd.f32 0.0, %v2051
    %v2053 = vpop.f32.mrf.mxu0
    %v2054 = vadd.f32 0.0, %v2053
    %2055 = vmatmul.bf16.gmra.mxu0 %v1916
    %v2056 = vpop.f32.mrf.mxu0
    %v2057 = vadd.f32 0.0, %v2056
    %v2058 = vpop.f32.mrf.mxu0
    %v2059 = vadd.f32 0.0, %v2058
    %2060 = vmatmul.bf16.gmra.mxu0 %v1919
    %v2061 = vpop.f32.mrf.mxu0
    %v2062 = vadd.f32 0.0, %v2061
    %v2063 = vpop.f32.mrf.mxu0
    %v2064 = vadd.f32 0.0, %v2063
    %2065 = vmatmul.bf16.gmra.mxu0 %v1922
    %v2066 = vpop.f32.mrf.mxu0
    %v2067 = vadd.f32 0.0, %v2066
    %v2068 = vpop.f32.mrf.mxu0
    %v2069 = vadd.f32 0.0, %v2068
    %2070 = vmatmul.bf16.gmra.mxu0 %v1925
    %v2071 = vpop.f32.mrf.mxu0
    %v2072 = vadd.f32 0.0, %v2071
    %v2073 = vpop.f32.mrf.mxu0
    %v2074 = vadd.f32 0.0, %v2073
    %2075 = vmatmul.bf16.gmra.mxu0 %v1928
    %v2076 = vpop.f32.mrf.mxu0
    %v2077 = vadd.f32 0.0, %v2076
    %v2078 = vpop.f32.mrf.mxu0
    %v2079 = vadd.f32 0.0, %v2078
    %2080 = vmatmul.bf16.gmra.mxu0 %v1931
    %v2081 = vpop.f32.mrf.mxu0
    %v2082 = vadd.f32 0.0, %v2081
    %v2083 = vpop.f32.mrf.mxu0
    %v2084 = vadd.f32 0.0, %v2083
    %2085 = vmatmul.bf16.gmra.mxu0 %v1934
    %v2086 = vpop.f32.mrf.mxu0
    %v2087 = vadd.f32 0.0, %v2086
    %v2088 = vpop.f32.mrf.mxu0
    %v2089 = vadd.f32 0.0, %v2088
    %2090 = vmatmul.bf16.gmra.mxu0 %v1937
    %v2091 = vpop.f32.mrf.mxu0
    %v2092 = vadd.f32 0.0, %v2091
    %v2093 = vpop.f32.mrf.mxu0
    %v2094 = vadd.f32 0.0, %v2093
    %2095 = vmatmul.bf16.gmra.mxu0 %v1940
    %v2096 = vpop.f32.mrf.mxu0
    %v2097 = vadd.f32 0.0, %v2096
    %v2098 = vpop.f32.mrf.mxu0
    %v2099 = vadd.f32 0.0, %v2098
    %2100 = vmatmul.bf16.gmra.mxu0 %v1943
    %v2101 = vpop.f32.mrf.mxu0
    %v2102 = vadd.f32 0.0, %v2101
    %v2103 = vpop.f32.mrf.mxu0
    %v2104 = vadd.f32 0.0, %v2103
    %2105 = vmatmul.bf16.gmra.mxu0 %v1946
    %v2106 = vpop.f32.mrf.mxu0
    %v2107 = vadd.f32 0.0, %v2106
    %v2108 = vpop.f32.mrf.mxu0
    %v2109 = vadd.f32 0.0, %v2108
    %2110 = vmatmul.bf16.gmra.mxu0 %v1949
    %v2111 = vpop.f32.mrf.mxu0
    %v2112 = vadd.f32 0.0, %v2111
    %v2113 = vpop.f32.mrf.mxu0
    %v2114 = vadd.f32 0.0, %v2113
    %2115 = vmatmul.bf16.gmra.mxu0 %v1952
    %v2116 = vpop.f32.mrf.mxu0
    %v2117 = vadd.f32 0.0, %v2116
    %v2118 = vpop.f32.mrf.mxu0
    %v2119 = vadd.f32 0.0, %v2118
    %2120 = vmatmul.bf16.gmra.mxu0 %v1955
    %v2121 = vpop.f32.mrf.mxu0
    %v2122 = vadd.f32 0.0, %v2121
    %v2123 = vpop.f32.mrf.mxu0
    %v2124 = vadd.f32 0.0, %v2123
    %2125 = vmatmul.bf16.gmra.mxu0 %v1958
    %v2126 = vpop.f32.mrf.mxu0
    %v2127 = vadd.f32 0.0, %v2126
    %v2128 = vpop.f32.mrf.mxu0
    %v2129 = vadd.f32 0.0, %v2128
    %2130 = vmatmul.bf16.gmra.mxu0 %v1961
    %v2131 = vpop.f32.mrf.mxu0
    %v2132 = vadd.f32 0.0, %v2131
    %v2133 = vpop.f32.mrf.mxu0
    %v2134 = vadd.f32 0.0, %v2133
    %2135 = vmatmul.bf16.gmra.mxu0 %v1964
    %v2136 = vpop.f32.mrf.mxu0
    %v2137 = vadd.f32 0.0, %v2136
    %v2138 = vpop.f32.mrf.mxu0
    %v2139 = vadd.f32 0.0, %v2138
    %2140 = vmatmul.bf16.gmra.mxu0 %v1967
    %v2141 = vpop.f32.mrf.mxu0
    %v2142 = vadd.f32 0.0, %v2141
    %v2143 = vpop.f32.mrf.mxu0
    %v2144 = vadd.f32 0.0, %v2143
    %2145 = vmatmul.bf16.gmra.mxu0 %v1970
    %v2146 = vpop.f32.mrf.mxu0
    %v2147 = vadd.f32 0.0, %v2146
    %v2148 = vpop.f32.mrf.mxu0
    %2149 = vdwg.mxu0
    %v2150 = vadd.f32 %v1568, %v1982
    %v2151 = vadd.f32 %v1570, %v1984
    %v2152 = vadd.f32 %v1573, %v1987
    %v2153 = vadd.f32 %v1575, %v1989
    %v2154 = vadd.f32 %v1578, %v1992
    %v2155 = vadd.f32 %v1580, %v1994
    %v2156 = vadd.f32 %v1583, %v1997
    %v2157 = vadd.f32 %v1585, %v1999
    %v2158 = vadd.f32 %v1588, %v2002
    %v2159 = vadd.f32 %v1590, %v2004
    %v2160 = vadd.f32 %v1593, %v2007
    %v2161 = vadd.f32 %v1595, %v2009
    %v2162 = vadd.f32 %v1598, %v2012
    %v2163 = vadd.f32 %v1600, %v2014
    %v2164 = vadd.f32 %v1603, %v2017
    %v2165 = vadd.f32 %v1605, %v2019
    %v2166 = vadd.f32 %v1608, %v2022
    %v2167 = vadd.f32 %v1610, %v2024
    %v2168 = vadd.f32 %v1613, %v2027
    %v2169 = vadd.f32 %v1615, %v2029
    %v2170 = vadd.f32 %v1618, %v2032
    %v2171 = vadd.f32 %v1620, %v2034
    %v2172 = vadd.f32 %v1623, %v2037
    %v2173 = vadd.f32 %v1625, %v2039
    %v2174 = vadd.f32 %v1628, %v2042
    %v2175 = vadd.f32 %v1630, %v2044
    %v2176 = vadd.f32 %v1633, %v2047
    %v2177 = vadd.f32 %v1635, %v2049
    %v2178 = vadd.f32 %v1638, %v2052
    %v2179 = vadd.f32 %v1640, %v2054
    %v2180 = vadd.f32 %v1643, %v2057
    %v2181 = vadd.f32 %v1645, %v2059
    %v2182 = vadd.f32 %v1648, %v2062
    %v2183 = vadd.f32 %v1650, %v2064
    %v2184 = vadd.f32 %v1653, %v2067
    %v2185 = vadd.f32 %v1655, %v2069
    %v2186 = vadd.f32 %v1658, %v2072
    %v2187 = vadd.f32 %v1660, %v2074
    %v2188 = vadd.f32 %v1663, %v2077
    %v2189 = vadd.f32 %v1665, %v2079
    %v2190 = vadd.f32 %v1668, %v2082
    %v2191 = vadd.f32 %v1670, %v2084
    %v2192 = vadd.f32 %v1673, %v2087
    %v2193 = vadd.f32 %v1675, %v2089
    %v2194 = vadd.f32 %v1678, %v2092
    %v2195 = vadd.f32 %v1680, %v2094
    %v2196 = vadd.f32 %v1683, %v2097
    %v2197 = vadd.f32 %v1685, %v2099
    %v2198 = vadd.f32 %v1688, %v2102
    %v2199 = vadd.f32 %v1690, %v2104
    %v2200 = vadd.f32 %v1693, %v2107
    %v2201 = vadd.f32 %v1695, %v2109
    %v2202 = vadd.f32 %v1698, %v2112
    %v2203 = vadd.f32 %v1700, %v2114
    %v2204 = vadd.f32 %v1703, %v2117
    %v2205 = vadd.f32 %v1705, %v2119
    %v2206 = vadd.f32 %v1708, %v2122
    %v2207 = vadd.f32 %v1710, %v2124
    %v2208 = vadd.f32 %v1713, %v2127
    %v2209 = vadd.f32 %v1715, %v2129
    %v2210 = vadd.f32 %v1718, %v2132
    %v2211 = vadd.f32 %v1720, %v2134
    %v2212 = vadd.f32 %v1723, %v2137
    %v2213 = vadd.f32 %v1725, %v2139
    %v2214 = vadd.f32 %v1728, %v2142
    %v2215 = vadd.f32 %v1730, %v2144
    %v2216 = vadd.f32 %v1733, %v2147
    %v2217 = vld [vmem:[#allocation2 + $0x10] sm:$0xff]
    %v2218 = vld [vmem:[#allocation2 + $0x18] sm:$0xff]
    %v2219 = vld [vmem:[#allocation2 + $0x20] sm:$0xff]
    %v2220 = vld [vmem:[#allocation2 + $0x28] sm:$0xff]
    %v2221 = vld [vmem:[#allocation2 + $0x30] sm:$0xff]
    %v2222 = vld [vmem:[#allocation2 + $0x38] sm:$0xff]
    %v2223 = vld [vmem:[#allocation2 + $0x40] sm:$0xff]
    %v2224 = vld [vmem:[#allocation2 + $0x48] sm:$0xff]
    %v2225 = vld [vmem:[#allocation2 + $0x50] sm:$0xff]
    %v2226 = vld [vmem:[#allocation2 + $0x58] sm:$0xff]
    %v2227 = vld [vmem:[#allocation2 + $0x60] sm:$0xff]
    %v2228 = vld [vmem:[#allocation2 + $0x68] sm:$0xff]
    %v2229 = vld [vmem:[#allocation2 + $0x70] sm:$0xff]
    %v2230 = vld [vmem:[#allocation2 + $0x78] sm:$0xff]
    %v2231 = vld [vmem:[#allocation2 + $0x80] sm:$0xff]
    %v2232 = vld [vmem:[#allocation2 + $0x88] sm:$0xff]
    %v2233 = vld [vmem:[#allocation2 + $0x90] sm:$0xff]
    %v2234 = vld [vmem:[#allocation2 + $0x98] sm:$0xff]
    %v2235 = vld [vmem:[#allocation2 + $0xa0] sm:$0xff]
    %v2236 = vld [vmem:[#allocation2 + $0xa8] sm:$0xff]
    %v2237 = vld [vmem:[#allocation2 + $0xb0] sm:$0xff]
    %v2238 = vld [vmem:[#allocation2 + $0xb8] sm:$0xff]
    %v2239 = vld [vmem:[#allocation2 + $0xc0] sm:$0xff]
    %v2240 = vld [vmem:[#allocation2 + $0xc8] sm:$0xff]
    %v2241 = vld [vmem:[#allocation2 + $0xd0] sm:$0xff]
    %v2242 = vld [vmem:[#allocation2 + $0xd8] sm:$0xff]
    %v2243 = vld [vmem:[#allocation2 + $0xe0] sm:$0xff]
    %v2244 = vld [vmem:[#allocation2 + $0xe8] sm:$0xff]
    %v2245 = vld [vmem:[#allocation2 + $0xf0] sm:$0xff]
    %v2246 = vld [vmem:[#allocation2 + $0xf8] sm:$0xff]
    %v2247 = vld [vmem:[#allocation2 + $0x100] sm:$0xff]
    %v2248 = vld [vmem:[#allocation2 + $0x108] sm:$0xff]
    %v2249 = vld [vmem:[#allocation2 + $0x110] sm:$0xff]
    %v2250 = vld [vmem:[#allocation2 + $0x118] sm:$0xff]
    %v2251 = vld [vmem:[#allocation2 + $0x120] sm:$0xff]
    %v2252 = vld [vmem:[#allocation2 + $0x128] sm:$0xff]
    %v2253 = vld [vmem:[#allocation2 + $0x130] sm:$0xff]
    %v2254 = vld [vmem:[#allocation2 + $0x138] sm:$0xff]
    %v2255 = vld [vmem:[#allocation2 + $0x140] sm:$0xff]
    %v2256 = vld [vmem:[#allocation2 + $0x148] sm:$0xff]
    %v2257 = vld [vmem:[#allocation2 + $0x150] sm:$0xff]
    %v2258 = vld [vmem:[#allocation2 + $0x158] sm:$0xff]
    %v2259 = vld [vmem:[#allocation2 + $0x160] sm:$0xff]
    %v2260 = vld [vmem:[#allocation2 + $0x168] sm:$0xff]
    %v2261 = vld [vmem:[#allocation2 + $0x170] sm:$0xff]
    %v2262 = vld [vmem:[#allocation2 + $0x178] sm:$0xff]
    %v2263 = vld [vmem:[#allocation2 + $0x180] sm:$0xff]
    %v2264 = vld [vmem:[#allocation2 + $0x188] sm:$0xff]
    %v2265 = vld [vmem:[#allocation2 + $0x190] sm:$0xff]
    %v2266 = vld [vmem:[#allocation2 + $0x198] sm:$0xff]
    %v2267 = vld [vmem:[#allocation2 + $0x1a0] sm:$0xff]
    %v2268 = vld [vmem:[#allocation2 + $0x1a8] sm:$0xff]
    %v2269 = vld [vmem:[#allocation2 + $0x1b0] sm:$0xff]
    %v2270 = vld [vmem:[#allocation2 + $0x1b8] sm:$0xff]
    %v2271 = vld [vmem:[#allocation2 + $0x1c0] sm:$0xff]
    %v2272 = vld [vmem:[#allocation2 + $0x1c8] sm:$0xff]
    %v2273 = vld [vmem:[#allocation2 + $0x1d0] sm:$0xff]
    %v2274 = vld [vmem:[#allocation2 + $0x1d8] sm:$0xff]
    %v2275 = vld [vmem:[#allocation2 + $0x1e0] sm:$0xff]
    %v2276 = vld [vmem:[#allocation2 + $0x1e8] sm:$0xff]
    %v2277 = vld [vmem:[#allocation2 + $0x1f0] sm:$0xff]
    %v2278 = vld [vmem:[#allocation2 + $0x1f8] sm:$0xff]
    %v2279 = vld [vmem:[#allocation2 + $0x200] sm:$0xff]
    %v2280 = vld [vmem:[#allocation2 + $0x208] sm:$0xff]
    %v2281 = vld [vmem:[#allocation2 + $0x210] sm:$0xff]
    %v2282 = vld [vmem:[#allocation2 + $0x218] sm:$0xff]
    %v2283 = vld [vmem:[#allocation2 + $0x220] sm:$0xff]
    %v2284 = vpack.c.bf16 %v2218, %v2217
    %v2285 = vpack.c.bf16 %v2220, %v2219
    %v2286 = vpack.c.bf16 %v2222, %v2221
    %v2287 = vpack.c.bf16 %v2224, %v2223
    %v2288 = vpack.c.bf16 %v2226, %v2225
    %v2289 = vpack.c.bf16 %v2228, %v2227
    %v2290 = vpack.c.bf16 %v2230, %v2229
    %v2291 = vpack.c.bf16 %v2232, %v2231
    %v2292 = vpack.c.bf16 %v2234, %v2233
    %v2293 = vpack.c.bf16 %v2236, %v2235
    %v2294 = vpack.c.bf16 %v2238, %v2237
    %v2295 = vpack.c.bf16 %v2240, %v2239
    %v2296 = vpack.c.bf16 %v2242, %v2241
    %v2297 = vpack.c.bf16 %v2244, %v2243
    %v2298 = vpack.c.bf16 %v2246, %v2245
    %v2299 = vpack.c.bf16 %v2248, %v2247
    %v2300 = vpack.c.bf16 %v2250, %v2249
    %v2301 = vpack.c.bf16 %v2252, %v2251
    %v2302 = vpack.c.bf16 %v2254, %v2253
    %v2303 = vpack.c.bf16 %v2256, %v2255
    %v2304 = vpack.c.bf16 %v2258, %v2257
    %v2305 = vpack.c.bf16 %v2260, %v2259
    %v2306 = vpack.c.bf16 %v2262, %v2261
    %v2307 = vpack.c.bf16 %v2264, %v2263
    %v2308 = vpack.c.bf16 %v2266, %v2265
    %v2309 = vpack.c.bf16 %v2268, %v2267
    %v2310 = vpack.c.bf16 %v2270, %v2269
    %v2311 = vpack.c.bf16 %v2272, %v2271
    %v2312 = vpack.c.bf16 %v2274, %v2273
    %v2313 = vpack.c.bf16 %v2276, %v2275
    %v2314 = vpack.c.bf16 %v2278, %v2277
    %v2315 = vpack.c.bf16 %v2280, %v2279
    %v2316 = vpack.c.bf16 %v2282, %v2281
    %v2317 = vpack.c.bf16 %v2283, %v2283
    %s2318 = scalar_lea.vmem %s3, 96
    %v2319 = vld [vmem:[%s2318] sm:$0xf]
    %v2320 = vld [vmem:[%s2318 + $0x4] sm:$0xf]
    %v2321 = vld [vmem:[%s2318 + $0x8] sm:$0xf]
    %v2322 = vld [vmem:[%s2318 + $0xc] sm:$0xf]
    %v2323 = vld [vmem:[%s2318 + $0x10] sm:$0xf]
    %v2324 = vld [vmem:[%s2318 + $0x14] sm:$0xf]
    %v2325 = vld [vmem:[%s2318 + $0x18] sm:$0xf]
    %v2326 = vld [vmem:[%s2318 + $0x1c] sm:$0xf]
    %v2335 = vunpack.c.l.b16 %v2319
    %v2336 = vunpack.c.l.b16 %v2320
    %v2337 = vunpack.c.l.b16 %v2321
    %v2338 = vunpack.c.l.b16 %v2322
    %v2339 = vunpack.c.l.b16 %v2323
    %v2340 = vunpack.c.l.b16 %v2324
    %v2341 = vunpack.c.l.b16 %v2325
    %v2342 = vunpack.c.l.b16 %v2326
    %v2343 = vpack.c.b16 %v2336, %v2335
    %v2344 = vpack.c.b16 %v2338, %v2337
    %v2345 = vpack.c.b16 %v2340, %v2339
    %v2346 = vpack.c.b16 %v2342, %v2341
    %v2352 = vsel %vm836, %v2284, 0
    %v2355 = vsel %vm836, %v2285, 0
    %v2358 = vsel %vm836, %v2286, 0
    %v2361 = vsel %vm836, %v2287, 0
    %v2364 = vsel %vm836, %v2288, 0
    %v2367 = vsel %vm836, %v2289, 0
    %v2370 = vsel %vm836, %v2290, 0
    %v2373 = vsel %vm836, %v2291, 0
    %v2376 = vsel %vm836, %v2292, 0
    %v2379 = vsel %vm836, %v2293, 0
    %v2382 = vsel %vm836, %v2294, 0
    %v2385 = vsel %vm836, %v2295, 0
    %v2388 = vsel %vm836, %v2296, 0
    %v2391 = vsel %vm836, %v2297, 0
    %v2394 = vsel %vm836, %v2298, 0
    %v2397 = vsel %vm836, %v2299, 0
    %v2400 = vsel %vm836, %v2300, 0
    %v2403 = vsel %vm836, %v2301, 0
    %v2406 = vsel %vm836, %v2302, 0
    %v2409 = vsel %vm836, %v2303, 0
    %v2412 = vsel %vm836, %v2304, 0
    %v2415 = vsel %vm836, %v2305, 0
    %v2418 = vsel %vm836, %v2306, 0
    %v2421 = vsel %vm836, %v2307, 0
    %v2424 = vsel %vm836, %v2308, 0
    %v2427 = vsel %vm836, %v2309, 0
    %v2430 = vsel %vm836, %v2310, 0
    %v2433 = vsel %vm836, %v2311, 0
    %v2436 = vsel %vm836, %v2312, 0
    %v2439 = vsel %vm836, %v2313, 0
    %v2442 = vsel %vm836, %v2314, 0
    %v2445 = vsel %vm836, %v2315, 0
    %v2448 = vsel %vm836, %v2316, 0
    %v2451 = vsel %vm836, %v2317, 0
    %2453 = vmatpush.bf16.msra.mxu0 0
    %2454 = vmatpush.bf16.msra.mxu0 0
    %2455 = vmatpush.bf16.msra.mxu0 0
    %2456 = vmatpush.bf16.msra.mxu0 0
    %2457 = vmatpush.bf16.msra.mxu0 %v2346
    %2458 = vmatpush.bf16.msra.mxu0 %v2345
    %2459 = vmatpush.bf16.msra.mxu0 %v2344
    %2460 = vmatpush.bf16.msra.mxu0 %v2343
    %2461 = vmatmul.bf16.gmra.mxu0 %v2352
    %v2462 = vpop.f32.mrf.mxu0
    %v2463 = vadd.f32 0.0, %v2462
    %v2464 = vpop.f32.mrf.mxu0
    %v2465 = vadd.f32 0.0, %v2464
    %2466 = vmatmul.bf16.gmra.mxu0 %v2355
    %v2467 = vpop.f32.mrf.mxu0
    %v2468 = vadd.f32 0.0, %v2467
    %v2469 = vpop.f32.mrf.mxu0
    %v2470 = vadd.f32 0.0, %v2469
    %2471 = vmatmul.bf16.gmra.mxu0 %v2358
    %v2472 = vpop.f32.mrf.mxu0
    %v2473 = vadd.f32 0.0, %v2472
    %v2474 = vpop.f32.mrf.mxu0
    %v2475 = vadd.f32 0.0, %v2474
    %2476 = vmatmul.bf16.gmra.mxu0 %v2361
    %v2477 = vpop.f32.mrf.mxu0
    %v2478 = vadd.f32 0.0, %v2477
    %v2479 = vpop.f32.mrf.mxu0
    %v2480 = vadd.f32 0.0, %v2479
    %2481 = vmatmul.bf16.gmra.mxu0 %v2364
    %v2482 = vpop.f32.mrf.mxu0
    %v2483 = vadd.f32 0.0, %v2482
    %v2484 = vpop.f32.mrf.mxu0
    %v2485 = vadd.f32 0.0, %v2484
    %2486 = vmatmul.bf16.gmra.mxu0 %v2367
    %v2487 = vpop.f32.mrf.mxu0
    %v2488 = vadd.f32 0.0, %v2487
    %v2489 = vpop.f32.mrf.mxu0
    %v2490 = vadd.f32 0.0, %v2489
    %2491 = vmatmul.bf16.gmra.mxu0 %v2370
    %v2492 = vpop.f32.mrf.mxu0
    %v2493 = vadd.f32 0.0, %v2492
    %v2494 = vpop.f32.mrf.mxu0
    %v2495 = vadd.f32 0.0, %v2494
    %2496 = vmatmul.bf16.gmra.mxu0 %v2373
    %v2497 = vpop.f32.mrf.mxu0
    %v2498 = vadd.f32 0.0, %v2497
    %v2499 = vpop.f32.mrf.mxu0
    %v2500 = vadd.f32 0.0, %v2499
    %2501 = vmatmul.bf16.gmra.mxu0 %v2376
    %v2502 = vpop.f32.mrf.mxu0
    %v2503 = vadd.f32 0.0, %v2502
    %v2504 = vpop.f32.mrf.mxu0
    %v2505 = vadd.f32 0.0, %v2504
    %2506 = vmatmul.bf16.gmra.mxu0 %v2379
    %v2507 = vpop.f32.mrf.mxu0
    %v2508 = vadd.f32 0.0, %v2507
    %v2509 = vpop.f32.mrf.mxu0
    %v2510 = vadd.f32 0.0, %v2509
    %2511 = vmatmul.bf16.gmra.mxu0 %v2382
    %v2512 = vpop.f32.mrf.mxu0
    %v2513 = vadd.f32 0.0, %v2512
    %v2514 = vpop.f32.mrf.mxu0
    %v2515 = vadd.f32 0.0, %v2514
    %2516 = vmatmul.bf16.gmra.mxu0 %v2385
    %v2517 = vpop.f32.mrf.mxu0
    %v2518 = vadd.f32 0.0, %v2517
    %v2519 = vpop.f32.mrf.mxu0
    %v2520 = vadd.f32 0.0, %v2519
    %2521 = vmatmul.bf16.gmra.mxu0 %v2388
    %v2522 = vpop.f32.mrf.mxu0
    %v2523 = vadd.f32 0.0, %v2522
    %v2524 = vpop.f32.mrf.mxu0
    %v2525 = vadd.f32 0.0, %v2524
    %2526 = vmatmul.bf16.gmra.mxu0 %v2391
    %v2527 = vpop.f32.mrf.mxu0
    %v2528 = vadd.f32 0.0, %v2527
    %v2529 = vpop.f32.mrf.mxu0
    %v2530 = vadd.f32 0.0, %v2529
    %2531 = vmatmul.bf16.gmra.mxu0 %v2394
    %v2532 = vpop.f32.mrf.mxu0
    %v2533 = vadd.f32 0.0, %v2532
    %v2534 = vpop.f32.mrf.mxu0
    %v2535 = vadd.f32 0.0, %v2534
    %2536 = vmatmul.bf16.gmra.mxu0 %v2397
    %v2537 = vpop.f32.mrf.mxu0
    %v2538 = vadd.f32 0.0, %v2537
    %v2539 = vpop.f32.mrf.mxu0
    %v2540 = vadd.f32 0.0, %v2539
    %2541 = vmatmul.bf16.gmra.mxu0 %v2400
    %v2542 = vpop.f32.mrf.mxu0
    %v2543 = vadd.f32 0.0, %v2542
    %v2544 = vpop.f32.mrf.mxu0
    %v2545 = vadd.f32 0.0, %v2544
    %2546 = vmatmul.bf16.gmra.mxu0 %v2403
    %v2547 = vpop.f32.mrf.mxu0
    %v2548 = vadd.f32 0.0, %v2547
    %v2549 = vpop.f32.mrf.mxu0
    %v2550 = vadd.f32 0.0, %v2549
    %2551 = vmatmul.bf16.gmra.mxu0 %v2406
    %v2552 = vpop.f32.mrf.mxu0
    %v2553 = vadd.f32 0.0, %v2552
    %v2554 = vpop.f32.mrf.mxu0
    %v2555 = vadd.f32 0.0, %v2554
    %2556 = vmatmul.bf16.gmra.mxu0 %v2409
    %v2557 = vpop.f32.mrf.mxu0
    %v2558 = vadd.f32 0.0, %v2557
    %v2559 = vpop.f32.mrf.mxu0
    %v2560 = vadd.f32 0.0, %v2559
    %2561 = vmatmul.bf16.gmra.mxu0 %v2412
    %v2562 = vpop.f32.mrf.mxu0
    %v2563 = vadd.f32 0.0, %v2562
    %v2564 = vpop.f32.mrf.mxu0
    %v2565 = vadd.f32 0.0, %v2564
    %2566 = vmatmul.bf16.gmra.mxu0 %v2415
    %v2567 = vpop.f32.mrf.mxu0
    %v2568 = vadd.f32 0.0, %v2567
    %v2569 = vpop.f32.mrf.mxu0
    %v2570 = vadd.f32 0.0, %v2569
    %2571 = vmatmul.bf16.gmra.mxu0 %v2418
    %v2572 = vpop.f32.mrf.mxu0
    %v2573 = vadd.f32 0.0, %v2572
    %v2574 = vpop.f32.mrf.mxu0
    %v2575 = vadd.f32 0.0, %v2574
    %2576 = vmatmul.bf16.gmra.mxu0 %v2421
    %v2577 = vpop.f32.mrf.mxu0
    %v2578 = vadd.f32 0.0, %v2577
    %v2579 = vpop.f32.mrf.mxu0
    %v2580 = vadd.f32 0.0, %v2579
    %2581 = vmatmul.bf16.gmra.mxu0 %v2424
    %v2582 = vpop.f32.mrf.mxu0
    %v2583 = vadd.f32 0.0, %v2582
    %v2584 = vpop.f32.mrf.mxu0
    %v2585 = vadd.f32 0.0, %v2584
    %2586 = vmatmul.bf16.gmra.mxu0 %v2427
    %v2587 = vpop.f32.mrf.mxu0
    %v2588 = vadd.f32 0.0, %v2587
    %v2589 = vpop.f32.mrf.mxu0
    %v2590 = vadd.f32 0.0, %v2589
    %2591 = vmatmul.bf16.gmra.mxu0 %v2430
    %v2592 = vpop.f32.mrf.mxu0
    %v2593 = vadd.f32 0.0, %v2592
    %v2594 = vpop.f32.mrf.mxu0
    %v2595 = vadd.f32 0.0, %v2594
    %2596 = vmatmul.bf16.gmra.mxu0 %v2433
    %v2597 = vpop.f32.mrf.mxu0
    %v2598 = vadd.f32 0.0, %v2597
    %v2599 = vpop.f32.mrf.mxu0
    %v2600 = vadd.f32 0.0, %v2599
    %2601 = vmatmul.bf16.gmra.mxu0 %v2436
    %v2602 = vpop.f32.mrf.mxu0
    %v2603 = vadd.f32 0.0, %v2602
    %v2604 = vpop.f32.mrf.mxu0
    %v2605 = vadd.f32 0.0, %v2604
    %2606 = vmatmul.bf16.gmra.mxu0 %v2439
    %v2607 = vpop.f32.mrf.mxu0
    %v2608 = vadd.f32 0.0, %v2607
    %v2609 = vpop.f32.mrf.mxu0
    %v2610 = vadd.f32 0.0, %v2609
    %2611 = vmatmul.bf16.gmra.mxu0 %v2442
    %v2612 = vpop.f32.mrf.mxu0
    %v2613 = vadd.f32 0.0, %v2612
    %v2614 = vpop.f32.mrf.mxu0
    %v2615 = vadd.f32 0.0, %v2614
    %2616 = vmatmul.bf16.gmra.mxu0 %v2445
    %v2617 = vpop.f32.mrf.mxu0
    %v2618 = vadd.f32 0.0, %v2617
    %v2619 = vpop.f32.mrf.mxu0
    %v2620 = vadd.f32 0.0, %v2619
    %2621 = vmatmul.bf16.gmra.mxu0 %v2448
    %v2622 = vpop.f32.mrf.mxu0
    %v2623 = vadd.f32 0.0, %v2622
    %v2624 = vpop.f32.mrf.mxu0
    %v2625 = vadd.f32 0.0, %v2624
    %2626 = vmatmul.bf16.gmra.mxu0 %v2451
    %v2627 = vpop.f32.mrf.mxu0
    %v2628 = vadd.f32 0.0, %v2627
    %v2629 = vpop.f32.mrf.mxu0
    %2630 = vdwg.mxu0
    %v2631 = vadd.f32 %v2150, %v2463
    %v2632 = vadd.f32 %v2151, %v2465
    %v2633 = vadd.f32 %v2152, %v2468
    %v2634 = vadd.f32 %v2153, %v2470
    %v2635 = vadd.f32 %v2154, %v2473
    %v2636 = vadd.f32 %v2155, %v2475
    %v2637 = vadd.f32 %v2156, %v2478
    %v2638 = vadd.f32 %v2157, %v2480
    %v2639 = vadd.f32 %v2158, %v2483
    %v2640 = vadd.f32 %v2159, %v2485
    %v2641 = vadd.f32 %v2160, %v2488
    %v2642 = vadd.f32 %v2161, %v2490
    %v2643 = vadd.f32 %v2162, %v2493
    %v2644 = vadd.f32 %v2163, %v2495
    %v2645 = vadd.f32 %v2164, %v2498
    %v2646 = vadd.f32 %v2165, %v2500
    %v2647 = vadd.f32 %v2166, %v2503
    %v2648 = vadd.f32 %v2167, %v2505
    %v2649 = vadd.f32 %v2168, %v2508
    %v2650 = vadd.f32 %v2169, %v2510
    %v2651 = vadd.f32 %v2170, %v2513
    %v2652 = vadd.f32 %v2171, %v2515
    %v2653 = vadd.f32 %v2172, %v2518
    %v2654 = vadd.f32 %v2173, %v2520
    %v2655 = vadd.f32 %v2174, %v2523
    %v2656 = vadd.f32 %v2175, %v2525
    %v2657 = vadd.f32 %v2176, %v2528
    %v2658 = vadd.f32 %v2177, %v2530
    %v2659 = vadd.f32 %v2178, %v2533
    %v2660 = vadd.f32 %v2179, %v2535
    %v2661 = vadd.f32 %v2180, %v2538
    %v2662 = vadd.f32 %v2181, %v2540
    %v2663 = vadd.f32 %v2182, %v2543
    %v2664 = vadd.f32 %v2183, %v2545
    %v2665 = vadd.f32 %v2184, %v2548
    %v2666 = vadd.f32 %v2185, %v2550
    %v2667 = vadd.f32 %v2186, %v2553
    %v2668 = vadd.f32 %v2187, %v2555
    %v2669 = vadd.f32 %v2188, %v2558
    %v2670 = vadd.f32 %v2189, %v2560
    %v2671 = vadd.f32 %v2190, %v2563
    %v2672 = vadd.f32 %v2191, %v2565
    %v2673 = vadd.f32 %v2192, %v2568
    %v2674 = vadd.f32 %v2193, %v2570
    %v2675 = vadd.f32 %v2194, %v2573
    %v2676 = vadd.f32 %v2195, %v2575
    %v2677 = vadd.f32 %v2196, %v2578
    %v2678 = vadd.f32 %v2197, %v2580
    %v2679 = vadd.f32 %v2198, %v2583
    %v2680 = vadd.f32 %v2199, %v2585
    %v2681 = vadd.f32 %v2200, %v2588
    %v2682 = vadd.f32 %v2201, %v2590
    %v2683 = vadd.f32 %v2202, %v2593
    %v2684 = vadd.f32 %v2203, %v2595
    %v2685 = vadd.f32 %v2204, %v2598
    %v2686 = vadd.f32 %v2205, %v2600
    %v2687 = vadd.f32 %v2206, %v2603
    %v2688 = vadd.f32 %v2207, %v2605
    %v2689 = vadd.f32 %v2208, %v2608
    %v2690 = vadd.f32 %v2209, %v2610
    %v2691 = vadd.f32 %v2210, %v2613
    %v2692 = vadd.f32 %v2211, %v2615
    %v2693 = vadd.f32 %v2212, %v2618
    %v2694 = vadd.f32 %v2213, %v2620
    %v2695 = vadd.f32 %v2214, %v2623
    %v2696 = vadd.f32 %v2215, %v2625
    %v2697 = vadd.f32 %v2216, %v2628
    %v2698 = vld [vmem:[#allocation2 + $0x11] sm:$0xff]
    %v2699 = vld [vmem:[#allocation2 + $0x19] sm:$0xff]
    %v2700 = vld [vmem:[#allocation2 + $0x21] sm:$0xff]
    %v2701 = vld [vmem:[#allocation2 + $0x29] sm:$0xff]
    %v2702 = vld [vmem:[#allocation2 + $0x31] sm:$0xff]
    %v2703 = vld [vmem:[#allocation2 + $0x39] sm:$0xff]
    %v2704 = vld [vmem:[#allocation2 + $0x41] sm:$0xff]
    %v2705 = vld [vmem:[#allocation2 + $0x49] sm:$0xff]
    %v2706 = vld [vmem:[#allocation2 + $0x51] sm:$0xff]
    %v2707 = vld [vmem:[#allocation2 + $0x59] sm:$0xff]
    %v2708 = vld [vmem:[#allocation2 + $0x61] sm:$0xff]
    %v2709 = vld [vmem:[#allocation2 + $0x69] sm:$0xff]
    %v2710 = vld [vmem:[#allocation2 + $0x71] sm:$0xff]
    %v2711 = vld [vmem:[#allocation2 + $0x79] sm:$0xff]
    %v2712 = vld [vmem:[#allocation2 + $0x81] sm:$0xff]
    %v2713 = vld [vmem:[#allocation2 + $0x89] sm:$0xff]
    %v2714 = vld [vmem:[#allocation2 + $0x91] sm:$0xff]
    %v2715 = vld [vmem:[#allocation2 + $0x99] sm:$0xff]
    %v2716 = vld [vmem:[#allocation2 + $0xa1] sm:$0xff]
    %v2717 = vld [vmem:[#allocation2 + $0xa9] sm:$0xff]
    %v2718 = vld [vmem:[#allocation2 + $0xb1] sm:$0xff]
    %v2719 = vld [vmem:[#allocation2 + $0xb9] sm:$0xff]
    %v2720 = vld [vmem:[#allocation2 + $0xc1] sm:$0xff]
    %v2721 = vld [vmem:[#allocation2 + $0xc9] sm:$0xff]
    %v2722 = vld [vmem:[#allocation2 + $0xd1] sm:$0xff]
    %v2723 = vld [vmem:[#allocation2 + $0xd9] sm:$0xff]
    %v2724 = vld [vmem:[#allocation2 + $0xe1] sm:$0xff]
    %v2725 = vld [vmem:[#allocation2 + $0xe9] sm:$0xff]
    %v2726 = vld [vmem:[#allocation2 + $0xf1] sm:$0xff]
    %v2727 = vld [vmem:[#allocation2 + $0xf9] sm:$0xff]
    %v2728 = vld [vmem:[#allocation2 + $0x101] sm:$0xff]
    %v2729 = vld [vmem:[#allocation2 + $0x109] sm:$0xff]
    %v2730 = vld [vmem:[#allocation2 + $0x111] sm:$0xff]
    %v2731 = vld [vmem:[#allocation2 + $0x119] sm:$0xff]
    %v2732 = vld [vmem:[#allocation2 + $0x121] sm:$0xff]
    %v2733 = vld [vmem:[#allocation2 + $0x129] sm:$0xff]
    %v2734 = vld [vmem:[#allocation2 + $0x131] sm:$0xff]
    %v2735 = vld [vmem:[#allocation2 + $0x139] sm:$0xff]
    %v2736 = vld [vmem:[#allocation2 + $0x141] sm:$0xff]
    %v2737 = vld [vmem:[#allocation2 + $0x149] sm:$0xff]
    %v2738 = vld [vmem:[#allocation2 + $0x151] sm:$0xff]
    %v2739 = vld [vmem:[#allocation2 + $0x159] sm:$0xff]
    %v2740 = vld [vmem:[#allocation2 + $0x161] sm:$0xff]
    %v2741 = vld [vmem:[#allocation2 + $0x169] sm:$0xff]
    %v2742 = vld [vmem:[#allocation2 + $0x171] sm:$0xff]
    %v2743 = vld [vmem:[#allocation2 + $0x179] sm:$0xff]
    %v2744 = vld [vmem:[#allocation2 + $0x181] sm:$0xff]
    %v2745 = vld [vmem:[#allocation2 + $0x189] sm:$0xff]
    %v2746 = vld [vmem:[#allocation2 + $0x191] sm:$0xff]
    %v2747 = vld [vmem:[#allocation2 + $0x199] sm:$0xff]
    %v2748 = vld [vmem:[#allocation2 + $0x1a1] sm:$0xff]
    %v2749 = vld [vmem:[#allocation2 + $0x1a9] sm:$0xff]
    %v2750 = vld [vmem:[#allocation2 + $0x1b1] sm:$0xff]
    %v2751 = vld [vmem:[#allocation2 + $0x1b9] sm:$0xff]
    %v2752 = vld [vmem:[#allocation2 + $0x1c1] sm:$0xff]
    %v2753 = vld [vmem:[#allocation2 + $0x1c9] sm:$0xff]
    %v2754 = vld [vmem:[#allocation2 + $0x1d1] sm:$0xff]
    %v2755 = vld [vmem:[#allocation2 + $0x1d9] sm:$0xff]
    %v2756 = vld [vmem:[#allocation2 + $0x1e1] sm:$0xff]
    %v2757 = vld [vmem:[#allocation2 + $0x1e9] sm:$0xff]
    %v2758 = vld [vmem:[#allocation2 + $0x1f1] sm:$0xff]
    %v2759 = vld [vmem:[#allocation2 + $0x1f9] sm:$0xff]
    %v2760 = vld [vmem:[#allocation2 + $0x201] sm:$0xff]
    %v2761 = vld [vmem:[#allocation2 + $0x209] sm:$0xff]
    %v2762 = vld [vmem:[#allocation2 + $0x211] sm:$0xff]
    %v2763 = vld [vmem:[#allocation2 + $0x219] sm:$0xff]
    %v2764 = vld [vmem:[#allocation2 + $0x221] sm:$0xff]
    %v2765 = vpack.c.bf16 %v2699, %v2698
    %v2766 = vpack.c.bf16 %v2701, %v2700
    %v2767 = vpack.c.bf16 %v2703, %v2702
    %v2768 = vpack.c.bf16 %v2705, %v2704
    %v2769 = vpack.c.bf16 %v2707, %v2706
    %v2770 = vpack.c.bf16 %v2709, %v2708
    %v2771 = vpack.c.bf16 %v2711, %v2710
    %v2772 = vpack.c.bf16 %v2713, %v2712
    %v2773 = vpack.c.bf16 %v2715, %v2714
    %v2774 = vpack.c.bf16 %v2717, %v2716
    %v2775 = vpack.c.bf16 %v2719, %v2718
    %v2776 = vpack.c.bf16 %v2721, %v2720
    %v2777 = vpack.c.bf16 %v2723, %v2722
    %v2778 = vpack.c.bf16 %v2725, %v2724
    %v2779 = vpack.c.bf16 %v2727, %v2726
    %v2780 = vpack.c.bf16 %v2729, %v2728
    %v2781 = vpack.c.bf16 %v2731, %v2730
    %v2782 = vpack.c.bf16 %v2733, %v2732
    %v2783 = vpack.c.bf16 %v2735, %v2734
    %v2784 = vpack.c.bf16 %v2737, %v2736
    %v2785 = vpack.c.bf16 %v2739, %v2738
    %v2786 = vpack.c.bf16 %v2741, %v2740
    %v2787 = vpack.c.bf16 %v2743, %v2742
    %v2788 = vpack.c.bf16 %v2745, %v2744
    %v2789 = vpack.c.bf16 %v2747, %v2746
    %v2790 = vpack.c.bf16 %v2749, %v2748
    %v2791 = vpack.c.bf16 %v2751, %v2750
    %v2792 = vpack.c.bf16 %v2753, %v2752
    %v2793 = vpack.c.bf16 %v2755, %v2754
    %v2794 = vpack.c.bf16 %v2757, %v2756
    %v2795 = vpack.c.bf16 %v2759, %v2758
    %v2796 = vpack.c.bf16 %v2761, %v2760
    %v2797 = vpack.c.bf16 %v2763, %v2762
    %v2798 = vpack.c.bf16 %v2764, %v2764
    %s2799 = scalar_lea.vmem %s3, 128
    %v2800 = vld [vmem:[%s2799] sm:$0xf]
    %v2801 = vld [vmem:[%s2799 + $0x4] sm:$0xf]
    %v2802 = vld [vmem:[%s2799 + $0x8] sm:$0xf]
    %v2803 = vld [vmem:[%s2799 + $0xc] sm:$0xf]
    %v2804 = vld [vmem:[%s2799 + $0x10] sm:$0xf]
    %v2805 = vld [vmem:[%s2799 + $0x14] sm:$0xf]
    %v2806 = vld [vmem:[%s2799 + $0x18] sm:$0xf]
    %v2807 = vld [vmem:[%s2799 + $0x1c] sm:$0xf]
    %v2816 = vunpack.c.l.b16 %v2800
    %v2817 = vunpack.c.l.b16 %v2801
    %v2818 = vunpack.c.l.b16 %v2802
    %v2819 = vunpack.c.l.b16 %v2803
    %v2820 = vunpack.c.l.b16 %v2804
    %v2821 = vunpack.c.l.b16 %v2805
    %v2822 = vunpack.c.l.b16 %v2806
    %v2823 = vunpack.c.l.b16 %v2807
    %v2824 = vpack.c.b16 %v2817, %v2816
    %v2825 = vpack.c.b16 %v2819, %v2818
    %v2826 = vpack.c.b16 %v2821, %v2820
    %v2827 = vpack.c.b16 %v2823, %v2822
    %v2833 = vsel %vm836, %v2765, 0
    %v2836 = vsel %vm836, %v2766, 0
    %v2839 = vsel %vm836, %v2767, 0
    %v2842 = vsel %vm836, %v2768, 0
    %v2845 = vsel %vm836, %v2769, 0
    %v2848 = vsel %vm836, %v2770, 0
    %v2851 = vsel %vm836, %v2771, 0
    %v2854 = vsel %vm836, %v2772, 0
    %v2857 = vsel %vm836, %v2773, 0
    %v2860 = vsel %vm836, %v2774, 0
    %v2863 = vsel %vm836, %v2775, 0
    %v2866 = vsel %vm836, %v2776, 0
    %v2869 = vsel %vm836, %v2777, 0
    %v2872 = vsel %vm836, %v2778, 0
    %v2875 = vsel %vm836, %v2779, 0
    %v2878 = vsel %vm836, %v2780, 0
    %v2881 = vsel %vm836, %v2781, 0
    %v2884 = vsel %vm836, %v2782, 0
    %v2887 = vsel %vm836, %v2783, 0
    %v2890 = vsel %vm836, %v2784, 0
    %v2893 = vsel %vm836, %v2785, 0
    %v2896 = vsel %vm836, %v2786, 0
    %v2899 = vsel %vm836, %v2787, 0
    %v2902 = vsel %vm836, %v2788, 0
    %v2905 = vsel %vm836, %v2789, 0
    %v2908 = vsel %vm836, %v2790, 0
    %v2911 = vsel %vm836, %v2791, 0
    %v2914 = vsel %vm836, %v2792, 0
    %v2917 = vsel %vm836, %v2793, 0
    %v2920 = vsel %vm836, %v2794, 0
    %v2923 = vsel %vm836, %v2795, 0
    %v2926 = vsel %vm836, %v2796, 0
    %v2929 = vsel %vm836, %v2797, 0
    %v2932 = vsel %vm836, %v2798, 0
    %2934 = vmatpush.bf16.msra.mxu0 0
    %2935 = vmatpush.bf16.msra.mxu0 0
    %2936 = vmatpush.bf16.msra.mxu0 0
    %2937 = vmatpush.bf16.msra.mxu0 0
    %2938 = vmatpush.bf16.msra.mxu0 %v2827
    %2939 = vmatpush.bf16.msra.mxu0 %v2826
    %2940 = vmatpush.bf16.msra.mxu0 %v2825
    %2941 = vmatpush.bf16.msra.mxu0 %v2824
    %2942 = vmatmul.bf16.gmra.mxu0 %v2833
    %v2943 = vpop.f32.mrf.mxu0
    %v2944 = vadd.f32 0.0, %v2943
    %v2945 = vpop.f32.mrf.mxu0
    %v2946 = vadd.f32 0.0, %v2945
    %2947 = vmatmul.bf16.gmra.mxu0 %v2836
    %v2948 = vpop.f32.mrf.mxu0
    %v2949 = vadd.f32 0.0, %v2948
    %v2950 = vpop.f32.mrf.mxu0
    %v2951 = vadd.f32 0.0, %v2950
    %2952 = vmatmul.bf16.gmra.mxu0 %v2839
    %v2953 = vpop.f32.mrf.mxu0
    %v2954 = vadd.f32 0.0, %v2953
    %v2955 = vpop.f32.mrf.mxu0
    %v2956 = vadd.f32 0.0, %v2955
    %2957 = vmatmul.bf16.gmra.mxu0 %v2842
    %v2958 = vpop.f32.mrf.mxu0
    %v2959 = vadd.f32 0.0, %v2958
    %v2960 = vpop.f32.mrf.mxu0
    %v2961 = vadd.f32 0.0, %v2960
    %2962 = vmatmul.bf16.gmra.mxu0 %v2845
    %v2963 = vpop.f32.mrf.mxu0
    %v2964 = vadd.f32 0.0, %v2963
    %v2965 = vpop.f32.mrf.mxu0
    %v2966 = vadd.f32 0.0, %v2965
    %2967 = vmatmul.bf16.gmra.mxu0 %v2848
    %v2968 = vpop.f32.mrf.mxu0
    %v2969 = vadd.f32 0.0, %v2968
    %v2970 = vpop.f32.mrf.mxu0
    %v2971 = vadd.f32 0.0, %v2970
    %2972 = vmatmul.bf16.gmra.mxu0 %v2851
    %v2973 = vpop.f32.mrf.mxu0
    %v2974 = vadd.f32 0.0, %v2973
    %v2975 = vpop.f32.mrf.mxu0
    %v2976 = vadd.f32 0.0, %v2975
    %2977 = vmatmul.bf16.gmra.mxu0 %v2854
    %v2978 = vpop.f32.mrf.mxu0
    %v2979 = vadd.f32 0.0, %v2978
    %v2980 = vpop.f32.mrf.mxu0
    %v2981 = vadd.f32 0.0, %v2980
    %2982 = vmatmul.bf16.gmra.mxu0 %v2857
    %v2983 = vpop.f32.mrf.mxu0
    %v2984 = vadd.f32 0.0, %v2983
    %v2985 = vpop.f32.mrf.mxu0
    %v2986 = vadd.f32 0.0, %v2985
    %2987 = vmatmul.bf16.gmra.mxu0 %v2860
    %v2988 = vpop.f32.mrf.mxu0
    %v2989 = vadd.f32 0.0, %v2988
    %v2990 = vpop.f32.mrf.mxu0
    %v2991 = vadd.f32 0.0, %v2990
    %2992 = vmatmul.bf16.gmra.mxu0 %v2863
    %v2993 = vpop.f32.mrf.mxu0
    %v2994 = vadd.f32 0.0, %v2993
    %v2995 = vpop.f32.mrf.mxu0
    %v2996 = vadd.f32 0.0, %v2995
    %2997 = vmatmul.bf16.gmra.mxu0 %v2866
    %v2998 = vpop.f32.mrf.mxu0
    %v2999 = vadd.f32 0.0, %v2998
    %v3000 = vpop.f32.mrf.mxu0
    %v3001 = vadd.f32 0.0, %v3000
    %3002 = vmatmul.bf16.gmra.mxu0 %v2869
    %v3003 = vpop.f32.mrf.mxu0
    %v3004 = vadd.f32 0.0, %v3003
    %v3005 = vpop.f32.mrf.mxu0
    %v3006 = vadd.f32 0.0, %v3005
    %3007 = vmatmul.bf16.gmra.mxu0 %v2872
    %v3008 = vpop.f32.mrf.mxu0
    %v3009 = vadd.f32 0.0, %v3008
    %v3010 = vpop.f32.mrf.mxu0
    %v3011 = vadd.f32 0.0, %v3010
    %3012 = vmatmul.bf16.gmra.mxu0 %v2875
    %v3013 = vpop.f32.mrf.mxu0
    %v3014 = vadd.f32 0.0, %v3013
    %v3015 = vpop.f32.mrf.mxu0
    %v3016 = vadd.f32 0.0, %v3015
    %3017 = vmatmul.bf16.gmra.mxu0 %v2878
    %v3018 = vpop.f32.mrf.mxu0
    %v3019 = vadd.f32 0.0, %v3018
    %v3020 = vpop.f32.mrf.mxu0
    %v3021 = vadd.f32 0.0, %v3020
    %3022 = vmatmul.bf16.gmra.mxu0 %v2881
    %v3023 = vpop.f32.mrf.mxu0
    %v3024 = vadd.f32 0.0, %v3023
    %v3025 = vpop.f32.mrf.mxu0
    %v3026 = vadd.f32 0.0, %v3025
    %3027 = vmatmul.bf16.gmra.mxu0 %v2884
    %v3028 = vpop.f32.mrf.mxu0
    %v3029 = vadd.f32 0.0, %v3028
    %v3030 = vpop.f32.mrf.mxu0
    %v3031 = vadd.f32 0.0, %v3030
    %3032 = vmatmul.bf16.gmra.mxu0 %v2887
    %v3033 = vpop.f32.mrf.mxu0
    %v3034 = vadd.f32 0.0, %v3033
    %v3035 = vpop.f32.mrf.mxu0
    %v3036 = vadd.f32 0.0, %v3035
    %3037 = vmatmul.bf16.gmra.mxu0 %v2890
    %v3038 = vpop.f32.mrf.mxu0
    %v3039 = vadd.f32 0.0, %v3038
    %v3040 = vpop.f32.mrf.mxu0
    %v3041 = vadd.f32 0.0, %v3040
    %3042 = vmatmul.bf16.gmra.mxu0 %v2893
    %v3043 = vpop.f32.mrf.mxu0
    %v3044 = vadd.f32 0.0, %v3043
    %v3045 = vpop.f32.mrf.mxu0
    %v3046 = vadd.f32 0.0, %v3045
    %3047 = vmatmul.bf16.gmra.mxu0 %v2896
    %v3048 = vpop.f32.mrf.mxu0
    %v3049 = vadd.f32 0.0, %v3048
    %v3050 = vpop.f32.mrf.mxu0
    %v3051 = vadd.f32 0.0, %v3050
    %3052 = vmatmul.bf16.gmra.mxu0 %v2899
    %v3053 = vpop.f32.mrf.mxu0
    %v3054 = vadd.f32 0.0, %v3053
    %v3055 = vpop.f32.mrf.mxu0
    %v3056 = vadd.f32 0.0, %v3055
    %3057 = vmatmul.bf16.gmra.mxu0 %v2902
    %v3058 = vpop.f32.mrf.mxu0
    %v3059 = vadd.f32 0.0, %v3058
    %v3060 = vpop.f32.mrf.mxu0
    %v3061 = vadd.f32 0.0, %v3060
    %3062 = vmatmul.bf16.gmra.mxu0 %v2905
    %v3063 = vpop.f32.mrf.mxu0
    %v3064 = vadd.f32 0.0, %v3063
    %v3065 = vpop.f32.mrf.mxu0
    %v3066 = vadd.f32 0.0, %v3065
    %3067 = vmatmul.bf16.gmra.mxu0 %v2908
    %v3068 = vpop.f32.mrf.mxu0
    %v3069 = vadd.f32 0.0, %v3068
    %v3070 = vpop.f32.mrf.mxu0
    %v3071 = vadd.f32 0.0, %v3070
    %3072 = vmatmul.bf16.gmra.mxu0 %v2911
    %v3073 = vpop.f32.mrf.mxu0
    %v3074 = vadd.f32 0.0, %v3073
    %v3075 = vpop.f32.mrf.mxu0
    %v3076 = vadd.f32 0.0, %v3075
    %3077 = vmatmul.bf16.gmra.mxu0 %v2914
    %v3078 = vpop.f32.mrf.mxu0
    %v3079 = vadd.f32 0.0, %v3078
    %v3080 = vpop.f32.mrf.mxu0
    %v3081 = vadd.f32 0.0, %v3080
    %3082 = vmatmul.bf16.gmra.mxu0 %v2917
    %v3083 = vpop.f32.mrf.mxu0
    %v3084 = vadd.f32 0.0, %v3083
    %v3085 = vpop.f32.mrf.mxu0
    %v3086 = vadd.f32 0.0, %v3085
    %3087 = vmatmul.bf16.gmra.mxu0 %v2920
    %v3088 = vpop.f32.mrf.mxu0
    %v3089 = vadd.f32 0.0, %v3088
    %v3090 = vpop.f32.mrf.mxu0
    %v3091 = vadd.f32 0.0, %v3090
    %3092 = vmatmul.bf16.gmra.mxu0 %v2923
    %v3093 = vpop.f32.mrf.mxu0
    %v3094 = vadd.f32 0.0, %v3093
    %v3095 = vpop.f32.mrf.mxu0
    %v3096 = vadd.f32 0.0, %v3095
    %3097 = vmatmul.bf16.gmra.mxu0 %v2926
    %v3098 = vpop.f32.mrf.mxu0
    %v3099 = vadd.f32 0.0, %v3098
    %v3100 = vpop.f32.mrf.mxu0
    %v3101 = vadd.f32 0.0, %v3100
    %3102 = vmatmul.bf16.gmra.mxu0 %v2929
    %v3103 = vpop.f32.mrf.mxu0
    %v3104 = vadd.f32 0.0, %v3103
    %v3105 = vpop.f32.mrf.mxu0
    %v3106 = vadd.f32 0.0, %v3105
    %3107 = vmatmul.bf16.gmra.mxu0 %v2932
    %v3108 = vpop.f32.mrf.mxu0
    %v3109 = vadd.f32 0.0, %v3108
    %v3110 = vpop.f32.mrf.mxu0
    %3111 = vdwg.mxu0
    %v3112 = vadd.f32 %v2631, %v2944
    %v3113 = vadd.f32 %v2632, %v2946
    %v3114 = vadd.f32 %v2633, %v2949
    %v3115 = vadd.f32 %v2634, %v2951
    %v3116 = vadd.f32 %v2635, %v2954
    %v3117 = vadd.f32 %v2636, %v2956
    %v3118 = vadd.f32 %v2637, %v2959
    %v3119 = vadd.f32 %v2638, %v2961
    %v3120 = vadd.f32 %v2639, %v2964
    %v3121 = vadd.f32 %v2640, %v2966
    %v3122 = vadd.f32 %v2641, %v2969
    %v3123 = vadd.f32 %v2642, %v2971
    %v3124 = vadd.f32 %v2643, %v2974
    %v3125 = vadd.f32 %v2644, %v2976
    %v3126 = vadd.f32 %v2645, %v2979
    %v3127 = vadd.f32 %v2646, %v2981
    %v3128 = vadd.f32 %v2647, %v2984
    %v3129 = vadd.f32 %v2648, %v2986
    %v3130 = vadd.f32 %v2649, %v2989
    %v3131 = vadd.f32 %v2650, %v2991
    %v3132 = vadd.f32 %v2651, %v2994
    %v3133 = vadd.f32 %v2652, %v2996
    %v3134 = vadd.f32 %v2653, %v2999
    %v3135 = vadd.f32 %v2654, %v3001
    %v3136 = vadd.f32 %v2655, %v3004
    %v3137 = vadd.f32 %v2656, %v3006
    %v3138 = vadd.f32 %v2657, %v3009
    %v3139 = vadd.f32 %v2658, %v3011
    %v3140 = vadd.f32 %v2659, %v3014
    %v3141 = vadd.f32 %v2660, %v3016
    %v3142 = vadd.f32 %v2661, %v3019
    %v3143 = vadd.f32 %v2662, %v3021
    %v3144 = vadd.f32 %v2663, %v3024
    %v3145 = vadd.f32 %v2664, %v3026
    %v3146 = vadd.f32 %v2665, %v3029
    %v3147 = vadd.f32 %v2666, %v3031
    %v3148 = vadd.f32 %v2667, %v3034
    %v3149 = vadd.f32 %v2668, %v3036
    %v3150 = vadd.f32 %v2669, %v3039
    %v3151 = vadd.f32 %v2670, %v3041
    %v3152 = vadd.f32 %v2671, %v3044
    %v3153 = vadd.f32 %v2672, %v3046
    %v3154 = vadd.f32 %v2673, %v3049
    %v3155 = vadd.f32 %v2674, %v3051
    %v3156 = vadd.f32 %v2675, %v3054
    %v3157 = vadd.f32 %v2676, %v3056
    %v3158 = vadd.f32 %v2677, %v3059
    %v3159 = vadd.f32 %v2678, %v3061
    %v3160 = vadd.f32 %v2679, %v3064
    %v3161 = vadd.f32 %v2680, %v3066
    %v3162 = vadd.f32 %v2681, %v3069
    %v3163 = vadd.f32 %v2682, %v3071
    %v3164 = vadd.f32 %v2683, %v3074
    %v3165 = vadd.f32 %v2684, %v3076
    %v3166 = vadd.f32 %v2685, %v3079
    %v3167 = vadd.f32 %v2686, %v3081
    %v3168 = vadd.f32 %v2687, %v3084
    %v3169 = vadd.f32 %v2688, %v3086
    %v3170 = vadd.f32 %v2689, %v3089
    %v3171 = vadd.f32 %v2690, %v3091
    %v3172 = vadd.f32 %v2691, %v3094
    %v3173 = vadd.f32 %v2692, %v3096
    %v3174 = vadd.f32 %v2693, %v3099
    %v3175 = vadd.f32 %v2694, %v3101
    %v3176 = vadd.f32 %v2695, %v3104
    %v3177 = vadd.f32 %v2696, %v3106
    %v3178 = vadd.f32 %v2697, %v3109
    %v3179 = vld [vmem:[#allocation2 + $0x12] sm:$0xff]
    %v3180 = vld [vmem:[#allocation2 + $0x1a] sm:$0xff]
    %v3181 = vld [vmem:[#allocation2 + $0x22] sm:$0xff]
    %v3182 = vld [vmem:[#allocation2 + $0x2a] sm:$0xff]
    %v3183 = vld [vmem:[#allocation2 + $0x32] sm:$0xff]
    %v3184 = vld [vmem:[#allocation2 + $0x3a] sm:$0xff]
    %v3185 = vld [vmem:[#allocation2 + $0x42] sm:$0xff]
    %v3186 = vld [vmem:[#allocation2 + $0x4a] sm:$0xff]
    %v3187 = vld [vmem:[#allocation2 + $0x52] sm:$0xff]
    %v3188 = vld [vmem:[#allocation2 + $0x5a] sm:$0xff]
    %v3189 = vld [vmem:[#allocation2 + $0x62] sm:$0xff]
    %v3190 = vld [vmem:[#allocation2 + $0x6a] sm:$0xff]
    %v3191 = vld [vmem:[#allocation2 + $0x72] sm:$0xff]
    %v3192 = vld [vmem:[#allocation2 + $0x7a] sm:$0xff]
    %v3193 = vld [vmem:[#allocation2 + $0x82] sm:$0xff]
    %v3194 = vld [vmem:[#allocation2 + $0x8a] sm:$0xff]
    %v3195 = vld [vmem:[#allocation2 + $0x92] sm:$0xff]
    %v3196 = vld [vmem:[#allocation2 + $0x9a] sm:$0xff]
    %v3197 = vld [vmem:[#allocation2 + $0xa2] sm:$0xff]
    %v3198 = vld [vmem:[#allocation2 + $0xaa] sm:$0xff]
    %v3199 = vld [vmem:[#allocation2 + $0xb2] sm:$0xff]
    %v3200 = vld [vmem:[#allocation2 + $0xba] sm:$0xff]
    %v3201 = vld [vmem:[#allocation2 + $0xc2] sm:$0xff]
    %v3202 = vld [vmem:[#allocation2 + $0xca] sm:$0xff]
    %v3203 = vld [vmem:[#allocation2 + $0xd2] sm:$0xff]
    %v3204 = vld [vmem:[#allocation2 + $0xda] sm:$0xff]
    %v3205 = vld [vmem:[#allocation2 + $0xe2] sm:$0xff]
    %v3206 = vld [vmem:[#allocation2 + $0xea] sm:$0xff]
    %v3207 = vld [vmem:[#allocation2 + $0xf2] sm:$0xff]
    %v3208 = vld [vmem:[#allocation2 + $0xfa] sm:$0xff]
    %v3209 = vld [vmem:[#allocation2 + $0x102] sm:$0xff]
    %v3210 = vld [vmem:[#allocation2 + $0x10a] sm:$0xff]
    %v3211 = vld [vmem:[#allocation2 + $0x112] sm:$0xff]
    %v3212 = vld [vmem:[#allocation2 + $0x11a] sm:$0xff]
    %v3213 = vld [vmem:[#allocation2 + $0x122] sm:$0xff]
    %v3214 = vld [vmem:[#allocation2 + $0x12a] sm:$0xff]
    %v3215 = vld [vmem:[#allocation2 + $0x132] sm:$0xff]
    %v3216 = vld [vmem:[#allocation2 + $0x13a] sm:$0xff]
    %v3217 = vld [vmem:[#allocation2 + $0x142] sm:$0xff]
    %v3218 = vld [vmem:[#allocation2 + $0x14a] sm:$0xff]
    %v3219 = vld [vmem:[#allocation2 + $0x152] sm:$0xff]
    %v3220 = vld [vmem:[#allocation2 + $0x15a] sm:$0xff]
    %v3221 = vld [vmem:[#allocation2 + $0x162] sm:$0xff]
    %v3222 = vld [vmem:[#allocation2 + $0x16a] sm:$0xff]
    %v3223 = vld [vmem:[#allocation2 + $0x172] sm:$0xff]
    %v3224 = vld [vmem:[#allocation2 + $0x17a] sm:$0xff]
    %v3225 = vld [vmem:[#allocation2 + $0x182] sm:$0xff]
    %v3226 = vld [vmem:[#allocation2 + $0x18a] sm:$0xff]
    %v3227 = vld [vmem:[#allocation2 + $0x192] sm:$0xff]
    %v3228 = vld [vmem:[#allocation2 + $0x19a] sm:$0xff]
    %v3229 = vld [vmem:[#allocation2 + $0x1a2] sm:$0xff]
    %v3230 = vld [vmem:[#allocation2 + $0x1aa] sm:$0xff]
    %v3231 = vld [vmem:[#allocation2 + $0x1b2] sm:$0xff]
    %v3232 = vld [vmem:[#allocation2 + $0x1ba] sm:$0xff]
    %v3233 = vld [vmem:[#allocation2 + $0x1c2] sm:$0xff]
    %v3234 = vld [vmem:[#allocation2 + $0x1ca] sm:$0xff]
    %v3235 = vld [vmem:[#allocation2 + $0x1d2] sm:$0xff]
    %v3236 = vld [vmem:[#allocation2 + $0x1da] sm:$0xff]
    %v3237 = vld [vmem:[#allocation2 + $0x1e2] sm:$0xff]
    %v3238 = vld [vmem:[#allocation2 + $0x1ea] sm:$0xff]
    %v3239 = vld [vmem:[#allocation2 + $0x1f2] sm:$0xff]
    %v3240 = vld [vmem:[#allocation2 + $0x1fa] sm:$0xff]
    %v3241 = vld [vmem:[#allocation2 + $0x202] sm:$0xff]
    %v3242 = vld [vmem:[#allocation2 + $0x20a] sm:$0xff]
    %v3243 = vld [vmem:[#allocation2 + $0x212] sm:$0xff]
    %v3244 = vld [vmem:[#allocation2 + $0x21a] sm:$0xff]
    %v3245 = vld [vmem:[#allocation2 + $0x222] sm:$0xff]
    %v3246 = vpack.c.bf16 %v3180, %v3179
    %v3247 = vpack.c.bf16 %v3182, %v3181
    %v3248 = vpack.c.bf16 %v3184, %v3183
    %v3249 = vpack.c.bf16 %v3186, %v3185
    %v3250 = vpack.c.bf16 %v3188, %v3187
    %v3251 = vpack.c.bf16 %v3190, %v3189
    %v3252 = vpack.c.bf16 %v3192, %v3191
    %v3253 = vpack.c.bf16 %v3194, %v3193
    %v3254 = vpack.c.bf16 %v3196, %v3195
    %v3255 = vpack.c.bf16 %v3198, %v3197
    %v3256 = vpack.c.bf16 %v3200, %v3199
    %v3257 = vpack.c.bf16 %v3202, %v3201
    %v3258 = vpack.c.bf16 %v3204, %v3203
    %v3259 = vpack.c.bf16 %v3206, %v3205
    %v3260 = vpack.c.bf16 %v3208, %v3207
    %v3261 = vpack.c.bf16 %v3210, %v3209
    %v3262 = vpack.c.bf16 %v3212, %v3211
    %v3263 = vpack.c.bf16 %v3214, %v3213
    %v3264 = vpack.c.bf16 %v3216, %v3215
    %v3265 = vpack.c.bf16 %v3218, %v3217
    %v3266 = vpack.c.bf16 %v3220, %v3219
    %v3267 = vpack.c.bf16 %v3222, %v3221
    %v3268 = vpack.c.bf16 %v3224, %v3223
    %v3269 = vpack.c.bf16 %v3226, %v3225
    %v3270 = vpack.c.bf16 %v3228, %v3227
    %v3271 = vpack.c.bf16 %v3230, %v3229
    %v3272 = vpack.c.bf16 %v3232, %v3231
    %v3273 = vpack.c.bf16 %v3234, %v3233
    %v3274 = vpack.c.bf16 %v3236, %v3235
    %v3275 = vpack.c.bf16 %v3238, %v3237
    %v3276 = vpack.c.bf16 %v3240, %v3239
    %v3277 = vpack.c.bf16 %v3242, %v3241
    %v3278 = vpack.c.bf16 %v3244, %v3243
    %v3279 = vpack.c.bf16 %v3245, %v3245
    %s3280 = scalar_lea.vmem %s3, 160
    %v3281 = vld [vmem:[%s3280] sm:$0xf]
    %v3282 = vld [vmem:[%s3280 + $0x4] sm:$0xf]
    %v3283 = vld [vmem:[%s3280 + $0x8] sm:$0xf]
    %v3284 = vld [vmem:[%s3280 + $0xc] sm:$0xf]
    %v3285 = vld [vmem:[%s3280 + $0x10] sm:$0xf]
    %v3286 = vld [vmem:[%s3280 + $0x14] sm:$0xf]
    %v3287 = vld [vmem:[%s3280 + $0x18] sm:$0xf]
    %v3288 = vld [vmem:[%s3280 + $0x1c] sm:$0xf]
    %v3297 = vunpack.c.l.b16 %v3281
    %v3298 = vunpack.c.l.b16 %v3282
    %v3299 = vunpack.c.l.b16 %v3283
    %v3300 = vunpack.c.l.b16 %v3284
    %v3301 = vunpack.c.l.b16 %v3285
    %v3302 = vunpack.c.l.b16 %v3286
    %v3303 = vunpack.c.l.b16 %v3287
    %v3304 = vunpack.c.l.b16 %v3288
    %v3305 = vpack.c.b16 %v3298, %v3297
    %v3306 = vpack.c.b16 %v3300, %v3299
    %v3307 = vpack.c.b16 %v3302, %v3301
    %v3308 = vpack.c.b16 %v3304, %v3303
    %v3314 = vsel %vm836, %v3246, 0
    %v3317 = vsel %vm836, %v3247, 0
    %v3320 = vsel %vm836, %v3248, 0
    %v3323 = vsel %vm836, %v3249, 0
    %v3326 = vsel %vm836, %v3250, 0
    %v3329 = vsel %vm836, %v3251, 0
    %v3332 = vsel %vm836, %v3252, 0
    %v3335 = vsel %vm836, %v3253, 0
    %v3338 = vsel %vm836, %v3254, 0
    %v3341 = vsel %vm836, %v3255, 0
    %v3344 = vsel %vm836, %v3256, 0
    %v3347 = vsel %vm836, %v3257, 0
    %v3350 = vsel %vm836, %v3258, 0
    %v3353 = vsel %vm836, %v3259, 0
    %v3356 = vsel %vm836, %v3260, 0
    %v3359 = vsel %vm836, %v3261, 0
    %v3362 = vsel %vm836, %v3262, 0
    %v3365 = vsel %vm836, %v3263, 0
    %v3368 = vsel %vm836, %v3264, 0
    %v3371 = vsel %vm836, %v3265, 0
    %v3374 = vsel %vm836, %v3266, 0
    %v3377 = vsel %vm836, %v3267, 0
    %v3380 = vsel %vm836, %v3268, 0
    %v3383 = vsel %vm836, %v3269, 0
    %v3386 = vsel %vm836, %v3270, 0
    %v3389 = vsel %vm836, %v3271, 0
    %v3392 = vsel %vm836, %v3272, 0
    %v3395 = vsel %vm836, %v3273, 0
    %v3398 = vsel %vm836, %v3274, 0
    %v3401 = vsel %vm836, %v3275, 0
    %v3404 = vsel %vm836, %v3276, 0
    %v3407 = vsel %vm836, %v3277, 0
    %v3410 = vsel %vm836, %v3278, 0
    %v3413 = vsel %vm836, %v3279, 0
    %3415 = vmatpush.bf16.msra.mxu0 0
    %3416 = vmatpush.bf16.msra.mxu0 0
    %3417 = vmatpush.bf16.msra.mxu0 0
    %3418 = vmatpush.bf16.msra.mxu0 0
    %3419 = vmatpush.bf16.msra.mxu0 %v3308
    %3420 = vmatpush.bf16.msra.mxu0 %v3307
    %3421 = vmatpush.bf16.msra.mxu0 %v3306
    %3422 = vmatpush.bf16.msra.mxu0 %v3305
    %3423 = vmatmul.bf16.gmra.mxu0 %v3314
    %v3424 = vpop.f32.mrf.mxu0
    %v3425 = vadd.f32 0.0, %v3424
    %v3426 = vpop.f32.mrf.mxu0
    %v3427 = vadd.f32 0.0, %v3426
    %3428 = vmatmul.bf16.gmra.mxu0 %v3317
    %v3429 = vpop.f32.mrf.mxu0
    %v3430 = vadd.f32 0.0, %v3429
    %v3431 = vpop.f32.mrf.mxu0
    %v3432 = vadd.f32 0.0, %v3431
    %3433 = vmatmul.bf16.gmra.mxu0 %v3320
    %v3434 = vpop.f32.mrf.mxu0
    %v3435 = vadd.f32 0.0, %v3434
    %v3436 = vpop.f32.mrf.mxu0
    %v3437 = vadd.f32 0.0, %v3436
    %3438 = vmatmul.bf16.gmra.mxu0 %v3323
    %v3439 = vpop.f32.mrf.mxu0
    %v3440 = vadd.f32 0.0, %v3439
    %v3441 = vpop.f32.mrf.mxu0
    %v3442 = vadd.f32 0.0, %v3441
    %3443 = vmatmul.bf16.gmra.mxu0 %v3326
    %v3444 = vpop.f32.mrf.mxu0
    %v3445 = vadd.f32 0.0, %v3444
    %v3446 = vpop.f32.mrf.mxu0
    %v3447 = vadd.f32 0.0, %v3446
    %3448 = vmatmul.bf16.gmra.mxu0 %v3329
    %v3449 = vpop.f32.mrf.mxu0
    %v3450 = vadd.f32 0.0, %v3449
    %v3451 = vpop.f32.mrf.mxu0
    %v3452 = vadd.f32 0.0, %v3451
    %3453 = vmatmul.bf16.gmra.mxu0 %v3332
    %v3454 = vpop.f32.mrf.mxu0
    %v3455 = vadd.f32 0.0, %v3454
    %v3456 = vpop.f32.mrf.mxu0
    %v3457 = vadd.f32 0.0, %v3456
    %3458 = vmatmul.bf16.gmra.mxu0 %v3335
    %v3459 = vpop.f32.mrf.mxu0
    %v3460 = vadd.f32 0.0, %v3459
    %v3461 = vpop.f32.mrf.mxu0
    %v3462 = vadd.f32 0.0, %v3461
    %3463 = vmatmul.bf16.gmra.mxu0 %v3338
    %v3464 = vpop.f32.mrf.mxu0
    %v3465 = vadd.f32 0.0, %v3464
    %v3466 = vpop.f32.mrf.mxu0
    %v3467 = vadd.f32 0.0, %v3466
    %3468 = vmatmul.bf16.gmra.mxu0 %v3341
    %v3469 = vpop.f32.mrf.mxu0
    %v3470 = vadd.f32 0.0, %v3469
    %v3471 = vpop.f32.mrf.mxu0
    %v3472 = vadd.f32 0.0, %v3471
    %3473 = vmatmul.bf16.gmra.mxu0 %v3344
    %v3474 = vpop.f32.mrf.mxu0
    %v3475 = vadd.f32 0.0, %v3474
    %v3476 = vpop.f32.mrf.mxu0
    %v3477 = vadd.f32 0.0, %v3476
    %3478 = vmatmul.bf16.gmra.mxu0 %v3347
    %v3479 = vpop.f32.mrf.mxu0
    %v3480 = vadd.f32 0.0, %v3479
    %v3481 = vpop.f32.mrf.mxu0
    %v3482 = vadd.f32 0.0, %v3481
    %3483 = vmatmul.bf16.gmra.mxu0 %v3350
    %v3484 = vpop.f32.mrf.mxu0
    %v3485 = vadd.f32 0.0, %v3484
    %v3486 = vpop.f32.mrf.mxu0
    %v3487 = vadd.f32 0.0, %v3486
    %3488 = vmatmul.bf16.gmra.mxu0 %v3353
    %v3489 = vpop.f32.mrf.mxu0
    %v3490 = vadd.f32 0.0, %v3489
    %v3491 = vpop.f32.mrf.mxu0
    %v3492 = vadd.f32 0.0, %v3491
    %3493 = vmatmul.bf16.gmra.mxu0 %v3356
    %v3494 = vpop.f32.mrf.mxu0
    %v3495 = vadd.f32 0.0, %v3494
    %v3496 = vpop.f32.mrf.mxu0
    %v3497 = vadd.f32 0.0, %v3496
    %3498 = vmatmul.bf16.gmra.mxu0 %v3359
    %v3499 = vpop.f32.mrf.mxu0
    %v3500 = vadd.f32 0.0, %v3499
    %v3501 = vpop.f32.mrf.mxu0
    %v3502 = vadd.f32 0.0, %v3501
    %3503 = vmatmul.bf16.gmra.mxu0 %v3362
    %v3504 = vpop.f32.mrf.mxu0
    %v3505 = vadd.f32 0.0, %v3504
    %v3506 = vpop.f32.mrf.mxu0
    %v3507 = vadd.f32 0.0, %v3506
    %3508 = vmatmul.bf16.gmra.mxu0 %v3365
    %v3509 = vpop.f32.mrf.mxu0
    %v3510 = vadd.f32 0.0, %v3509
    %v3511 = vpop.f32.mrf.mxu0
    %v3512 = vadd.f32 0.0, %v3511
    %3513 = vmatmul.bf16.gmra.mxu0 %v3368
    %v3514 = vpop.f32.mrf.mxu0
    %v3515 = vadd.f32 0.0, %v3514
    %v3516 = vpop.f32.mrf.mxu0
    %v3517 = vadd.f32 0.0, %v3516
    %3518 = vmatmul.bf16.gmra.mxu0 %v3371
    %v3519 = vpop.f32.mrf.mxu0
    %v3520 = vadd.f32 0.0, %v3519
    %v3521 = vpop.f32.mrf.mxu0
    %v3522 = vadd.f32 0.0, %v3521
    %3523 = vmatmul.bf16.gmra.mxu0 %v3374
    %v3524 = vpop.f32.mrf.mxu0
    %v3525 = vadd.f32 0.0, %v3524
    %v3526 = vpop.f32.mrf.mxu0
    %v3527 = vadd.f32 0.0, %v3526
    %3528 = vmatmul.bf16.gmra.mxu0 %v3377
    %v3529 = vpop.f32.mrf.mxu0
    %v3530 = vadd.f32 0.0, %v3529
    %v3531 = vpop.f32.mrf.mxu0
    %v3532 = vadd.f32 0.0, %v3531
    %3533 = vmatmul.bf16.gmra.mxu0 %v3380
    %v3534 = vpop.f32.mrf.mxu0
    %v3535 = vadd.f32 0.0, %v3534
    %v3536 = vpop.f32.mrf.mxu0
    %v3537 = vadd.f32 0.0, %v3536
    %3538 = vmatmul.bf16.gmra.mxu0 %v3383
    %v3539 = vpop.f32.mrf.mxu0
    %v3540 = vadd.f32 0.0, %v3539
    %v3541 = vpop.f32.mrf.mxu0
    %v3542 = vadd.f32 0.0, %v3541
    %3543 = vmatmul.bf16.gmra.mxu0 %v3386
    %v3544 = vpop.f32.mrf.mxu0
    %v3545 = vadd.f32 0.0, %v3544
    %v3546 = vpop.f32.mrf.mxu0
    %v3547 = vadd.f32 0.0, %v3546
    %3548 = vmatmul.bf16.gmra.mxu0 %v3389
    %v3549 = vpop.f32.mrf.mxu0
    %v3550 = vadd.f32 0.0, %v3549
    %v3551 = vpop.f32.mrf.mxu0
    %v3552 = vadd.f32 0.0, %v3551
    %3553 = vmatmul.bf16.gmra.mxu0 %v3392
    %v3554 = vpop.f32.mrf.mxu0
    %v3555 = vadd.f32 0.0, %v3554
    %v3556 = vpop.f32.mrf.mxu0
    %v3557 = vadd.f32 0.0, %v3556
    %3558 = vmatmul.bf16.gmra.mxu0 %v3395
    %v3559 = vpop.f32.mrf.mxu0
    %v3560 = vadd.f32 0.0, %v3559
    %v3561 = vpop.f32.mrf.mxu0
    %v3562 = vadd.f32 0.0, %v3561
    %3563 = vmatmul.bf16.gmra.mxu0 %v3398
    %v3564 = vpop.f32.mrf.mxu0
    %v3565 = vadd.f32 0.0, %v3564
    %v3566 = vpop.f32.mrf.mxu0
    %v3567 = vadd.f32 0.0, %v3566
    %3568 = vmatmul.bf16.gmra.mxu0 %v3401
    %v3569 = vpop.f32.mrf.mxu0
    %v3570 = vadd.f32 0.0, %v3569
    %v3571 = vpop.f32.mrf.mxu0
    %v3572 = vadd.f32 0.0, %v3571
    %3573 = vmatmul.bf16.gmra.mxu0 %v3404
    %v3574 = vpop.f32.mrf.mxu0
    %v3575 = vadd.f32 0.0, %v3574
    %v3576 = vpop.f32.mrf.mxu0
    %v3577 = vadd.f32 0.0, %v3576
    %3578 = vmatmul.bf16.gmra.mxu0 %v3407
    %v3579 = vpop.f32.mrf.mxu0
    %v3580 = vadd.f32 0.0, %v3579
    %v3581 = vpop.f32.mrf.mxu0
    %v3582 = vadd.f32 0.0, %v3581
    %3583 = vmatmul.bf16.gmra.mxu0 %v3410
    %v3584 = vpop.f32.mrf.mxu0
    %v3585 = vadd.f32 0.0, %v3584
    %v3586 = vpop.f32.mrf.mxu0
    %v3587 = vadd.f32 0.0, %v3586
    %3588 = vmatmul.bf16.gmra.mxu0 %v3413
    %v3589 = vpop.f32.mrf.mxu0
    %v3590 = vadd.f32 0.0, %v3589
    %v3591 = vpop.f32.mrf.mxu0
    %3592 = vdwg.mxu0
    %v3593 = vadd.f32 %v3112, %v3425
    %v3594 = vadd.f32 %v3113, %v3427
    %v3595 = vadd.f32 %v3114, %v3430
    %v3596 = vadd.f32 %v3115, %v3432
    %v3597 = vadd.f32 %v3116, %v3435
    %v3598 = vadd.f32 %v3117, %v3437
    %v3599 = vadd.f32 %v3118, %v3440
    %v3600 = vadd.f32 %v3119, %v3442
    %v3601 = vadd.f32 %v3120, %v3445
    %v3602 = vadd.f32 %v3121, %v3447
    %v3603 = vadd.f32 %v3122, %v3450
    %v3604 = vadd.f32 %v3123, %v3452
    %v3605 = vadd.f32 %v3124, %v3455
    %v3606 = vadd.f32 %v3125, %v3457
    %v3607 = vadd.f32 %v3126, %v3460
    %v3608 = vadd.f32 %v3127, %v3462
    %v3609 = vadd.f32 %v3128, %v3465
    %v3610 = vadd.f32 %v3129, %v3467
    %v3611 = vadd.f32 %v3130, %v3470
    %v3612 = vadd.f32 %v3131, %v3472
    %v3613 = vadd.f32 %v3132, %v3475
    %v3614 = vadd.f32 %v3133, %v3477
    %v3615 = vadd.f32 %v3134, %v3480
    %v3616 = vadd.f32 %v3135, %v3482
    %v3617 = vadd.f32 %v3136, %v3485
    %v3618 = vadd.f32 %v3137, %v3487
    %v3619 = vadd.f32 %v3138, %v3490
    %v3620 = vadd.f32 %v3139, %v3492
    %v3621 = vadd.f32 %v3140, %v3495
    %v3622 = vadd.f32 %v3141, %v3497
    %v3623 = vadd.f32 %v3142, %v3500
    %v3624 = vadd.f32 %v3143, %v3502
    %v3625 = vadd.f32 %v3144, %v3505
    %v3626 = vadd.f32 %v3145, %v3507
    %v3627 = vadd.f32 %v3146, %v3510
    %v3628 = vadd.f32 %v3147, %v3512
    %v3629 = vadd.f32 %v3148, %v3515
    %v3630 = vadd.f32 %v3149, %v3517
    %v3631 = vadd.f32 %v3150, %v3520
    %v3632 = vadd.f32 %v3151, %v3522
    %v3633 = vadd.f32 %v3152, %v3525
    %v3634 = vadd.f32 %v3153, %v3527
    %v3635 = vadd.f32 %v3154, %v3530
    %v3636 = vadd.f32 %v3155, %v3532
    %v3637 = vadd.f32 %v3156, %v3535
    %v3638 = vadd.f32 %v3157, %v3537
    %v3639 = vadd.f32 %v3158, %v3540
    %v3640 = vadd.f32 %v3159, %v3542
    %v3641 = vadd.f32 %v3160, %v3545
    %v3642 = vadd.f32 %v3161, %v3547
    %v3643 = vadd.f32 %v3162, %v3550
    %v3644 = vadd.f32 %v3163, %v3552
    %v3645 = vadd.f32 %v3164, %v3555
    %v3646 = vadd.f32 %v3165, %v3557
    %v3647 = vadd.f32 %v3166, %v3560
    %v3648 = vadd.f32 %v3167, %v3562
    %v3649 = vadd.f32 %v3168, %v3565
    %v3650 = vadd.f32 %v3169, %v3567
    %v3651 = vadd.f32 %v3170, %v3570
    %v3652 = vadd.f32 %v3171, %v3572
    %v3653 = vadd.f32 %v3172, %v3575
    %v3654 = vadd.f32 %v3173, %v3577
    %v3655 = vadd.f32 %v3174, %v3580
    %v3656 = vadd.f32 %v3175, %v3582
    %v3657 = vadd.f32 %v3176, %v3585
    %v3658 = vadd.f32 %v3177, %v3587
    %v3659 = vadd.f32 %v3178, %v3590
    %v3660 = vld [vmem:[#allocation2 + $0x20] sm:$0xff]
    %v3661 = vld [vmem:[#allocation2 + $0x28] sm:$0xff]
    %v3662 = vld [vmem:[#allocation2 + $0x30] sm:$0xff]
    %v3663 = vld [vmem:[#allocation2 + $0x38] sm:$0xff]
    %v3664 = vld [vmem:[#allocation2 + $0x40] sm:$0xff]
    %v3665 = vld [vmem:[#allocation2 + $0x48] sm:$0xff]
    %v3666 = vld [vmem:[#allocation2 + $0x50] sm:$0xff]
    %v3667 = vld [vmem:[#allocation2 + $0x58] sm:$0xff]
    %v3668 = vld [vmem:[#allocation2 + $0x60] sm:$0xff]
    %v3669 = vld [vmem:[#allocation2 + $0x68] sm:$0xff]
    %v3670 = vld [vmem:[#allocation2 + $0x70] sm:$0xff]
    %v3671 = vld [vmem:[#allocation2 + $0x78] sm:$0xff]
    %v3672 = vld [vmem:[#allocation2 + $0x80] sm:$0xff]
    %v3673 = vld [vmem:[#allocation2 + $0x88] sm:$0xff]
    %v3674 = vld [vmem:[#allocation2 + $0x90] sm:$0xff]
    %v3675 = vld [vmem:[#allocation2 + $0x98] sm:$0xff]
    %v3676 = vld [vmem:[#allocation2 + $0xa0] sm:$0xff]
    %v3677 = vld [vmem:[#allocation2 + $0xa8] sm:$0xff]
    %v3678 = vld [vmem:[#allocation2 + $0xb0] sm:$0xff]
    %v3679 = vld [vmem:[#allocation2 + $0xb8] sm:$0xff]
    %v3680 = vld [vmem:[#allocation2 + $0xc0] sm:$0xff]
    %v3681 = vld [vmem:[#allocation2 + $0xc8] sm:$0xff]
    %v3682 = vld [vmem:[#allocation2 + $0xd0] sm:$0xff]
    %v3683 = vld [vmem:[#allocation2 + $0xd8] sm:$0xff]
    %v3684 = vld [vmem:[#allocation2 + $0xe0] sm:$0xff]
    %v3685 = vld [vmem:[#allocation2 + $0xe8] sm:$0xff]
    %v3686 = vld [vmem:[#allocation2 + $0xf0] sm:$0xff]
    %v3687 = vld [vmem:[#allocation2 + $0xf8] sm:$0xff]
    %v3688 = vld [vmem:[#allocation2 + $0x100] sm:$0xff]
    %v3689 = vld [vmem:[#allocation2 + $0x108] sm:$0xff]
    %v3690 = vld [vmem:[#allocation2 + $0x110] sm:$0xff]
    %v3691 = vld [vmem:[#allocation2 + $0x118] sm:$0xff]
    %v3692 = vld [vmem:[#allocation2 + $0x120] sm:$0xff]
    %v3693 = vld [vmem:[#allocation2 + $0x128] sm:$0xff]
    %v3694 = vld [vmem:[#allocation2 + $0x130] sm:$0xff]
    %v3695 = vld [vmem:[#allocation2 + $0x138] sm:$0xff]
    %v3696 = vld [vmem:[#allocation2 + $0x140] sm:$0xff]
    %v3697 = vld [vmem:[#allocation2 + $0x148] sm:$0xff]
    %v3698 = vld [vmem:[#allocation2 + $0x150] sm:$0xff]
    %v3699 = vld [vmem:[#allocation2 + $0x158] sm:$0xff]
    %v3700 = vld [vmem:[#allocation2 + $0x160] sm:$0xff]
    %v3701 = vld [vmem:[#allocation2 + $0x168] sm:$0xff]
    %v3702 = vld [vmem:[#allocation2 + $0x170] sm:$0xff]
    %v3703 = vld [vmem:[#allocation2 + $0x178] sm:$0xff]
    %v3704 = vld [vmem:[#allocation2 + $0x180] sm:$0xff]
    %v3705 = vld [vmem:[#allocation2 + $0x188] sm:$0xff]
    %v3706 = vld [vmem:[#allocation2 + $0x190] sm:$0xff]
    %v3707 = vld [vmem:[#allocation2 + $0x198] sm:$0xff]
    %v3708 = vld [vmem:[#allocation2 + $0x1a0] sm:$0xff]
    %v3709 = vld [vmem:[#allocation2 + $0x1a8] sm:$0xff]
    %v3710 = vld [vmem:[#allocation2 + $0x1b0] sm:$0xff]
    %v3711 = vld [vmem:[#allocation2 + $0x1b8] sm:$0xff]
    %v3712 = vld [vmem:[#allocation2 + $0x1c0] sm:$0xff]
    %v3713 = vld [vmem:[#allocation2 + $0x1c8] sm:$0xff]
    %v3714 = vld [vmem:[#allocation2 + $0x1d0] sm:$0xff]
    %v3715 = vld [vmem:[#allocation2 + $0x1d8] sm:$0xff]
    %v3716 = vld [vmem:[#allocation2 + $0x1e0] sm:$0xff]
    %v3717 = vld [vmem:[#allocation2 + $0x1e8] sm:$0xff]
    %v3718 = vld [vmem:[#allocation2 + $0x1f0] sm:$0xff]
    %v3719 = vld [vmem:[#allocation2 + $0x1f8] sm:$0xff]
    %v3720 = vld [vmem:[#allocation2 + $0x200] sm:$0xff]
    %v3721 = vld [vmem:[#allocation2 + $0x208] sm:$0xff]
    %v3722 = vld [vmem:[#allocation2 + $0x210] sm:$0xff]
    %v3723 = vld [vmem:[#allocation2 + $0x218] sm:$0xff]
    %v3724 = vld [vmem:[#allocation2 + $0x220] sm:$0xff]
    %v3725 = vld [vmem:[#allocation2 + $0x228] sm:$0xff]
    %v3726 = vld [vmem:[#allocation2 + $0x230] sm:$0xff]
    %v3727 = vpack.c.bf16 %v3661, %v3660
    %v3728 = vpack.c.bf16 %v3663, %v3662
    %v3729 = vpack.c.bf16 %v3665, %v3664
    %v3730 = vpack.c.bf16 %v3667, %v3666
    %v3731 = vpack.c.bf16 %v3669, %v3668
    %v3732 = vpack.c.bf16 %v3671, %v3670
    %v3733 = vpack.c.bf16 %v3673, %v3672
    %v3734 = vpack.c.bf16 %v3675, %v3674
    %v3735 = vpack.c.bf16 %v3677, %v3676
    %v3736 = vpack.c.bf16 %v3679, %v3678
    %v3737 = vpack.c.bf16 %v3681, %v3680
    %v3738 = vpack.c.bf16 %v3683, %v3682
    %v3739 = vpack.c.bf16 %v3685, %v3684
    %v3740 = vpack.c.bf16 %v3687, %v3686
    %v3741 = vpack.c.bf16 %v3689, %v3688
    %v3742 = vpack.c.bf16 %v3691, %v3690
    %v3743 = vpack.c.bf16 %v3693, %v3692
    %v3744 = vpack.c.bf16 %v3695, %v3694
    %v3745 = vpack.c.bf16 %v3697, %v3696
    %v3746 = vpack.c.bf16 %v3699, %v3698
    %v3747 = vpack.c.bf16 %v3701, %v3700
    %v3748 = vpack.c.bf16 %v3703, %v3702
    %v3749 = vpack.c.bf16 %v3705, %v3704
    %v3750 = vpack.c.bf16 %v3707, %v3706
    %v3751 = vpack.c.bf16 %v3709, %v3708
    %v3752 = vpack.c.bf16 %v3711, %v3710
    %v3753 = vpack.c.bf16 %v3713, %v3712
    %v3754 = vpack.c.bf16 %v3715, %v3714
    %v3755 = vpack.c.bf16 %v3717, %v3716
    %v3756 = vpack.c.bf16 %v3719, %v3718
    %v3757 = vpack.c.bf16 %v3721, %v3720
    %v3758 = vpack.c.bf16 %v3723, %v3722
    %v3759 = vpack.c.bf16 %v3725, %v3724
    %v3760 = vpack.c.bf16 %v3726, %v3726
    %s3761 = scalar_lea.vmem %s3, 192
    %v3762 = vld [vmem:[%s3761] sm:$0xf]
    %v3763 = vld [vmem:[%s3761 + $0x4] sm:$0xf]
    %v3764 = vld [vmem:[%s3761 + $0x8] sm:$0xf]
    %v3765 = vld [vmem:[%s3761 + $0xc] sm:$0xf]
    %v3766 = vld [vmem:[%s3761 + $0x10] sm:$0xf]
    %v3767 = vld [vmem:[%s3761 + $0x14] sm:$0xf]
    %v3768 = vld [vmem:[%s3761 + $0x18] sm:$0xf]
    %v3769 = vld [vmem:[%s3761 + $0x1c] sm:$0xf]
    %v3778 = vunpack.c.l.b16 %v3762
    %v3779 = vunpack.c.l.b16 %v3763
    %v3780 = vunpack.c.l.b16 %v3764
    %v3781 = vunpack.c.l.b16 %v3765
    %v3782 = vunpack.c.l.b16 %v3766
    %v3783 = vunpack.c.l.b16 %v3767
    %v3784 = vunpack.c.l.b16 %v3768
    %v3785 = vunpack.c.l.b16 %v3769
    %v3786 = vpack.c.b16 %v3779, %v3778
    %v3787 = vpack.c.b16 %v3781, %v3780
    %v3788 = vpack.c.b16 %v3783, %v3782
    %v3789 = vpack.c.b16 %v3785, %v3784
    %v3795 = vsel %vm836, %v3727, 0
    %v3798 = vsel %vm836, %v3728, 0
    %v3801 = vsel %vm836, %v3729, 0
    %v3804 = vsel %vm836, %v3730, 0
    %v3807 = vsel %vm836, %v3731, 0
    %v3810 = vsel %vm836, %v3732, 0
    %v3813 = vsel %vm836, %v3733, 0
    %v3816 = vsel %vm836, %v3734, 0
    %v3819 = vsel %vm836, %v3735, 0
    %v3822 = vsel %vm836, %v3736, 0
    %v3825 = vsel %vm836, %v3737, 0
    %v3828 = vsel %vm836, %v3738, 0
    %v3831 = vsel %vm836, %v3739, 0
    %v3834 = vsel %vm836, %v3740, 0
    %v3837 = vsel %vm836, %v3741, 0
    %v3840 = vsel %vm836, %v3742, 0
    %v3843 = vsel %vm836, %v3743, 0
    %v3846 = vsel %vm836, %v3744, 0
    %v3849 = vsel %vm836, %v3745, 0
    %v3852 = vsel %vm836, %v3746, 0
    %v3855 = vsel %vm836, %v3747, 0
    %v3858 = vsel %vm836, %v3748, 0
    %v3861 = vsel %vm836, %v3749, 0
    %v3864 = vsel %vm836, %v3750, 0
    %v3867 = vsel %vm836, %v3751, 0
    %v3870 = vsel %vm836, %v3752, 0
    %v3873 = vsel %vm836, %v3753, 0
    %v3876 = vsel %vm836, %v3754, 0
    %v3879 = vsel %vm836, %v3755, 0
    %v3882 = vsel %vm836, %v3756, 0
    %v3885 = vsel %vm836, %v3757, 0
    %v3888 = vsel %vm836, %v3758, 0
    %v3891 = vsel %vm836, %v3759, 0
    %v3894 = vsel %vm836, %v3760, 0
    %3896 = vmatpush.bf16.msra.mxu0 0
    %3897 = vmatpush.bf16.msra.mxu0 0
    %3898 = vmatpush.bf16.msra.mxu0 0
    %3899 = vmatpush.bf16.msra.mxu0 0
    %3900 = vmatpush.bf16.msra.mxu0 %v3789
    %3901 = vmatpush.bf16.msra.mxu0 %v3788
    %3902 = vmatpush.bf16.msra.mxu0 %v3787
    %3903 = vmatpush.bf16.msra.mxu0 %v3786
    %3904 = vmatmul.bf16.gmra.mxu0 %v3795
    %v3905 = vpop.f32.mrf.mxu0
    %v3906 = vadd.f32 0.0, %v3905
    %v3907 = vpop.f32.mrf.mxu0
    %v3908 = vadd.f32 0.0, %v3907
    %3909 = vmatmul.bf16.gmra.mxu0 %v3798
    %v3910 = vpop.f32.mrf.mxu0
    %v3911 = vadd.f32 0.0, %v3910
    %v3912 = vpop.f32.mrf.mxu0
    %v3913 = vadd.f32 0.0, %v3912
    %3914 = vmatmul.bf16.gmra.mxu0 %v3801
    %v3915 = vpop.f32.mrf.mxu0
    %v3916 = vadd.f32 0.0, %v3915
    %v3917 = vpop.f32.mrf.mxu0
    %v3918 = vadd.f32 0.0, %v3917
    %3919 = vmatmul.bf16.gmra.mxu0 %v3804
    %v3920 = vpop.f32.mrf.mxu0
    %v3921 = vadd.f32 0.0, %v3920
    %v3922 = vpop.f32.mrf.mxu0
    %v3923 = vadd.f32 0.0, %v3922
    %3924 = vmatmul.bf16.gmra.mxu0 %v3807
    %v3925 = vpop.f32.mrf.mxu0
    %v3926 = vadd.f32 0.0, %v3925
    %v3927 = vpop.f32.mrf.mxu0
    %v3928 = vadd.f32 0.0, %v3927
    %3929 = vmatmul.bf16.gmra.mxu0 %v3810
    %v3930 = vpop.f32.mrf.mxu0
    %v3931 = vadd.f32 0.0, %v3930
    %v3932 = vpop.f32.mrf.mxu0
    %v3933 = vadd.f32 0.0, %v3932
    %3934 = vmatmul.bf16.gmra.mxu0 %v3813
    %v3935 = vpop.f32.mrf.mxu0
    %v3936 = vadd.f32 0.0, %v3935
    %v3937 = vpop.f32.mrf.mxu0
    %v3938 = vadd.f32 0.0, %v3937
    %3939 = vmatmul.bf16.gmra.mxu0 %v3816
    %v3940 = vpop.f32.mrf.mxu0
    %v3941 = vadd.f32 0.0, %v3940
    %v3942 = vpop.f32.mrf.mxu0
    %v3943 = vadd.f32 0.0, %v3942
    %3944 = vmatmul.bf16.gmra.mxu0 %v3819
    %v3945 = vpop.f32.mrf.mxu0
    %v3946 = vadd.f32 0.0, %v3945
    %v3947 = vpop.f32.mrf.mxu0
    %v3948 = vadd.f32 0.0, %v3947
    %3949 = vmatmul.bf16.gmra.mxu0 %v3822
    %v3950 = vpop.f32.mrf.mxu0
    %v3951 = vadd.f32 0.0, %v3950
    %v3952 = vpop.f32.mrf.mxu0
    %v3953 = vadd.f32 0.0, %v3952
    %3954 = vmatmul.bf16.gmra.mxu0 %v3825
    %v3955 = vpop.f32.mrf.mxu0
    %v3956 = vadd.f32 0.0, %v3955
    %v3957 = vpop.f32.mrf.mxu0
    %v3958 = vadd.f32 0.0, %v3957
    %3959 = vmatmul.bf16.gmra.mxu0 %v3828
    %v3960 = vpop.f32.mrf.mxu0
    %v3961 = vadd.f32 0.0, %v3960
    %v3962 = vpop.f32.mrf.mxu0
    %v3963 = vadd.f32 0.0, %v3962
    %3964 = vmatmul.bf16.gmra.mxu0 %v3831
    %v3965 = vpop.f32.mrf.mxu0
    %v3966 = vadd.f32 0.0, %v3965
    %v3967 = vpop.f32.mrf.mxu0
    %v3968 = vadd.f32 0.0, %v3967
    %3969 = vmatmul.bf16.gmra.mxu0 %v3834
    %v3970 = vpop.f32.mrf.mxu0
    %v3971 = vadd.f32 0.0, %v3970
    %v3972 = vpop.f32.mrf.mxu0
    %v3973 = vadd.f32 0.0, %v3972
    %3974 = vmatmul.bf16.gmra.mxu0 %v3837
    %v3975 = vpop.f32.mrf.mxu0
    %v3976 = vadd.f32 0.0, %v3975
    %v3977 = vpop.f32.mrf.mxu0
    %v3978 = vadd.f32 0.0, %v3977
    %3979 = vmatmul.bf16.gmra.mxu0 %v3840
    %v3980 = vpop.f32.mrf.mxu0
    %v3981 = vadd.f32 0.0, %v3980
    %v3982 = vpop.f32.mrf.mxu0
    %v3983 = vadd.f32 0.0, %v3982
    %3984 = vmatmul.bf16.gmra.mxu0 %v3843
    %v3985 = vpop.f32.mrf.mxu0
    %v3986 = vadd.f32 0.0, %v3985
    %v3987 = vpop.f32.mrf.mxu0
    %v3988 = vadd.f32 0.0, %v3987
    %3989 = vmatmul.bf16.gmra.mxu0 %v3846
    %v3990 = vpop.f32.mrf.mxu0
    %v3991 = vadd.f32 0.0, %v3990
    %v3992 = vpop.f32.mrf.mxu0
    %v3993 = vadd.f32 0.0, %v3992
    %3994 = vmatmul.bf16.gmra.mxu0 %v3849
    %v3995 = vpop.f32.mrf.mxu0
    %v3996 = vadd.f32 0.0, %v3995
    %v3997 = vpop.f32.mrf.mxu0
    %v3998 = vadd.f32 0.0, %v3997
    %3999 = vmatmul.bf16.gmra.mxu0 %v3852
    %v4000 = vpop.f32.mrf.mxu0
    %v4001 = vadd.f32 0.0, %v4000
    %v4002 = vpop.f32.mrf.mxu0
    %v4003 = vadd.f32 0.0, %v4002
    %4004 = vmatmul.bf16.gmra.mxu0 %v3855
    %v4005 = vpop.f32.mrf.mxu0
    %v4006 = vadd.f32 0.0, %v4005
    %v4007 = vpop.f32.mrf.mxu0
    %v4008 = vadd.f32 0.0, %v4007
    %4009 = vmatmul.bf16.gmra.mxu0 %v3858
    %v4010 = vpop.f32.mrf.mxu0
    %v4011 = vadd.f32 0.0, %v4010
    %v4012 = vpop.f32.mrf.mxu0
    %v4013 = vadd.f32 0.0, %v4012
    %4014 = vmatmul.bf16.gmra.mxu0 %v3861
    %v4015 = vpop.f32.mrf.mxu0
    %v4016 = vadd.f32 0.0, %v4015
    %v4017 = vpop.f32.mrf.mxu0
    %v4018 = vadd.f32 0.0, %v4017
    %4019 = vmatmul.bf16.gmra.mxu0 %v3864
    %v4020 = vpop.f32.mrf.mxu0
    %v4021 = vadd.f32 0.0, %v4020
    %v4022 = vpop.f32.mrf.mxu0
    %v4023 = vadd.f32 0.0, %v4022
    %4024 = vmatmul.bf16.gmra.mxu0 %v3867
    %v4025 = vpop.f32.mrf.mxu0
    %v4026 = vadd.f32 0.0, %v4025
    %v4027 = vpop.f32.mrf.mxu0
    %v4028 = vadd.f32 0.0, %v4027
    %4029 = vmatmul.bf16.gmra.mxu0 %v3870
    %v4030 = vpop.f32.mrf.mxu0
    %v4031 = vadd.f32 0.0, %v4030
    %v4032 = vpop.f32.mrf.mxu0
    %v4033 = vadd.f32 0.0, %v4032
    %4034 = vmatmul.bf16.gmra.mxu0 %v3873
    %v4035 = vpop.f32.mrf.mxu0
    %v4036 = vadd.f32 0.0, %v4035
    %v4037 = vpop.f32.mrf.mxu0
    %v4038 = vadd.f32 0.0, %v4037
    %4039 = vmatmul.bf16.gmra.mxu0 %v3876
    %v4040 = vpop.f32.mrf.mxu0
    %v4041 = vadd.f32 0.0, %v4040
    %v4042 = vpop.f32.mrf.mxu0
    %v4043 = vadd.f32 0.0, %v4042
    %4044 = vmatmul.bf16.gmra.mxu0 %v3879
    %v4045 = vpop.f32.mrf.mxu0
    %v4046 = vadd.f32 0.0, %v4045
    %v4047 = vpop.f32.mrf.mxu0
    %v4048 = vadd.f32 0.0, %v4047
    %4049 = vmatmul.bf16.gmra.mxu0 %v3882
    %v4050 = vpop.f32.mrf.mxu0
    %v4051 = vadd.f32 0.0, %v4050
    %v4052 = vpop.f32.mrf.mxu0
    %v4053 = vadd.f32 0.0, %v4052
    %4054 = vmatmul.bf16.gmra.mxu0 %v3885
    %v4055 = vpop.f32.mrf.mxu0
    %v4056 = vadd.f32 0.0, %v4055
    %v4057 = vpop.f32.mrf.mxu0
    %v4058 = vadd.f32 0.0, %v4057
    %4059 = vmatmul.bf16.gmra.mxu0 %v3888
    %v4060 = vpop.f32.mrf.mxu0
    %v4061 = vadd.f32 0.0, %v4060
    %v4062 = vpop.f32.mrf.mxu0
    %v4063 = vadd.f32 0.0, %v4062
    %4064 = vmatmul.bf16.gmra.mxu0 %v3891
    %v4065 = vpop.f32.mrf.mxu0
    %v4066 = vadd.f32 0.0, %v4065
    %v4067 = vpop.f32.mrf.mxu0
    %v4068 = vadd.f32 0.0, %v4067
    %4069 = vmatmul.bf16.gmra.mxu0 %v3894
    %v4070 = vpop.f32.mrf.mxu0
    %v4071 = vadd.f32 0.0, %v4070
    %v4072 = vpop.f32.mrf.mxu0
    %4073 = vdwg.mxu0
    %v4074 = vadd.f32 %v3593, %v3906
    %v4075 = vadd.f32 %v3594, %v3908
    %v4076 = vadd.f32 %v3595, %v3911
    %v4077 = vadd.f32 %v3596, %v3913
    %v4078 = vadd.f32 %v3597, %v3916
    %v4079 = vadd.f32 %v3598, %v3918
    %v4080 = vadd.f32 %v3599, %v3921
    %v4081 = vadd.f32 %v3600, %v3923
    %v4082 = vadd.f32 %v3601, %v3926
    %v4083 = vadd.f32 %v3602, %v3928
    %v4084 = vadd.f32 %v3603, %v3931
    %v4085 = vadd.f32 %v3604, %v3933
    %v4086 = vadd.f32 %v3605, %v3936
    %v4087 = vadd.f32 %v3606, %v3938
    %v4088 = vadd.f32 %v3607, %v3941
    %v4089 = vadd.f32 %v3608, %v3943
    %v4090 = vadd.f32 %v3609, %v3946
    %v4091 = vadd.f32 %v3610, %v3948
    %v4092 = vadd.f32 %v3611, %v3951
    %v4093 = vadd.f32 %v3612, %v3953
    %v4094 = vadd.f32 %v3613, %v3956
    %v4095 = vadd.f32 %v3614, %v3958
    %v4096 = vadd.f32 %v3615, %v3961
    %v4097 = vadd.f32 %v3616, %v3963
    %v4098 = vadd.f32 %v3617, %v3966
    %v4099 = vadd.f32 %v3618, %v3968
    %v4100 = vadd.f32 %v3619, %v3971
    %v4101 = vadd.f32 %v3620, %v3973
    %v4102 = vadd.f32 %v3621, %v3976
    %v4103 = vadd.f32 %v3622, %v3978
    %v4104 = vadd.f32 %v3623, %v3981
    %v4105 = vadd.f32 %v3624, %v3983
    %v4106 = vadd.f32 %v3625, %v3986
    %v4107 = vadd.f32 %v3626, %v3988
    %v4108 = vadd.f32 %v3627, %v3991
    %v4109 = vadd.f32 %v3628, %v3993
    %v4110 = vadd.f32 %v3629, %v3996
    %v4111 = vadd.f32 %v3630, %v3998
    %v4112 = vadd.f32 %v3631, %v4001
    %v4113 = vadd.f32 %v3632, %v4003
    %v4114 = vadd.f32 %v3633, %v4006
    %v4115 = vadd.f32 %v3634, %v4008
    %v4116 = vadd.f32 %v3635, %v4011
    %v4117 = vadd.f32 %v3636, %v4013
    %v4118 = vadd.f32 %v3637, %v4016
    %v4119 = vadd.f32 %v3638, %v4018
    %v4120 = vadd.f32 %v3639, %v4021
    %v4121 = vadd.f32 %v3640, %v4023
    %v4122 = vadd.f32 %v3641, %v4026
    %v4123 = vadd.f32 %v3642, %v4028
    %v4124 = vadd.f32 %v3643, %v4031
    %v4125 = vadd.f32 %v3644, %v4033
    %v4126 = vadd.f32 %v3645, %v4036
    %v4127 = vadd.f32 %v3646, %v4038
    %v4128 = vadd.f32 %v3647, %v4041
    %v4129 = vadd.f32 %v3648, %v4043
    %v4130 = vadd.f32 %v3649, %v4046
    %v4131 = vadd.f32 %v3650, %v4048
    %v4132 = vadd.f32 %v3651, %v4051
    %v4133 = vadd.f32 %v3652, %v4053
    %v4134 = vadd.f32 %v3653, %v4056
    %v4135 = vadd.f32 %v3654, %v4058
    %v4136 = vadd.f32 %v3655, %v4061
    %v4137 = vadd.f32 %v3656, %v4063
    %v4138 = vadd.f32 %v3657, %v4066
    %v4139 = vadd.f32 %v3658, %v4068
    %v4140 = vadd.f32 %v3659, %v4071
    %v4141 = vld [vmem:[#allocation2 + $0x21] sm:$0xff]
    %v4142 = vld [vmem:[#allocation2 + $0x29] sm:$0xff]
    %v4143 = vld [vmem:[#allocation2 + $0x31] sm:$0xff]
    %v4144 = vld [vmem:[#allocation2 + $0x39] sm:$0xff]
    %v4145 = vld [vmem:[#allocation2 + $0x41] sm:$0xff]
    %v4146 = vld [vmem:[#allocation2 + $0x49] sm:$0xff]
    %v4147 = vld [vmem:[#allocation2 + $0x51] sm:$0xff]
    %v4148 = vld [vmem:[#allocation2 + $0x59] sm:$0xff]
    %v4149 = vld [vmem:[#allocation2 + $0x61] sm:$0xff]
    %v4150 = vld [vmem:[#allocation2 + $0x69] sm:$0xff]
    %v4151 = vld [vmem:[#allocation2 + $0x71] sm:$0xff]
    %v4152 = vld [vmem:[#allocation2 + $0x79] sm:$0xff]
    %v4153 = vld [vmem:[#allocation2 + $0x81] sm:$0xff]
    %v4154 = vld [vmem:[#allocation2 + $0x89] sm:$0xff]
    %v4155 = vld [vmem:[#allocation2 + $0x91] sm:$0xff]
    %v4156 = vld [vmem:[#allocation2 + $0x99] sm:$0xff]
    %v4157 = vld [vmem:[#allocation2 + $0xa1] sm:$0xff]
    %v4158 = vld [vmem:[#allocation2 + $0xa9] sm:$0xff]
    %v4159 = vld [vmem:[#allocation2 + $0xb1] sm:$0xff]
    %v4160 = vld [vmem:[#allocation2 + $0xb9] sm:$0xff]
    %v4161 = vld [vmem:[#allocation2 + $0xc1] sm:$0xff]
    %v4162 = vld [vmem:[#allocation2 + $0xc9] sm:$0xff]
    %v4163 = vld [vmem:[#allocation2 + $0xd1] sm:$0xff]
    %v4164 = vld [vmem:[#allocation2 + $0xd9] sm:$0xff]
    %v4165 = vld [vmem:[#allocation2 + $0xe1] sm:$0xff]
    %v4166 = vld [vmem:[#allocation2 + $0xe9] sm:$0xff]
    %v4167 = vld [vmem:[#allocation2 + $0xf1] sm:$0xff]
    %v4168 = vld [vmem:[#allocation2 + $0xf9] sm:$0xff]
    %v4169 = vld [vmem:[#allocation2 + $0x101] sm:$0xff]
    %v4170 = vld [vmem:[#allocation2 + $0x109] sm:$0xff]
    %v4171 = vld [vmem:[#allocation2 + $0x111] sm:$0xff]
    %v4172 = vld [vmem:[#allocation2 + $0x119] sm:$0xff]
    %v4173 = vld [vmem:[#allocation2 + $0x121] sm:$0xff]
    %v4174 = vld [vmem:[#allocation2 + $0x129] sm:$0xff]
    %v4175 = vld [vmem:[#allocation2 + $0x131] sm:$0xff]
    %v4176 = vld [vmem:[#allocation2 + $0x139] sm:$0xff]
    %v4177 = vld [vmem:[#allocation2 + $0x141] sm:$0xff]
    %v4178 = vld [vmem:[#allocation2 + $0x149] sm:$0xff]
    %v4179 = vld [vmem:[#allocation2 + $0x151] sm:$0xff]
    %v4180 = vld [vmem:[#allocation2 + $0x159] sm:$0xff]
    %v4181 = vld [vmem:[#allocation2 + $0x161] sm:$0xff]
    %v4182 = vld [vmem:[#allocation2 + $0x169] sm:$0xff]
    %v4183 = vld [vmem:[#allocation2 + $0x171] sm:$0xff]
    %v4184 = vld [vmem:[#allocation2 + $0x179] sm:$0xff]
    %v4185 = vld [vmem:[#allocation2 + $0x181] sm:$0xff]
    %v4186 = vld [vmem:[#allocation2 + $0x189] sm:$0xff]
    %v4187 = vld [vmem:[#allocation2 + $0x191] sm:$0xff]
    %v4188 = vld [vmem:[#allocation2 + $0x199] sm:$0xff]
    %v4189 = vld [vmem:[#allocation2 + $0x1a1] sm:$0xff]
    %v4190 = vld [vmem:[#allocation2 + $0x1a9] sm:$0xff]
    %v4191 = vld [vmem:[#allocation2 + $0x1b1] sm:$0xff]
    %v4192 = vld [vmem:[#allocation2 + $0x1b9] sm:$0xff]
    %v4193 = vld [vmem:[#allocation2 + $0x1c1] sm:$0xff]
    %v4194 = vld [vmem:[#allocation2 + $0x1c9] sm:$0xff]
    %v4195 = vld [vmem:[#allocation2 + $0x1d1] sm:$0xff]
    %v4196 = vld [vmem:[#allocation2 + $0x1d9] sm:$0xff]
    %v4197 = vld [vmem:[#allocation2 + $0x1e1] sm:$0xff]
    %v4198 = vld [vmem:[#allocation2 + $0x1e9] sm:$0xff]
    %v4199 = vld [vmem:[#allocation2 + $0x1f1] sm:$0xff]
    %v4200 = vld [vmem:[#allocation2 + $0x1f9] sm:$0xff]
    %v4201 = vld [vmem:[#allocation2 + $0x201] sm:$0xff]
    %v4202 = vld [vmem:[#allocation2 + $0x209] sm:$0xff]
    %v4203 = vld [vmem:[#allocation2 + $0x211] sm:$0xff]
    %v4204 = vld [vmem:[#allocation2 + $0x219] sm:$0xff]
    %v4205 = vld [vmem:[#allocation2 + $0x221] sm:$0xff]
    %v4206 = vld [vmem:[#allocation2 + $0x229] sm:$0xff]
    %v4207 = vld [vmem:[#allocation2 + $0x231] sm:$0xff]
    %v4208 = vpack.c.bf16 %v4142, %v4141
    %v4209 = vpack.c.bf16 %v4144, %v4143
    %v4210 = vpack.c.bf16 %v4146, %v4145
    %v4211 = vpack.c.bf16 %v4148, %v4147
    %v4212 = vpack.c.bf16 %v4150, %v4149
    %v4213 = vpack.c.bf16 %v4152, %v4151
    %v4214 = vpack.c.bf16 %v4154, %v4153
    %v4215 = vpack.c.bf16 %v4156, %v4155
    %v4216 = vpack.c.bf16 %v4158, %v4157
    %v4217 = vpack.c.bf16 %v4160, %v4159
    %v4218 = vpack.c.bf16 %v4162, %v4161
    %v4219 = vpack.c.bf16 %v4164, %v4163
    %v4220 = vpack.c.bf16 %v4166, %v4165
    %v4221 = vpack.c.bf16 %v4168, %v4167
    %v4222 = vpack.c.bf16 %v4170, %v4169
    %v4223 = vpack.c.bf16 %v4172, %v4171
    %v4224 = vpack.c.bf16 %v4174, %v4173
    %v4225 = vpack.c.bf16 %v4176, %v4175
    %v4226 = vpack.c.bf16 %v4178, %v4177
    %v4227 = vpack.c.bf16 %v4180, %v4179
    %v4228 = vpack.c.bf16 %v4182, %v4181
    %v4229 = vpack.c.bf16 %v4184, %v4183
    %v4230 = vpack.c.bf16 %v4186, %v4185
    %v4231 = vpack.c.bf16 %v4188, %v4187
    %v4232 = vpack.c.bf16 %v4190, %v4189
    %v4233 = vpack.c.bf16 %v4192, %v4191
    %v4234 = vpack.c.bf16 %v4194, %v4193
    %v4235 = vpack.c.bf16 %v4196, %v4195
    %v4236 = vpack.c.bf16 %v4198, %v4197
    %v4237 = vpack.c.bf16 %v4200, %v4199
    %v4238 = vpack.c.bf16 %v4202, %v4201
    %v4239 = vpack.c.bf16 %v4204, %v4203
    %v4240 = vpack.c.bf16 %v4206, %v4205
    %v4241 = vpack.c.bf16 %v4207, %v4207
    %s4242 = scalar_lea.vmem %s3, 224
    %v4243 = vld [vmem:[%s4242] sm:$0xf]
    %v4244 = vld [vmem:[%s4242 + $0x4] sm:$0xf]
    %v4245 = vld [vmem:[%s4242 + $0x8] sm:$0xf]
    %v4246 = vld [vmem:[%s4242 + $0xc] sm:$0xf]
    %v4247 = vld [vmem:[%s4242 + $0x10] sm:$0xf]
    %v4248 = vld [vmem:[%s4242 + $0x14] sm:$0xf]
    %v4249 = vld [vmem:[%s4242 + $0x18] sm:$0xf]
    %v4250 = vld [vmem:[%s4242 + $0x1c] sm:$0xf]
    %v4259 = vunpack.c.l.b16 %v4243
    %v4260 = vunpack.c.l.b16 %v4244
    %v4261 = vunpack.c.l.b16 %v4245
    %v4262 = vunpack.c.l.b16 %v4246
    %v4263 = vunpack.c.l.b16 %v4247
    %v4264 = vunpack.c.l.b16 %v4248
    %v4265 = vunpack.c.l.b16 %v4249
    %v4266 = vunpack.c.l.b16 %v4250
    %v4267 = vpack.c.b16 %v4260, %v4259
    %v4268 = vpack.c.b16 %v4262, %v4261
    %v4269 = vpack.c.b16 %v4264, %v4263
    %v4270 = vpack.c.b16 %v4266, %v4265
    %v4276 = vsel %vm836, %v4208, 0
    %v4279 = vsel %vm836, %v4209, 0
    %v4282 = vsel %vm836, %v4210, 0
    %v4285 = vsel %vm836, %v4211, 0
    %v4288 = vsel %vm836, %v4212, 0
    %v4291 = vsel %vm836, %v4213, 0
    %v4294 = vsel %vm836, %v4214, 0
    %v4297 = vsel %vm836, %v4215, 0
    %v4300 = vsel %vm836, %v4216, 0
    %v4303 = vsel %vm836, %v4217, 0
    %v4306 = vsel %vm836, %v4218, 0
    %v4309 = vsel %vm836, %v4219, 0
    %v4312 = vsel %vm836, %v4220, 0
    %v4315 = vsel %vm836, %v4221, 0
    %v4318 = vsel %vm836, %v4222, 0
    %v4321 = vsel %vm836, %v4223, 0
    %v4324 = vsel %vm836, %v4224, 0
    %v4327 = vsel %vm836, %v4225, 0
    %v4330 = vsel %vm836, %v4226, 0
    %v4333 = vsel %vm836, %v4227, 0
    %v4336 = vsel %vm836, %v4228, 0
    %v4339 = vsel %vm836, %v4229, 0
    %v4342 = vsel %vm836, %v4230, 0
    %v4345 = vsel %vm836, %v4231, 0
    %v4348 = vsel %vm836, %v4232, 0
    %v4351 = vsel %vm836, %v4233, 0
    %v4354 = vsel %vm836, %v4234, 0
    %v4357 = vsel %vm836, %v4235, 0
    %v4360 = vsel %vm836, %v4236, 0
    %v4363 = vsel %vm836, %v4237, 0
    %v4366 = vsel %vm836, %v4238, 0
    %v4369 = vsel %vm836, %v4239, 0
    %v4372 = vsel %vm836, %v4240, 0
    %v4375 = vsel %vm836, %v4241, 0
    %4377 = vmatpush.bf16.msra.mxu0 0
    %4378 = vmatpush.bf16.msra.mxu0 0
    %4379 = vmatpush.bf16.msra.mxu0 0
    %4380 = vmatpush.bf16.msra.mxu0 0
    %4381 = vmatpush.bf16.msra.mxu0 %v4270
    %4382 = vmatpush.bf16.msra.mxu0 %v4269
    %4383 = vmatpush.bf16.msra.mxu0 %v4268
    %4384 = vmatpush.bf16.msra.mxu0 %v4267
    %4385 = vmatmul.bf16.gmra.mxu0 %v4276
    %v4386 = vpop.f32.mrf.mxu0
    %v4387 = vadd.f32 0.0, %v4386
    %v4388 = vpop.f32.mrf.mxu0
    %v4389 = vadd.f32 0.0, %v4388
    %4390 = vmatmul.bf16.gmra.mxu0 %v4279
    %v4391 = vpop.f32.mrf.mxu0
    %v4392 = vadd.f32 0.0, %v4391
    %v4393 = vpop.f32.mrf.mxu0
    %v4394 = vadd.f32 0.0, %v4393
    %4395 = vmatmul.bf16.gmra.mxu0 %v4282
    %v4396 = vpop.f32.mrf.mxu0
    %v4397 = vadd.f32 0.0, %v4396
    %v4398 = vpop.f32.mrf.mxu0
    %v4399 = vadd.f32 0.0, %v4398
    %4400 = vmatmul.bf16.gmra.mxu0 %v4285
    %v4401 = vpop.f32.mrf.mxu0
    %v4402 = vadd.f32 0.0, %v4401
    %v4403 = vpop.f32.mrf.mxu0
    %v4404 = vadd.f32 0.0, %v4403
    %4405 = vmatmul.bf16.gmra.mxu0 %v4288
    %v4406 = vpop.f32.mrf.mxu0
    %v4407 = vadd.f32 0.0, %v4406
    %v4408 = vpop.f32.mrf.mxu0
    %v4409 = vadd.f32 0.0, %v4408
    %4410 = vmatmul.bf16.gmra.mxu0 %v4291
    %v4411 = vpop.f32.mrf.mxu0
    %v4412 = vadd.f32 0.0, %v4411
    %v4413 = vpop.f32.mrf.mxu0
    %v4414 = vadd.f32 0.0, %v4413
    %4415 = vmatmul.bf16.gmra.mxu0 %v4294
    %v4416 = vpop.f32.mrf.mxu0
    %v4417 = vadd.f32 0.0, %v4416
    %v4418 = vpop.f32.mrf.mxu0
    %v4419 = vadd.f32 0.0, %v4418
    %4420 = vmatmul.bf16.gmra.mxu0 %v4297
    %v4421 = vpop.f32.mrf.mxu0
    %v4422 = vadd.f32 0.0, %v4421
    %v4423 = vpop.f32.mrf.mxu0
    %v4424 = vadd.f32 0.0, %v4423
    %4425 = vmatmul.bf16.gmra.mxu0 %v4300
    %v4426 = vpop.f32.mrf.mxu0
    %v4427 = vadd.f32 0.0, %v4426
    %v4428 = vpop.f32.mrf.mxu0
    %v4429 = vadd.f32 0.0, %v4428
    %4430 = vmatmul.bf16.gmra.mxu0 %v4303
    %v4431 = vpop.f32.mrf.mxu0
    %v4432 = vadd.f32 0.0, %v4431
    %v4433 = vpop.f32.mrf.mxu0
    %v4434 = vadd.f32 0.0, %v4433
    %4435 = vmatmul.bf16.gmra.mxu0 %v4306
    %v4436 = vpop.f32.mrf.mxu0
    %v4437 = vadd.f32 0.0, %v4436
    %v4438 = vpop.f32.mrf.mxu0
    %v4439 = vadd.f32 0.0, %v4438
    %4440 = vmatmul.bf16.gmra.mxu0 %v4309
    %v4441 = vpop.f32.mrf.mxu0
    %v4442 = vadd.f32 0.0, %v4441
    %v4443 = vpop.f32.mrf.mxu0
    %v4444 = vadd.f32 0.0, %v4443
    %4445 = vmatmul.bf16.gmra.mxu0 %v4312
    %v4446 = vpop.f32.mrf.mxu0
    %v4447 = vadd.f32 0.0, %v4446
    %v4448 = vpop.f32.mrf.mxu0
    %v4449 = vadd.f32 0.0, %v4448
    %4450 = vmatmul.bf16.gmra.mxu0 %v4315
    %v4451 = vpop.f32.mrf.mxu0
    %v4452 = vadd.f32 0.0, %v4451
    %v4453 = vpop.f32.mrf.mxu0
    %v4454 = vadd.f32 0.0, %v4453
    %4455 = vmatmul.bf16.gmra.mxu0 %v4318
    %v4456 = vpop.f32.mrf.mxu0
    %v4457 = vadd.f32 0.0, %v4456
    %v4458 = vpop.f32.mrf.mxu0
    %v4459 = vadd.f32 0.0, %v4458
    %4460 = vmatmul.bf16.gmra.mxu0 %v4321
    %v4461 = vpop.f32.mrf.mxu0
    %v4462 = vadd.f32 0.0, %v4461
    %v4463 = vpop.f32.mrf.mxu0
    %v4464 = vadd.f32 0.0, %v4463
    %4465 = vmatmul.bf16.gmra.mxu0 %v4324
    %v4466 = vpop.f32.mrf.mxu0
    %v4467 = vadd.f32 0.0, %v4466
    %v4468 = vpop.f32.mrf.mxu0
    %v4469 = vadd.f32 0.0, %v4468
    %4470 = vmatmul.bf16.gmra.mxu0 %v4327
    %v4471 = vpop.f32.mrf.mxu0
    %v4472 = vadd.f32 0.0, %v4471
    %v4473 = vpop.f32.mrf.mxu0
    %v4474 = vadd.f32 0.0, %v4473
    %4475 = vmatmul.bf16.gmra.mxu0 %v4330
    %v4476 = vpop.f32.mrf.mxu0
    %v4477 = vadd.f32 0.0, %v4476
    %v4478 = vpop.f32.mrf.mxu0
    %v4479 = vadd.f32 0.0, %v4478
    %4480 = vmatmul.bf16.gmra.mxu0 %v4333
    %v4481 = vpop.f32.mrf.mxu0
    %v4482 = vadd.f32 0.0, %v4481
    %v4483 = vpop.f32.mrf.mxu0
    %v4484 = vadd.f32 0.0, %v4483
    %4485 = vmatmul.bf16.gmra.mxu0 %v4336
    %v4486 = vpop.f32.mrf.mxu0
    %v4487 = vadd.f32 0.0, %v4486
    %v4488 = vpop.f32.mrf.mxu0
    %v4489 = vadd.f32 0.0, %v4488
    %4490 = vmatmul.bf16.gmra.mxu0 %v4339
    %v4491 = vpop.f32.mrf.mxu0
    %v4492 = vadd.f32 0.0, %v4491
    %v4493 = vpop.f32.mrf.mxu0
    %v4494 = vadd.f32 0.0, %v4493
    %4495 = vmatmul.bf16.gmra.mxu0 %v4342
    %v4496 = vpop.f32.mrf.mxu0
    %v4497 = vadd.f32 0.0, %v4496
    %v4498 = vpop.f32.mrf.mxu0
    %v4499 = vadd.f32 0.0, %v4498
    %4500 = vmatmul.bf16.gmra.mxu0 %v4345
    %v4501 = vpop.f32.mrf.mxu0
    %v4502 = vadd.f32 0.0, %v4501
    %v4503 = vpop.f32.mrf.mxu0
    %v4504 = vadd.f32 0.0, %v4503
    %4505 = vmatmul.bf16.gmra.mxu0 %v4348
    %v4506 = vpop.f32.mrf.mxu0
    %v4507 = vadd.f32 0.0, %v4506
    %v4508 = vpop.f32.mrf.mxu0
    %v4509 = vadd.f32 0.0, %v4508
    %4510 = vmatmul.bf16.gmra.mxu0 %v4351
    %v4511 = vpop.f32.mrf.mxu0
    %v4512 = vadd.f32 0.0, %v4511
    %v4513 = vpop.f32.mrf.mxu0
    %v4514 = vadd.f32 0.0, %v4513
    %4515 = vmatmul.bf16.gmra.mxu0 %v4354
    %v4516 = vpop.f32.mrf.mxu0
    %v4517 = vadd.f32 0.0, %v4516
    %v4518 = vpop.f32.mrf.mxu0
    %v4519 = vadd.f32 0.0, %v4518
    %4520 = vmatmul.bf16.gmra.mxu0 %v4357
    %v4521 = vpop.f32.mrf.mxu0
    %v4522 = vadd.f32 0.0, %v4521
    %v4523 = vpop.f32.mrf.mxu0
    %v4524 = vadd.f32 0.0, %v4523
    %4525 = vmatmul.bf16.gmra.mxu0 %v4360
    %v4526 = vpop.f32.mrf.mxu0
    %v4527 = vadd.f32 0.0, %v4526
    %v4528 = vpop.f32.mrf.mxu0
    %v4529 = vadd.f32 0.0, %v4528
    %4530 = vmatmul.bf16.gmra.mxu0 %v4363
    %v4531 = vpop.f32.mrf.mxu0
    %v4532 = vadd.f32 0.0, %v4531
    %v4533 = vpop.f32.mrf.mxu0
    %v4534 = vadd.f32 0.0, %v4533
    %4535 = vmatmul.bf16.gmra.mxu0 %v4366
    %v4536 = vpop.f32.mrf.mxu0
    %v4537 = vadd.f32 0.0, %v4536
    %v4538 = vpop.f32.mrf.mxu0
    %v4539 = vadd.f32 0.0, %v4538
    %4540 = vmatmul.bf16.gmra.mxu0 %v4369
    %v4541 = vpop.f32.mrf.mxu0
    %v4542 = vadd.f32 0.0, %v4541
    %v4543 = vpop.f32.mrf.mxu0
    %v4544 = vadd.f32 0.0, %v4543
    %4545 = vmatmul.bf16.gmra.mxu0 %v4372
    %v4546 = vpop.f32.mrf.mxu0
    %v4547 = vadd.f32 0.0, %v4546
    %v4548 = vpop.f32.mrf.mxu0
    %v4549 = vadd.f32 0.0, %v4548
    %4550 = vmatmul.bf16.gmra.mxu0 %v4375
    %v4551 = vpop.f32.mrf.mxu0
    %v4552 = vadd.f32 0.0, %v4551
    %v4553 = vpop.f32.mrf.mxu0
    %4554 = vdwg.mxu0
    %v4555 = vadd.f32 %v4074, %v4387
    %v4556 = vadd.f32 %v4075, %v4389
    %v4557 = vadd.f32 %v4076, %v4392
    %v4558 = vadd.f32 %v4077, %v4394
    %v4559 = vadd.f32 %v4078, %v4397
    %v4560 = vadd.f32 %v4079, %v4399
    %v4561 = vadd.f32 %v4080, %v4402
    %v4562 = vadd.f32 %v4081, %v4404
    %v4563 = vadd.f32 %v4082, %v4407
    %v4564 = vadd.f32 %v4083, %v4409
    %v4565 = vadd.f32 %v4084, %v4412
    %v4566 = vadd.f32 %v4085, %v4414
    %v4567 = vadd.f32 %v4086, %v4417
    %v4568 = vadd.f32 %v4087, %v4419
    %v4569 = vadd.f32 %v4088, %v4422
    %v4570 = vadd.f32 %v4089, %v4424
    %v4571 = vadd.f32 %v4090, %v4427
    %v4572 = vadd.f32 %v4091, %v4429
    %v4573 = vadd.f32 %v4092, %v4432
    %v4574 = vadd.f32 %v4093, %v4434
    %v4575 = vadd.f32 %v4094, %v4437
    %v4576 = vadd.f32 %v4095, %v4439
    %v4577 = vadd.f32 %v4096, %v4442
    %v4578 = vadd.f32 %v4097, %v4444
    %v4579 = vadd.f32 %v4098, %v4447
    %v4580 = vadd.f32 %v4099, %v4449
    %v4581 = vadd.f32 %v4100, %v4452
    %v4582 = vadd.f32 %v4101, %v4454
    %v4583 = vadd.f32 %v4102, %v4457
    %v4584 = vadd.f32 %v4103, %v4459
    %v4585 = vadd.f32 %v4104, %v4462
    %v4586 = vadd.f32 %v4105, %v4464
    %v4587 = vadd.f32 %v4106, %v4467
    %v4588 = vadd.f32 %v4107, %v4469
    %v4589 = vadd.f32 %v4108, %v4472
    %v4590 = vadd.f32 %v4109, %v4474
    %v4591 = vadd.f32 %v4110, %v4477
    %v4592 = vadd.f32 %v4111, %v4479
    %v4593 = vadd.f32 %v4112, %v4482
    %v4594 = vadd.f32 %v4113, %v4484
    %v4595 = vadd.f32 %v4114, %v4487
    %v4596 = vadd.f32 %v4115, %v4489
    %v4597 = vadd.f32 %v4116, %v4492
    %v4598 = vadd.f32 %v4117, %v4494
    %v4599 = vadd.f32 %v4118, %v4497
    %v4600 = vadd.f32 %v4119, %v4499
    %v4601 = vadd.f32 %v4120, %v4502
    %v4602 = vadd.f32 %v4121, %v4504
    %v4603 = vadd.f32 %v4122, %v4507
    %v4604 = vadd.f32 %v4123, %v4509
    %v4605 = vadd.f32 %v4124, %v4512
    %v4606 = vadd.f32 %v4125, %v4514
    %v4607 = vadd.f32 %v4126, %v4517
    %v4608 = vadd.f32 %v4127, %v4519
    %v4609 = vadd.f32 %v4128, %v4522
    %v4610 = vadd.f32 %v4129, %v4524
    %v4611 = vadd.f32 %v4130, %v4527
    %v4612 = vadd.f32 %v4131, %v4529
    %v4613 = vadd.f32 %v4132, %v4532
    %v4614 = vadd.f32 %v4133, %v4534
    %v4615 = vadd.f32 %v4134, %v4537
    %v4616 = vadd.f32 %v4135, %v4539
    %v4617 = vadd.f32 %v4136, %v4542
    %v4618 = vadd.f32 %v4137, %v4544
    %v4619 = vadd.f32 %v4138, %v4547
    %v4620 = vadd.f32 %v4139, %v4549
    %v4621 = vadd.f32 %v4140, %v4552
    %v4622 = vld [vmem:[#allocation2 + $0x22] sm:$0xff]
    %v4623 = vld [vmem:[#allocation2 + $0x2a] sm:$0xff]
    %v4624 = vld [vmem:[#allocation2 + $0x32] sm:$0xff]
    %v4625 = vld [vmem:[#allocation2 + $0x3a] sm:$0xff]
    %v4626 = vld [vmem:[#allocation2 + $0x42] sm:$0xff]
    %v4627 = vld [vmem:[#allocation2 + $0x4a] sm:$0xff]
    %v4628 = vld [vmem:[#allocation2 + $0x52] sm:$0xff]
    %v4629 = vld [vmem:[#allocation2 + $0x5a] sm:$0xff]
    %v4630 = vld [vmem:[#allocation2 + $0x62] sm:$0xff]
    %v4631 = vld [vmem:[#allocation2 + $0x6a] sm:$0xff]
    %v4632 = vld [vmem:[#allocation2 + $0x72] sm:$0xff]
    %v4633 = vld [vmem:[#allocation2 + $0x7a] sm:$0xff]
    %v4634 = vld [vmem:[#allocation2 + $0x82] sm:$0xff]
    %v4635 = vld [vmem:[#allocation2 + $0x8a] sm:$0xff]
    %v4636 = vld [vmem:[#allocation2 + $0x92] sm:$0xff]
    %v4637 = vld [vmem:[#allocation2 + $0x9a] sm:$0xff]
    %v4638 = vld [vmem:[#allocation2 + $0xa2] sm:$0xff]
    %v4639 = vld [vmem:[#allocation2 + $0xaa] sm:$0xff]
    %v4640 = vld [vmem:[#allocation2 + $0xb2] sm:$0xff]
    %v4641 = vld [vmem:[#allocation2 + $0xba] sm:$0xff]
    %v4642 = vld [vmem:[#allocation2 + $0xc2] sm:$0xff]
    %v4643 = vld [vmem:[#allocation2 + $0xca] sm:$0xff]
    %v4644 = vld [vmem:[#allocation2 + $0xd2] sm:$0xff]
    %v4645 = vld [vmem:[#allocation2 + $0xda] sm:$0xff]
    %v4646 = vld [vmem:[#allocation2 + $0xe2] sm:$0xff]
    %v4647 = vld [vmem:[#allocation2 + $0xea] sm:$0xff]
    %v4648 = vld [vmem:[#allocation2 + $0xf2] sm:$0xff]
    %v4649 = vld [vmem:[#allocation2 + $0xfa] sm:$0xff]
    %v4650 = vld [vmem:[#allocation2 + $0x102] sm:$0xff]
    %v4651 = vld [vmem:[#allocation2 + $0x10a] sm:$0xff]
    %v4652 = vld [vmem:[#allocation2 + $0x112] sm:$0xff]
    %v4653 = vld [vmem:[#allocation2 + $0x11a] sm:$0xff]
    %v4654 = vld [vmem:[#allocation2 + $0x122] sm:$0xff]
    %v4655 = vld [vmem:[#allocation2 + $0x12a] sm:$0xff]
    %v4656 = vld [vmem:[#allocation2 + $0x132] sm:$0xff]
    %v4657 = vld [vmem:[#allocation2 + $0x13a] sm:$0xff]
    %v4658 = vld [vmem:[#allocation2 + $0x142] sm:$0xff]
    %v4659 = vld [vmem:[#allocation2 + $0x14a] sm:$0xff]
    %v4660 = vld [vmem:[#allocation2 + $0x152] sm:$0xff]
    %v4661 = vld [vmem:[#allocation2 + $0x15a] sm:$0xff]
    %v4662 = vld [vmem:[#allocation2 + $0x162] sm:$0xff]
    %v4663 = vld [vmem:[#allocation2 + $0x16a] sm:$0xff]
    %v4664 = vld [vmem:[#allocation2 + $0x172] sm:$0xff]
    %v4665 = vld [vmem:[#allocation2 + $0x17a] sm:$0xff]
    %v4666 = vld [vmem:[#allocation2 + $0x182] sm:$0xff]
    %v4667 = vld [vmem:[#allocation2 + $0x18a] sm:$0xff]
    %v4668 = vld [vmem:[#allocation2 + $0x192] sm:$0xff]
    %v4669 = vld [vmem:[#allocation2 + $0x19a] sm:$0xff]
    %v4670 = vld [vmem:[#allocation2 + $0x1a2] sm:$0xff]
    %v4671 = vld [vmem:[#allocation2 + $0x1aa] sm:$0xff]
    %v4672 = vld [vmem:[#allocation2 + $0x1b2] sm:$0xff]
    %v4673 = vld [vmem:[#allocation2 + $0x1ba] sm:$0xff]
    %v4674 = vld [vmem:[#allocation2 + $0x1c2] sm:$0xff]
    %v4675 = vld [vmem:[#allocation2 + $0x1ca] sm:$0xff]
    %v4676 = vld [vmem:[#allocation2 + $0x1d2] sm:$0xff]
    %v4677 = vld [vmem:[#allocation2 + $0x1da] sm:$0xff]
    %v4678 = vld [vmem:[#allocation2 + $0x1e2] sm:$0xff]
    %v4679 = vld [vmem:[#allocation2 + $0x1ea] sm:$0xff]
    %v4680 = vld [vmem:[#allocation2 + $0x1f2] sm:$0xff]
    %v4681 = vld [vmem:[#allocation2 + $0x1fa] sm:$0xff]
    %v4682 = vld [vmem:[#allocation2 + $0x202] sm:$0xff]
    %v4683 = vld [vmem:[#allocation2 + $0x20a] sm:$0xff]
    %v4684 = vld [vmem:[#allocation2 + $0x212] sm:$0xff]
    %v4685 = vld [vmem:[#allocation2 + $0x21a] sm:$0xff]
    %v4686 = vld [vmem:[#allocation2 + $0x222] sm:$0xff]
    %v4687 = vld [vmem:[#allocation2 + $0x22a] sm:$0xff]
    %v4688 = vld [vmem:[#allocation2 + $0x232] sm:$0xff]
    %v4689 = vpack.c.bf16 %v4623, %v4622
    %v4690 = vpack.c.bf16 %v4625, %v4624
    %v4691 = vpack.c.bf16 %v4627, %v4626
    %v4692 = vpack.c.bf16 %v4629, %v4628
    %v4693 = vpack.c.bf16 %v4631, %v4630
    %v4694 = vpack.c.bf16 %v4633, %v4632
    %v4695 = vpack.c.bf16 %v4635, %v4634
    %v4696 = vpack.c.bf16 %v4637, %v4636
    %v4697 = vpack.c.bf16 %v4639, %v4638
    %v4698 = vpack.c.bf16 %v4641, %v4640
    %v4699 = vpack.c.bf16 %v4643, %v4642
    %v4700 = vpack.c.bf16 %v4645, %v4644
    %v4701 = vpack.c.bf16 %v4647, %v4646
    %v4702 = vpack.c.bf16 %v4649, %v4648
    %v4703 = vpack.c.bf16 %v4651, %v4650
    %v4704 = vpack.c.bf16 %v4653, %v4652
    %v4705 = vpack.c.bf16 %v4655, %v4654
    %v4706 = vpack.c.bf16 %v4657, %v4656
    %v4707 = vpack.c.bf16 %v4659, %v4658
    %v4708 = vpack.c.bf16 %v4661, %v4660
    %v4709 = vpack.c.bf16 %v4663, %v4662
    %v4710 = vpack.c.bf16 %v4665, %v4664
    %v4711 = vpack.c.bf16 %v4667, %v4666
    %v4712 = vpack.c.bf16 %v4669, %v4668
    %v4713 = vpack.c.bf16 %v4671, %v4670
    %v4714 = vpack.c.bf16 %v4673, %v4672
    %v4715 = vpack.c.bf16 %v4675, %v4674
    %v4716 = vpack.c.bf16 %v4677, %v4676
    %v4717 = vpack.c.bf16 %v4679, %v4678
    %v4718 = vpack.c.bf16 %v4681, %v4680
    %v4719 = vpack.c.bf16 %v4683, %v4682
    %v4720 = vpack.c.bf16 %v4685, %v4684
    %v4721 = vpack.c.bf16 %v4687, %v4686
    %v4722 = vpack.c.bf16 %v4688, %v4688
    %s4723 = scalar_lea.vmem %s3, 256
    %v4724 = vld [vmem:[%s4723] sm:$0xf]
    %v4725 = vld [vmem:[%s4723 + $0x4] sm:$0xf]
    %v4726 = vld [vmem:[%s4723 + $0x8] sm:$0xf]
    %v4727 = vld [vmem:[%s4723 + $0xc] sm:$0xf]
    %v4728 = vld [vmem:[%s4723 + $0x10] sm:$0xf]
    %v4729 = vld [vmem:[%s4723 + $0x14] sm:$0xf]
    %v4730 = vld [vmem:[%s4723 + $0x18] sm:$0xf]
    %v4731 = vld [vmem:[%s4723 + $0x1c] sm:$0xf]
    %v4740 = vunpack.c.l.b16 %v4724
    %v4741 = vunpack.c.l.b16 %v4725
    %v4742 = vunpack.c.l.b16 %v4726
    %v4743 = vunpack.c.l.b16 %v4727
    %v4744 = vunpack.c.l.b16 %v4728
    %v4745 = vunpack.c.l.b16 %v4729
    %v4746 = vunpack.c.l.b16 %v4730
    %v4747 = vunpack.c.l.b16 %v4731
    %v4748 = vpack.c.b16 %v4741, %v4740
    %v4749 = vpack.c.b16 %v4743, %v4742
    %v4750 = vpack.c.b16 %v4745, %v4744
    %v4751 = vpack.c.b16 %v4747, %v4746
    %v4757 = vsel %vm836, %v4689, 0
    %v4760 = vsel %vm836, %v4690, 0
    %v4763 = vsel %vm836, %v4691, 0
    %v4766 = vsel %vm836, %v4692, 0
    %v4769 = vsel %vm836, %v4693, 0
    %v4772 = vsel %vm836, %v4694, 0
    %v4775 = vsel %vm836, %v4695, 0
    %v4778 = vsel %vm836, %v4696, 0
    %v4781 = vsel %vm836, %v4697, 0
    %v4784 = vsel %vm836, %v4698, 0
    %v4787 = vsel %vm836, %v4699, 0
    %v4790 = vsel %vm836, %v4700, 0
    %v4793 = vsel %vm836, %v4701, 0
    %v4796 = vsel %vm836, %v4702, 0
    %v4799 = vsel %vm836, %v4703, 0
    %v4802 = vsel %vm836, %v4704, 0
    %v4805 = vsel %vm836, %v4705, 0
    %v4808 = vsel %vm836, %v4706, 0
    %v4811 = vsel %vm836, %v4707, 0
    %v4814 = vsel %vm836, %v4708, 0
    %v4817 = vsel %vm836, %v4709, 0
    %v4820 = vsel %vm836, %v4710, 0
    %v4823 = vsel %vm836, %v4711, 0
    %v4826 = vsel %vm836, %v4712, 0
    %v4829 = vsel %vm836, %v4713, 0
    %v4832 = vsel %vm836, %v4714, 0
    %v4835 = vsel %vm836, %v4715, 0
    %v4838 = vsel %vm836, %v4716, 0
    %v4841 = vsel %vm836, %v4717, 0
    %v4844 = vsel %vm836, %v4718, 0
    %v4847 = vsel %vm836, %v4719, 0
    %v4850 = vsel %vm836, %v4720, 0
    %v4853 = vsel %vm836, %v4721, 0
    %v4856 = vsel %vm836, %v4722, 0
    %4858 = vmatpush.bf16.msra.mxu0 0
    %4859 = vmatpush.bf16.msra.mxu0 0
    %4860 = vmatpush.bf16.msra.mxu0 0
    %4861 = vmatpush.bf16.msra.mxu0 0
    %4862 = vmatpush.bf16.msra.mxu0 %v4751
    %4863 = vmatpush.bf16.msra.mxu0 %v4750
    %4864 = vmatpush.bf16.msra.mxu0 %v4749
    %4865 = vmatpush.bf16.msra.mxu0 %v4748
    %4866 = vmatmul.bf16.gmra.mxu0 %v4757
    %v4867 = vpop.f32.mrf.mxu0
    %v4868 = vadd.f32 0.0, %v4867
    %v4869 = vpop.f32.mrf.mxu0
    %v4870 = vadd.f32 0.0, %v4869
    %4871 = vmatmul.bf16.gmra.mxu0 %v4760
    %v4872 = vpop.f32.mrf.mxu0
    %v4873 = vadd.f32 0.0, %v4872
    %v4874 = vpop.f32.mrf.mxu0
    %v4875 = vadd.f32 0.0, %v4874
    %4876 = vmatmul.bf16.gmra.mxu0 %v4763
    %v4877 = vpop.f32.mrf.mxu0
    %v4878 = vadd.f32 0.0, %v4877
    %v4879 = vpop.f32.mrf.mxu0
    %v4880 = vadd.f32 0.0, %v4879
    %4881 = vmatmul.bf16.gmra.mxu0 %v4766
    %v4882 = vpop.f32.mrf.mxu0
    %v4883 = vadd.f32 0.0, %v4882
    %v4884 = vpop.f32.mrf.mxu0
    %v4885 = vadd.f32 0.0, %v4884
    %4886 = vmatmul.bf16.gmra.mxu0 %v4769
    %v4887 = vpop.f32.mrf.mxu0
    %v4888 = vadd.f32 0.0, %v4887
    %v4889 = vpop.f32.mrf.mxu0
    %v4890 = vadd.f32 0.0, %v4889
    %4891 = vmatmul.bf16.gmra.mxu0 %v4772
    %v4892 = vpop.f32.mrf.mxu0
    %v4893 = vadd.f32 0.0, %v4892
    %v4894 = vpop.f32.mrf.mxu0
    %v4895 = vadd.f32 0.0, %v4894
    %4896 = vmatmul.bf16.gmra.mxu0 %v4775
    %v4897 = vpop.f32.mrf.mxu0
    %v4898 = vadd.f32 0.0, %v4897
    %v4899 = vpop.f32.mrf.mxu0
    %v4900 = vadd.f32 0.0, %v4899
    %4901 = vmatmul.bf16.gmra.mxu0 %v4778
    %v4902 = vpop.f32.mrf.mxu0
    %v4903 = vadd.f32 0.0, %v4902
    %v4904 = vpop.f32.mrf.mxu0
    %v4905 = vadd.f32 0.0, %v4904
    %4906 = vmatmul.bf16.gmra.mxu0 %v4781
    %v4907 = vpop.f32.mrf.mxu0
    %v4908 = vadd.f32 0.0, %v4907
    %v4909 = vpop.f32.mrf.mxu0
    %v4910 = vadd.f32 0.0, %v4909
    %4911 = vmatmul.bf16.gmra.mxu0 %v4784
    %v4912 = vpop.f32.mrf.mxu0
    %v4913 = vadd.f32 0.0, %v4912
    %v4914 = vpop.f32.mrf.mxu0
    %v4915 = vadd.f32 0.0, %v4914
    %4916 = vmatmul.bf16.gmra.mxu0 %v4787
    %v4917 = vpop.f32.mrf.mxu0
    %v4918 = vadd.f32 0.0, %v4917
    %v4919 = vpop.f32.mrf.mxu0
    %v4920 = vadd.f32 0.0, %v4919
    %4921 = vmatmul.bf16.gmra.mxu0 %v4790
    %v4922 = vpop.f32.mrf.mxu0
    %v4923 = vadd.f32 0.0, %v4922
    %v4924 = vpop.f32.mrf.mxu0
    %v4925 = vadd.f32 0.0, %v4924
    %4926 = vmatmul.bf16.gmra.mxu0 %v4793
    %v4927 = vpop.f32.mrf.mxu0
    %v4928 = vadd.f32 0.0, %v4927
    %v4929 = vpop.f32.mrf.mxu0
    %v4930 = vadd.f32 0.0, %v4929
    %4931 = vmatmul.bf16.gmra.mxu0 %v4796
    %v4932 = vpop.f32.mrf.mxu0
    %v4933 = vadd.f32 0.0, %v4932
    %v4934 = vpop.f32.mrf.mxu0
    %v4935 = vadd.f32 0.0, %v4934
    %4936 = vmatmul.bf16.gmra.mxu0 %v4799
    %v4937 = vpop.f32.mrf.mxu0
    %v4938 = vadd.f32 0.0, %v4937
    %v4939 = vpop.f32.mrf.mxu0
    %v4940 = vadd.f32 0.0, %v4939
    %4941 = vmatmul.bf16.gmra.mxu0 %v4802
    %v4942 = vpop.f32.mrf.mxu0
    %v4943 = vadd.f32 0.0, %v4942
    %v4944 = vpop.f32.mrf.mxu0
    %v4945 = vadd.f32 0.0, %v4944
    %4946 = vmatmul.bf16.gmra.mxu0 %v4805
    %v4947 = vpop.f32.mrf.mxu0
    %v4948 = vadd.f32 0.0, %v4947
    %v4949 = vpop.f32.mrf.mxu0
    %v4950 = vadd.f32 0.0, %v4949
    %4951 = vmatmul.bf16.gmra.mxu0 %v4808
    %v4952 = vpop.f32.mrf.mxu0
    %v4953 = vadd.f32 0.0, %v4952
    %v4954 = vpop.f32.mrf.mxu0
    %v4955 = vadd.f32 0.0, %v4954
    %4956 = vmatmul.bf16.gmra.mxu0 %v4811
    %v4957 = vpop.f32.mrf.mxu0
    %v4958 = vadd.f32 0.0, %v4957
    %v4959 = vpop.f32.mrf.mxu0
    %v4960 = vadd.f32 0.0, %v4959
    %4961 = vmatmul.bf16.gmra.mxu0 %v4814
    %v4962 = vpop.f32.mrf.mxu0
    %v4963 = vadd.f32 0.0, %v4962
    %v4964 = vpop.f32.mrf.mxu0
    %v4965 = vadd.f32 0.0, %v4964
    %4966 = vmatmul.bf16.gmra.mxu0 %v4817
    %v4967 = vpop.f32.mrf.mxu0
    %v4968 = vadd.f32 0.0, %v4967
    %v4969 = vpop.f32.mrf.mxu0
    %v4970 = vadd.f32 0.0, %v4969
    %4971 = vmatmul.bf16.gmra.mxu0 %v4820
    %v4972 = vpop.f32.mrf.mxu0
    %v4973 = vadd.f32 0.0, %v4972
    %v4974 = vpop.f32.mrf.mxu0
    %v4975 = vadd.f32 0.0, %v4974
    %4976 = vmatmul.bf16.gmra.mxu0 %v4823
    %v4977 = vpop.f32.mrf.mxu0
    %v4978 = vadd.f32 0.0, %v4977
    %v4979 = vpop.f32.mrf.mxu0
    %v4980 = vadd.f32 0.0, %v4979
    %4981 = vmatmul.bf16.gmra.mxu0 %v4826
    %v4982 = vpop.f32.mrf.mxu0
    %v4983 = vadd.f32 0.0, %v4982
    %v4984 = vpop.f32.mrf.mxu0
    %v4985 = vadd.f32 0.0, %v4984
    %4986 = vmatmul.bf16.gmra.mxu0 %v4829
    %v4987 = vpop.f32.mrf.mxu0
    %v4988 = vadd.f32 0.0, %v4987
    %v4989 = vpop.f32.mrf.mxu0
    %v4990 = vadd.f32 0.0, %v4989
    %4991 = vmatmul.bf16.gmra.mxu0 %v4832
    %v4992 = vpop.f32.mrf.mxu0
    %v4993 = vadd.f32 0.0, %v4992
    %v4994 = vpop.f32.mrf.mxu0
    %v4995 = vadd.f32 0.0, %v4994
    %4996 = vmatmul.bf16.gmra.mxu0 %v4835
    %v4997 = vpop.f32.mrf.mxu0
    %v4998 = vadd.f32 0.0, %v4997
    %v4999 = vpop.f32.mrf.mxu0
    %v5000 = vadd.f32 0.0, %v4999
    %5001 = vmatmul.bf16.gmra.mxu0 %v4838
    %v5002 = vpop.f32.mrf.mxu0
    %v5003 = vadd.f32 0.0, %v5002
    %v5004 = vpop.f32.mrf.mxu0
    %v5005 = vadd.f32 0.0, %v5004
    %5006 = vmatmul.bf16.gmra.mxu0 %v4841
    %v5007 = vpop.f32.mrf.mxu0
    %v5008 = vadd.f32 0.0, %v5007
    %v5009 = vpop.f32.mrf.mxu0
    %v5010 = vadd.f32 0.0, %v5009
    %5011 = vmatmul.bf16.gmra.mxu0 %v4844
    %v5012 = vpop.f32.mrf.mxu0
    %v5013 = vadd.f32 0.0, %v5012
    %v5014 = vpop.f32.mrf.mxu0
    %v5015 = vadd.f32 0.0, %v5014
    %5016 = vmatmul.bf16.gmra.mxu0 %v4847
    %v5017 = vpop.f32.mrf.mxu0
    %v5018 = vadd.f32 0.0, %v5017
    %v5019 = vpop.f32.mrf.mxu0
    %v5020 = vadd.f32 0.0, %v5019
    %5021 = vmatmul.bf16.gmra.mxu0 %v4850
    %v5022 = vpop.f32.mrf.mxu0
    %v5023 = vadd.f32 0.0, %v5022
    %v5024 = vpop.f32.mrf.mxu0
    %v5025 = vadd.f32 0.0, %v5024
    %5026 = vmatmul.bf16.gmra.mxu0 %v4853
    %v5027 = vpop.f32.mrf.mxu0
    %v5028 = vadd.f32 0.0, %v5027
    %v5029 = vpop.f32.mrf.mxu0
    %v5030 = vadd.f32 0.0, %v5029
    %5031 = vmatmul.bf16.gmra.mxu0 %v4856
    %v5032 = vpop.f32.mrf.mxu0
    %v5033 = vadd.f32 0.0, %v5032
    %v5034 = vpop.f32.mrf.mxu0
    %5035 = vdwg.mxu0
    %v5036 = vadd.f32 %v4555, %v4868
    %v5037 = vadd.f32 %v4556, %v4870
    %v5038 = vadd.f32 %v4557, %v4873
    %v5039 = vadd.f32 %v4558, %v4875
    %v5040 = vadd.f32 %v4559, %v4878
    %v5041 = vadd.f32 %v4560, %v4880
    %v5042 = vadd.f32 %v4561, %v4883
    %v5043 = vadd.f32 %v4562, %v4885
    %v5044 = vadd.f32 %v4563, %v4888
    %v5045 = vadd.f32 %v4564, %v4890
    %v5046 = vadd.f32 %v4565, %v4893
    %v5047 = vadd.f32 %v4566, %v4895
    %v5048 = vadd.f32 %v4567, %v4898
    %v5049 = vadd.f32 %v4568, %v4900
    %v5050 = vadd.f32 %v4569, %v4903
    %v5051 = vadd.f32 %v4570, %v4905
    %v5052 = vadd.f32 %v4571, %v4908
    %v5053 = vadd.f32 %v4572, %v4910
    %v5054 = vadd.f32 %v4573, %v4913
    %v5055 = vadd.f32 %v4574, %v4915
    %v5056 = vadd.f32 %v4575, %v4918
    %v5057 = vadd.f32 %v4576, %v4920
    %v5058 = vadd.f32 %v4577, %v4923
    %v5059 = vadd.f32 %v4578, %v4925
    %v5060 = vadd.f32 %v4579, %v4928
    %v5061 = vadd.f32 %v4580, %v4930
    %v5062 = vadd.f32 %v4581, %v4933
    %v5063 = vadd.f32 %v4582, %v4935
    %v5064 = vadd.f32 %v4583, %v4938
    %v5065 = vadd.f32 %v4584, %v4940
    %v5066 = vadd.f32 %v4585, %v4943
    %v5067 = vadd.f32 %v4586, %v4945
    %v5068 = vadd.f32 %v4587, %v4948
    %v5069 = vadd.f32 %v4588, %v4950
    %v5070 = vadd.f32 %v4589, %v4953
    %v5071 = vadd.f32 %v4590, %v4955
    %v5072 = vadd.f32 %v4591, %v4958
    %v5073 = vadd.f32 %v4592, %v4960
    %v5074 = vadd.f32 %v4593, %v4963
    %v5075 = vadd.f32 %v4594, %v4965
    %v5076 = vadd.f32 %v4595, %v4968
    %v5077 = vadd.f32 %v4596, %v4970
    %v5078 = vadd.f32 %v4597, %v4973
    %v5079 = vadd.f32 %v4598, %v4975
    %v5080 = vadd.f32 %v4599, %v4978
    %v5081 = vadd.f32 %v4600, %v4980
    %v5082 = vadd.f32 %v4601, %v4983
    %v5083 = vadd.f32 %v4602, %v4985
    %v5084 = vadd.f32 %v4603, %v4988
    %v5085 = vadd.f32 %v4604, %v4990
    %v5086 = vadd.f32 %v4605, %v4993
    %v5087 = vadd.f32 %v4606, %v4995
    %v5088 = vadd.f32 %v4607, %v4998
    %v5089 = vadd.f32 %v4608, %v5000
    %v5090 = vadd.f32 %v4609, %v5003
    %v5091 = vadd.f32 %v4610, %v5005
    %v5092 = vadd.f32 %v4611, %v5008
    %v5093 = vadd.f32 %v4612, %v5010
    %v5094 = vadd.f32 %v4613, %v5013
    %v5095 = vadd.f32 %v4614, %v5015
    %v5096 = vadd.f32 %v4615, %v5018
    %v5097 = vadd.f32 %v4616, %v5020
    %v5098 = vadd.f32 %v4617, %v5023
    %v5099 = vadd.f32 %v4618, %v5025
    %v5100 = vadd.f32 %v4619, %v5028
    %v5101 = vadd.f32 %v4620, %v5030
    %v5102 = vadd.f32 %v4621, %v5033
    %v5103 = vld [vmem:[%s4] sm:$0x1]
    %v5105 = vperm.slane %v5103, 0
    %v5107 = vadd.f32 %v5036, %v5105
    %v5108 = vadd.f32 %v5037, %v5105
    %v5109 = vadd.f32 %v5038, %v5105
    %v5110 = vadd.f32 %v5039, %v5105
    %v5111 = vadd.f32 %v5040, %v5105
    %v5112 = vadd.f32 %v5041, %v5105
    %v5113 = vadd.f32 %v5042, %v5105
    %v5114 = vadd.f32 %v5043, %v5105
    %v5115 = vadd.f32 %v5044, %v5105
    %v5116 = vadd.f32 %v5045, %v5105
    %v5117 = vadd.f32 %v5046, %v5105
    %v5118 = vadd.f32 %v5047, %v5105
    %v5119 = vadd.f32 %v5048, %v5105
    %v5120 = vadd.f32 %v5049, %v5105
    %v5121 = vadd.f32 %v5050, %v5105
    %v5122 = vadd.f32 %v5051, %v5105
    %v5123 = vadd.f32 %v5052, %v5105
    %v5124 = vadd.f32 %v5053, %v5105
    %v5125 = vadd.f32 %v5054, %v5105
    %v5126 = vadd.f32 %v5055, %v5105
    %v5127 = vadd.f32 %v5056, %v5105
    %v5128 = vadd.f32 %v5057, %v5105
    %v5129 = vadd.f32 %v5058, %v5105
    %v5130 = vadd.f32 %v5059, %v5105
    %v5131 = vadd.f32 %v5060, %v5105
    %v5132 = vadd.f32 %v5061, %v5105
    %v5133 = vadd.f32 %v5062, %v5105
    %v5134 = vadd.f32 %v5063, %v5105
    %v5135 = vadd.f32 %v5064, %v5105
    %v5136 = vadd.f32 %v5065, %v5105
    %v5137 = vadd.f32 %v5066, %v5105
    %v5138 = vadd.f32 %v5067, %v5105
    %v5139 = vadd.f32 %v5068, %v5105
    %v5140 = vadd.f32 %v5069, %v5105
    %v5141 = vadd.f32 %v5070, %v5105
    %v5142 = vadd.f32 %v5071, %v5105
    %v5143 = vadd.f32 %v5072, %v5105
    %v5144 = vadd.f32 %v5073, %v5105
    %v5145 = vadd.f32 %v5074, %v5105
    %v5146 = vadd.f32 %v5075, %v5105
    %v5147 = vadd.f32 %v5076, %v5105
    %v5148 = vadd.f32 %v5077, %v5105
    %v5149 = vadd.f32 %v5078, %v5105
    %v5150 = vadd.f32 %v5079, %v5105
    %v5151 = vadd.f32 %v5080, %v5105
    %v5152 = vadd.f32 %v5081, %v5105
    %v5153 = vadd.f32 %v5082, %v5105
    %v5154 = vadd.f32 %v5083, %v5105
    %v5155 = vadd.f32 %v5084, %v5105
    %v5156 = vadd.f32 %v5085, %v5105
    %v5157 = vadd.f32 %v5086, %v5105
    %v5158 = vadd.f32 %v5087, %v5105
    %v5159 = vadd.f32 %v5088, %v5105
    %v5160 = vadd.f32 %v5089, %v5105
    %v5161 = vadd.f32 %v5090, %v5105
    %v5162 = vadd.f32 %v5091, %v5105
    %v5163 = vadd.f32 %v5092, %v5105
    %v5164 = vadd.f32 %v5093, %v5105
    %v5165 = vadd.f32 %v5094, %v5105
    %v5166 = vadd.f32 %v5095, %v5105
    %v5167 = vadd.f32 %v5096, %v5105
    %v5168 = vadd.f32 %v5097, %v5105
    %v5169 = vadd.f32 %v5098, %v5105
    %v5170 = vadd.f32 %v5099, %v5105
    %v5171 = vadd.f32 %v5100, %v5105
    %v5172 = vadd.f32 %v5101, %v5105
    %v5173 = vadd.f32 %v5102, %v5105
    %vm5174 = vcmp.ge.f32.partialorder %v5107, 0.0
    %vm5175 = vcmp.ge.f32.partialorder %v5108, 0.0
    %vm5176 = vcmp.ge.f32.partialorder %v5109, 0.0
    %vm5177 = vcmp.ge.f32.partialorder %v5110, 0.0
    %vm5178 = vcmp.ge.f32.partialorder %v5111, 0.0
    %vm5179 = vcmp.ge.f32.partialorder %v5112, 0.0
    %vm5180 = vcmp.ge.f32.partialorder %v5113, 0.0
    %vm5181 = vcmp.ge.f32.partialorder %v5114, 0.0
    %vm5182 = vcmp.ge.f32.partialorder %v5115, 0.0
    %vm5183 = vcmp.ge.f32.partialorder %v5116, 0.0
    %vm5184 = vcmp.ge.f32.partialorder %v5117, 0.0
    %vm5185 = vcmp.ge.f32.partialorder %v5118, 0.0
    %vm5186 = vcmp.ge.f32.partialorder %v5119, 0.0
    %vm5187 = vcmp.ge.f32.partialorder %v5120, 0.0
    %vm5188 = vcmp.ge.f32.partialorder %v5121, 0.0
    %vm5189 = vcmp.ge.f32.partialorder %v5122, 0.0
    %vm5190 = vcmp.ge.f32.partialorder %v5123, 0.0
    %vm5191 = vcmp.ge.f32.partialorder %v5124, 0.0
    %vm5192 = vcmp.ge.f32.partialorder %v5125, 0.0
    %vm5193 = vcmp.ge.f32.partialorder %v5126, 0.0
    %vm5194 = vcmp.ge.f32.partialorder %v5127, 0.0
    %vm5195 = vcmp.ge.f32.partialorder %v5128, 0.0
    %vm5196 = vcmp.ge.f32.partialorder %v5129, 0.0
    %vm5197 = vcmp.ge.f32.partialorder %v5130, 0.0
    %vm5198 = vcmp.ge.f32.partialorder %v5131, 0.0
    %vm5199 = vcmp.ge.f32.partialorder %v5132, 0.0
    %vm5200 = vcmp.ge.f32.partialorder %v5133, 0.0
    %vm5201 = vcmp.ge.f32.partialorder %v5134, 0.0
    %vm5202 = vcmp.ge.f32.partialorder %v5135, 0.0
    %vm5203 = vcmp.ge.f32.partialorder %v5136, 0.0
    %vm5204 = vcmp.ge.f32.partialorder %v5137, 0.0
    %vm5205 = vcmp.ge.f32.partialorder %v5138, 0.0
    %vm5206 = vcmp.ge.f32.partialorder %v5139, 0.0
    %vm5207 = vcmp.ge.f32.partialorder %v5140, 0.0
    %vm5208 = vcmp.ge.f32.partialorder %v5141, 0.0
    %vm5209 = vcmp.ge.f32.partialorder %v5142, 0.0
    %vm5210 = vcmp.ge.f32.partialorder %v5143, 0.0
    %vm5211 = vcmp.ge.f32.partialorder %v5144, 0.0
    %vm5212 = vcmp.ge.f32.partialorder %v5145, 0.0
    %vm5213 = vcmp.ge.f32.partialorder %v5146, 0.0
    %vm5214 = vcmp.ge.f32.partialorder %v5147, 0.0
    %vm5215 = vcmp.ge.f32.partialorder %v5148, 0.0
    %vm5216 = vcmp.ge.f32.partialorder %v5149, 0.0
    %vm5217 = vcmp.ge.f32.partialorder %v5150, 0.0
    %vm5218 = vcmp.ge.f32.partialorder %v5151, 0.0
    %vm5219 = vcmp.ge.f32.partialorder %v5152, 0.0
    %vm5220 = vcmp.ge.f32.partialorder %v5153, 0.0
    %vm5221 = vcmp.ge.f32.partialorder %v5154, 0.0
    %vm5222 = vcmp.ge.f32.partialorder %v5155, 0.0
    %vm5223 = vcmp.ge.f32.partialorder %v5156, 0.0
    %vm5224 = vcmp.ge.f32.partialorder %v5157, 0.0
    %vm5225 = vcmp.ge.f32.partialorder %v5158, 0.0
    %vm5226 = vcmp.ge.f32.partialorder %v5159, 0.0
    %vm5227 = vcmp.ge.f32.partialorder %v5160, 0.0
    %vm5228 = vcmp.ge.f32.partialorder %v5161, 0.0
    %vm5229 = vcmp.ge.f32.partialorder %v5162, 0.0
    %vm5230 = vcmp.ge.f32.partialorder %v5163, 0.0
    %vm5231 = vcmp.ge.f32.partialorder %v5164, 0.0
    %vm5232 = vcmp.ge.f32.partialorder %v5165, 0.0
    %vm5233 = vcmp.ge.f32.partialorder %v5166, 0.0
    %vm5234 = vcmp.ge.f32.partialorder %v5167, 0.0
    %vm5235 = vcmp.ge.f32.partialorder %v5168, 0.0
    %vm5236 = vcmp.ge.f32.partialorder %v5169, 0.0
    %vm5237 = vcmp.ge.f32.partialorder %v5170, 0.0
    %vm5238 = vcmp.ge.f32.partialorder %v5171, 0.0
    %vm5239 = vcmp.ge.f32.partialorder %v5172, 0.0
    %vm5240 = vcmp.ge.f32.partialorder %v5173, 0.0
    %v5241 = vmul.f32 %v5107, 0.01
    %v5242 = vmul.f32 %v5108, 0.01
    %v5243 = vmul.f32 %v5109, 0.01
    %v5244 = vmul.f32 %v5110, 0.01
    %v5245 = vmul.f32 %v5111, 0.01
    %v5246 = vmul.f32 %v5112, 0.01
    %v5247 = vmul.f32 %v5113, 0.01
    %v5248 = vmul.f32 %v5114, 0.01
    %v5249 = vmul.f32 %v5115, 0.01
    %v5250 = vmul.f32 %v5116, 0.01
    %v5251 = vmul.f32 %v5117, 0.01
    %v5252 = vmul.f32 %v5118, 0.01
    %v5253 = vmul.f32 %v5119, 0.01
    %v5254 = vmul.f32 %v5120, 0.01
    %v5255 = vmul.f32 %v5121, 0.01
    %v5256 = vmul.f32 %v5122, 0.01
    %v5257 = vmul.f32 %v5123, 0.01
    %v5258 = vmul.f32 %v5124, 0.01
    %v5259 = vmul.f32 %v5125, 0.01
    %v5260 = vmul.f32 %v5126, 0.01
    %v5261 = vmul.f32 %v5127, 0.01
    %v5262 = vmul.f32 %v5128, 0.01
    %v5263 = vmul.f32 %v5129, 0.01
    %v5264 = vmul.f32 %v5130, 0.01
    %v5265 = vmul.f32 %v5131, 0.01
    %v5266 = vmul.f32 %v5132, 0.01
    %v5267 = vmul.f32 %v5133, 0.01
    %v5268 = vmul.f32 %v5134, 0.01
    %v5269 = vmul.f32 %v5135, 0.01
    %v5270 = vmul.f32 %v5136, 0.01
    %v5271 = vmul.f32 %v5137, 0.01
    %v5272 = vmul.f32 %v5138, 0.01
    %v5273 = vmul.f32 %v5139, 0.01
    %v5274 = vmul.f32 %v5140, 0.01
    %v5275 = vmul.f32 %v5141, 0.01
    %v5276 = vmul.f32 %v5142, 0.01
    %v5277 = vmul.f32 %v5143, 0.01
    %v5278 = vmul.f32 %v5144, 0.01
    %v5279 = vmul.f32 %v5145, 0.01
    %v5280 = vmul.f32 %v5146, 0.01
    %v5281 = vmul.f32 %v5147, 0.01
    %v5282 = vmul.f32 %v5148, 0.01
    %v5283 = vmul.f32 %v5149, 0.01
    %v5284 = vmul.f32 %v5150, 0.01
    %v5285 = vmul.f32 %v5151, 0.01
    %v5286 = vmul.f32 %v5152, 0.01
    %v5287 = vmul.f32 %v5153, 0.01
    %v5288 = vmul.f32 %v5154, 0.01
    %v5289 = vmul.f32 %v5155, 0.01
    %v5290 = vmul.f32 %v5156, 0.01
    %v5291 = vmul.f32 %v5157, 0.01
    %v5292 = vmul.f32 %v5158, 0.01
    %v5293 = vmul.f32 %v5159, 0.01
    %v5294 = vmul.f32 %v5160, 0.01
    %v5295 = vmul.f32 %v5161, 0.01
    %v5296 = vmul.f32 %v5162, 0.01
    %v5297 = vmul.f32 %v5163, 0.01
    %v5298 = vmul.f32 %v5164, 0.01
    %v5299 = vmul.f32 %v5165, 0.01
    %v5300 = vmul.f32 %v5166, 0.01
    %v5301 = vmul.f32 %v5167, 0.01
    %v5302 = vmul.f32 %v5168, 0.01
    %v5303 = vmul.f32 %v5169, 0.01
    %v5304 = vmul.f32 %v5170, 0.01
    %v5305 = vmul.f32 %v5171, 0.01
    %v5306 = vmul.f32 %v5172, 0.01
    %v5307 = vmul.f32 %v5173, 0.01
    %v5308 = vsel %vm5174, %v5107, %v5241
    %v5309 = vsel %vm5175, %v5108, %v5242
    %v5310 = vsel %vm5176, %v5109, %v5243
    %v5311 = vsel %vm5177, %v5110, %v5244
    %v5312 = vsel %vm5178, %v5111, %v5245
    %v5313 = vsel %vm5179, %v5112, %v5246
    %v5314 = vsel %vm5180, %v5113, %v5247
    %v5315 = vsel %vm5181, %v5114, %v5248
    %v5316 = vsel %vm5182, %v5115, %v5249
    %v5317 = vsel %vm5183, %v5116, %v5250
    %v5318 = vsel %vm5184, %v5117, %v5251
    %v5319 = vsel %vm5185, %v5118, %v5252
    %v5320 = vsel %vm5186, %v5119, %v5253
    %v5321 = vsel %vm5187, %v5120, %v5254
    %v5322 = vsel %vm5188, %v5121, %v5255
    %v5323 = vsel %vm5189, %v5122, %v5256
    %v5324 = vsel %vm5190, %v5123, %v5257
    %v5325 = vsel %vm5191, %v5124, %v5258
    %v5326 = vsel %vm5192, %v5125, %v5259
    %v5327 = vsel %vm5193, %v5126, %v5260
    %v5328 = vsel %vm5194, %v5127, %v5261
    %v5329 = vsel %vm5195, %v5128, %v5262
    %v5330 = vsel %vm5196, %v5129, %v5263
    %v5331 = vsel %vm5197, %v5130, %v5264
    %v5332 = vsel %vm5198, %v5131, %v5265
    %v5333 = vsel %vm5199, %v5132, %v5266
    %v5334 = vsel %vm5200, %v5133, %v5267
    %v5335 = vsel %vm5201, %v5134, %v5268
    %v5336 = vsel %vm5202, %v5135, %v5269
    %v5337 = vsel %vm5203, %v5136, %v5270
    %v5338 = vsel %vm5204, %v5137, %v5271
    %v5339 = vsel %vm5205, %v5138, %v5272
    %v5340 = vsel %vm5206, %v5139, %v5273
    %v5341 = vsel %vm5207, %v5140, %v5274
    %v5342 = vsel %vm5208, %v5141, %v5275
    %v5343 = vsel %vm5209, %v5142, %v5276
    %v5344 = vsel %vm5210, %v5143, %v5277
    %v5345 = vsel %vm5211, %v5144, %v5278
    %v5346 = vsel %vm5212, %v5145, %v5279
    %v5347 = vsel %vm5213, %v5146, %v5280
    %v5348 = vsel %vm5214, %v5147, %v5281
    %v5349 = vsel %vm5215, %v5148, %v5282
    %v5350 = vsel %vm5216, %v5149, %v5283
    %v5351 = vsel %vm5217, %v5150, %v5284
    %v5352 = vsel %vm5218, %v5151, %v5285
    %v5353 = vsel %vm5219, %v5152, %v5286
    %v5354 = vsel %vm5220, %v5153, %v5287
    %v5355 = vsel %vm5221, %v5154, %v5288
    %v5356 = vsel %vm5222, %v5155, %v5289
    %v5357 = vsel %vm5223, %v5156, %v5290
    %v5358 = vsel %vm5224, %v5157, %v5291
    %v5359 = vsel %vm5225, %v5158, %v5292
    %v5360 = vsel %vm5226, %v5159, %v5293
    %v5361 = vsel %vm5227, %v5160, %v5294
    %v5362 = vsel %vm5228, %v5161, %v5295
    %v5363 = vsel %vm5229, %v5162, %v5296
    %v5364 = vsel %vm5230, %v5163, %v5297
    %v5365 = vsel %vm5231, %v5164, %v5298
    %v5366 = vsel %vm5232, %v5165, %v5299
    %v5367 = vsel %vm5233, %v5166, %v5300
    %v5368 = vsel %vm5234, %v5167, %v5301
    %v5369 = vsel %vm5235, %v5168, %v5302
    %v5370 = vsel %vm5236, %v5169, %v5303
    %v5371 = vsel %vm5237, %v5170, %v5304
    %v5372 = vsel %vm5238, %v5171, %v5305
    %v5373 = vsel %vm5239, %v5172, %v5306
    %v5374 = vsel %vm5240, %v5173, %v5307
    %5375 = vst.msk [vmem:[#allocation3] sm:$0xff] %vm836, %v5308
    %5376 = vst.msk [vmem:[#allocation3 + $0x8] sm:$0xff] %vm836, %v5309
    %5377 = vst.msk [vmem:[#allocation3 + $0x10] sm:$0xff] %vm836, %v5310
    %5378 = vst.msk [vmem:[#allocation3 + $0x18] sm:$0xff] %vm836, %v5311
    %5379 = vst.msk [vmem:[#allocation3 + $0x20] sm:$0xff] %vm836, %v5312
    %5380 = vst.msk [vmem:[#allocation3 + $0x28] sm:$0xff] %vm836, %v5313
    %5381 = vst.msk [vmem:[#allocation3 + $0x30] sm:$0xff] %vm836, %v5314
    %5382 = vst.msk [vmem:[#allocation3 + $0x38] sm:$0xff] %vm836, %v5315
    %5383 = vst.msk [vmem:[#allocation3 + $0x40] sm:$0xff] %vm836, %v5316
    %5384 = vst.msk [vmem:[#allocation3 + $0x48] sm:$0xff] %vm836, %v5317
    %5385 = vst.msk [vmem:[#allocation3 + $0x50] sm:$0xff] %vm836, %v5318
    %5386 = vst.msk [vmem:[#allocation3 + $0x58] sm:$0xff] %vm836, %v5319
    %5387 = vst.msk [vmem:[#allocation3 + $0x60] sm:$0xff] %vm836, %v5320
    %5388 = vst.msk [vmem:[#allocation3 + $0x68] sm:$0xff] %vm836, %v5321
    %5389 = vst.msk [vmem:[#allocation3 + $0x70] sm:$0xff] %vm836, %v5322
    %5390 = vst.msk [vmem:[#allocation3 + $0x78] sm:$0xff] %vm836, %v5323
    %5391 = vst.msk [vmem:[#allocation3 + $0x80] sm:$0xff] %vm836, %v5324
    %5392 = vst.msk [vmem:[#allocation3 + $0x88] sm:$0xff] %vm836, %v5325
    %5393 = vst.msk [vmem:[#allocation3 + $0x90] sm:$0xff] %vm836, %v5326
    %5394 = vst.msk [vmem:[#allocation3 + $0x98] sm:$0xff] %vm836, %v5327
    %5395 = vst.msk [vmem:[#allocation3 + $0xa0] sm:$0xff] %vm836, %v5328
    %5396 = vst.msk [vmem:[#allocation3 + $0xa8] sm:$0xff] %vm836, %v5329
    %5397 = vst.msk [vmem:[#allocation3 + $0xb0] sm:$0xff] %vm836, %v5330
    %5398 = vst.msk [vmem:[#allocation3 + $0xb8] sm:$0xff] %vm836, %v5331
    %5399 = vst.msk [vmem:[#allocation3 + $0xc0] sm:$0xff] %vm836, %v5332
    %5400 = vst.msk [vmem:[#allocation3 + $0xc8] sm:$0xff] %vm836, %v5333
    %5401 = vst.msk [vmem:[#allocation3 + $0xd0] sm:$0xff] %vm836, %v5334
    %5402 = vst.msk [vmem:[#allocation3 + $0xd8] sm:$0xff] %vm836, %v5335
    %5403 = vst.msk [vmem:[#allocation3 + $0xe0] sm:$0xff] %vm836, %v5336
    %5404 = vst.msk [vmem:[#allocation3 + $0xe8] sm:$0xff] %vm836, %v5337
    %5405 = vst.msk [vmem:[#allocation3 + $0xf0] sm:$0xff] %vm836, %v5338
    %5406 = vst.msk [vmem:[#allocation3 + $0xf8] sm:$0xff] %vm836, %v5339
    %5407 = vst.msk [vmem:[#allocation3 + $0x100] sm:$0xff] %vm836, %v5340
    %5408 = vst.msk [vmem:[#allocation3 + $0x108] sm:$0xff] %vm836, %v5341
    %5409 = vst.msk [vmem:[#allocation3 + $0x110] sm:$0xff] %vm836, %v5342
    %5410 = vst.msk [vmem:[#allocation3 + $0x118] sm:$0xff] %vm836, %v5343
    %5411 = vst.msk [vmem:[#allocation3 + $0x120] sm:$0xff] %vm836, %v5344
    %5412 = vst.msk [vmem:[#allocation3 + $0x128] sm:$0xff] %vm836, %v5345
    %5413 = vst.msk [vmem:[#allocation3 + $0x130] sm:$0xff] %vm836, %v5346
    %5414 = vst.msk [vmem:[#allocation3 + $0x138] sm:$0xff] %vm836, %v5347
    %5415 = vst.msk [vmem:[#allocation3 + $0x140] sm:$0xff] %vm836, %v5348
    %5416 = vst.msk [vmem:[#allocation3 + $0x148] sm:$0xff] %vm836, %v5349
    %5417 = vst.msk [vmem:[#allocation3 + $0x150] sm:$0xff] %vm836, %v5350
    %5418 = vst.msk [vmem:[#allocation3 + $0x158] sm:$0xff] %vm836, %v5351
    %5419 = vst.msk [vmem:[#allocation3 + $0x160] sm:$0xff] %vm836, %v5352
    %5420 = vst.msk [vmem:[#allocation3 + $0x168] sm:$0xff] %vm836, %v5353
    %5421 = vst.msk [vmem:[#allocation3 + $0x170] sm:$0xff] %vm836, %v5354
    %5422 = vst.msk [vmem:[#allocation3 + $0x178] sm:$0xff] %vm836, %v5355
    %5423 = vst.msk [vmem:[#allocation3 + $0x180] sm:$0xff] %vm836, %v5356
    %5424 = vst.msk [vmem:[#allocation3 + $0x188] sm:$0xff] %vm836, %v5357
    %5425 = vst.msk [vmem:[#allocation3 + $0x190] sm:$0xff] %vm836, %v5358
    %5426 = vst.msk [vmem:[#allocation3 + $0x198] sm:$0xff] %vm836, %v5359
    %5427 = vst.msk [vmem:[#allocation3 + $0x1a0] sm:$0xff] %vm836, %v5360
    %5428 = vst.msk [vmem:[#allocation3 + $0x1a8] sm:$0xff] %vm836, %v5361
    %5429 = vst.msk [vmem:[#allocation3 + $0x1b0] sm:$0xff] %vm836, %v5362
    %5430 = vst.msk [vmem:[#allocation3 + $0x1b8] sm:$0xff] %vm836, %v5363
    %5431 = vst.msk [vmem:[#allocation3 + $0x1c0] sm:$0xff] %vm836, %v5364
    %5432 = vst.msk [vmem:[#allocation3 + $0x1c8] sm:$0xff] %vm836, %v5365
    %5433 = vst.msk [vmem:[#allocation3 + $0x1d0] sm:$0xff] %vm836, %v5366
    %5434 = vst.msk [vmem:[#allocation3 + $0x1d8] sm:$0xff] %vm836, %v5367
    %5435 = vst.msk [vmem:[#allocation3 + $0x1e0] sm:$0xff] %vm836, %v5368
    %5436 = vst.msk [vmem:[#allocation3 + $0x1e8] sm:$0xff] %vm836, %v5369
    %5437 = vst.msk [vmem:[#allocation3 + $0x1f0] sm:$0xff] %vm836, %v5370
    %5438 = vst.msk [vmem:[#allocation3 + $0x1f8] sm:$0xff] %vm836, %v5371
    %5439 = vst.msk [vmem:[#allocation3 + $0x200] sm:$0xff] %vm836, %v5372
    %5440 = vst.msk [vmem:[#allocation3 + $0x208] sm:$0xff] %vm836, %v5373
    %5441 = vst.msk [vmem:[#allocation3 + $0x210] sm:$0xff] %vm836, %v5374
    %v5442 = vld [vmem:[#allocation3] sm:$0xff]
    %v5443 = vld [vmem:[#allocation3 + $0x8] sm:$0xff]
    %v5444 = vld [vmem:[#allocation3 + $0x10] sm:$0xff]
    %v5445 = vld [vmem:[#allocation3 + $0x18] sm:$0xff]
    %v5446 = vld [vmem:[#allocation3 + $0x20] sm:$0xff]
    %v5447 = vld [vmem:[#allocation3 + $0x28] sm:$0xff]
    %v5448 = vld [vmem:[#allocation3 + $0x30] sm:$0xff]
    %v5449 = vld [vmem:[#allocation3 + $0x38] sm:$0xff]
    %v5450 = vld [vmem:[#allocation3 + $0x40] sm:$0xff]
    %v5451 = vld [vmem:[#allocation3 + $0x48] sm:$0xff]
    %v5452 = vld [vmem:[#allocation3 + $0x50] sm:$0xff]
    %v5453 = vld [vmem:[#allocation3 + $0x58] sm:$0xff]
    %v5454 = vld [vmem:[#allocation3 + $0x60] sm:$0xff]
    %v5455 = vld [vmem:[#allocation3 + $0x68] sm:$0xff]
    %v5456 = vld [vmem:[#allocation3 + $0x70] sm:$0xff]
    %v5457 = vld [vmem:[#allocation3 + $0x78] sm:$0xff]
    %v5458 = vld [vmem:[#allocation3 + $0x80] sm:$0xff]
    %v5459 = vld [vmem:[#allocation3 + $0x88] sm:$0xff]
    %v5460 = vld [vmem:[#allocation3 + $0x90] sm:$0xff]
    %v5461 = vld [vmem:[#allocation3 + $0x98] sm:$0xff]
    %v5462 = vld [vmem:[#allocation3 + $0xa0] sm:$0xff]
    %v5463 = vld [vmem:[#allocation3 + $0xa8] sm:$0xff]
    %v5464 = vld [vmem:[#allocation3 + $0xb0] sm:$0xff]
    %v5465 = vld [vmem:[#allocation3 + $0xb8] sm:$0xff]
    %v5466 = vld [vmem:[#allocation3 + $0xc0] sm:$0xff]
    %v5467 = vld [vmem:[#allocation3 + $0xc8] sm:$0xff]
    %v5468 = vld [vmem:[#allocation3 + $0xd0] sm:$0xff]
    %v5469 = vld [vmem:[#allocation3 + $0xd8] sm:$0xff]
    %v5470 = vld [vmem:[#allocation3 + $0xe0] sm:$0xff]
    %v5471 = vld [vmem:[#allocation3 + $0xe8] sm:$0xff]
    %v5472 = vld [vmem:[#allocation3 + $0xf0] sm:$0xff]
    %v5473 = vld [vmem:[#allocation3 + $0xf8] sm:$0xff]
    %v5474 = vld [vmem:[#allocation3 + $0x100] sm:$0xff]
    %v5475 = vld [vmem:[#allocation3 + $0x108] sm:$0xff]
    %v5476 = vld [vmem:[#allocation3 + $0x110] sm:$0xff]
    %v5477 = vld [vmem:[#allocation3 + $0x118] sm:$0xff]
    %v5478 = vld [vmem:[#allocation3 + $0x120] sm:$0xff]
    %v5479 = vld [vmem:[#allocation3 + $0x128] sm:$0xff]
    %v5480 = vld [vmem:[#allocation3 + $0x130] sm:$0xff]
    %v5481 = vld [vmem:[#allocation3 + $0x138] sm:$0xff]
    %v5482 = vld [vmem:[#allocation3 + $0x140] sm:$0xff]
    %v5483 = vld [vmem:[#allocation3 + $0x148] sm:$0xff]
    %v5484 = vld [vmem:[#allocation3 + $0x150] sm:$0xff]
    %v5485 = vld [vmem:[#allocation3 + $0x158] sm:$0xff]
    %v5486 = vld [vmem:[#allocation3 + $0x160] sm:$0xff]
    %v5487 = vld [vmem:[#allocation3 + $0x168] sm:$0xff]
    %v5488 = vld [vmem:[#allocation3 + $0x170] sm:$0xff]
    %v5489 = vld [vmem:[#allocation3 + $0x178] sm:$0xff]
    %v5490 = vld [vmem:[#allocation3 + $0x180] sm:$0xff]
    %v5491 = vld [vmem:[#allocation3 + $0x188] sm:$0xff]
    %v5492 = vld [vmem:[#allocation3 + $0x190] sm:$0xff]
    %v5493 = vld [vmem:[#allocation3 + $0x198] sm:$0xff]
    %v5494 = vld [vmem:[#allocation3 + $0x1a0] sm:$0xff]
    %v5495 = vld [vmem:[#allocation3 + $0x1a8] sm:$0xff]
    %v5496 = vld [vmem:[#allocation3 + $0x1b0] sm:$0xff]
    %v5497 = vld [vmem:[#allocation3 + $0x1b8] sm:$0xff]
    %v5498 = vld [vmem:[#allocation3 + $0x1c0] sm:$0xff]
    %v5499 = vld [vmem:[#allocation3 + $0x1c8] sm:$0xff]
    %v5500 = vld [vmem:[#allocation3 + $0x1d0] sm:$0xff]
    %v5501 = vld [vmem:[#allocation3 + $0x1d8] sm:$0xff]
    %v5502 = vld [vmem:[#allocation3 + $0x1e0] sm:$0xff]
    %v5503 = vld [vmem:[#allocation3 + $0x1e8] sm:$0xff]
    %v5504 = vld [vmem:[#allocation3 + $0x1f0] sm:$0xff]
    %v5505 = vld [vmem:[#allocation3 + $0x1f8] sm:$0xff]
    %v5506 = vld [vmem:[#allocation3 + $0x1] sm:$0xff]
    %v5507 = vld [vmem:[#allocation3 + $0x9] sm:$0xff]
    %v5508 = vld [vmem:[#allocation3 + $0x11] sm:$0xff]
    %v5509 = vld [vmem:[#allocation3 + $0x19] sm:$0xff]
    %v5510 = vld [vmem:[#allocation3 + $0x21] sm:$0xff]
    %v5511 = vld [vmem:[#allocation3 + $0x29] sm:$0xff]
    %v5512 = vld [vmem:[#allocation3 + $0x31] sm:$0xff]
    %v5513 = vld [vmem:[#allocation3 + $0x39] sm:$0xff]
    %v5514 = vld [vmem:[#allocation3 + $0x41] sm:$0xff]
    %v5515 = vld [vmem:[#allocation3 + $0x49] sm:$0xff]
    %v5516 = vld [vmem:[#allocation3 + $0x51] sm:$0xff]
    %v5517 = vld [vmem:[#allocation3 + $0x59] sm:$0xff]
    %v5518 = vld [vmem:[#allocation3 + $0x61] sm:$0xff]
    %v5519 = vld [vmem:[#allocation3 + $0x69] sm:$0xff]
    %v5520 = vld [vmem:[#allocation3 + $0x71] sm:$0xff]
    %v5521 = vld [vmem:[#allocation3 + $0x79] sm:$0xff]
    %v5522 = vld [vmem:[#allocation3 + $0x81] sm:$0xff]
    %v5523 = vld [vmem:[#allocation3 + $0x89] sm:$0xff]
    %v5524 = vld [vmem:[#allocation3 + $0x91] sm:$0xff]
    %v5525 = vld [vmem:[#allocation3 + $0x99] sm:$0xff]
    %v5526 = vld [vmem:[#allocation3 + $0xa1] sm:$0xff]
    %v5527 = vld [vmem:[#allocation3 + $0xa9] sm:$0xff]
    %v5528 = vld [vmem:[#allocation3 + $0xb1] sm:$0xff]
    %v5529 = vld [vmem:[#allocation3 + $0xb9] sm:$0xff]
    %v5530 = vld [vmem:[#allocation3 + $0xc1] sm:$0xff]
    %v5531 = vld [vmem:[#allocation3 + $0xc9] sm:$0xff]
    %v5532 = vld [vmem:[#allocation3 + $0xd1] sm:$0xff]
    %v5533 = vld [vmem:[#allocation3 + $0xd9] sm:$0xff]
    %v5534 = vld [vmem:[#allocation3 + $0xe1] sm:$0xff]
    %v5535 = vld [vmem:[#allocation3 + $0xe9] sm:$0xff]
    %v5536 = vld [vmem:[#allocation3 + $0xf1] sm:$0xff]
    %v5537 = vld [vmem:[#allocation3 + $0xf9] sm:$0xff]
    %v5538 = vld [vmem:[#allocation3 + $0x101] sm:$0xff]
    %v5539 = vld [vmem:[#allocation3 + $0x109] sm:$0xff]
    %v5540 = vld [vmem:[#allocation3 + $0x111] sm:$0xff]
    %v5541 = vld [vmem:[#allocation3 + $0x119] sm:$0xff]
    %v5542 = vld [vmem:[#allocation3 + $0x121] sm:$0xff]
    %v5543 = vld [vmem:[#allocation3 + $0x129] sm:$0xff]
    %v5544 = vld [vmem:[#allocation3 + $0x131] sm:$0xff]
    %v5545 = vld [vmem:[#allocation3 + $0x139] sm:$0xff]
    %v5546 = vld [vmem:[#allocation3 + $0x141] sm:$0xff]
    %v5547 = vld [vmem:[#allocation3 + $0x149] sm:$0xff]
    %v5548 = vld [vmem:[#allocation3 + $0x151] sm:$0xff]
    %v5549 = vld [vmem:[#allocation3 + $0x159] sm:$0xff]
    %v5550 = vld [vmem:[#allocation3 + $0x161] sm:$0xff]
    %v5551 = vld [vmem:[#allocation3 + $0x169] sm:$0xff]
    %v5552 = vld [vmem:[#allocation3 + $0x171] sm:$0xff]
    %v5553 = vld [vmem:[#allocation3 + $0x179] sm:$0xff]
    %v5554 = vld [vmem:[#allocation3 + $0x181] sm:$0xff]
    %v5555 = vld [vmem:[#allocation3 + $0x189] sm:$0xff]
    %v5556 = vld [vmem:[#allocation3 + $0x191] sm:$0xff]
    %v5557 = vld [vmem:[#allocation3 + $0x199] sm:$0xff]
    %v5558 = vld [vmem:[#allocation3 + $0x1a1] sm:$0xff]
    %v5559 = vld [vmem:[#allocation3 + $0x1a9] sm:$0xff]
    %v5560 = vld [vmem:[#allocation3 + $0x1b1] sm:$0xff]
    %v5561 = vld [vmem:[#allocation3 + $0x1b9] sm:$0xff]
    %v5562 = vld [vmem:[#allocation3 + $0x1c1] sm:$0xff]
    %v5563 = vld [vmem:[#allocation3 + $0x1c9] sm:$0xff]
    %v5564 = vld [vmem:[#allocation3 + $0x1d1] sm:$0xff]
    %v5565 = vld [vmem:[#allocation3 + $0x1d9] sm:$0xff]
    %v5566 = vld [vmem:[#allocation3 + $0x1e1] sm:$0xff]
    %v5567 = vld [vmem:[#allocation3 + $0x1e9] sm:$0xff]
    %v5568 = vld [vmem:[#allocation3 + $0x1f1] sm:$0xff]
    %v5569 = vld [vmem:[#allocation3 + $0x1f9] sm:$0xff]
    %v5570 = vmax.f32 %v5442, %v5506
    %v5571 = vmax.f32 %v5443, %v5507
    %v5572 = vmax.f32 %v5444, %v5508
    %v5573 = vmax.f32 %v5445, %v5509
    %v5574 = vmax.f32 %v5446, %v5510
    %v5575 = vmax.f32 %v5447, %v5511
    %v5576 = vmax.f32 %v5448, %v5512
    %v5577 = vmax.f32 %v5449, %v5513
    %v5578 = vmax.f32 %v5450, %v5514
    %v5579 = vmax.f32 %v5451, %v5515
    %v5580 = vmax.f32 %v5452, %v5516
    %v5581 = vmax.f32 %v5453, %v5517
    %v5582 = vmax.f32 %v5454, %v5518
    %v5583 = vmax.f32 %v5455, %v5519
    %v5584 = vmax.f32 %v5456, %v5520
    %v5585 = vmax.f32 %v5457, %v5521
    %v5586 = vmax.f32 %v5458, %v5522
    %v5587 = vmax.f32 %v5459, %v5523
    %v5588 = vmax.f32 %v5460, %v5524
    %v5589 = vmax.f32 %v5461, %v5525
    %v5590 = vmax.f32 %v5462, %v5526
    %v5591 = vmax.f32 %v5463, %v5527
    %v5592 = vmax.f32 %v5464, %v5528
    %v5593 = vmax.f32 %v5465, %v5529
    %v5594 = vmax.f32 %v5466, %v5530
    %v5595 = vmax.f32 %v5467, %v5531
    %v5596 = vmax.f32 %v5468, %v5532
    %v5597 = vmax.f32 %v5469, %v5533
    %v5598 = vmax.f32 %v5470, %v5534
    %v5599 = vmax.f32 %v5471, %v5535
    %v5600 = vmax.f32 %v5472, %v5536
    %v5601 = vmax.f32 %v5473, %v5537
    %v5602 = vmax.f32 %v5474, %v5538
    %v5603 = vmax.f32 %v5475, %v5539
    %v5604 = vmax.f32 %v5476, %v5540
    %v5605 = vmax.f32 %v5477, %v5541
    %v5606 = vmax.f32 %v5478, %v5542
    %v5607 = vmax.f32 %v5479, %v5543
    %v5608 = vmax.f32 %v5480, %v5544
    %v5609 = vmax.f32 %v5481, %v5545
    %v5610 = vmax.f32 %v5482, %v5546
    %v5611 = vmax.f32 %v5483, %v5547
    %v5612 = vmax.f32 %v5484, %v5548
    %v5613 = vmax.f32 %v5485, %v5549
    %v5614 = vmax.f32 %v5486, %v5550
    %v5615 = vmax.f32 %v5487, %v5551
    %v5616 = vmax.f32 %v5488, %v5552
    %v5617 = vmax.f32 %v5489, %v5553
    %v5618 = vmax.f32 %v5490, %v5554
    %v5619 = vmax.f32 %v5491, %v5555
    %v5620 = vmax.f32 %v5492, %v5556
    %v5621 = vmax.f32 %v5493, %v5557
    %v5622 = vmax.f32 %v5494, %v5558
    %v5623 = vmax.f32 %v5495, %v5559
    %v5624 = vmax.f32 %v5496, %v5560
    %v5625 = vmax.f32 %v5497, %v5561
    %v5626 = vmax.f32 %v5498, %v5562
    %v5627 = vmax.f32 %v5499, %v5563
    %v5628 = vmax.f32 %v5500, %v5564
    %v5629 = vmax.f32 %v5501, %v5565
    %v5630 = vmax.f32 %v5502, %v5566
    %v5631 = vmax.f32 %v5503, %v5567
    %v5632 = vmax.f32 %v5504, %v5568
    %v5633 = vmax.f32 %v5505, %v5569
    %v5634 = vld [vmem:[#allocation3 + $0x200] sm:$0xff]
    %v5635 = vld [vmem:[#allocation3 + $0x208] sm:$0xff]
    %v5636 = vld [vmem:[#allocation3 + $0x201] sm:$0xff]
    %v5637 = vld [vmem:[#allocation3 + $0x209] sm:$0xff]
    %v5638 = vmax.f32 %v5634, %v5636
    %v5639 = vmax.f32 %v5635, %v5637
    %v5640 = vmax.f32 %v5570, %v5572
    %v5641 = vmax.f32 %v5571, %v5573
    %v5642 = vmax.f32 %v5572, %v5574
    %v5643 = vmax.f32 %v5573, %v5575
    %v5644 = vmax.f32 %v5574, %v5576
    %v5645 = vmax.f32 %v5575, %v5577
    %v5646 = vmax.f32 %v5576, %v5578
    %v5647 = vmax.f32 %v5577, %v5579
    %v5648 = vmax.f32 %v5578, %v5580
    %v5649 = vmax.f32 %v5579, %v5581
    %v5650 = vmax.f32 %v5580, %v5582
    %v5651 = vmax.f32 %v5581, %v5583
    %v5652 = vmax.f32 %v5582, %v5584
    %v5653 = vmax.f32 %v5583, %v5585
    %v5654 = vmax.f32 %v5584, %v5586
    %v5655 = vmax.f32 %v5585, %v5587
    %v5656 = vmax.f32 %v5586, %v5588
    %v5657 = vmax.f32 %v5587, %v5589
    %v5658 = vmax.f32 %v5588, %v5590
    %v5659 = vmax.f32 %v5589, %v5591
    %v5660 = vmax.f32 %v5590, %v5592
    %v5661 = vmax.f32 %v5591, %v5593
    %v5662 = vmax.f32 %v5592, %v5594
    %v5663 = vmax.f32 %v5593, %v5595
    %v5664 = vmax.f32 %v5594, %v5596
    %v5665 = vmax.f32 %v5595, %v5597
    %v5666 = vmax.f32 %v5596, %v5598
    %v5667 = vmax.f32 %v5597, %v5599
    %v5668 = vmax.f32 %v5598, %v5600
    %v5669 = vmax.f32 %v5599, %v5601
    %v5670 = vmax.f32 %v5600, %v5602
    %v5671 = vmax.f32 %v5601, %v5603
    %v5672 = vmax.f32 %v5602, %v5604
    %v5673 = vmax.f32 %v5603, %v5605
    %v5674 = vmax.f32 %v5604, %v5606
    %v5675 = vmax.f32 %v5605, %v5607
    %v5676 = vmax.f32 %v5606, %v5608
    %v5677 = vmax.f32 %v5607, %v5609
    %v5678 = vmax.f32 %v5608, %v5610
    %v5679 = vmax.f32 %v5609, %v5611
    %v5680 = vmax.f32 %v5610, %v5612
    %v5681 = vmax.f32 %v5611, %v5613
    %v5682 = vmax.f32 %v5612, %v5614
    %v5683 = vmax.f32 %v5613, %v5615
    %v5684 = vmax.f32 %v5614, %v5616
    %v5685 = vmax.f32 %v5615, %v5617
    %v5686 = vmax.f32 %v5616, %v5618
    %v5687 = vmax.f32 %v5617, %v5619
    %v5688 = vmax.f32 %v5618, %v5620
    %v5689 = vmax.f32 %v5619, %v5621
    %v5690 = vmax.f32 %v5620, %v5622
    %v5691 = vmax.f32 %v5621, %v5623
    %v5692 = vmax.f32 %v5622, %v5624
    %v5693 = vmax.f32 %v5623, %v5625
    %v5694 = vmax.f32 %v5624, %v5626
    %v5695 = vmax.f32 %v5625, %v5627
    %v5696 = vmax.f32 %v5626, %v5628
    %v5697 = vmax.f32 %v5627, %v5629
    %v5698 = vmax.f32 %v5628, %v5630
    %v5699 = vmax.f32 %v5629, %v5631
    %v5700 = vmax.f32 %v5630, %v5632
    %v5701 = vmax.f32 %v5631, %v5633
    %v5702 = vmax.f32 %v5632, %v5638
    %v5703 = vmax.f32 %v5633, %v5639
    %v5704 = vld [vmem:[%s7] sm:$0xff]
    %v5705 = vld [vmem:[%s7 + $0x8] sm:$0xff]
    %v5706 = vld [vmem:[%s7 + $0x10] sm:$0xff]
    %v5707 = vld [vmem:[%s7 + $0x18] sm:$0xff]
    %v5708 = vld [vmem:[%s7 + $0x20] sm:$0xff]
    %v5709 = vld [vmem:[%s7 + $0x28] sm:$0xff]
    %v5710 = vld [vmem:[%s7 + $0x30] sm:$0xff]
    %v5711 = vld [vmem:[%s7 + $0x38] sm:$0xff]
    %v5712 = vld [vmem:[%s7 + $0x40] sm:$0xff]
    %v5713 = vld [vmem:[%s7 + $0x48] sm:$0xff]
    %v5714 = vld [vmem:[%s7 + $0x50] sm:$0xff]
    %v5715 = vld [vmem:[%s7 + $0x58] sm:$0xff]
    %v5716 = vld [vmem:[%s7 + $0x60] sm:$0xff]
    %v5717 = vld [vmem:[%s7 + $0x68] sm:$0xff]
    %v5718 = vld [vmem:[%s7 + $0x70] sm:$0xff]
    %v5719 = vld [vmem:[%s7 + $0x78] sm:$0xff]
    %v5720 = vld [vmem:[%s7 + $0x80] sm:$0xff]
    %v5721 = vld [vmem:[%s7 + $0x88] sm:$0xff]
    %v5722 = vld [vmem:[%s7 + $0x90] sm:$0xff]
    %v5723 = vld [vmem:[%s7 + $0x98] sm:$0xff]
    %v5724 = vld [vmem:[%s7 + $0xa0] sm:$0xff]
    %v5725 = vld [vmem:[%s7 + $0xa8] sm:$0xff]
    %v5726 = vld [vmem:[%s7 + $0xb0] sm:$0xff]
    %v5727 = vld [vmem:[%s7 + $0xb8] sm:$0xff]
    %v5728 = vpack.c.bf16 %v5641, %v5640
    %v5729 = vpack.c.bf16 %v5643, %v5642
    %v5730 = vpack.c.bf16 %v5645, %v5644
    %v5731 = vpack.c.bf16 %v5647, %v5646
    %v5732 = vpack.c.bf16 %v5649, %v5648
    %v5733 = vpack.c.bf16 %v5651, %v5650
    %v5734 = vpack.c.bf16 %v5653, %v5652
    %v5735 = vpack.c.bf16 %v5655, %v5654
    %v5736 = vpack.c.bf16 %v5657, %v5656
    %v5737 = vpack.c.bf16 %v5659, %v5658
    %v5738 = vpack.c.bf16 %v5661, %v5660
    %v5739 = vpack.c.bf16 %v5663, %v5662
    %v5740 = vpack.c.bf16 %v5665, %v5664
    %v5741 = vpack.c.bf16 %v5667, %v5666
    %v5742 = vpack.c.bf16 %v5669, %v5668
    %v5743 = vpack.c.bf16 %v5671, %v5670
    %v5744 = vpack.c.bf16 %v5673, %v5672
    %v5745 = vpack.c.bf16 %v5675, %v5674
    %v5746 = vpack.c.bf16 %v5677, %v5676
    %v5747 = vpack.c.bf16 %v5679, %v5678
    %v5748 = vpack.c.bf16 %v5681, %v5680
    %v5749 = vpack.c.bf16 %v5683, %v5682
    %v5750 = vpack.c.bf16 %v5685, %v5684
    %v5751 = vpack.c.bf16 %v5687, %v5686
    %v5752 = vpack.c.bf16 %v5689, %v5688
    %v5753 = vpack.c.bf16 %v5691, %v5690
    %v5754 = vpack.c.bf16 %v5693, %v5692
    %v5755 = vpack.c.bf16 %v5695, %v5694
    %v5756 = vpack.c.bf16 %v5697, %v5696
    %v5757 = vpack.c.bf16 %v5699, %v5698
    %v5758 = vpack.c.bf16 %v5701, %v5700
    %v5759 = vpack.c.bf16 %v5703, %v5702
    %v5784 = vunpack.c.l.b16 %v5704
    %v5785 = vunpack.c.h.b16 %v5704
    %v5786 = vunpack.c.l.b16 %v5705
    %v5787 = vunpack.c.h.b16 %v5705
    %v5788 = vunpack.c.l.b16 %v5706
    %v5789 = vunpack.c.h.b16 %v5706
    %v5790 = vunpack.c.l.b16 %v5707
    %v5791 = vunpack.c.h.b16 %v5707
    %v5792 = vunpack.c.l.b16 %v5708
    %v5793 = vunpack.c.h.b16 %v5708
    %v5794 = vunpack.c.l.b16 %v5709
    %v5795 = vunpack.c.h.b16 %v5709
    %v5796 = vunpack.c.l.b16 %v5710
    %v5797 = vunpack.c.h.b16 %v5710
    %v5798 = vunpack.c.l.b16 %v5711
    %v5799 = vunpack.c.h.b16 %v5711
    %v5800 = vunpack.c.l.b16 %v5712
    %v5801 = vunpack.c.h.b16 %v5712
    %v5802 = vunpack.c.l.b16 %v5713
    %v5803 = vunpack.c.h.b16 %v5713
    %v5804 = vunpack.c.l.b16 %v5714
    %v5805 = vunpack.c.h.b16 %v5714
    %v5806 = vunpack.c.l.b16 %v5715
    %v5807 = vunpack.c.h.b16 %v5715
    %v5808 = vunpack.c.l.b16 %v5716
    %v5809 = vunpack.c.h.b16 %v5716
    %v5810 = vunpack.c.l.b16 %v5717
    %v5811 = vunpack.c.h.b16 %v5717
    %v5812 = vunpack.c.l.b16 %v5718
    %v5813 = vunpack.c.h.b16 %v5718
    %v5814 = vunpack.c.l.b16 %v5719
    %v5815 = vunpack.c.h.b16 %v5719
    %v5816 = vunpack.c.l.b16 %v5720
    %v5817 = vunpack.c.h.b16 %v5720
    %v5818 = vunpack.c.l.b16 %v5721
    %v5819 = vunpack.c.h.b16 %v5721
    %v5820 = vunpack.c.l.b16 %v5722
    %v5821 = vunpack.c.h.b16 %v5722
    %v5822 = vunpack.c.l.b16 %v5723
    %v5823 = vunpack.c.h.b16 %v5723
    %v5824 = vunpack.c.l.b16 %v5724
    %v5825 = vunpack.c.h.b16 %v5724
    %v5826 = vunpack.c.l.b16 %v5725
    %v5827 = vunpack.c.h.b16 %v5725
    %v5828 = vunpack.c.l.b16 %v5726
    %v5829 = vunpack.c.h.b16 %v5726
    %v5830 = vunpack.c.l.b16 %v5727
    %v5831 = vunpack.c.h.b16 %v5727
    %v5832 = vpack.c.b16 %v5788, %v5784
    %v5833 = vpack.c.b16 %v5789, %v5785
    %v5834 = vpack.c.b16 %v5790, %v5786
    %v5835 = vpack.c.b16 %v5791, %v5787
    %v5836 = vpack.c.b16 %v5796, %v5792
    %v5837 = vpack.c.b16 %v5797, %v5793
    %v5838 = vpack.c.b16 %v5798, %v5794
    %v5839 = vpack.c.b16 %v5799, %v5795
    %v5840 = vpack.c.b16 %v5804, %v5800
    %v5841 = vpack.c.b16 %v5805, %v5801
    %v5842 = vpack.c.b16 %v5806, %v5802
    %v5843 = vpack.c.b16 %v5807, %v5803
    %v5844 = vpack.c.b16 %v5812, %v5808
    %v5845 = vpack.c.b16 %v5813, %v5809
    %v5846 = vpack.c.b16 %v5814, %v5810
    %v5847 = vpack.c.b16 %v5815, %v5811
    %v5848 = vpack.c.b16 %v5820, %v5816
    %v5849 = vpack.c.b16 %v5821, %v5817
    %v5850 = vpack.c.b16 %v5822, %v5818
    %v5851 = vpack.c.b16 %v5823, %v5819
    %v5852 = vpack.c.b16 %v5828, %v5824
    %v5853 = vpack.c.b16 %v5829, %v5825
    %v5854 = vpack.c.b16 %v5830, %v5826
    %v5855 = vpack.c.b16 %v5831, %v5827
    %5880 = vmatpush.bf16.msra.mxu0 %v5735
    %5881 = vmatpush.bf16.msra.mxu0 %v5734
    %5882 = vmatpush.bf16.msra.mxu0 %v5733
    %5883 = vmatpush.bf16.msra.mxu0 %v5732
    %5884 = vmatpush.bf16.msra.mxu0 %v5731
    %5885 = vmatpush.bf16.msra.mxu0 %v5730
    %5886 = vmatpush.bf16.msra.mxu0 %v5729
    %5887 = vmatpush.bf16.msra.mxu0 %v5728
    %5888 = vmatmul.bf16.gmra.mxu0 %v5832
    %v5889 = vpop.f32.mrf.mxu0
    %v5890 = vadd.f32 0.0, %v5889
    %v5891 = vpop.f32.mrf.mxu0
    %v5892 = vadd.f32 0.0, %v5891
    %5893 = vmatmul.bf16.gmra.mxu0 %v5836
    %v5894 = vpop.f32.mrf.mxu0
    %v5895 = vadd.f32 0.0, %v5894
    %v5896 = vpop.f32.mrf.mxu0
    %v5897 = vadd.f32 0.0, %v5896
    %5898 = vmatmul.bf16.gmra.mxu0 %v5840
    %v5899 = vpop.f32.mrf.mxu0
    %v5900 = vadd.f32 0.0, %v5899
    %v5901 = vpop.f32.mrf.mxu0
    %v5902 = vadd.f32 0.0, %v5901
    %5903 = vmatmul.bf16.gmra.mxu0 %v5844
    %v5904 = vpop.f32.mrf.mxu0
    %v5905 = vadd.f32 0.0, %v5904
    %v5906 = vpop.f32.mrf.mxu0
    %v5907 = vadd.f32 0.0, %v5906
    %5908 = vmatmul.bf16.gmra.mxu0 %v5848
    %v5909 = vpop.f32.mrf.mxu0
    %v5910 = vadd.f32 0.0, %v5909
    %v5911 = vpop.f32.mrf.mxu0
    %v5912 = vadd.f32 0.0, %v5911
    %5913 = vmatmul.bf16.gmra.mxu0 %v5852
    %v5914 = vpop.f32.mrf.mxu0
    %v5915 = vadd.f32 0.0, %v5914
    %v5916 = vpop.f32.mrf.mxu0
    %v5917 = vadd.f32 0.0, %v5916
    %5918 = vdwg.mxu0
    %5919 = vmatpush.bf16.msra.mxu0 %v5743
    %5920 = vmatpush.bf16.msra.mxu0 %v5742
    %5921 = vmatpush.bf16.msra.mxu0 %v5741
    %5922 = vmatpush.bf16.msra.mxu0 %v5740
    %5923 = vmatpush.bf16.msra.mxu0 %v5739
    %5924 = vmatpush.bf16.msra.mxu0 %v5738
    %5925 = vmatpush.bf16.msra.mxu0 %v5737
    %5926 = vmatpush.bf16.msra.mxu0 %v5736
    %5927 = vmatmul.bf16.gmra.mxu0 %v5833
    %v5928 = vpop.f32.mrf.mxu0
    %v5929 = vadd.f32 %v5890, %v5928
    %v5930 = vpop.f32.mrf.mxu0
    %v5931 = vadd.f32 %v5892, %v5930
    %5932 = vmatmul.bf16.gmra.mxu0 %v5837
    %v5933 = vpop.f32.mrf.mxu0
    %v5934 = vadd.f32 %v5895, %v5933
    %v5935 = vpop.f32.mrf.mxu0
    %v5936 = vadd.f32 %v5897, %v5935
    %5937 = vmatmul.bf16.gmra.mxu0 %v5841
    %v5938 = vpop.f32.mrf.mxu0
    %v5939 = vadd.f32 %v5900, %v5938
    %v5940 = vpop.f32.mrf.mxu0
    %v5941 = vadd.f32 %v5902, %v5940
    %5942 = vmatmul.bf16.gmra.mxu0 %v5845
    %v5943 = vpop.f32.mrf.mxu0
    %v5944 = vadd.f32 %v5905, %v5943
    %v5945 = vpop.f32.mrf.mxu0
    %v5946 = vadd.f32 %v5907, %v5945
    %5947 = vmatmul.bf16.gmra.mxu0 %v5849
    %v5948 = vpop.f32.mrf.mxu0
    %v5949 = vadd.f32 %v5910, %v5948
    %v5950 = vpop.f32.mrf.mxu0
    %v5951 = vadd.f32 %v5912, %v5950
    %5952 = vmatmul.bf16.gmra.mxu0 %v5853
    %v5953 = vpop.f32.mrf.mxu0
    %v5954 = vadd.f32 %v5915, %v5953
    %v5955 = vpop.f32.mrf.mxu0
    %v5956 = vadd.f32 %v5917, %v5955
    %5957 = vdwg.mxu0
    %5958 = vmatpush.bf16.msra.mxu0 %v5751
    %5959 = vmatpush.bf16.msra.mxu0 %v5750
    %5960 = vmatpush.bf16.msra.mxu0 %v5749
    %5961 = vmatpush.bf16.msra.mxu0 %v5748
    %5962 = vmatpush.bf16.msra.mxu0 %v5747
    %5963 = vmatpush.bf16.msra.mxu0 %v5746
    %5964 = vmatpush.bf16.msra.mxu0 %v5745
    %5965 = vmatpush.bf16.msra.mxu0 %v5744
    %5966 = vmatmul.bf16.gmra.mxu0 %v5834
    %v5967 = vpop.f32.mrf.mxu0
    %v5968 = vadd.f32 %v5929, %v5967
    %v5969 = vpop.f32.mrf.mxu0
    %v5970 = vadd.f32 %v5931, %v5969
    %5971 = vmatmul.bf16.gmra.mxu0 %v5838
    %v5972 = vpop.f32.mrf.mxu0
    %v5973 = vadd.f32 %v5934, %v5972
    %v5974 = vpop.f32.mrf.mxu0
    %v5975 = vadd.f32 %v5936, %v5974
    %5976 = vmatmul.bf16.gmra.mxu0 %v5842
    %v5977 = vpop.f32.mrf.mxu0
    %v5978 = vadd.f32 %v5939, %v5977
    %v5979 = vpop.f32.mrf.mxu0
    %v5980 = vadd.f32 %v5941, %v5979
    %5981 = vmatmul.bf16.gmra.mxu0 %v5846
    %v5982 = vpop.f32.mrf.mxu0
    %v5983 = vadd.f32 %v5944, %v5982
    %v5984 = vpop.f32.mrf.mxu0
    %v5985 = vadd.f32 %v5946, %v5984
    %5986 = vmatmul.bf16.gmra.mxu0 %v5850
    %v5987 = vpop.f32.mrf.mxu0
    %v5988 = vadd.f32 %v5949, %v5987
    %v5989 = vpop.f32.mrf.mxu0
    %v5990 = vadd.f32 %v5951, %v5989
    %5991 = vmatmul.bf16.gmra.mxu0 %v5854
    %v5992 = vpop.f32.mrf.mxu0
    %v5993 = vadd.f32 %v5954, %v5992
    %v5994 = vpop.f32.mrf.mxu0
    %v5995 = vadd.f32 %v5956, %v5994
    %5996 = vdwg.mxu0
    %5997 = vmatpush.bf16.msra.mxu0 %v5759
    %5998 = vmatpush.bf16.msra.mxu0 %v5758
    %5999 = vmatpush.bf16.msra.mxu0 %v5757
    %6000 = vmatpush.bf16.msra.mxu0 %v5756
    %6001 = vmatpush.bf16.msra.mxu0 %v5755
    %6002 = vmatpush.bf16.msra.mxu0 %v5754
    %6003 = vmatpush.bf16.msra.mxu0 %v5753
    %6004 = vmatpush.bf16.msra.mxu0 %v5752
    %6005 = vmatmul.bf16.gmra.mxu0 %v5835
    %v6006 = vpop.f32.mrf.mxu0
    %v6007 = vadd.f32 %v5968, %v6006
    %v6008 = vpop.f32.mrf.mxu0
    %v6009 = vadd.f32 %v5970, %v6008
    %6010 = vmatmul.bf16.gmra.mxu0 %v5839
    %v6011 = vpop.f32.mrf.mxu0
    %v6012 = vadd.f32 %v5973, %v6011
    %v6013 = vpop.f32.mrf.mxu0
    %v6014 = vadd.f32 %v5975, %v6013
    %6015 = vmatmul.bf16.gmra.mxu0 %v5843
    %v6016 = vpop.f32.mrf.mxu0
    %v6017 = vadd.f32 %v5978, %v6016
    %v6018 = vpop.f32.mrf.mxu0
    %v6019 = vadd.f32 %v5980, %v6018
    %6020 = vmatmul.bf16.gmra.mxu0 %v5847
    %v6021 = vpop.f32.mrf.mxu0
    %v6022 = vadd.f32 %v5983, %v6021
    %v6023 = vpop.f32.mrf.mxu0
    %v6024 = vadd.f32 %v5985, %v6023
    %6025 = vmatmul.bf16.gmra.mxu0 %v5851
    %v6026 = vpop.f32.mrf.mxu0
    %v6027 = vadd.f32 %v5988, %v6026
    %v6028 = vpop.f32.mrf.mxu0
    %v6029 = vadd.f32 %v5990, %v6028
    %6030 = vmatmul.bf16.gmra.mxu0 %v5855
    %v6031 = vpop.f32.mrf.mxu0
    %v6032 = vadd.f32 %v5993, %v6031
    %v6033 = vpop.f32.mrf.mxu0
    %v6034 = vadd.f32 %v5995, %v6033
    %6035 = vdwg.mxu0
    %6036 = vst.msk [vmem:[#allocation4] sm:$0xff] %vm836, %v6007
    %6037 = vst.msk [vmem:[#allocation4 + $0x8] sm:$0xff] %vm836, %v6009
    %6038 = vst.msk [vmem:[#allocation4 + $0x10] sm:$0xff] %vm836, %v6012
    %6039 = vst.msk [vmem:[#allocation4 + $0x18] sm:$0xff] %vm836, %v6014
    %6040 = vst.msk [vmem:[#allocation4 + $0x20] sm:$0xff] %vm836, %v6017
    %6041 = vst.msk [vmem:[#allocation4 + $0x28] sm:$0xff] %vm836, %v6019
    %6042 = vst.msk [vmem:[#allocation4 + $0x30] sm:$0xff] %vm836, %v6022
    %6043 = vst.msk [vmem:[#allocation4 + $0x38] sm:$0xff] %vm836, %v6024
    %6044 = vst.msk [vmem:[#allocation4 + $0x40] sm:$0xff] %vm836, %v6027
    %6045 = vst.msk [vmem:[#allocation4 + $0x48] sm:$0xff] %vm836, %v6029
    %6046 = vst.msk [vmem:[#allocation4 + $0x50] sm:$0xff] %vm836, %v6032
    %6047 = vst.msk [vmem:[#allocation4 + $0x58] sm:$0xff] %vm836, %v6034
    %v6048 = vld [vmem:[#allocation4] sm:$0xff]
    %v6049 = vld [vmem:[#allocation4 + $0x8] sm:$0xff]
    %v6050 = vld [vmem:[#allocation4 + $0x10] sm:$0xff]
    %v6051 = vld [vmem:[#allocation4 + $0x18] sm:$0xff]
    %v6052 = vld [vmem:[#allocation4 + $0x20] sm:$0xff]
    %v6053 = vld [vmem:[#allocation4 + $0x28] sm:$0xff]
    %v6054 = vld [vmem:[#allocation4 + $0x30] sm:$0xff]
    %v6055 = vld [vmem:[#allocation4 + $0x38] sm:$0xff]
    %v6056 = vld [vmem:[#allocation4 + $0x40] sm:$0xff]
    %v6057 = vld [vmem:[#allocation4 + $0x48] sm:$0xff]
    %v6058 = vpack.c.bf16 %v6049, %v6048
    %v6059 = vpack.c.bf16 %v6051, %v6050
    %v6060 = vpack.c.bf16 %v6053, %v6052
    %v6061 = vpack.c.bf16 %v6055, %v6054
    %v6062 = vpack.c.bf16 %v6057, %v6056
    %v6063 = vld [vmem:[%s5] sm:$0xf]
    %v6064 = vld [vmem:[%s5 + $0x4] sm:$0xf]
    %v6065 = vld [vmem:[%s5 + $0x8] sm:$0xf]
    %v6066 = vld [vmem:[%s5 + $0xc] sm:$0xf]
    %v6067 = vld [vmem:[%s5 + $0x10] sm:$0xf]
    %v6068 = vld [vmem:[%s5 + $0x14] sm:$0xf]
    %v6069 = vld [vmem:[%s5 + $0x18] sm:$0xf]
    %v6070 = vld [vmem:[%s5 + $0x1c] sm:$0xf]
    %v6071 = vld [vmem:[#allocation4 + $0x1] sm:$0xff]
    %v6072 = vld [vmem:[#allocation4 + $0x9] sm:$0xff]
    %v6073 = vld [vmem:[#allocation4 + $0x11] sm:$0xff]
    %v6074 = vld [vmem:[#allocation4 + $0x19] sm:$0xff]
    %v6075 = vld [vmem:[#allocation4 + $0x21] sm:$0xff]
    %v6076 = vld [vmem:[#allocation4 + $0x29] sm:$0xff]
    %v6077 = vld [vmem:[#allocation4 + $0x31] sm:$0xff]
    %v6078 = vld [vmem:[#allocation4 + $0x39] sm:$0xff]
    %v6079 = vld [vmem:[#allocation4 + $0x41] sm:$0xff]
    %v6080 = vld [vmem:[#allocation4 + $0x49] sm:$0xff]
    %v6081 = vpack.c.bf16 %v6072, %v6071
    %v6082 = vpack.c.bf16 %v6074, %v6073
    %v6083 = vpack.c.bf16 %v6076, %v6075
    %v6084 = vpack.c.bf16 %v6078, %v6077
    %v6085 = vpack.c.bf16 %v6080, %v6079
    %s6086 = scalar_lea.vmem %s5, 32
    %v6087 = vld [vmem:[%s6086] sm:$0xf]
    %v6088 = vld [vmem:[%s6086 + $0x4] sm:$0xf]
    %v6089 = vld [vmem:[%s6086 + $0x8] sm:$0xf]
    %v6090 = vld [vmem:[%s6086 + $0xc] sm:$0xf]
    %v6091 = vld [vmem:[%s6086 + $0x10] sm:$0xf]
    %v6092 = vld [vmem:[%s6086 + $0x14] sm:$0xf]
    %v6093 = vld [vmem:[%s6086 + $0x18] sm:$0xf]
    %v6094 = vld [vmem:[%s6086 + $0x1c] sm:$0xf]
    %v6103 = vunpack.c.l.b16 %v6087
    %v6104 = vunpack.c.l.b16 %v6088
    %v6105 = vunpack.c.l.b16 %v6089
    %v6106 = vunpack.c.l.b16 %v6090
    %v6107 = vunpack.c.l.b16 %v6091
    %v6108 = vunpack.c.l.b16 %v6092
    %v6109 = vunpack.c.l.b16 %v6093
    %v6110 = vunpack.c.l.b16 %v6094
    %v6111 = vpack.c.b16 %v6104, %v6103
    %v6112 = vpack.c.b16 %v6106, %v6105
    %v6113 = vpack.c.b16 %v6108, %v6107
    %v6114 = vpack.c.b16 %v6110, %v6109
    %v6120 = vsel %vm836, %v6081, 0
    %v6123 = vsel %vm836, %v6082, 0
    %v6126 = vsel %vm836, %v6083, 0
    %v6129 = vsel %vm836, %v6084, 0
    %v6132 = vsel %vm836, %v6085, 0
    %6134 = vmatpush.bf16.msra.mxu0 0
    %6135 = vmatpush.bf16.msra.mxu0 0
    %6136 = vmatpush.bf16.msra.mxu0 0
    %6137 = vmatpush.bf16.msra.mxu0 0
    %6138 = vmatpush.bf16.msra.mxu0 %v6114
    %6139 = vmatpush.bf16.msra.mxu0 %v6113
    %6140 = vmatpush.bf16.msra.mxu0 %v6112
    %6141 = vmatpush.bf16.msra.mxu0 %v6111
    %6142 = vmatmul.bf16.gmra.mxu0 %v6120
    %v6143 = vpop.f32.mrf.mxu0
    %v6144 = vadd.f32 0.0, %v6143
    %v6145 = vpop.f32.mrf.mxu0
    %v6146 = vadd.f32 0.0, %v6145
    %6147 = vmatmul.bf16.gmra.mxu0 %v6123
    %v6148 = vpop.f32.mrf.mxu0
    %v6149 = vadd.f32 0.0, %v6148
    %v6150 = vpop.f32.mrf.mxu0
    %v6151 = vadd.f32 0.0, %v6150
    %6152 = vmatmul.bf16.gmra.mxu0 %v6126
    %v6153 = vpop.f32.mrf.mxu0
    %v6154 = vadd.f32 0.0, %v6153
    %v6155 = vpop.f32.mrf.mxu0
    %v6156 = vadd.f32 0.0, %v6155
    %6157 = vmatmul.bf16.gmra.mxu0 %v6129
    %v6158 = vpop.f32.mrf.mxu0
    %v6159 = vadd.f32 0.0, %v6158
    %v6160 = vpop.f32.mrf.mxu0
    %v6161 = vadd.f32 0.0, %v6160
    %6162 = vmatmul.bf16.gmra.mxu0 %v6132
    %v6163 = vpop.f32.mrf.mxu0
    %v6164 = vadd.f32 0.0, %v6163
    %v6165 = vpop.f32.mrf.mxu0
    %v6166 = vadd.f32 0.0, %v6165
    %6167 = vdwg.mxu0
    %v6176 = vunpack.c.l.b16 %v6063
    %v6177 = vunpack.c.l.b16 %v6064
    %v6178 = vunpack.c.l.b16 %v6065
    %v6179 = vunpack.c.l.b16 %v6066
    %v6180 = vunpack.c.l.b16 %v6067
    %v6181 = vunpack.c.l.b16 %v6068
    %v6182 = vunpack.c.l.b16 %v6069
    %v6183 = vunpack.c.l.b16 %v6070
    %v6184 = vpack.c.b16 %v6177, %v6176
    %v6185 = vpack.c.b16 %v6179, %v6178
    %v6186 = vpack.c.b16 %v6181, %v6180
    %v6187 = vpack.c.b16 %v6183, %v6182
    %v6193 = vsel %vm836, %v6058, 0
    %v6196 = vsel %vm836, %v6059, 0
    %v6199 = vsel %vm836, %v6060, 0
    %v6202 = vsel %vm836, %v6061, 0
    %v6205 = vsel %vm836, %v6062, 0
    %6207 = vmatpush.bf16.msra.mxu0 0
    %6208 = vmatpush.bf16.msra.mxu0 0
    %6209 = vmatpush.bf16.msra.mxu0 0
    %6210 = vmatpush.bf16.msra.mxu0 0
    %6211 = vmatpush.bf16.msra.mxu0 %v6187
    %6212 = vmatpush.bf16.msra.mxu0 %v6186
    %6213 = vmatpush.bf16.msra.mxu0 %v6185
    %6214 = vmatpush.bf16.msra.mxu0 %v6184
    %6215 = vmatmul.bf16.gmra.mxu0 %v6193
    %v6216 = vpop.f32.mrf.mxu0
    %v6217 = vadd.f32 %v6144, %v6216
    %v6218 = vpop.f32.mrf.mxu0
    %v6219 = vadd.f32 %v6146, %v6218
    %6220 = vmatmul.bf16.gmra.mxu0 %v6196
    %v6221 = vpop.f32.mrf.mxu0
    %v6222 = vadd.f32 %v6149, %v6221
    %v6223 = vpop.f32.mrf.mxu0
    %v6224 = vadd.f32 %v6151, %v6223
    %6225 = vmatmul.bf16.gmra.mxu0 %v6199
    %v6226 = vpop.f32.mrf.mxu0
    %v6227 = vadd.f32 %v6154, %v6226
    %v6228 = vpop.f32.mrf.mxu0
    %v6229 = vadd.f32 %v6156, %v6228
    %6230 = vmatmul.bf16.gmra.mxu0 %v6202
    %v6231 = vpop.f32.mrf.mxu0
    %v6232 = vadd.f32 %v6159, %v6231
    %v6233 = vpop.f32.mrf.mxu0
    %v6234 = vadd.f32 %v6161, %v6233
    %6235 = vmatmul.bf16.gmra.mxu0 %v6205
    %v6236 = vpop.f32.mrf.mxu0
    %v6237 = vadd.f32 %v6164, %v6236
    %v6238 = vpop.f32.mrf.mxu0
    %v6239 = vadd.f32 %v6166, %v6238
    %6240 = vdwg.mxu0
    %v6241 = vld [vmem:[#allocation4 + $0x2] sm:$0xff]
    %v6242 = vld [vmem:[#allocation4 + $0xa] sm:$0xff]
    %v6243 = vld [vmem:[#allocation4 + $0x12] sm:$0xff]
    %v6244 = vld [vmem:[#allocation4 + $0x1a] sm:$0xff]
    %v6245 = vld [vmem:[#allocation4 + $0x22] sm:$0xff]
    %v6246 = vld [vmem:[#allocation4 + $0x2a] sm:$0xff]
    %v6247 = vld [vmem:[#allocation4 + $0x32] sm:$0xff]
    %v6248 = vld [vmem:[#allocation4 + $0x3a] sm:$0xff]
    %v6249 = vld [vmem:[#allocation4 + $0x42] sm:$0xff]
    %v6250 = vld [vmem:[#allocation4 + $0x4a] sm:$0xff]
    %v6251 = vpack.c.bf16 %v6242, %v6241
    %v6252 = vpack.c.bf16 %v6244, %v6243
    %v6253 = vpack.c.bf16 %v6246, %v6245
    %v6254 = vpack.c.bf16 %v6248, %v6247
    %v6255 = vpack.c.bf16 %v6250, %v6249
    %s6256 = scalar_lea.vmem %s5, 64
    %v6257 = vld [vmem:[%s6256] sm:$0xf]
    %v6258 = vld [vmem:[%s6256 + $0x4] sm:$0xf]
    %v6259 = vld [vmem:[%s6256 + $0x8] sm:$0xf]
    %v6260 = vld [vmem:[%s6256 + $0xc] sm:$0xf]
    %v6261 = vld [vmem:[%s6256 + $0x10] sm:$0xf]
    %v6262 = vld [vmem:[%s6256 + $0x14] sm:$0xf]
    %v6263 = vld [vmem:[%s6256 + $0x18] sm:$0xf]
    %v6264 = vld [vmem:[%s6256 + $0x1c] sm:$0xf]
    %v6273 = vunpack.c.l.b16 %v6257
    %v6274 = vunpack.c.l.b16 %v6258
    %v6275 = vunpack.c.l.b16 %v6259
    %v6276 = vunpack.c.l.b16 %v6260
    %v6277 = vunpack.c.l.b16 %v6261
    %v6278 = vunpack.c.l.b16 %v6262
    %v6279 = vunpack.c.l.b16 %v6263
    %v6280 = vunpack.c.l.b16 %v6264
    %v6281 = vpack.c.b16 %v6274, %v6273
    %v6282 = vpack.c.b16 %v6276, %v6275
    %v6283 = vpack.c.b16 %v6278, %v6277
    %v6284 = vpack.c.b16 %v6280, %v6279
    %v6290 = vsel %vm836, %v6251, 0
    %v6293 = vsel %vm836, %v6252, 0
    %v6296 = vsel %vm836, %v6253, 0
    %v6299 = vsel %vm836, %v6254, 0
    %v6302 = vsel %vm836, %v6255, 0
    %6304 = vmatpush.bf16.msra.mxu0 0
    %6305 = vmatpush.bf16.msra.mxu0 0
    %6306 = vmatpush.bf16.msra.mxu0 0
    %6307 = vmatpush.bf16.msra.mxu0 0
    %6308 = vmatpush.bf16.msra.mxu0 %v6284
    %6309 = vmatpush.bf16.msra.mxu0 %v6283
    %6310 = vmatpush.bf16.msra.mxu0 %v6282
    %6311 = vmatpush.bf16.msra.mxu0 %v6281
    %6312 = vmatmul.bf16.gmra.mxu0 %v6290
    %v6313 = vpop.f32.mrf.mxu0
    %v6314 = vadd.f32 0.0, %v6313
    %v6315 = vpop.f32.mrf.mxu0
    %v6316 = vadd.f32 0.0, %v6315
    %6317 = vmatmul.bf16.gmra.mxu0 %v6293
    %v6318 = vpop.f32.mrf.mxu0
    %v6319 = vadd.f32 0.0, %v6318
    %v6320 = vpop.f32.mrf.mxu0
    %v6321 = vadd.f32 0.0, %v6320
    %6322 = vmatmul.bf16.gmra.mxu0 %v6296
    %v6323 = vpop.f32.mrf.mxu0
    %v6324 = vadd.f32 0.0, %v6323
    %v6325 = vpop.f32.mrf.mxu0
    %v6326 = vadd.f32 0.0, %v6325
    %6327 = vmatmul.bf16.gmra.mxu0 %v6299
    %v6328 = vpop.f32.mrf.mxu0
    %v6329 = vadd.f32 0.0, %v6328
    %v6330 = vpop.f32.mrf.mxu0
    %v6331 = vadd.f32 0.0, %v6330
    %6332 = vmatmul.bf16.gmra.mxu0 %v6302
    %v6333 = vpop.f32.mrf.mxu0
    %v6334 = vadd.f32 0.0, %v6333
    %v6335 = vpop.f32.mrf.mxu0
    %v6336 = vadd.f32 0.0, %v6335
    %6337 = vdwg.mxu0
    %v6338 = vadd.f32 %v6217, %v6314
    %v6339 = vadd.f32 %v6219, %v6316
    %v6340 = vadd.f32 %v6222, %v6319
    %v6341 = vadd.f32 %v6224, %v6321
    %v6342 = vadd.f32 %v6227, %v6324
    %v6343 = vadd.f32 %v6229, %v6326
    %v6344 = vadd.f32 %v6232, %v6329
    %v6345 = vadd.f32 %v6234, %v6331
    %v6346 = vadd.f32 %v6237, %v6334
    %v6347 = vadd.f32 %v6239, %v6336
    %v6348 = vld [vmem:[#allocation4 + $0x6] sm:$0xff]
    %v6349 = vld [vmem:[#allocation4 + $0xe] sm:$0xff]
    %v6350 = vld [vmem:[#allocation4 + $0x16] sm:$0xff]
    %v6351 = vld [vmem:[#allocation4 + $0x1e] sm:$0xff]
    %v6352 = vld [vmem:[#allocation4 + $0x26] sm:$0xff]
    %v6353 = vld [vmem:[#allocation4 + $0x2e] sm:$0xff]
    %v6354 = vld [vmem:[#allocation4 + $0x36] sm:$0xff]
    %v6355 = vld [vmem:[#allocation4 + $0x3e] sm:$0xff]
    %v6356 = vld [vmem:[#allocation4 + $0x46] sm:$0xff]
    %v6357 = vld [vmem:[#allocation4 + $0x4e] sm:$0xff]
    %v6358 = vpack.c.bf16 %v6349, %v6348
    %v6359 = vpack.c.bf16 %v6351, %v6350
    %v6360 = vpack.c.bf16 %v6353, %v6352
    %v6361 = vpack.c.bf16 %v6355, %v6354
    %v6362 = vpack.c.bf16 %v6357, %v6356
    %s6363 = scalar_lea.vmem %s5, 96
    %v6364 = vld [vmem:[%s6363] sm:$0xf]
    %v6365 = vld [vmem:[%s6363 + $0x4] sm:$0xf]
    %v6366 = vld [vmem:[%s6363 + $0x8] sm:$0xf]
    %v6367 = vld [vmem:[%s6363 + $0xc] sm:$0xf]
    %v6368 = vld [vmem:[%s6363 + $0x10] sm:$0xf]
    %v6369 = vld [vmem:[%s6363 + $0x14] sm:$0xf]
    %v6370 = vld [vmem:[%s6363 + $0x18] sm:$0xf]
    %v6371 = vld [vmem:[%s6363 + $0x1c] sm:$0xf]
    %v6380 = vunpack.c.l.b16 %v6364
    %v6381 = vunpack.c.l.b16 %v6365
    %v6382 = vunpack.c.l.b16 %v6366
    %v6383 = vunpack.c.l.b16 %v6367
    %v6384 = vunpack.c.l.b16 %v6368
    %v6385 = vunpack.c.l.b16 %v6369
    %v6386 = vunpack.c.l.b16 %v6370
    %v6387 = vunpack.c.l.b16 %v6371
    %v6388 = vpack.c.b16 %v6381, %v6380
    %v6389 = vpack.c.b16 %v6383, %v6382
    %v6390 = vpack.c.b16 %v6385, %v6384
    %v6391 = vpack.c.b16 %v6387, %v6386
    %v6397 = vsel %vm836, %v6358, 0
    %v6400 = vsel %vm836, %v6359, 0
    %v6403 = vsel %vm836, %v6360, 0
    %v6406 = vsel %vm836, %v6361, 0
    %v6409 = vsel %vm836, %v6362, 0
    %6411 = vmatpush.bf16.msra.mxu0 0
    %6412 = vmatpush.bf16.msra.mxu0 0
    %6413 = vmatpush.bf16.msra.mxu0 0
    %6414 = vmatpush.bf16.msra.mxu0 0
    %6415 = vmatpush.bf16.msra.mxu0 %v6391
    %6416 = vmatpush.bf16.msra.mxu0 %v6390
    %6417 = vmatpush.bf16.msra.mxu0 %v6389
    %6418 = vmatpush.bf16.msra.mxu0 %v6388
    %6419 = vmatmul.bf16.gmra.mxu0 %v6397
    %v6420 = vpop.f32.mrf.mxu0
    %v6421 = vadd.f32 0.0, %v6420
    %v6422 = vpop.f32.mrf.mxu0
    %v6423 = vadd.f32 0.0, %v6422
    %6424 = vmatmul.bf16.gmra.mxu0 %v6400
    %v6425 = vpop.f32.mrf.mxu0
    %v6426 = vadd.f32 0.0, %v6425
    %v6427 = vpop.f32.mrf.mxu0
    %v6428 = vadd.f32 0.0, %v6427
    %6429 = vmatmul.bf16.gmra.mxu0 %v6403
    %v6430 = vpop.f32.mrf.mxu0
    %v6431 = vadd.f32 0.0, %v6430
    %v6432 = vpop.f32.mrf.mxu0
    %v6433 = vadd.f32 0.0, %v6432
    %6434 = vmatmul.bf16.gmra.mxu0 %v6406
    %v6435 = vpop.f32.mrf.mxu0
    %v6436 = vadd.f32 0.0, %v6435
    %v6437 = vpop.f32.mrf.mxu0
    %v6438 = vadd.f32 0.0, %v6437
    %6439 = vmatmul.bf16.gmra.mxu0 %v6409
    %v6440 = vpop.f32.mrf.mxu0
    %v6441 = vadd.f32 0.0, %v6440
    %v6442 = vpop.f32.mrf.mxu0
    %v6443 = vadd.f32 0.0, %v6442
    %6444 = vdwg.mxu0
    %v6445 = vadd.f32 %v6338, %v6421
    %v6446 = vadd.f32 %v6339, %v6423
    %v6447 = vadd.f32 %v6340, %v6426
    %v6448 = vadd.f32 %v6341, %v6428
    %v6449 = vadd.f32 %v6342, %v6431
    %v6450 = vadd.f32 %v6343, %v6433
    %v6451 = vadd.f32 %v6344, %v6436
    %v6452 = vadd.f32 %v6345, %v6438
    %v6453 = vadd.f32 %v6346, %v6441
    %v6454 = vadd.f32 %v6347, %v6443
    %v6455 = vld [vmem:[#allocation4 + $0x7] sm:$0xff]
    %v6456 = vld [vmem:[#allocation4 + $0xf] sm:$0xff]
    %v6457 = vld [vmem:[#allocation4 + $0x17] sm:$0xff]
    %v6458 = vld [vmem:[#allocation4 + $0x1f] sm:$0xff]
    %v6459 = vld [vmem:[#allocation4 + $0x27] sm:$0xff]
    %v6460 = vld [vmem:[#allocation4 + $0x2f] sm:$0xff]
    %v6461 = vld [vmem:[#allocation4 + $0x37] sm:$0xff]
    %v6462 = vld [vmem:[#allocation4 + $0x3f] sm:$0xff]
    %v6463 = vld [vmem:[#allocation4 + $0x47] sm:$0xff]
    %v6464 = vld [vmem:[#allocation4 + $0x4f] sm:$0xff]
    %v6465 = vpack.c.bf16 %v6456, %v6455
    %v6466 = vpack.c.bf16 %v6458, %v6457
    %v6467 = vpack.c.bf16 %v6460, %v6459
    %v6468 = vpack.c.bf16 %v6462, %v6461
    %v6469 = vpack.c.bf16 %v6464, %v6463
    %s6470 = scalar_lea.vmem %s5, 128
    %v6471 = vld [vmem:[%s6470] sm:$0xf]
    %v6472 = vld [vmem:[%s6470 + $0x4] sm:$0xf]
    %v6473 = vld [vmem:[%s6470 + $0x8] sm:$0xf]
    %v6474 = vld [vmem:[%s6470 + $0xc] sm:$0xf]
    %v6475 = vld [vmem:[%s6470 + $0x10] sm:$0xf]
    %v6476 = vld [vmem:[%s6470 + $0x14] sm:$0xf]
    %v6477 = vld [vmem:[%s6470 + $0x18] sm:$0xf]
    %v6478 = vld [vmem:[%s6470 + $0x1c] sm:$0xf]
    %v6487 = vunpack.c.l.b16 %v6471
    %v6488 = vunpack.c.l.b16 %v6472
    %v6489 = vunpack.c.l.b16 %v6473
    %v6490 = vunpack.c.l.b16 %v6474
    %v6491 = vunpack.c.l.b16 %v6475
    %v6492 = vunpack.c.l.b16 %v6476
    %v6493 = vunpack.c.l.b16 %v6477
    %v6494 = vunpack.c.l.b16 %v6478
    %v6495 = vpack.c.b16 %v6488, %v6487
    %v6496 = vpack.c.b16 %v6490, %v6489
    %v6497 = vpack.c.b16 %v6492, %v6491
    %v6498 = vpack.c.b16 %v6494, %v6493
    %v6504 = vsel %vm836, %v6465, 0
    %v6507 = vsel %vm836, %v6466, 0
    %v6510 = vsel %vm836, %v6467, 0
    %v6513 = vsel %vm836, %v6468, 0
    %v6516 = vsel %vm836, %v6469, 0
    %6518 = vmatpush.bf16.msra.mxu0 0
    %6519 = vmatpush.bf16.msra.mxu0 0
    %6520 = vmatpush.bf16.msra.mxu0 0
    %6521 = vmatpush.bf16.msra.mxu0 0
    %6522 = vmatpush.bf16.msra.mxu0 %v6498
    %6523 = vmatpush.bf16.msra.mxu0 %v6497
    %6524 = vmatpush.bf16.msra.mxu0 %v6496
    %6525 = vmatpush.bf16.msra.mxu0 %v6495
    %6526 = vmatmul.bf16.gmra.mxu0 %v6504
    %v6527 = vpop.f32.mrf.mxu0
    %v6528 = vadd.f32 0.0, %v6527
    %v6529 = vpop.f32.mrf.mxu0
    %v6530 = vadd.f32 0.0, %v6529
    %6531 = vmatmul.bf16.gmra.mxu0 %v6507
    %v6532 = vpop.f32.mrf.mxu0
    %v6533 = vadd.f32 0.0, %v6532
    %v6534 = vpop.f32.mrf.mxu0
    %v6535 = vadd.f32 0.0, %v6534
    %6536 = vmatmul.bf16.gmra.mxu0 %v6510
    %v6537 = vpop.f32.mrf.mxu0
    %v6538 = vadd.f32 0.0, %v6537
    %v6539 = vpop.f32.mrf.mxu0
    %v6540 = vadd.f32 0.0, %v6539
    %6541 = vmatmul.bf16.gmra.mxu0 %v6513
    %v6542 = vpop.f32.mrf.mxu0
    %v6543 = vadd.f32 0.0, %v6542
    %v6544 = vpop.f32.mrf.mxu0
    %v6545 = vadd.f32 0.0, %v6544
    %6546 = vmatmul.bf16.gmra.mxu0 %v6516
    %v6547 = vpop.f32.mrf.mxu0
    %v6548 = vadd.f32 0.0, %v6547
    %v6549 = vpop.f32.mrf.mxu0
    %v6550 = vadd.f32 0.0, %v6549
    %6551 = vdwg.mxu0
    %v6552 = vadd.f32 %v6445, %v6528
    %v6553 = vadd.f32 %v6446, %v6530
    %v6554 = vadd.f32 %v6447, %v6533
    %v6555 = vadd.f32 %v6448, %v6535
    %v6556 = vadd.f32 %v6449, %v6538
    %v6557 = vadd.f32 %v6450, %v6540
    %v6558 = vadd.f32 %v6451, %v6543
    %v6559 = vadd.f32 %v6452, %v6545
    %v6560 = vadd.f32 %v6453, %v6548
    %v6561 = vadd.f32 %v6454, %v6550
    %v6562 = vld [vmem:[#allocation4 + $0x8] sm:$0xff]
    %v6563 = vld [vmem:[#allocation4 + $0x10] sm:$0xff]
    %v6564 = vld [vmem:[#allocation4 + $0x18] sm:$0xff]
    %v6565 = vld [vmem:[#allocation4 + $0x20] sm:$0xff]
    %v6566 = vld [vmem:[#allocation4 + $0x28] sm:$0xff]
    %v6567 = vld [vmem:[#allocation4 + $0x30] sm:$0xff]
    %v6568 = vld [vmem:[#allocation4 + $0x38] sm:$0xff]
    %v6569 = vld [vmem:[#allocation4 + $0x40] sm:$0xff]
    %v6570 = vld [vmem:[#allocation4 + $0x48] sm:$0xff]
    %v6571 = vld [vmem:[#allocation4 + $0x50] sm:$0xff]
    %v6572 = vpack.c.bf16 %v6563, %v6562
    %v6573 = vpack.c.bf16 %v6565, %v6564
    %v6574 = vpack.c.bf16 %v6567, %v6566
    %v6575 = vpack.c.bf16 %v6569, %v6568
    %v6576 = vpack.c.bf16 %v6571, %v6570
    %s6577 = scalar_lea.vmem %s5, 160
    %v6578 = vld [vmem:[%s6577] sm:$0xf]
    %v6579 = vld [vmem:[%s6577 + $0x4] sm:$0xf]
    %v6580 = vld [vmem:[%s6577 + $0x8] sm:$0xf]
    %v6581 = vld [vmem:[%s6577 + $0xc] sm:$0xf]
    %v6582 = vld [vmem:[%s6577 + $0x10] sm:$0xf]
    %v6583 = vld [vmem:[%s6577 + $0x14] sm:$0xf]
    %v6584 = vld [vmem:[%s6577 + $0x18] sm:$0xf]
    %v6585 = vld [vmem:[%s6577 + $0x1c] sm:$0xf]
    %v6594 = vunpack.c.l.b16 %v6578
    %v6595 = vunpack.c.l.b16 %v6579
    %v6596 = vunpack.c.l.b16 %v6580
    %v6597 = vunpack.c.l.b16 %v6581
    %v6598 = vunpack.c.l.b16 %v6582
    %v6599 = vunpack.c.l.b16 %v6583
    %v6600 = vunpack.c.l.b16 %v6584
    %v6601 = vunpack.c.l.b16 %v6585
    %v6602 = vpack.c.b16 %v6595, %v6594
    %v6603 = vpack.c.b16 %v6597, %v6596
    %v6604 = vpack.c.b16 %v6599, %v6598
    %v6605 = vpack.c.b16 %v6601, %v6600
    %v6611 = vsel %vm836, %v6572, 0
    %v6614 = vsel %vm836, %v6573, 0
    %v6617 = vsel %vm836, %v6574, 0
    %v6620 = vsel %vm836, %v6575, 0
    %v6623 = vsel %vm836, %v6576, 0
    %6625 = vmatpush.bf16.msra.mxu0 0
    %6626 = vmatpush.bf16.msra.mxu0 0
    %6627 = vmatpush.bf16.msra.mxu0 0
    %6628 = vmatpush.bf16.msra.mxu0 0
    %6629 = vmatpush.bf16.msra.mxu0 %v6605
    %6630 = vmatpush.bf16.msra.mxu0 %v6604
    %6631 = vmatpush.bf16.msra.mxu0 %v6603
    %6632 = vmatpush.bf16.msra.mxu0 %v6602
    %6633 = vmatmul.bf16.gmra.mxu0 %v6611
    %v6634 = vpop.f32.mrf.mxu0
    %v6635 = vadd.f32 0.0, %v6634
    %v6636 = vpop.f32.mrf.mxu0
    %v6637 = vadd.f32 0.0, %v6636
    %6638 = vmatmul.bf16.gmra.mxu0 %v6614
    %v6639 = vpop.f32.mrf.mxu0
    %v6640 = vadd.f32 0.0, %v6639
    %v6641 = vpop.f32.mrf.mxu0
    %v6642 = vadd.f32 0.0, %v6641
    %6643 = vmatmul.bf16.gmra.mxu0 %v6617
    %v6644 = vpop.f32.mrf.mxu0
    %v6645 = vadd.f32 0.0, %v6644
    %v6646 = vpop.f32.mrf.mxu0
    %v6647 = vadd.f32 0.0, %v6646
    %6648 = vmatmul.bf16.gmra.mxu0 %v6620
    %v6649 = vpop.f32.mrf.mxu0
    %v6650 = vadd.f32 0.0, %v6649
    %v6651 = vpop.f32.mrf.mxu0
    %v6652 = vadd.f32 0.0, %v6651
    %6653 = vmatmul.bf16.gmra.mxu0 %v6623
    %v6654 = vpop.f32.mrf.mxu0
    %v6655 = vadd.f32 0.0, %v6654
    %v6656 = vpop.f32.mrf.mxu0
    %v6657 = vadd.f32 0.0, %v6656
    %6658 = vdwg.mxu0
    %v6659 = vadd.f32 %v6552, %v6635
    %v6660 = vadd.f32 %v6553, %v6637
    %v6661 = vadd.f32 %v6554, %v6640
    %v6662 = vadd.f32 %v6555, %v6642
    %v6663 = vadd.f32 %v6556, %v6645
    %v6664 = vadd.f32 %v6557, %v6647
    %v6665 = vadd.f32 %v6558, %v6650
    %v6666 = vadd.f32 %v6559, %v6652
    %v6667 = vadd.f32 %v6560, %v6655
    %v6668 = vadd.f32 %v6561, %v6657
    %v6669 = vld [vmem:[#allocation4 + $0xc] sm:$0xff]
    %v6670 = vld [vmem:[#allocation4 + $0x14] sm:$0xff]
    %v6671 = vld [vmem:[#allocation4 + $0x1c] sm:$0xff]
    %v6672 = vld [vmem:[#allocation4 + $0x24] sm:$0xff]
    %v6673 = vld [vmem:[#allocation4 + $0x2c] sm:$0xff]
    %v6674 = vld [vmem:[#allocation4 + $0x34] sm:$0xff]
    %v6675 = vld [vmem:[#allocation4 + $0x3c] sm:$0xff]
    %v6676 = vld [vmem:[#allocation4 + $0x44] sm:$0xff]
    %v6677 = vld [vmem:[#allocation4 + $0x4c] sm:$0xff]
    %v6678 = vld [vmem:[#allocation4 + $0x54] sm:$0xff]
    %v6679 = vpack.c.bf16 %v6670, %v6669
    %v6680 = vpack.c.bf16 %v6672, %v6671
    %v6681 = vpack.c.bf16 %v6674, %v6673
    %v6682 = vpack.c.bf16 %v6676, %v6675
    %v6683 = vpack.c.bf16 %v6678, %v6677
    %s6684 = scalar_lea.vmem %s5, 192
    %v6685 = vld [vmem:[%s6684] sm:$0xf]
    %v6686 = vld [vmem:[%s6684 + $0x4] sm:$0xf]
    %v6687 = vld [vmem:[%s6684 + $0x8] sm:$0xf]
    %v6688 = vld [vmem:[%s6684 + $0xc] sm:$0xf]
    %v6689 = vld [vmem:[%s6684 + $0x10] sm:$0xf]
    %v6690 = vld [vmem:[%s6684 + $0x14] sm:$0xf]
    %v6691 = vld [vmem:[%s6684 + $0x18] sm:$0xf]
    %v6692 = vld [vmem:[%s6684 + $0x1c] sm:$0xf]
    %v6701 = vunpack.c.l.b16 %v6685
    %v6702 = vunpack.c.l.b16 %v6686
    %v6703 = vunpack.c.l.b16 %v6687
    %v6704 = vunpack.c.l.b16 %v6688
    %v6705 = vunpack.c.l.b16 %v6689
    %v6706 = vunpack.c.l.b16 %v6690
    %v6707 = vunpack.c.l.b16 %v6691
    %v6708 = vunpack.c.l.b16 %v6692
    %v6709 = vpack.c.b16 %v6702, %v6701
    %v6710 = vpack.c.b16 %v6704, %v6703
    %v6711 = vpack.c.b16 %v6706, %v6705
    %v6712 = vpack.c.b16 %v6708, %v6707
    %v6718 = vsel %vm836, %v6679, 0
    %v6721 = vsel %vm836, %v6680, 0
    %v6724 = vsel %vm836, %v6681, 0
    %v6727 = vsel %vm836, %v6682, 0
    %v6730 = vsel %vm836, %v6683, 0
    %6732 = vmatpush.bf16.msra.mxu0 0
    %6733 = vmatpush.bf16.msra.mxu0 0
    %6734 = vmatpush.bf16.msra.mxu0 0
    %6735 = vmatpush.bf16.msra.mxu0 0
    %6736 = vmatpush.bf16.msra.mxu0 %v6712
    %6737 = vmatpush.bf16.msra.mxu0 %v6711
    %6738 = vmatpush.bf16.msra.mxu0 %v6710
    %6739 = vmatpush.bf16.msra.mxu0 %v6709
    %6740 = vmatmul.bf16.gmra.mxu0 %v6718
    %v6741 = vpop.f32.mrf.mxu0
    %v6742 = vadd.f32 0.0, %v6741
    %v6743 = vpop.f32.mrf.mxu0
    %v6744 = vadd.f32 0.0, %v6743
    %6745 = vmatmul.bf16.gmra.mxu0 %v6721
    %v6746 = vpop.f32.mrf.mxu0
    %v6747 = vadd.f32 0.0, %v6746
    %v6748 = vpop.f32.mrf.mxu0
    %v6749 = vadd.f32 0.0, %v6748
    %6750 = vmatmul.bf16.gmra.mxu0 %v6724
    %v6751 = vpop.f32.mrf.mxu0
    %v6752 = vadd.f32 0.0, %v6751
    %v6753 = vpop.f32.mrf.mxu0
    %v6754 = vadd.f32 0.0, %v6753
    %6755 = vmatmul.bf16.gmra.mxu0 %v6727
    %v6756 = vpop.f32.mrf.mxu0
    %v6757 = vadd.f32 0.0, %v6756
    %v6758 = vpop.f32.mrf.mxu0
    %v6759 = vadd.f32 0.0, %v6758
    %6760 = vmatmul.bf16.gmra.mxu0 %v6730
    %v6761 = vpop.f32.mrf.mxu0
    %v6762 = vadd.f32 0.0, %v6761
    %v6763 = vpop.f32.mrf.mxu0
    %v6764 = vadd.f32 0.0, %v6763
    %6765 = vdwg.mxu0
    %v6766 = vadd.f32 %v6659, %v6742
    %v6767 = vadd.f32 %v6660, %v6744
    %v6768 = vadd.f32 %v6661, %v6747
    %v6769 = vadd.f32 %v6662, %v6749
    %v6770 = vadd.f32 %v6663, %v6752
    %v6771 = vadd.f32 %v6664, %v6754
    %v6772 = vadd.f32 %v6665, %v6757
    %v6773 = vadd.f32 %v6666, %v6759
    %v6774 = vadd.f32 %v6667, %v6762
    %v6775 = vadd.f32 %v6668, %v6764
    %v6776 = vld [vmem:[#allocation4 + $0xd] sm:$0xff]
    %v6777 = vld [vmem:[#allocation4 + $0x15] sm:$0xff]
    %v6778 = vld [vmem:[#allocation4 + $0x1d] sm:$0xff]
    %v6779 = vld [vmem:[#allocation4 + $0x25] sm:$0xff]
    %v6780 = vld [vmem:[#allocation4 + $0x2d] sm:$0xff]
    %v6781 = vld [vmem:[#allocation4 + $0x35] sm:$0xff]
    %v6782 = vld [vmem:[#allocation4 + $0x3d] sm:$0xff]
    %v6783 = vld [vmem:[#allocation4 + $0x45] sm:$0xff]
    %v6784 = vld [vmem:[#allocation4 + $0x4d] sm:$0xff]
    %v6785 = vld [vmem:[#allocation4 + $0x55] sm:$0xff]
    %v6786 = vpack.c.bf16 %v6777, %v6776
    %v6787 = vpack.c.bf16 %v6779, %v6778
    %v6788 = vpack.c.bf16 %v6781, %v6780
    %v6789 = vpack.c.bf16 %v6783, %v6782
    %v6790 = vpack.c.bf16 %v6785, %v6784
    %s6791 = scalar_lea.vmem %s5, 224
    %v6792 = vld [vmem:[%s6791] sm:$0xf]
    %v6793 = vld [vmem:[%s6791 + $0x4] sm:$0xf]
    %v6794 = vld [vmem:[%s6791 + $0x8] sm:$0xf]
    %v6795 = vld [vmem:[%s6791 + $0xc] sm:$0xf]
    %v6796 = vld [vmem:[%s6791 + $0x10] sm:$0xf]
    %v6797 = vld [vmem:[%s6791 + $0x14] sm:$0xf]
    %v6798 = vld [vmem:[%s6791 + $0x18] sm:$0xf]
    %v6799 = vld [vmem:[%s6791 + $0x1c] sm:$0xf]
    %v6808 = vunpack.c.l.b16 %v6792
    %v6809 = vunpack.c.l.b16 %v6793
    %v6810 = vunpack.c.l.b16 %v6794
    %v6811 = vunpack.c.l.b16 %v6795
    %v6812 = vunpack.c.l.b16 %v6796
    %v6813 = vunpack.c.l.b16 %v6797
    %v6814 = vunpack.c.l.b16 %v6798
    %v6815 = vunpack.c.l.b16 %v6799
    %v6816 = vpack.c.b16 %v6809, %v6808
    %v6817 = vpack.c.b16 %v6811, %v6810
    %v6818 = vpack.c.b16 %v6813, %v6812
    %v6819 = vpack.c.b16 %v6815, %v6814
    %v6825 = vsel %vm836, %v6786, 0
    %v6828 = vsel %vm836, %v6787, 0
    %v6831 = vsel %vm836, %v6788, 0
    %v6834 = vsel %vm836, %v6789, 0
    %v6837 = vsel %vm836, %v6790, 0
    %6839 = vmatpush.bf16.msra.mxu0 0
    %6840 = vmatpush.bf16.msra.mxu0 0
    %6841 = vmatpush.bf16.msra.mxu0 0
    %6842 = vmatpush.bf16.msra.mxu0 0
    %6843 = vmatpush.bf16.msra.mxu0 %v6819
    %6844 = vmatpush.bf16.msra.mxu0 %v6818
    %6845 = vmatpush.bf16.msra.mxu0 %v6817
    %6846 = vmatpush.bf16.msra.mxu0 %v6816
    %6847 = vmatmul.bf16.gmra.mxu0 %v6825
    %v6848 = vpop.f32.mrf.mxu0
    %v6849 = vadd.f32 0.0, %v6848
    %v6850 = vpop.f32.mrf.mxu0
    %v6851 = vadd.f32 0.0, %v6850
    %6852 = vmatmul.bf16.gmra.mxu0 %v6828
    %v6853 = vpop.f32.mrf.mxu0
    %v6854 = vadd.f32 0.0, %v6853
    %v6855 = vpop.f32.mrf.mxu0
    %v6856 = vadd.f32 0.0, %v6855
    %6857 = vmatmul.bf16.gmra.mxu0 %v6831
    %v6858 = vpop.f32.mrf.mxu0
    %v6859 = vadd.f32 0.0, %v6858
    %v6860 = vpop.f32.mrf.mxu0
    %v6861 = vadd.f32 0.0, %v6860
    %6862 = vmatmul.bf16.gmra.mxu0 %v6834
    %v6863 = vpop.f32.mrf.mxu0
    %v6864 = vadd.f32 0.0, %v6863
    %v6865 = vpop.f32.mrf.mxu0
    %v6866 = vadd.f32 0.0, %v6865
    %6867 = vmatmul.bf16.gmra.mxu0 %v6837
    %v6868 = vpop.f32.mrf.mxu0
    %v6869 = vadd.f32 0.0, %v6868
    %v6870 = vpop.f32.mrf.mxu0
    %v6871 = vadd.f32 0.0, %v6870
    %6872 = vdwg.mxu0
    %v6873 = vadd.f32 %v6766, %v6849
    %v6874 = vadd.f32 %v6767, %v6851
    %v6875 = vadd.f32 %v6768, %v6854
    %v6876 = vadd.f32 %v6769, %v6856
    %v6877 = vadd.f32 %v6770, %v6859
    %v6878 = vadd.f32 %v6771, %v6861
    %v6879 = vadd.f32 %v6772, %v6864
    %v6880 = vadd.f32 %v6773, %v6866
    %v6881 = vadd.f32 %v6774, %v6869
    %v6882 = vadd.f32 %v6775, %v6871
    %v6883 = vld [vmem:[#allocation4 + $0xe] sm:$0xff]
    %v6884 = vld [vmem:[#allocation4 + $0x16] sm:$0xff]
    %v6885 = vld [vmem:[#allocation4 + $0x1e] sm:$0xff]
    %v6886 = vld [vmem:[#allocation4 + $0x26] sm:$0xff]
    %v6887 = vld [vmem:[#allocation4 + $0x2e] sm:$0xff]
    %v6888 = vld [vmem:[#allocation4 + $0x36] sm:$0xff]
    %v6889 = vld [vmem:[#allocation4 + $0x3e] sm:$0xff]
    %v6890 = vld [vmem:[#allocation4 + $0x46] sm:$0xff]
    %v6891 = vld [vmem:[#allocation4 + $0x4e] sm:$0xff]
    %v6892 = vld [vmem:[#allocation4 + $0x56] sm:$0xff]
    %v6893 = vpack.c.bf16 %v6884, %v6883
    %v6894 = vpack.c.bf16 %v6886, %v6885
    %v6895 = vpack.c.bf16 %v6888, %v6887
    %v6896 = vpack.c.bf16 %v6890, %v6889
    %v6897 = vpack.c.bf16 %v6892, %v6891
    %s6898 = scalar_lea.vmem %s5, 256
    %v6899 = vld [vmem:[%s6898] sm:$0xf]
    %v6900 = vld [vmem:[%s6898 + $0x4] sm:$0xf]
    %v6901 = vld [vmem:[%s6898 + $0x8] sm:$0xf]
    %v6902 = vld [vmem:[%s6898 + $0xc] sm:$0xf]
    %v6903 = vld [vmem:[%s6898 + $0x10] sm:$0xf]
    %v6904 = vld [vmem:[%s6898 + $0x14] sm:$0xf]
    %v6905 = vld [vmem:[%s6898 + $0x18] sm:$0xf]
    %v6906 = vld [vmem:[%s6898 + $0x1c] sm:$0xf]
    %v6915 = vunpack.c.l.b16 %v6899
    %v6916 = vunpack.c.l.b16 %v6900
    %v6917 = vunpack.c.l.b16 %v6901
    %v6918 = vunpack.c.l.b16 %v6902
    %v6919 = vunpack.c.l.b16 %v6903
    %v6920 = vunpack.c.l.b16 %v6904
    %v6921 = vunpack.c.l.b16 %v6905
    %v6922 = vunpack.c.l.b16 %v6906
    %v6923 = vpack.c.b16 %v6916, %v6915
    %v6924 = vpack.c.b16 %v6918, %v6917
    %v6925 = vpack.c.b16 %v6920, %v6919
    %v6926 = vpack.c.b16 %v6922, %v6921
    %v6932 = vsel %vm836, %v6893, 0
    %v6935 = vsel %vm836, %v6894, 0
    %v6938 = vsel %vm836, %v6895, 0
    %v6941 = vsel %vm836, %v6896, 0
    %v6944 = vsel %vm836, %v6897, 0
    %6946 = vmatpush.bf16.msra.mxu0 0
    %6947 = vmatpush.bf16.msra.mxu0 0
    %6948 = vmatpush.bf16.msra.mxu0 0
    %6949 = vmatpush.bf16.msra.mxu0 0
    %6950 = vmatpush.bf16.msra.mxu0 %v6926
    %6951 = vmatpush.bf16.msra.mxu0 %v6925
    %6952 = vmatpush.bf16.msra.mxu0 %v6924
    %6953 = vmatpush.bf16.msra.mxu0 %v6923
    %6954 = vmatmul.bf16.gmra.mxu0 %v6932
    %v6955 = vpop.f32.mrf.mxu0
    %v6956 = vadd.f32 0.0, %v6955
    %v6957 = vpop.f32.mrf.mxu0
    %v6958 = vadd.f32 0.0, %v6957
    %6959 = vmatmul.bf16.gmra.mxu0 %v6935
    %v6960 = vpop.f32.mrf.mxu0
    %v6961 = vadd.f32 0.0, %v6960
    %v6962 = vpop.f32.mrf.mxu0
    %v6963 = vadd.f32 0.0, %v6962
    %6964 = vmatmul.bf16.gmra.mxu0 %v6938
    %v6965 = vpop.f32.mrf.mxu0
    %v6966 = vadd.f32 0.0, %v6965
    %v6967 = vpop.f32.mrf.mxu0
    %v6968 = vadd.f32 0.0, %v6967
    %6969 = vmatmul.bf16.gmra.mxu0 %v6941
    %v6970 = vpop.f32.mrf.mxu0
    %v6971 = vadd.f32 0.0, %v6970
    %v6972 = vpop.f32.mrf.mxu0
    %v6973 = vadd.f32 0.0, %v6972
    %6974 = vmatmul.bf16.gmra.mxu0 %v6944
    %v6975 = vpop.f32.mrf.mxu0
    %v6976 = vadd.f32 0.0, %v6975
    %v6977 = vpop.f32.mrf.mxu0
    %v6978 = vadd.f32 0.0, %v6977
    %6979 = vdwg.mxu0
    %v6980 = vadd.f32 %v6873, %v6956
    %v6981 = vadd.f32 %v6874, %v6958
    %v6982 = vadd.f32 %v6875, %v6961
    %v6983 = vadd.f32 %v6876, %v6963
    %v6984 = vadd.f32 %v6877, %v6966
    %v6985 = vadd.f32 %v6878, %v6968
    %v6986 = vadd.f32 %v6879, %v6971
    %v6987 = vadd.f32 %v6880, %v6973
    %v6988 = vadd.f32 %v6881, %v6976
    %v6989 = vadd.f32 %v6882, %v6978
    %v6990 = vld [vmem:[%s6] sm:$0x1]
    %v6992 = vperm.slane %v6990, 0
    %v6994 = vadd.f32 %v6980, %v6992
    %v6995 = vadd.f32 %v6981, %v6992
    %v6996 = vadd.f32 %v6982, %v6992
    %v6997 = vadd.f32 %v6983, %v6992
    %v6998 = vadd.f32 %v6984, %v6992
    %v6999 = vadd.f32 %v6985, %v6992
    %v7000 = vadd.f32 %v6986, %v6992
    %v7001 = vadd.f32 %v6987, %v6992
    %v7002 = vadd.f32 %v6988, %v6992
    %v7003 = vadd.f32 %v6989, %v6992
    %vm7004 = vcmp.ge.f32.partialorder %v6994, 0.0
    %vm7005 = vcmp.ge.f32.partialorder %v6995, 0.0
    %vm7006 = vcmp.ge.f32.partialorder %v6996, 0.0
    %vm7007 = vcmp.ge.f32.partialorder %v6997, 0.0
    %vm7008 = vcmp.ge.f32.partialorder %v6998, 0.0
    %vm7009 = vcmp.ge.f32.partialorder %v6999, 0.0
    %vm7010 = vcmp.ge.f32.partialorder %v7000, 0.0
    %vm7011 = vcmp.ge.f32.partialorder %v7001, 0.0
    %vm7012 = vcmp.ge.f32.partialorder %v7002, 0.0
    %vm7013 = vcmp.ge.f32.partialorder %v7003, 0.0
    %v7014 = vmul.f32 %v6994, 0.01
    %v7015 = vmul.f32 %v6995, 0.01
    %v7016 = vmul.f32 %v6996, 0.01
    %v7017 = vmul.f32 %v6997, 0.01
    %v7018 = vmul.f32 %v6998, 0.01
    %v7019 = vmul.f32 %v6999, 0.01
    %v7020 = vmul.f32 %v7000, 0.01
    %v7021 = vmul.f32 %v7001, 0.01
    %v7022 = vmul.f32 %v7002, 0.01
    %v7023 = vmul.f32 %v7003, 0.01
    %v7024 = vsel %vm7004, %v6994, %v7014
    %v7025 = vsel %vm7005, %v6995, %v7015
    %v7026 = vsel %vm7006, %v6996, %v7016
    %v7027 = vsel %vm7007, %v6997, %v7017
    %v7028 = vsel %vm7008, %v6998, %v7018
    %v7029 = vsel %vm7009, %v6999, %v7019
    %v7030 = vsel %vm7010, %v7000, %v7020
    %v7031 = vsel %vm7011, %v7001, %v7021
    %v7032 = vsel %vm7012, %v7002, %v7022
    %v7033 = vsel %vm7013, %v7003, %v7023
    %7034 = vst [vmem:[#allocation5] sm:$0xff] %v7024
    %7035 = vst [vmem:[#allocation5 + $0x8] sm:$0xff] %v7025
    %7036 = vst [vmem:[#allocation5 + $0x10] sm:$0xff] %v7026
    %7037 = vst [vmem:[#allocation5 + $0x18] sm:$0xff] %v7027
    %7038 = vst [vmem:[#allocation5 + $0x20] sm:$0xff] %v7028
    %7039 = vst [vmem:[#allocation5 + $0x28] sm:$0xff] %v7029
    %7040 = vst [vmem:[#allocation5 + $0x30] sm:$0xff] %v7030
    %7041 = vst [vmem:[#allocation5 + $0x38] sm:$0xff] %v7031
    %7042 = vst [vmem:[#allocation5 + $0x40] sm:$0xff] %v7032
    %7043 = vst [vmem:[#allocation5 + $0x48] sm:$0xff] %v7033
    %v7044 = vld [vmem:[#allocation5] sm:$0xff]
    %v7045 = vld [vmem:[#allocation5 + $0x8] sm:$0xff]
    %v7046 = vld [vmem:[#allocation5 + $0x10] sm:$0xff]
    %v7047 = vld [vmem:[#allocation5 + $0x18] sm:$0xff]
    %v7048 = vld [vmem:[#allocation5 + $0x20] sm:$0xff]
    %v7049 = vld [vmem:[#allocation5 + $0x28] sm:$0xff]
    %v7050 = vld [vmem:[#allocation5 + $0x30] sm:$0xff]
    %v7051 = vld [vmem:[#allocation5 + $0x38] sm:$0xff]
    %v7052 = vld [vmem:[#allocation5 + $0x40] sm:$0xff]
    %v7053 = vld [vmem:[#allocation5 + $0x1] sm:$0xff]
    %v7054 = vld [vmem:[#allocation5 + $0x9] sm:$0xff]
    %v7055 = vld [vmem:[#allocation5 + $0x11] sm:$0xff]
    %v7056 = vld [vmem:[#allocation5 + $0x19] sm:$0xff]
    %v7057 = vld [vmem:[#allocation5 + $0x21] sm:$0xff]
    %v7058 = vld [vmem:[#allocation5 + $0x29] sm:$0xff]
    %v7059 = vld [vmem:[#allocation5 + $0x31] sm:$0xff]
    %v7060 = vld [vmem:[#allocation5 + $0x39] sm:$0xff]
    %v7061 = vld [vmem:[#allocation5 + $0x41] sm:$0xff]
    %v7062 = vmax.f32 %v7044, %v7053
    %v7063 = vmax.f32 %v7045, %v7054
    %v7064 = vmax.f32 %v7046, %v7055
    %v7065 = vmax.f32 %v7047, %v7056
    %v7066 = vmax.f32 %v7048, %v7057
    %v7067 = vmax.f32 %v7049, %v7058
    %v7068 = vmax.f32 %v7050, %v7059
    %v7069 = vmax.f32 %v7051, %v7060
    %v7070 = vmax.f32 %v7052, %v7061
    %v7071 = vld [vmem:[#allocation5 + $0x6] sm:$0xff]
    %v7072 = vld [vmem:[#allocation5 + $0xe] sm:$0xff]
    %v7073 = vld [vmem:[#allocation5 + $0x16] sm:$0xff]
    %v7074 = vld [vmem:[#allocation5 + $0x1e] sm:$0xff]
    %v7075 = vld [vmem:[#allocation5 + $0x26] sm:$0xff]
    %v7076 = vld [vmem:[#allocation5 + $0x2e] sm:$0xff]
    %v7077 = vld [vmem:[#allocation5 + $0x36] sm:$0xff]
    %v7078 = vld [vmem:[#allocation5 + $0x3e] sm:$0xff]
    %v7079 = vld [vmem:[#allocation5 + $0x46] sm:$0xff]
    %v7080 = vld [vmem:[#allocation5 + $0x7] sm:$0xff]
    %v7081 = vld [vmem:[#allocation5 + $0xf] sm:$0xff]
    %v7082 = vld [vmem:[#allocation5 + $0x17] sm:$0xff]
    %v7083 = vld [vmem:[#allocation5 + $0x1f] sm:$0xff]
    %v7084 = vld [vmem:[#allocation5 + $0x27] sm:$0xff]
    %v7085 = vld [vmem:[#allocation5 + $0x2f] sm:$0xff]
    %v7086 = vld [vmem:[#allocation5 + $0x37] sm:$0xff]
    %v7087 = vld [vmem:[#allocation5 + $0x3f] sm:$0xff]
    %v7088 = vld [vmem:[#allocation5 + $0x47] sm:$0xff]
    %v7089 = vmax.f32 %v7071, %v7080
    %v7090 = vmax.f32 %v7072, %v7081
    %v7091 = vmax.f32 %v7073, %v7082
    %v7092 = vmax.f32 %v7074, %v7083
    %v7093 = vmax.f32 %v7075, %v7084
    %v7094 = vmax.f32 %v7076, %v7085
    %v7095 = vmax.f32 %v7077, %v7086
    %v7096 = vmax.f32 %v7078, %v7087
    %v7097 = vmax.f32 %v7079, %v7088
    %v7098 = vmax.f32 %v7062, %v7089
    %v7099 = vmax.f32 %v7063, %v7090
    %v7100 = vmax.f32 %v7064, %v7091
    %v7101 = vmax.f32 %v7065, %v7092
    %v7102 = vmax.f32 %v7066, %v7093
    %v7103 = vmax.f32 %v7067, %v7094
    %v7104 = vmax.f32 %v7068, %v7095
    %v7105 = vmax.f32 %v7069, %v7096
    %v7106 = vmax.f32 %v7070, %v7097
    %v7107 = vpack.c.bf16 %v7099, %v7098
    %v7108 = vpack.c.bf16 %v7101, %v7100
    %v7109 = vpack.c.bf16 %v7103, %v7102
    %v7110 = vpack.c.bf16 %v7105, %v7104
    %v7111 = vpack.c.bf16 %v7106, %v7106
    %v7112 = vld [vmem:[%s8] sm:$0x1]
    %vm7113 = vcmask 588800
    %v7115 = vsel %vm7113, %v7112, 0
    %v7118 = vsel %vm424, %v7111, 0
    %7120 = vmatpush.bf16.msra.mxu0 0
    %7121 = vmatpush.bf16.msra.mxu0 0
    %7122 = vmatpush.bf16.msra.mxu0 0
    %7123 = vmatpush.bf16.msra.mxu0 %v7118
    %7124 = vmatpush.bf16.msra.mxu0 %v7110
    %7125 = vmatpush.bf16.msra.mxu0 %v7109
    %7126 = vmatpush.bf16.msra.mxu0 %v7108
    %7127 = vmatpush.bf16.msra.mxu0 %v7107
    %7128 = vmatmul.bf16.gmra.mxu0 %v7115
    %v7129 = vpop.f32.mrf.mxu0
    %v7130 = vadd.f32 0.0, %v7129
    %v7131 = vpop.f32.mrf.mxu0
    %7132 = vdwg.mxu0
    %v7133 = vpack.c.bf16 %v7130, %v7130
    %v7134 = vld [vmem:[%s9] sm:$0xff]
    %v7135 = vld [vmem:[%s9 + $0x8] sm:$0xff]
    %v7136 = vld [vmem:[%s9 + $0x10] sm:$0xff]
    %v7137 = vld [vmem:[%s9 + $0x18] sm:$0xff]
    %v7138 = vld [vmem:[%s9 + $0x20] sm:$0xff]
    %v7139 = vld [vmem:[%s9 + $0x28] sm:$0xff]
    %v7140 = vld [vmem:[%s9 + $0x30] sm:$0xff]
    %v7141 = vld [vmem:[%s9 + $0x38] sm:$0xff]
    %v7142 = vld [vmem:[%s9 + $0x40] sm:$0xff]
    %v7143 = vld [vmem:[%s9 + $0x48] sm:$0xff]
    %v7144 = vld [vmem:[%s9 + $0x50] sm:$0xff]
    %v7145 = vld [vmem:[%s9 + $0x58] sm:$0xff]
    %v7146 = vld [vmem:[%s9 + $0x60] sm:$0xff]
    %v7147 = vld [vmem:[%s9 + $0x68] sm:$0xff]
    %v7148 = vld [vmem:[%s9 + $0x70] sm:$0xff]
    %v7149 = vld [vmem:[%s9 + $0x78] sm:$0xff]
    %s7150 = scalar_lea.vmem %s8, 1
    %v7151 = vld [vmem:[%s7150] sm:$0x1]
    %v7153 = vsel %vm7113, %v7151, 0
    %7155 = vmatpush.bf16.msra.mxu0 0
    %7156 = vmatpush.bf16.msra.mxu0 0
    %7157 = vmatpush.bf16.msra.mxu0 0
    %7158 = vmatpush.bf16.msra.mxu0 %v7118
    %7159 = vmatpush.bf16.msra.mxu0 %v7110
    %7160 = vmatpush.bf16.msra.mxu0 %v7109
    %7161 = vmatpush.bf16.msra.mxu0 %v7108
    %7162 = vmatpush.bf16.msra.mxu0 %v7107
    %7163 = vmatmul.bf16.gmra.mxu0 %v7153
    %v7164 = vpop.f32.mrf.mxu0
    %v7165 = vadd.f32 0.0, %v7164
    %v7166 = vpop.f32.mrf.mxu0
    %7167 = vdwg.mxu0
    %v7168 = vpack.c.bf16 %v7165, %v7165
    %s7169 = scalar_lea.vmem %s9, 128
    %v7170 = vld [vmem:[%s7169] sm:$0xff]
    %v7171 = vld [vmem:[%s7169 + $0x8] sm:$0xff]
    %v7172 = vld [vmem:[%s7169 + $0x10] sm:$0xff]
    %v7173 = vld [vmem:[%s7169 + $0x18] sm:$0xff]
    %v7174 = vld [vmem:[%s7169 + $0x20] sm:$0xff]
    %v7175 = vld [vmem:[%s7169 + $0x28] sm:$0xff]
    %v7176 = vld [vmem:[%s7169 + $0x30] sm:$0xff]
    %v7177 = vld [vmem:[%s7169 + $0x38] sm:$0xff]
    %v7178 = vld [vmem:[%s7169 + $0x40] sm:$0xff]
    %v7179 = vld [vmem:[%s7169 + $0x48] sm:$0xff]
    %v7180 = vld [vmem:[%s7169 + $0x50] sm:$0xff]
    %v7181 = vld [vmem:[%s7169 + $0x58] sm:$0xff]
    %v7182 = vld [vmem:[%s7169 + $0x60] sm:$0xff]
    %v7183 = vld [vmem:[%s7169 + $0x68] sm:$0xff]
    %v7184 = vld [vmem:[%s7169 + $0x70] sm:$0xff]
    %v7185 = vld [vmem:[%s7169 + $0x78] sm:$0xff]
    %v7202 = vunpack.c.l.b16 %v7170
    %v7203 = vunpack.c.h.b16 %v7170
    %v7204 = vunpack.c.l.b16 %v7171
    %v7205 = vunpack.c.h.b16 %v7171
    %v7206 = vunpack.c.l.b16 %v7172
    %v7207 = vunpack.c.h.b16 %v7172
    %v7208 = vunpack.c.l.b16 %v7173
    %v7209 = vunpack.c.h.b16 %v7173
    %v7210 = vunpack.c.l.b16 %v7174
    %v7211 = vunpack.c.h.b16 %v7174
    %v7212 = vunpack.c.l.b16 %v7175
    %v7213 = vunpack.c.h.b16 %v7175
    %v7214 = vunpack.c.l.b16 %v7176
    %v7215 = vunpack.c.h.b16 %v7176
    %v7216 = vunpack.c.l.b16 %v7177
    %v7217 = vunpack.c.h.b16 %v7177
    %v7218 = vunpack.c.l.b16 %v7178
    %v7219 = vunpack.c.h.b16 %v7178
    %v7220 = vunpack.c.l.b16 %v7179
    %v7221 = vunpack.c.h.b16 %v7179
    %v7222 = vunpack.c.l.b16 %v7180
    %v7223 = vunpack.c.h.b16 %v7180
    %v7224 = vunpack.c.l.b16 %v7181
    %v7225 = vunpack.c.h.b16 %v7181
    %v7226 = vunpack.c.l.b16 %v7182
    %v7227 = vunpack.c.h.b16 %v7182
    %v7228 = vunpack.c.l.b16 %v7183
    %v7229 = vunpack.c.h.b16 %v7183
    %v7230 = vunpack.c.l.b16 %v7184
    %v7231 = vunpack.c.h.b16 %v7184
    %v7232 = vunpack.c.l.b16 %v7185
    %v7233 = vunpack.c.h.b16 %v7185
    %v7234 = vpack.c.b16 %v7204, %v7202
    %v7235 = vpack.c.b16 %v7205, %v7203
    %v7236 = vpack.c.b16 %v7208, %v7206
    %v7237 = vpack.c.b16 %v7209, %v7207
    %v7238 = vpack.c.b16 %v7212, %v7210
    %v7239 = vpack.c.b16 %v7213, %v7211
    %v7240 = vpack.c.b16 %v7216, %v7214
    %v7241 = vpack.c.b16 %v7217, %v7215
    %v7242 = vpack.c.b16 %v7220, %v7218
    %v7243 = vpack.c.b16 %v7221, %v7219
    %v7244 = vpack.c.b16 %v7224, %v7222
    %v7245 = vpack.c.b16 %v7225, %v7223
    %v7246 = vpack.c.b16 %v7228, %v7226
    %v7247 = vpack.c.b16 %v7229, %v7227
    %v7248 = vpack.c.b16 %v7232, %v7230
    %v7249 = vpack.c.b16 %v7233, %v7231
    %7266 = vmatpush.bf16.msra.mxu0 %v7248
    %7267 = vmatpush.bf16.msra.mxu0 %v7246
    %7268 = vmatpush.bf16.msra.mxu0 %v7244
    %7269 = vmatpush.bf16.msra.mxu0 %v7242
    %7270 = vmatpush.bf16.msra.mxu0 %v7240
    %7271 = vmatpush.bf16.msra.mxu0 %v7238
    %7272 = vmatpush.bf16.msra.mxu0 %v7236
    %7273 = vmatpush.bf16.msra.mxu0 %v7234
    %7274 = vmatmul.bf16.gmra.mxu0 %v7168
    %v7275 = vpop.f32.mrf.mxu0
    %v7276 = vadd.f32 0.0, %v7275
    %v7277 = vpop.f32.mrf.mxu0
    %7278 = vdwg.mxu0
    %7279 = vmatpush.bf16.msra.mxu0 %v7249
    %7280 = vmatpush.bf16.msra.mxu0 %v7247
    %7281 = vmatpush.bf16.msra.mxu0 %v7245
    %7282 = vmatpush.bf16.msra.mxu0 %v7243
    %7283 = vmatpush.bf16.msra.mxu0 %v7241
    %7284 = vmatpush.bf16.msra.mxu0 %v7239
    %7285 = vmatpush.bf16.msra.mxu0 %v7237
    %7286 = vmatpush.bf16.msra.mxu0 %v7235
    %7287 = vmatmul.bf16.gmra.mxu0 %v7168
    %v7288 = vpop.f32.mrf.mxu0
    %v7289 = vadd.f32 0.0, %v7288
    %v7290 = vpop.f32.mrf.mxu0
    %7291 = vdwg.mxu0
    %v7308 = vunpack.c.l.b16 %v7134
    %v7309 = vunpack.c.h.b16 %v7134
    %v7310 = vunpack.c.l.b16 %v7135
    %v7311 = vunpack.c.h.b16 %v7135
    %v7312 = vunpack.c.l.b16 %v7136
    %v7313 = vunpack.c.h.b16 %v7136
    %v7314 = vunpack.c.l.b16 %v7137
    %v7315 = vunpack.c.h.b16 %v7137
    %v7316 = vunpack.c.l.b16 %v7138
    %v7317 = vunpack.c.h.b16 %v7138
    %v7318 = vunpack.c.l.b16 %v7139
    %v7319 = vunpack.c.h.b16 %v7139
    %v7320 = vunpack.c.l.b16 %v7140
    %v7321 = vunpack.c.h.b16 %v7140
    %v7322 = vunpack.c.l.b16 %v7141
    %v7323 = vunpack.c.h.b16 %v7141
    %v7324 = vunpack.c.l.b16 %v7142
    %v7325 = vunpack.c.h.b16 %v7142
    %v7326 = vunpack.c.l.b16 %v7143
    %v7327 = vunpack.c.h.b16 %v7143
    %v7328 = vunpack.c.l.b16 %v7144
    %v7329 = vunpack.c.h.b16 %v7144
    %v7330 = vunpack.c.l.b16 %v7145
    %v7331 = vunpack.c.h.b16 %v7145
    %v7332 = vunpack.c.l.b16 %v7146
    %v7333 = vunpack.c.h.b16 %v7146
    %v7334 = vunpack.c.l.b16 %v7147
    %v7335 = vunpack.c.h.b16 %v7147
    %v7336 = vunpack.c.l.b16 %v7148
    %v7337 = vunpack.c.h.b16 %v7148
    %v7338 = vunpack.c.l.b16 %v7149
    %v7339 = vunpack.c.h.b16 %v7149
    %v7340 = vpack.c.b16 %v7310, %v7308
    %v7341 = vpack.c.b16 %v7311, %v7309
    %v7342 = vpack.c.b16 %v7314, %v7312
    %v7343 = vpack.c.b16 %v7315, %v7313
    %v7344 = vpack.c.b16 %v7318, %v7316
    %v7345 = vpack.c.b16 %v7319, %v7317
    %v7346 = vpack.c.b16 %v7322, %v7320
    %v7347 = vpack.c.b16 %v7323, %v7321
    %v7348 = vpack.c.b16 %v7326, %v7324
    %v7349 = vpack.c.b16 %v7327, %v7325
    %v7350 = vpack.c.b16 %v7330, %v7328
    %v7351 = vpack.c.b16 %v7331, %v7329
    %v7352 = vpack.c.b16 %v7334, %v7332
    %v7353 = vpack.c.b16 %v7335, %v7333
    %v7354 = vpack.c.b16 %v7338, %v7336
    %v7355 = vpack.c.b16 %v7339, %v7337
    %7372 = vmatpush.bf16.msra.mxu0 %v7354
    %7373 = vmatpush.bf16.msra.mxu0 %v7352
    %7374 = vmatpush.bf16.msra.mxu0 %v7350
    %7375 = vmatpush.bf16.msra.mxu0 %v7348
    %7376 = vmatpush.bf16.msra.mxu0 %v7346
    %7377 = vmatpush.bf16.msra.mxu0 %v7344
    %7378 = vmatpush.bf16.msra.mxu0 %v7342
    %7379 = vmatpush.bf16.msra.mxu0 %v7340
    %7380 = vmatmul.bf16.gmra.mxu0 %v7133
    %v7381 = vpop.f32.mrf.mxu0
    %v7382 = vadd.f32 %v7276, %v7381
    %v7383 = vpop.f32.mrf.mxu0
    %7384 = vdwg.mxu0
    %7385 = vmatpush.bf16.msra.mxu0 %v7355
    %7386 = vmatpush.bf16.msra.mxu0 %v7353
    %7387 = vmatpush.bf16.msra.mxu0 %v7351
    %7388 = vmatpush.bf16.msra.mxu0 %v7349
    %7389 = vmatpush.bf16.msra.mxu0 %v7347
    %7390 = vmatpush.bf16.msra.mxu0 %v7345
    %7391 = vmatpush.bf16.msra.mxu0 %v7343
    %7392 = vmatpush.bf16.msra.mxu0 %v7341
    %7393 = vmatmul.bf16.gmra.mxu0 %v7133
    %v7394 = vpop.f32.mrf.mxu0
    %v7395 = vadd.f32 %v7289, %v7394
    %v7396 = vpop.f32.mrf.mxu0
    %7397 = vdwg.mxu0
    %s7398 = scalar_lea.vmem %s8, 2
    %v7399 = vld [vmem:[%s7398] sm:$0x1]
    %v7401 = vsel %vm7113, %v7399, 0
    %7403 = vmatpush.bf16.msra.mxu0 0
    %7404 = vmatpush.bf16.msra.mxu0 0
    %7405 = vmatpush.bf16.msra.mxu0 0
    %7406 = vmatpush.bf16.msra.mxu0 %v7118
    %7407 = vmatpush.bf16.msra.mxu0 %v7110
    %7408 = vmatpush.bf16.msra.mxu0 %v7109
    %7409 = vmatpush.bf16.msra.mxu0 %v7108
    %7410 = vmatpush.bf16.msra.mxu0 %v7107
    %7411 = vmatmul.bf16.gmra.mxu0 %v7401
    %v7412 = vpop.f32.mrf.mxu0
    %v7413 = vadd.f32 0.0, %v7412
    %v7414 = vpop.f32.mrf.mxu0
    %7415 = vdwg.mxu0
    %v7416 = vpack.c.bf16 %v7413, %v7413
    %s7417 = scalar_lea.vmem %s9, 256
    %v7418 = vld [vmem:[%s7417] sm:$0xff]
    %v7419 = vld [vmem:[%s7417 + $0x8] sm:$0xff]
    %v7420 = vld [vmem:[%s7417 + $0x10] sm:$0xff]
    %v7421 = vld [vmem:[%s7417 + $0x18] sm:$0xff]
    %v7422 = vld [vmem:[%s7417 + $0x20] sm:$0xff]
    %v7423 = vld [vmem:[%s7417 + $0x28] sm:$0xff]
    %v7424 = vld [vmem:[%s7417 + $0x30] sm:$0xff]
    %v7425 = vld [vmem:[%s7417 + $0x38] sm:$0xff]
    %v7426 = vld [vmem:[%s7417 + $0x40] sm:$0xff]
    %v7427 = vld [vmem:[%s7417 + $0x48] sm:$0xff]
    %v7428 = vld [vmem:[%s7417 + $0x50] sm:$0xff]
    %v7429 = vld [vmem:[%s7417 + $0x58] sm:$0xff]
    %v7430 = vld [vmem:[%s7417 + $0x60] sm:$0xff]
    %v7431 = vld [vmem:[%s7417 + $0x68] sm:$0xff]
    %v7432 = vld [vmem:[%s7417 + $0x70] sm:$0xff]
    %v7433 = vld [vmem:[%s7417 + $0x78] sm:$0xff]
    %v7450 = vunpack.c.l.b16 %v7418
    %v7451 = vunpack.c.h.b16 %v7418
    %v7452 = vunpack.c.l.b16 %v7419
    %v7453 = vunpack.c.h.b16 %v7419
    %v7454 = vunpack.c.l.b16 %v7420
    %v7455 = vunpack.c.h.b16 %v7420
    %v7456 = vunpack.c.l.b16 %v7421
    %v7457 = vunpack.c.h.b16 %v7421
    %v7458 = vunpack.c.l.b16 %v7422
    %v7459 = vunpack.c.h.b16 %v7422
    %v7460 = vunpack.c.l.b16 %v7423
    %v7461 = vunpack.c.h.b16 %v7423
    %v7462 = vunpack.c.l.b16 %v7424
    %v7463 = vunpack.c.h.b16 %v7424
    %v7464 = vunpack.c.l.b16 %v7425
    %v7465 = vunpack.c.h.b16 %v7425
    %v7466 = vunpack.c.l.b16 %v7426
    %v7467 = vunpack.c.h.b16 %v7426
    %v7468 = vunpack.c.l.b16 %v7427
    %v7469 = vunpack.c.h.b16 %v7427
    %v7470 = vunpack.c.l.b16 %v7428
    %v7471 = vunpack.c.h.b16 %v7428
    %v7472 = vunpack.c.l.b16 %v7429
    %v7473 = vunpack.c.h.b16 %v7429
    %v7474 = vunpack.c.l.b16 %v7430
    %v7475 = vunpack.c.h.b16 %v7430
    %v7476 = vunpack.c.l.b16 %v7431
    %v7477 = vunpack.c.h.b16 %v7431
    %v7478 = vunpack.c.l.b16 %v7432
    %v7479 = vunpack.c.h.b16 %v7432
    %v7480 = vunpack.c.l.b16 %v7433
    %v7481 = vunpack.c.h.b16 %v7433
    %v7482 = vpack.c.b16 %v7452, %v7450
    %v7483 = vpack.c.b16 %v7453, %v7451
    %v7484 = vpack.c.b16 %v7456, %v7454
    %v7485 = vpack.c.b16 %v7457, %v7455
    %v7486 = vpack.c.b16 %v7460, %v7458
    %v7487 = vpack.c.b16 %v7461, %v7459
    %v7488 = vpack.c.b16 %v7464, %v7462
    %v7489 = vpack.c.b16 %v7465, %v7463
    %v7490 = vpack.c.b16 %v7468, %v7466
    %v7491 = vpack.c.b16 %v7469, %v7467
    %v7492 = vpack.c.b16 %v7472, %v7470
    %v7493 = vpack.c.b16 %v7473, %v7471
    %v7494 = vpack.c.b16 %v7476, %v7474
    %v7495 = vpack.c.b16 %v7477, %v7475
    %v7496 = vpack.c.b16 %v7480, %v7478
    %v7497 = vpack.c.b16 %v7481, %v7479
    %7514 = vmatpush.bf16.msra.mxu0 %v7496
    %7515 = vmatpush.bf16.msra.mxu0 %v7494
    %7516 = vmatpush.bf16.msra.mxu0 %v7492
    %7517 = vmatpush.bf16.msra.mxu0 %v7490
    %7518 = vmatpush.bf16.msra.mxu0 %v7488
    %7519 = vmatpush.bf16.msra.mxu0 %v7486
    %7520 = vmatpush.bf16.msra.mxu0 %v7484
    %7521 = vmatpush.bf16.msra.mxu0 %v7482
    %7522 = vmatmul.bf16.gmra.mxu0 %v7416
    %v7523 = vpop.f32.mrf.mxu0
    %v7524 = vadd.f32 0.0, %v7523
    %v7525 = vpop.f32.mrf.mxu0
    %7526 = vdwg.mxu0
    %7527 = vmatpush.bf16.msra.mxu0 %v7497
    %7528 = vmatpush.bf16.msra.mxu0 %v7495
    %7529 = vmatpush.bf16.msra.mxu0 %v7493
    %7530 = vmatpush.bf16.msra.mxu0 %v7491
    %7531 = vmatpush.bf16.msra.mxu0 %v7489
    %7532 = vmatpush.bf16.msra.mxu0 %v7487
    %7533 = vmatpush.bf16.msra.mxu0 %v7485
    %7534 = vmatpush.bf16.msra.mxu0 %v7483
    %7535 = vmatmul.bf16.gmra.mxu0 %v7416
    %v7536 = vpop.f32.mrf.mxu0
    %v7537 = vadd.f32 0.0, %v7536
    %v7538 = vpop.f32.mrf.mxu0
    %7539 = vdwg.mxu0
    %v7540 = vadd.f32 %v7382, %v7524
    %v7541 = vadd.f32 %v7395, %v7537
    %s7542 = scalar_lea.vmem %s8, 3
    %v7543 = vld [vmem:[%s7542] sm:$0x1]
    %v7545 = vsel %vm7113, %v7543, 0
    %7547 = vmatpush.bf16.msra.mxu0 0
    %7548 = vmatpush.bf16.msra.mxu0 0
    %7549 = vmatpush.bf16.msra.mxu0 0
    %7550 = vmatpush.bf16.msra.mxu0 %v7118
    %7551 = vmatpush.bf16.msra.mxu0 %v7110
    %7552 = vmatpush.bf16.msra.mxu0 %v7109
    %7553 = vmatpush.bf16.msra.mxu0 %v7108
    %7554 = vmatpush.bf16.msra.mxu0 %v7107
    %7555 = vmatmul.bf16.gmra.mxu0 %v7545
    %v7556 = vpop.f32.mrf.mxu0
    %v7557 = vadd.f32 0.0, %v7556
    %v7558 = vpop.f32.mrf.mxu0
    %7559 = vdwg.mxu0
    %v7560 = vpack.c.bf16 %v7557, %v7557
    %s7561 = scalar_lea.vmem %s9, 384
    %v7562 = vld [vmem:[%s7561] sm:$0xff]
    %v7563 = vld [vmem:[%s7561 + $0x8] sm:$0xff]
    %v7564 = vld [vmem:[%s7561 + $0x10] sm:$0xff]
    %v7565 = vld [vmem:[%s7561 + $0x18] sm:$0xff]
    %v7566 = vld [vmem:[%s7561 + $0x20] sm:$0xff]
    %v7567 = vld [vmem:[%s7561 + $0x28] sm:$0xff]
    %v7568 = vld [vmem:[%s7561 + $0x30] sm:$0xff]
    %v7569 = vld [vmem:[%s7561 + $0x38] sm:$0xff]
    %v7570 = vld [vmem:[%s7561 + $0x40] sm:$0xff]
    %v7571 = vld [vmem:[%s7561 + $0x48] sm:$0xff]
    %v7572 = vld [vmem:[%s7561 + $0x50] sm:$0xff]
    %v7573 = vld [vmem:[%s7561 + $0x58] sm:$0xff]
    %v7574 = vld [vmem:[%s7561 + $0x60] sm:$0xff]
    %v7575 = vld [vmem:[%s7561 + $0x68] sm:$0xff]
    %v7576 = vld [vmem:[%s7561 + $0x70] sm:$0xff]
    %v7577 = vld [vmem:[%s7561 + $0x78] sm:$0xff]
    %v7594 = vunpack.c.l.b16 %v7562
    %v7595 = vunpack.c.h.b16 %v7562
    %v7596 = vunpack.c.l.b16 %v7563
    %v7597 = vunpack.c.h.b16 %v7563
    %v7598 = vunpack.c.l.b16 %v7564
    %v7599 = vunpack.c.h.b16 %v7564
    %v7600 = vunpack.c.l.b16 %v7565
    %v7601 = vunpack.c.h.b16 %v7565
    %v7602 = vunpack.c.l.b16 %v7566
    %v7603 = vunpack.c.h.b16 %v7566
    %v7604 = vunpack.c.l.b16 %v7567
    %v7605 = vunpack.c.h.b16 %v7567
    %v7606 = vunpack.c.l.b16 %v7568
    %v7607 = vunpack.c.h.b16 %v7568
    %v7608 = vunpack.c.l.b16 %v7569
    %v7609 = vunpack.c.h.b16 %v7569
    %v7610 = vunpack.c.l.b16 %v7570
    %v7611 = vunpack.c.h.b16 %v7570
    %v7612 = vunpack.c.l.b16 %v7571
    %v7613 = vunpack.c.h.b16 %v7571
    %v7614 = vunpack.c.l.b16 %v7572
    %v7615 = vunpack.c.h.b16 %v7572
    %v7616 = vunpack.c.l.b16 %v7573
    %v7617 = vunpack.c.h.b16 %v7573
    %v7618 = vunpack.c.l.b16 %v7574
    %v7619 = vunpack.c.h.b16 %v7574
    %v7620 = vunpack.c.l.b16 %v7575
    %v7621 = vunpack.c.h.b16 %v7575
    %v7622 = vunpack.c.l.b16 %v7576
    %v7623 = vunpack.c.h.b16 %v7576
    %v7624 = vunpack.c.l.b16 %v7577
    %v7625 = vunpack.c.h.b16 %v7577
    %v7626 = vpack.c.b16 %v7596, %v7594
    %v7627 = vpack.c.b16 %v7597, %v7595
    %v7628 = vpack.c.b16 %v7600, %v7598
    %v7629 = vpack.c.b16 %v7601, %v7599
    %v7630 = vpack.c.b16 %v7604, %v7602
    %v7631 = vpack.c.b16 %v7605, %v7603
    %v7632 = vpack.c.b16 %v7608, %v7606
    %v7633 = vpack.c.b16 %v7609, %v7607
    %v7634 = vpack.c.b16 %v7612, %v7610
    %v7635 = vpack.c.b16 %v7613, %v7611
    %v7636 = vpack.c.b16 %v7616, %v7614
    %v7637 = vpack.c.b16 %v7617, %v7615
    %v7638 = vpack.c.b16 %v7620, %v7618
    %v7639 = vpack.c.b16 %v7621, %v7619
    %v7640 = vpack.c.b16 %v7624, %v7622
    %v7641 = vpack.c.b16 %v7625, %v7623
    %7658 = vmatpush.bf16.msra.mxu0 %v7640
    %7659 = vmatpush.bf16.msra.mxu0 %v7638
    %7660 = vmatpush.bf16.msra.mxu0 %v7636
    %7661 = vmatpush.bf16.msra.mxu0 %v7634
    %7662 = vmatpush.bf16.msra.mxu0 %v7632
    %7663 = vmatpush.bf16.msra.mxu0 %v7630
    %7664 = vmatpush.bf16.msra.mxu0 %v7628
    %7665 = vmatpush.bf16.msra.mxu0 %v7626
    %7666 = vmatmul.bf16.gmra.mxu0 %v7560
    %v7667 = vpop.f32.mrf.mxu0
    %v7668 = vadd.f32 0.0, %v7667
    %v7669 = vpop.f32.mrf.mxu0
    %7670 = vdwg.mxu0
    %7671 = vmatpush.bf16.msra.mxu0 %v7641
    %7672 = vmatpush.bf16.msra.mxu0 %v7639
    %7673 = vmatpush.bf16.msra.mxu0 %v7637
    %7674 = vmatpush.bf16.msra.mxu0 %v7635
    %7675 = vmatpush.bf16.msra.mxu0 %v7633
    %7676 = vmatpush.bf16.msra.mxu0 %v7631
    %7677 = vmatpush.bf16.msra.mxu0 %v7629
    %7678 = vmatpush.bf16.msra.mxu0 %v7627
    %7679 = vmatmul.bf16.gmra.mxu0 %v7560
    %v7680 = vpop.f32.mrf.mxu0
    %v7681 = vadd.f32 0.0, %v7680
    %v7682 = vpop.f32.mrf.mxu0
    %7683 = vdwg.mxu0
    %v7684 = vadd.f32 %v7540, %v7668
    %v7685 = vadd.f32 %v7541, %v7681
    %v7686 = vld [vmem:[%s10] sm:$0x3]
    %v7688 = vperm.slane %v7686, 0
    %v7689 = vperm.slane %v7686, 1
    %v7692 = vadd.f32 %v7684, %v7688
    %v7693 = vadd.f32 %v7685, %v7689
    %vm7694 = vcmp.ge.f32.partialorder %v7692, 0.0
    %vm7695 = vcmp.ge.f32.partialorder %v7693, 0.0
    %v7696 = vmul.f32 %v7692, 0.01
    %v7697 = vmul.f32 %v7693, 0.01
    %v7698 = vsel %vm7694, %v7692, %v7696
    %v7699 = vsel %vm7695, %v7693, %v7697
    %v7700 = vpack.c.bf16 %v7698, %v7698
    %v7701 = vpack.c.bf16 %v7699, %v7699
    %v7702 = vld [vmem:[%s11] sm:$0xf]
    %v7703 = vld [vmem:[%s11 + $0x4] sm:$0xf]
    %v7704 = vld [vmem:[%s11 + $0x8] sm:$0xf]
    %v7705 = vld [vmem:[%s11 + $0xc] sm:$0xf]
    %v7706 = vld [vmem:[%s11 + $0x10] sm:$0xf]
    %v7707 = vld [vmem:[%s11 + $0x14] sm:$0xf]
    %v7708 = vld [vmem:[%s11 + $0x18] sm:$0xf]
    %v7709 = vld [vmem:[%s11 + $0x1c] sm:$0xf]
    %v7710 = vld [vmem:[%s11 + $0x20] sm:$0xf]
    %v7711 = vld [vmem:[%s11 + $0x24] sm:$0xf]
    %v7712 = vld [vmem:[%s11 + $0x28] sm:$0xf]
    %v7713 = vld [vmem:[%s11 + $0x2c] sm:$0xf]
    %v7714 = vld [vmem:[%s11 + $0x30] sm:$0xf]
    %v7715 = vld [vmem:[%s11 + $0x34] sm:$0xf]
    %v7716 = vld [vmem:[%s11 + $0x38] sm:$0xf]
    %v7717 = vld [vmem:[%s11 + $0x3c] sm:$0xf]
    %v7718 = vld [vmem:[%s11 + $0x40] sm:$0xf]
    %v7719 = vld [vmem:[%s11 + $0x44] sm:$0xf]
    %v7720 = vld [vmem:[%s11 + $0x48] sm:$0xf]
    %v7721 = vld [vmem:[%s11 + $0x4c] sm:$0xf]
    %v7722 = vld [vmem:[%s11 + $0x50] sm:$0xf]
    %v7723 = vld [vmem:[%s11 + $0x54] sm:$0xf]
    %v7724 = vld [vmem:[%s11 + $0x58] sm:$0xf]
    %v7725 = vld [vmem:[%s11 + $0x5c] sm:$0xf]
    %v7726 = vld [vmem:[%s11 + $0x60] sm:$0xf]
    %v7727 = vld [vmem:[%s11 + $0x64] sm:$0xf]
    %v7728 = vld [vmem:[%s11 + $0x68] sm:$0xf]
    %v7729 = vld [vmem:[%s11 + $0x6c] sm:$0xf]
    %v7730 = vld [vmem:[%s11 + $0x70] sm:$0xf]
    %v7731 = vld [vmem:[%s11 + $0x74] sm:$0xf]
    %v7732 = vld [vmem:[%s11 + $0x78] sm:$0xf]
    %v7733 = vld [vmem:[%s11 + $0x7c] sm:$0xf]
    %v7734 = vld [vmem:[%s12] sm:$0x1]
    %v7736 = vperm.slane %v7734, 0
    %v7770 = vunpack.c.l.b16 %v7702
    %v7771 = vunpack.c.l.b16 %v7703
    %v7772 = vunpack.c.l.b16 %v7704
    %v7773 = vunpack.c.l.b16 %v7705
    %v7774 = vunpack.c.l.b16 %v7706
    %v7775 = vunpack.c.l.b16 %v7707
    %v7776 = vunpack.c.l.b16 %v7708
    %v7777 = vunpack.c.l.b16 %v7709
    %v7778 = vunpack.c.l.b16 %v7710
    %v7779 = vunpack.c.l.b16 %v7711
    %v7780 = vunpack.c.l.b16 %v7712
    %v7781 = vunpack.c.l.b16 %v7713
    %v7782 = vunpack.c.l.b16 %v7714
    %v7783 = vunpack.c.l.b16 %v7715
    %v7784 = vunpack.c.l.b16 %v7716
    %v7785 = vunpack.c.l.b16 %v7717
    %v7786 = vunpack.c.l.b16 %v7718
    %v7787 = vunpack.c.l.b16 %v7719
    %v7788 = vunpack.c.l.b16 %v7720
    %v7789 = vunpack.c.l.b16 %v7721
    %v7790 = vunpack.c.l.b16 %v7722
    %v7791 = vunpack.c.l.b16 %v7723
    %v7792 = vunpack.c.l.b16 %v7724
    %v7793 = vunpack.c.l.b16 %v7725
    %v7794 = vunpack.c.l.b16 %v7726
    %v7795 = vunpack.c.l.b16 %v7727
    %v7796 = vunpack.c.l.b16 %v7728
    %v7797 = vunpack.c.l.b16 %v7729
    %v7798 = vunpack.c.l.b16 %v7730
    %v7799 = vunpack.c.l.b16 %v7731
    %v7800 = vunpack.c.l.b16 %v7732
    %v7801 = vunpack.c.l.b16 %v7733
    %v7802 = vpack.c.b16 %v7771, %v7770
    %v7803 = vpack.c.b16 %v7773, %v7772
    %v7804 = vpack.c.b16 %v7775, %v7774
    %v7805 = vpack.c.b16 %v7777, %v7776
    %v7806 = vpack.c.b16 %v7779, %v7778
    %v7807 = vpack.c.b16 %v7781, %v7780
    %v7808 = vpack.c.b16 %v7783, %v7782
    %v7809 = vpack.c.b16 %v7785, %v7784
    %v7810 = vpack.c.b16 %v7787, %v7786
    %v7811 = vpack.c.b16 %v7789, %v7788
    %v7812 = vpack.c.b16 %v7791, %v7790
    %v7813 = vpack.c.b16 %v7793, %v7792
    %v7814 = vpack.c.b16 %v7795, %v7794
    %v7815 = vpack.c.b16 %v7797, %v7796
    %v7816 = vpack.c.b16 %v7799, %v7798
    %v7817 = vpack.c.b16 %v7801, %v7800
    %7834 = vmatpush.bf16.msra.mxu0 %v7809
    %7835 = vmatpush.bf16.msra.mxu0 %v7808
    %7836 = vmatpush.bf16.msra.mxu0 %v7807
    %7837 = vmatpush.bf16.msra.mxu0 %v7806
    %7838 = vmatpush.bf16.msra.mxu0 %v7805
    %7839 = vmatpush.bf16.msra.mxu0 %v7804
    %7840 = vmatpush.bf16.msra.mxu0 %v7803
    %7841 = vmatpush.bf16.msra.mxu0 %v7802
    %7842 = vmatmul.bf16.gmra.mxu0 %v7700
    %v7843 = vpop.f32.mrf.mxu0
    %v7844 = vadd.f32 %v7736, %v7843
    %v7845 = vpop.f32.mrf.mxu0
    %7846 = vdwg.mxu0
    %7847 = vmatpush.bf16.msra.mxu0 %v7817
    %7848 = vmatpush.bf16.msra.mxu0 %v7816
    %7849 = vmatpush.bf16.msra.mxu0 %v7815
    %7850 = vmatpush.bf16.msra.mxu0 %v7814
    %7851 = vmatpush.bf16.msra.mxu0 %v7813
    %7852 = vmatpush.bf16.msra.mxu0 %v7812
    %7853 = vmatpush.bf16.msra.mxu0 %v7811
    %7854 = vmatpush.bf16.msra.mxu0 %v7810
    %7855 = vmatmul.bf16.gmra.mxu0 %v7701
    %v7856 = vpop.f32.mrf.mxu0
    %v7857 = vadd.f32 %v7844, %v7856
    %v7858 = vpop.f32.mrf.mxu0
    %7859 = vdwg.mxu0
    %vm7860 = vcmp.ge.f32.partialorder %v7857, 0.0
    %v7861 = vmul.f32 %v7857, 0.01
    %v7862 = vsel %vm7860, %v7857, %v7861
    %v7863 = vpack.c.bf16 %v7862, %v7862
    %v7864 = vld [vmem:[%s13] sm:$0xf]
    %v7865 = vld [vmem:[%s13 + $0x4] sm:$0xf]
    %v7866 = vld [vmem:[%s13 + $0x8] sm:$0xf]
    %v7867 = vld [vmem:[%s13 + $0xc] sm:$0xf]
    %v7868 = vld [vmem:[%s13 + $0x10] sm:$0xf]
    %v7869 = vld [vmem:[%s13 + $0x14] sm:$0xf]
    %v7870 = vld [vmem:[%s13 + $0x18] sm:$0xf]
    %v7871 = vld [vmem:[%s13 + $0x1c] sm:$0xf]
    %v7872 = vld [vmem:[%s13 + $0x20] sm:$0xf]
    %v7873 = vld [vmem:[%s13 + $0x24] sm:$0xf]
    %v7874 = vld [vmem:[%s13 + $0x28] sm:$0xf]
    %v7875 = vld [vmem:[%s13 + $0x2c] sm:$0xf]
    %v7876 = vld [vmem:[%s13 + $0x30] sm:$0xf]
    %v7877 = vld [vmem:[%s13 + $0x34] sm:$0xf]
    %v7878 = vld [vmem:[%s13 + $0x38] sm:$0xf]
    %v7879 = vld [vmem:[%s13 + $0x3c] sm:$0xf]
    %v7880 = vld [vmem:[%s14] sm:$0x1]
    %v7882 = vperm.slane %v7880, 0
    %v7900 = vunpack.c.l.b16 %v7864
    %v7901 = vunpack.c.l.b16 %v7865
    %v7902 = vunpack.c.l.b16 %v7866
    %v7903 = vunpack.c.l.b16 %v7867
    %v7904 = vunpack.c.l.b16 %v7868
    %v7905 = vunpack.c.l.b16 %v7869
    %v7906 = vunpack.c.l.b16 %v7870
    %v7907 = vunpack.c.l.b16 %v7871
    %v7908 = vunpack.c.l.b16 %v7872
    %v7909 = vunpack.c.l.b16 %v7873
    %v7910 = vunpack.c.l.b16 %v7874
    %v7911 = vunpack.c.l.b16 %v7875
    %v7912 = vunpack.c.l.b16 %v7876
    %v7913 = vunpack.c.l.b16 %v7877
    %v7914 = vunpack.c.l.b16 %v7878
    %v7915 = vunpack.c.l.b16 %v7879
    %v7916 = vpack.c.b16 %v7901, %v7900
    %v7917 = vpack.c.b16 %v7903, %v7902
    %v7918 = vpack.c.b16 %v7905, %v7904
    %v7919 = vpack.c.b16 %v7907, %v7906
    %v7920 = vpack.c.b16 %v7909, %v7908
    %v7921 = vpack.c.b16 %v7911, %v7910
    %v7922 = vpack.c.b16 %v7913, %v7912
    %v7923 = vpack.c.b16 %v7915, %v7914
    %7932 = vmatpush.bf16.msra.mxu0 %v7923
    %7933 = vmatpush.bf16.msra.mxu0 %v7922
    %7934 = vmatpush.bf16.msra.mxu0 %v7921
    %7935 = vmatpush.bf16.msra.mxu0 %v7920
    %7936 = vmatpush.bf16.msra.mxu0 %v7919
    %7937 = vmatpush.bf16.msra.mxu0 %v7918
    %7938 = vmatpush.bf16.msra.mxu0 %v7917
    %7939 = vmatpush.bf16.msra.mxu0 %v7916
    %7940 = vmatmul.bf16.gmra.mxu0 %v7863
    %v7941 = vpop.f32.mrf.mxu0
    %v7942 = vadd.f32 %v7882, %v7941
    %v7943 = vpop.f32.mrf.mxu0
    %7944 = vdwg.mxu0
    %7945 = vst [vmem:[#allocation6] sm:$0x3] %v7942
    // Predicated region
    $region62: #{cnn_forward.1} parent=1 // pred_check
      _
    $region63: #{cnn_forward.1} parent=1 // pred_check_branch
      %7947 = sbr.rel (0) target = $region65
    $region64: #{cnn_forward.1} parent=1 // pred_region
      %7949 = vsyncadd [#allocation7], 0
      %s7951 = sshll.u32 [#allocation6], 4
      %s7952 = int_to_ptr.vmem [resolvable:$true] %s7951
      %s7953 = sshll.u32 %s15, 4
      %s7954 = int_to_ptr.hbm [resolvable:$true] %s7953
      %7956 = dma.vmem_to_hbm [thread:$0]  %s7952, 32, %s7954, [#allocation7]
    $region65: #{cnn_forward.1} parent=1 // pred_fallthru
      _
    // Predicated region
    $region66: #{cnn_forward.1} parent=1 // pred_check
      _
    $region67: #{cnn_forward.1} parent=1 // pred_check_branch
      %7958 = sbr.rel (0) target = $region69
    $region68: #{cnn_forward.1} parent=1 // pred_region
      %7960 = dma.done [#allocation7], 32
    $region69: #{cnn_forward.1} parent=1 // pred_fallthru
      _
    %7961 = vsyncpa [#allocation7], 1

</llo_original>
